<compile_context>
chip_gen: v7x
topology: tpu7x:2x2x1
jax: 0.10.0
libtpu: 0.0.40
codegen_flags: <defaults>
</compile_context>

<pallas_src>
import functools

import jax
import jax.numpy as jnp
from jax import lax
from jax.experimental import pallas as pl
from jax.experimental.pallas import tpu as pltpu
from jax.flatten_util import ravel_pytree

MOMENTUM = 0.999
TEMP = 0.07
VMEM_LIMIT = 32 * 1024 * 1024


# ----------------------------------------------------------------------------
# Kernel 1: 3x3 same-conv (as 9 shifted matmuls) + bias + ReLU + global avg pool
# Grid: (N,) "parallel"; one image per step; no HBM im2col.
# ----------------------------------------------------------------------------
def _conv_gap_kernel(x_ref, w_ref, b_ref, o_ref, acc_ref, *, H, W, Wp):
    MP = H * Wp                                    # padded-width row-major positions
    acc_ref[...] = jnp.zeros_like(acc_ref)
    x = x_ref[0]                                   # (C, SP) bf16, flattened padded img
    for kh in range(3):
        for kw in range(3):
            t = kh * 3 + kw
            off = kh * Wp + kw
            a = x[:, off:off + MP]                 # (C, MP) shifted window view
            acc_ref[...] += lax.dot_general(       # (MP, D) f32 accumulation
                a, w_ref[t],
                dimension_numbers=(((0,), (0,)), ((), ())),
                preferred_element_type=jnp.float32)
    feat = jnp.maximum(acc_ref[...] + b_ref[...], 0.0)          # bias + ReLU
    row = lax.broadcasted_iota(jnp.int32, (MP, 1), 0)
    feat = jnp.where((row % Wp) < W, feat, 0.0)                 # drop padded columns
    gap = jnp.sum(feat, axis=0, keepdims=True) * (1.0 / (H * W))
    o_ref[...] = gap.reshape(1, 1, -1)


def conv_relu_gap(x, conv_w, conv_b):
    # x: (N, C, H, W) f32; conv_w: (D, C, 3, 3); conv_b: (D,)
    N, C, H, W = x.shape
    D = conv_w.shape[0]
    Hp, Wp = H + 2, W + 2
    # pad 1 each side (+1 extra bottom row so every shifted slice stays in bounds)
    xp = jnp.pad(x, ((0, 0), (0, 0), (1, 2), (1, 1)))
    SP = (Hp + 1) * Wp
    xp = xp.reshape(N, C, SP).astype(jnp.bfloat16)
    # per-tap weights: w_taps[kh*3+kw, c, d] = conv_w[d, c, kh, kw]
    w_taps = conv_w.transpose(2, 3, 1, 0).reshape(9, C, D).astype(jnp.bfloat16)
    b2d = conv_b.reshape(1, D).astype(jnp.float32)
    MP = H * Wp
    kernel = functools.partial(_conv_gap_kernel, H=H, W=W, Wp=Wp)
    out = pl.pallas_call(
        kernel,
        out_shape=jax.ShapeDtypeStruct((N, 1, D), jnp.float32),
        grid=(N,),
        in_specs=[pl.BlockSpec((1, C, SP), lambda n: (n, 0, 0)),
                  pl.BlockSpec((9, C, D), lambda n: (0, 0, 0)),   # resident
                  pl.BlockSpec((1, D), lambda n: (0, 0))],
        out_specs=pl.BlockSpec((1, 1, D), lambda n: (n, 0, 0)),
        scratch_shapes=[pltpu.VMEM((MP, D), jnp.float32)],
        compiler_params=pltpu.CompilerParams(
            dimension_semantics=("parallel",), vmem_limit_bytes=VMEM_LIMIT),
    )(xp, w_taps, b2d)
    return out.reshape(N, D)


# ----------------------------------------------------------------------------
# Kernel 2: MLP head (Linear -> ReLU -> Linear) fused with F.normalize(dim=1)
# Grid over batch rows; weights stay resident (constant index_map).
# ----------------------------------------------------------------------------
def _head_kernel(x_ref, w1_ref, b1_ref, w2_ref, b2_ref, o_ref):
    h = jnp.dot(x_ref[...], w1_ref[...],
                preferred_element_type=jnp.float32) + b1_ref[...]
    h = jnp.maximum(h, 0.0).astype(jnp.bfloat16)
    y = jnp.dot(h, w2_ref[...],
                preferred_element_type=jnp.float32) + b2_ref[...]
    nrm = jnp.sqrt(jnp.sum(y * y, axis=1, keepdims=True))
    o_ref[...] = y / jnp.maximum(nrm, 1e-12)                    # F.normalize eps


def mlp_head_normalize(x, fc1_w, fc1_b, fc2_w, fc2_b):
    N, dm = x.shape
    dim = fc2_w.shape[0]
    xb = x.astype(jnp.bfloat16)
    w1 = fc1_w.T.astype(jnp.bfloat16)
    b1 = fc1_b.reshape(1, -1).astype(jnp.float32)
    w2 = fc2_w.T.astype(jnp.bfloat16)
    b2 = fc2_b.reshape(1, -1).astype(jnp.float32)
    tn = 128 if N % 128 == 0 else N
    return pl.pallas_call(
        _head_kernel,
        out_shape=jax.ShapeDtypeStruct((N, dim), jnp.float32),
        grid=(N // tn,),
        in_specs=[pl.BlockSpec((tn, dm), lambda i: (i, 0)),
                  pl.BlockSpec((dm, dm), lambda i: (0, 0)),
                  pl.BlockSpec((1, dm), lambda i: (0, 0)),
                  pl.BlockSpec((dm, dim), lambda i: (0, 0)),
                  pl.BlockSpec((1, dim), lambda i: (0, 0))],
        out_specs=pl.BlockSpec((tn, dim), lambda i: (i, 0)),
        compiler_params=pltpu.CompilerParams(
            dimension_semantics=("parallel",), vmem_limit_bytes=VMEM_LIMIT),
    )(xb, w1, b1, w2, b2)


# ----------------------------------------------------------------------------
# Kernel 3a: l_pos = sum(q*k, -1) / T   (lane-dense (N,128) output, col 0 used)
# ----------------------------------------------------------------------------
def _lpos_kernel(q_ref, k_ref, o_ref):
    s = jnp.sum(q_ref[...] * k_ref[...], axis=1, keepdims=True) * (1.0 / TEMP)
    o_ref[...] = jnp.broadcast_to(s, o_ref.shape)


def l_pos_logits(q, k):
    N, d = q.shape
    out = pl.pallas_call(
        _lpos_kernel,
        out_shape=jax.ShapeDtypeStruct((N, 128), jnp.float32),
        in_specs=[pl.BlockSpec((N, d), lambda: (0, 0)),
                  pl.BlockSpec((N, d), lambda: (0, 0))],
        out_specs=pl.BlockSpec((N, 128), lambda: (0, 0)),
    )(q, k)
    return out[:, :1]


# ----------------------------------------------------------------------------
# Kernel 3b: l_neg = q @ queue^T / T, tiled over (N, K); queue stored (K, dim).
# ----------------------------------------------------------------------------
def _lneg_kernel(q_ref, qt_ref, o_ref):
    # q: (tn, dim) bf16; queue tile: (tk, dim) -> cast to bf16 for the MXU.
    # (Queue buffer itself stays f32 to preserve the PyTorch buffer semantics.)
    qt = qt_ref[...].astype(jnp.bfloat16)
    s = lax.dot_general(q_ref[...], qt,
                        dimension_numbers=(((1,), (1,)), ((), ())),
                        preferred_element_type=jnp.float32)      # (tn, tk)
    o_ref[...] = s * (1.0 / TEMP)


def l_neg_logits(q, queue_state, tk=256):
    N, d = q.shape
    Kq = queue_state.shape[0]
    tn = 128 if N % 128 == 0 else N
    tk = tk if Kq % tk == 0 else Kq
    cost = pl.CostEstimate(flops=2 * N * d * Kq, transcendentals=0,
                           bytes_accessed=N * d * 2 + Kq * d * 4 + N * Kq * 4)
    return pl.pallas_call(
        _lneg_kernel,
        out_shape=jax.ShapeDtypeStruct((N, Kq), jnp.float32),
        grid=(N // tn, Kq // tk),
        in_specs=[pl.BlockSpec((tn, d), lambda i, j: (i, 0)),
                  pl.BlockSpec((tk, d), lambda i, j: (j, 0))],
        out_specs=pl.BlockSpec((tn, tk), lambda i, j: (i, j)),
        compiler_params=pltpu.CompilerParams(
            dimension_semantics=("parallel", "parallel"),
            vmem_limit_bytes=VMEM_LIMIT),
        cost_estimate=cost,
    )(q.astype(jnp.bfloat16), queue_state)


# ----------------------------------------------------------------------------
# Kernel 4: momentum (EMA) update, single pass over all params as (rows, 128)
# ----------------------------------------------------------------------------
def _ema_kernel(pq_ref, pk_ref, o_ref):
    o_ref[...] = pk_ref[...] * MOMENTUM + pq_ref[...] * (1.0 - MOMENTUM)


def ema_update(params_q, params_k):
    flat_q, _ = ravel_pytree(params_q)
    flat_k, unravel = ravel_pytree(params_k)
    n = flat_q.shape[0]
    TR = 128
    chunk = TR * 128
    rows = pl.cdiv(n, chunk) * TR
    pad = rows * 128 - n
    pq = jnp.pad(flat_q, (0, pad)).reshape(rows, 128)
    pk = jnp.pad(flat_k, (0, pad)).reshape(rows, 128)
    out = pl.pallas_call(
        _ema_kernel,
        out_shape=jax.ShapeDtypeStruct((rows, 128), jnp.float32),
        grid=(rows // TR,),
        in_specs=[pl.BlockSpec((TR, 128), lambda i: (i, 0)),
                  pl.BlockSpec((TR, 128), lambda i: (i, 0))],
        out_specs=pl.BlockSpec((TR, 128), lambda i: (i, 0)),
        compiler_params=pltpu.CompilerParams(dimension_semantics=("parallel",)),
    )(pq, pk)
    return unravel(out.reshape(-1)[:n])


# ----------------------------------------------------------------------------
# Kernel 5: in-place dequeue/enqueue -- write k into queue rows [ptr, ptr+N)
# via DMA into the aliased HBM queue buffer (no full-queue copy).
# ----------------------------------------------------------------------------
def _enqueue_kernel(ptr_ref, k_ref, qin_ref, qout_ref):
    del qin_ref                                   # aliased to qout_ref (same HBM buffer)
    n = k_ref.shape[0]
    pltpu.sync_copy(k_ref, qout_ref.at[pl.ds(ptr_ref[0], n), :])


def enqueue(queue_state, k, queue_ptr):
    Kq, d = queue_state.shape
    n = k.shape[0]
    assert Kq % n == 0  # PyTorch MoCo's implicit assumption (no ptr wrap mid-batch)
    return pl.pallas_call(
        _enqueue_kernel,
        out_shape=jax.ShapeDtypeStruct((Kq, d), queue_state.dtype),
        in_specs=[pl.BlockSpec(memory_space=pltpu.MemorySpace.SMEM),
                  pl.BlockSpec((n, d), lambda: (0, 0)),
                  pl.BlockSpec(memory_space=pl.ANY)],
        out_specs=pl.BlockSpec(memory_space=pl.ANY),
        input_output_aliases={2: 0},
        compiler_params=pltpu.CompilerParams(has_side_effects=True),
    )(queue_ptr.astype(jnp.int32), k, queue_state)


# ----------------------------------------------------------------------------
# Encoder + MoCo forward (glue)
# ----------------------------------------------------------------------------
def encoder_forward(params, im):
    feat = conv_relu_gap(im, params['conv_w'], params['conv_b'])
    return mlp_head_normalize(feat, params['fc1_w'], params['fc1_b'],
                              params['fc2_w'], params['fc2_b'])


def moco_forward(params_q, params_k, queue_state, queue_ptr, im_q, im_k):
    # queue_state is stored transposed, (K, dim), relative to PyTorch's (dim, K).
    q = encoder_forward(params_q, im_q)                         # L2-normalized
    new_params_k = ema_update(params_q, params_k)               # momentum update
    k = jax.lax.stop_gradient(encoder_forward(new_params_k, im_k))
    l_pos = l_pos_logits(q, k)                                  # (N, 1), already / T
    l_neg = l_neg_logits(q, queue_state)                        # (N, K), already / T
    logits = jnp.concatenate([l_pos, l_neg], axis=1)            # lane-dense concat in XLA
    labels = jnp.zeros((q.shape[0],), jnp.int32)                # torch.long -> int32
    new_queue = enqueue(queue_state, k, queue_ptr)              # in-place column update
    new_ptr = jnp.mod(queue_ptr + k.shape[0], queue_state.shape[0])
    return logits, labels, new_params_k, new_queue, new_ptr


def init_params(key, c_in, dim_mlp, dim):
    ks = jax.random.split(key, 3)
    scale = 0.05
    return {
        'conv_w': scale * jax.random.normal(ks[0], (dim_mlp, c_in, 3, 3), jnp.float32),
        'conv_b': jnp.zeros((dim_mlp,), jnp.float32),
        'fc1_w': scale * jax.random.normal(ks[1], (dim_mlp, dim_mlp), jnp.float32),
        'fc1_b': jnp.zeros((dim_mlp,), jnp.float32),
        'fc2_w': scale * jax.random.normal(ks[2], (dim, dim_mlp), jnp.float32),
        'fc2_b': jnp.zeros((dim,), jnp.float32),
    }


if __name__ == "__main__":
    key = jax.random.PRNGKey(0)
    k_init, k_queue, k_imq, k_imk = jax.random.split(key, 4)

    # Small shapes consistent with the module (dim=128 as in MoCo; dim_mlp=256
    # stands in for 2048; K=1024 stands in for 65536).
    N, C, H, W = 8, 3, 16, 16
    dim, dim_mlp, K = 128, 256, 1024
    assert K % N == 0

    params_q = init_params(k_init, c_in=C, dim_mlp=dim_mlp, dim=dim)
    params_k = jax.tree_util.tree_map(jnp.array, params_q)     # param_k <- param_q

    queue = jax.random.normal(k_queue, (dim, K), jnp.float32)
    queue = queue / jnp.maximum(jnp.linalg.norm(queue, axis=0, keepdims=True), 1e-12)
    queue_state = queue.T                                       # stored (K, dim)
    queue_ptr = jnp.zeros((1,), jnp.int32)

    im_q = jax.random.normal(k_imq, (N, C, H, W), jnp.float32)
    im_k = jax.random.normal(k_imk, (N, C, H, W), jnp.float32)

    moco_step = jax.jit(moco_forward, donate_argnums=(2,))      # donate queue for in-place
    logits, labels, params_k, queue_state, queue_ptr = moco_step(
        params_q, params_k, queue_state, queue_ptr, im_q, im_k)
    jax.block_until_ready((logits, labels, queue_state, queue_ptr))

    assert logits.shape == (N, 1 + K) and logits.dtype == jnp.float32
    assert labels.shape == (N,)
    assert bool(jnp.all(jnp.isfinite(logits)))
    print("KERNEL_OK")
</pallas_src>

<mosaic_0001>
module attributes {stable_mosaic.version = 11 : i64} {
  func.func @_ema_kernel(%arg0: i32, %arg1: memref<128x128xf32, #tpu.memory_space<vmem>>, %arg2: memref<128x128xf32, #tpu.memory_space<vmem>>, %arg3: memref<128x128xf32, #tpu.memory_space<vmem>>) attributes {dimension_semantics = [#tpu.dimension_semantics<parallel>], iteration_bounds = array<i64: 7>, scalar_prefetch = 0 : i64, scratch_operands = 0 : i64, tpu.core_type = #tpu.core_type<tc>, window_params = [{transform_indices = @transform_0, window_bounds = array<i64: 128, 128>}, {transform_indices = @transform_1, window_bounds = array<i64: 128, 128>}, {transform_indices = @transform_2, window_bounds = array<i64: 128, 128>}]} {
    %c0 = arith.constant 0 : index
    %c0_0 = arith.constant 0 : index
    %0 = vector.load %arg2[%c0, %c0_0] : memref<128x128xf32, #tpu.memory_space<vmem>>, vector<128x128xf32>
    %cst = arith.constant 9.990000e-01 : f32
    %1 = vector.broadcast %cst : f32 to vector<128x128xf32>
    %2 = arith.mulf %0, %1 : vector<128x128xf32>
    %c0_1 = arith.constant 0 : index
    %c0_2 = arith.constant 0 : index
    %3 = vector.load %arg1[%c0_1, %c0_2] : memref<128x128xf32, #tpu.memory_space<vmem>>, vector<128x128xf32>
    %cst_3 = arith.constant 1.000000e-03 : f32
    %4 = vector.broadcast %cst_3 : f32 to vector<128x128xf32>
    %5 = arith.mulf %3, %4 : vector<128x128xf32>
    %6 = arith.addf %2, %5 : vector<128x128xf32>
    %c0_4 = arith.constant 0 : index
    %c0_5 = arith.constant 0 : index
    %7 = vector.load %arg3[%c0_4, %c0_5] : memref<128x128xf32, #tpu.memory_space<vmem>>, vector<128x128xf32>
    tpu.vector_store %arg3[%c0_4, %c0_5], %6 {strides = array<i32>} : memref<128x128xf32, #tpu.memory_space<vmem>>, vector<128x128xf32>,
    return
  }
  func.func @transform_0(%arg0: i32) -> (i32, i32) {
    %c0_i32 = arith.constant 0 : i32
    %c0_i32_0 = arith.constant 0 : i32
    return %arg0, %c0_i32 : i32, i32
  }
  func.func @transform_1(%arg0: i32) -> (i32, i32) {
    %c0_i32 = arith.constant 0 : i32
    %c0_i32_0 = arith.constant 0 : i32
    return %arg0, %c0_i32 : i32, i32
  }
  func.func @transform_2(%arg0: i32) -> (i32, i32) {
    %c0_i32 = arith.constant 0 : i32
    %c0_i32_0 = arith.constant 0 : i32
    return %arg0, %c0_i32 : i32, i32
  }
}

module attributes {stable_mosaic.version = 11 : i64} {
  func.func @_conv_gap_kernel(%arg0: i32, %arg1: memref<1x3x342xbf16, #tpu.memory_space<vmem>>, %arg2: memref<9x3x256xbf16, #tpu.memory_space<vmem>>, %arg3: memref<1x256xf32, #tpu.memory_space<vmem>>, %arg4: memref<1x1x256xf32, #tpu.memory_space<vmem>>, %arg5: memref<288x256xf32, #tpu.memory_space<vmem>>) attributes {dimension_semantics = [#tpu.dimension_semantics<parallel>], iteration_bounds = array<i64: 8>, scalar_prefetch = 0 : i64, scratch_operands = 1 : i64, tpu.core_type = #tpu.core_type<tc>, window_params = [{transform_indices = @transform_0, window_bounds = array<i64: 1, 3, 342>}, {pipeline_mode = #tpu.pipeline_mode<synchronous>, transform_indices = @transform_1, window_bounds = array<i64: 9, 3, 256>}, {pipeline_mode = #tpu.pipeline_mode<synchronous>, transform_indices = @transform_2, window_bounds = array<i64: 1, 256>}, {transform_indices = @transform_3, window_bounds = array<i64: 1, 1, 256>}]} {
    %cst = arith.constant 0.000000e+00 : f32
    %0 = vector.broadcast %cst : f32 to vector<288x256xf32>
    %c0 = arith.constant 0 : index
    %c0_0 = arith.constant 0 : index
    %1 = vector.load %arg5[%c0, %c0_0] : memref<288x256xf32, #tpu.memory_space<vmem>>, vector<288x256xf32>
    tpu.vector_store %arg5[%c0, %c0_0], %0 {strides = array<i32>} : memref<288x256xf32, #tpu.memory_space<vmem>>, vector<288x256xf32>,
    %c0_1 = arith.constant 0 : index
    %c0_2 = arith.constant 0 : index
    %c0_3 = arith.constant 0 : index
    %2 = vector.load %arg1[%c0_1, %c0_2, %c0_3] : memref<1x3x342xbf16, #tpu.memory_space<vmem>>, vector<1x3x342xbf16>
    %3 = vector.shape_cast %2 : vector<1x3x342xbf16> to vector<3x342xbf16>
    %4 = vector.extract_strided_slice %3 {offsets = [0, 0], sizes = [3, 288], strides = [1, 1]} : vector<3x342xbf16> to vector<3x288xbf16>
    %c0_4 = arith.constant 0 : index
    %c0_5 = arith.constant 0 : index
    %5 = vector.load %arg5[%c0_4, %c0_5] : memref<288x256xf32, #tpu.memory_space<vmem>>, vector<288x256xf32>
    %c0_6 = arith.constant 0 : index
    %c0_7 = arith.constant 0 : index
    %c0_8 = arith.constant 0 : index
    %6 = vector.load %arg2[%c0_6, %c0_7, %c0_8] : memref<9x3x256xbf16, #tpu.memory_space<vmem>>, vector<1x3x256xbf16>
    %7 = vector.shape_cast %6 : vector<1x3x256xbf16> to vector<3x256xbf16>
    %cst_9 = arith.constant dense<0.000000e+00> : vector<288x256xf32>
    %8 = tpu.matmul %4, %7, %cst_9 {dimension_numbers = #tpu.dot_dimension_numbers<[0], [0], [1], [1], [0, 1, 1, 1], [], []>} : vector<3x288xbf16>, vector<3x256xbf16>, vector<288x256xf32> -> vector<288x256xf32>
    %9 = arith.addf %5, %8 : vector<288x256xf32>
    %c0_10 = arith.constant 0 : index
    %c0_11 = arith.constant 0 : index
    %10 = vector.load %arg5[%c0_10, %c0_11] : memref<288x256xf32, #tpu.memory_space<vmem>>, vector<288x256xf32>
    tpu.vector_store %arg5[%c0_10, %c0_11], %9 {strides = array<i32>} : memref<288x256xf32, #tpu.memory_space<vmem>>, vector<288x256xf32>,
    %11 = vector.extract_strided_slice %3 {offsets = [0, 1], sizes = [3, 288], strides = [1, 1]} : vector<3x342xbf16> to vector<3x288xbf16>
    %c0_12 = arith.constant 0 : index
    %c0_13 = arith.constant 0 : index
    %12 = vector.load %arg5[%c0_12, %c0_13] : memref<288x256xf32, #tpu.memory_space<vmem>>, vector<288x256xf32>
    %c1 = arith.constant 1 : index
    %c0_14 = arith.constant 0 : index
    %c0_15 = arith.constant 0 : index
    %13 = vector.load %arg2[%c1, %c0_14, %c0_15] : memref<9x3x256xbf16, #tpu.memory_space<vmem>>, vector<1x3x256xbf16>
    %14 = vector.shape_cast %13 : vector<1x3x256xbf16> to vector<3x256xbf16>
    %cst_16 = arith.constant dense<0.000000e+00> : vector<288x256xf32>
    %15 = tpu.matmul %11, %14, %cst_16 {dimension_numbers = #tpu.dot_dimension_numbers<[0], [0], [1], [1], [0, 1, 1, 1], [], []>} : vector<3x288xbf16>, vector<3x256xbf16>, vector<288x256xf32> -> vector<288x256xf32>
    %16 = arith.addf %12, %15 : vector<288x256xf32>
    %c0_17 = arith.constant 0 : index
    %c0_18 = arith.constant 0 : index
    %17 = vector.load %arg5[%c0_17, %c0_18] : memref<288x256xf32, #tpu.memory_space<vmem>>, vector<288x256xf32>
    tpu.vector_store %arg5[%c0_17, %c0_18], %16 {strides = array<i32>} : memref<288x256xf32, #tpu.memory_space<vmem>>, vector<288x256xf32>,
    %18 = vector.extract_strided_slice %3 {offsets = [0, 2], sizes = [3, 288], strides = [1, 1]} : vector<3x342xbf16> to vector<3x288xbf16>
    %c0_19 = arith.constant 0 : index
    %c0_20 = arith.constant 0 : index
    %19 = vector.load %arg5[%c0_19, %c0_20] : memref<288x256xf32, #tpu.memory_space<vmem>>, vector<288x256xf32>
    %c2 = arith.constant 2 : index
    %c0_21 = arith.constant 0 : index
    %c0_22 = arith.constant 0 : index
    %20 = vector.load %arg2[%c2, %c0_21, %c0_22] : memref<9x3x256xbf16, #tpu.memory_space<vmem>>, vector<1x3x256xbf16>
    %21 = vector.shape_cast %20 : vector<1x3x256xbf16> to vector<3x256xbf16>
    %cst_23 = arith.constant dense<0.000000e+00> : vector<288x256xf32>
    %22 = tpu.matmul %18, %21, %cst_23 {dimension_numbers = #tpu.dot_dimension_numbers<[0], [0], [1], [1], [0, 1, 1, 1], [], []>} : vector<3x288xbf16>, vector<3x256xbf16>, vector<288x256xf32> -> vector<288x256xf32>
    %23 = arith.addf %19, %22 : vector<288x256xf32>
    %c0_24 = arith.constant 0 : index
    %c0_25 = arith.constant 0 : index
    %24 = vector.load %arg5[%c0_24, %c0_25] : memref<288x256xf32, #tpu.memory_space<vmem>>, vector<288x256xf32>
    tpu.vector_store %arg5[%c0_24, %c0_25], %23 {strides = array<i32>} : memref<288x256xf32, #tpu.memory_space<vmem>>, vector<288x256xf32>,
    %25 = vector.extract_strided_slice %3 {offsets = [0, 18], sizes = [3, 288], strides = [1, 1]} : vector<3x342xbf16> to vector<3x288xbf16>
    %c0_26 = arith.constant 0 : index
    %c0_27 = arith.constant 0 : index
    %26 = vector.load %arg5[%c0_26, %c0_27] : memref<288x256xf32, #tpu.memory_space<vmem>>, vector<288x256xf32>
    %c3 = arith.constant 3 : index
    %c0_28 = arith.constant 0 : index
    %c0_29 = arith.constant 0 : index
    %27 = vector.load %arg2[%c3, %c0_28, %c0_29] : memref<9x3x256xbf16, #tpu.memory_space<vmem>>, vector<1x3x256xbf16>
    %28 = vector.shape_cast %27 : vector<1x3x256xbf16> to vector<3x256xbf16>
    %cst_30 = arith.constant dense<0.000000e+00> : vector<288x256xf32>
    %29 = tpu.matmul %25, %28, %cst_30 {dimension_numbers = #tpu.dot_dimension_numbers<[0], [0], [1], [1], [0, 1, 1, 1], [], []>} : vector<3x288xbf16>, vector<3x256xbf16>, vector<288x256xf32> -> vector<288x256xf32>
    %30 = arith.addf %26, %29 : vector<288x256xf32>
    %c0_31 = arith.constant 0 : index
    %c0_32 = arith.constant 0 : index
    %31 = vector.load %arg5[%c0_31, %c0_32] : memref<288x256xf32, #tpu.memory_space<vmem>>, vector<288x256xf32>
    tpu.vector_store %arg5[%c0_31, %c0_32], %30 {strides = array<i32>} : memref<288x256xf32, #tpu.memory_space<vmem>>, vector<288x256xf32>,
    %32 = vector.extract_strided_slice %3 {offsets = [0, 19], sizes = [3, 288], strides = [1, 1]} : vector<3x342xbf16> to vector<3x288xbf16>
    %c0_33 = arith.constant 0 : index
    %c0_34 = arith.constant 0 : index
    %33 = vector.load %arg5[%c0_33, %c0_34] : memref<288x256xf32, #tpu.memory_space<vmem>>, vector<288x256xf32>
    %c4 = arith.constant 4 : index
    %c0_35 = arith.constant 0 : index
    %c0_36 = arith.constant 0 : index
    %34 = vector.load %arg2[%c4, %c0_35, %c0_36] : memref<9x3x256xbf16, #tpu.memory_space<vmem>>, vector<1x3x256xbf16>
    %35 = vector.shape_cast %34 : vector<1x3x256xbf16> to vector<3x256xbf16>
    %cst_37 = arith.constant dense<0.000000e+00> : vector<288x256xf32>
    %36 = tpu.matmul %32, %35, %cst_37 {dimension_numbers = #tpu.dot_dimension_numbers<[0], [0], [1], [1], [0, 1, 1, 1], [], []>} : vector<3x288xbf16>, vector<3x256xbf16>, vector<288x256xf32> -> vector<288x256xf32>
    %37 = arith.addf %33, %36 : vector<288x256xf32>
    %c0_38 = arith.constant 0 : index
    %c0_39 = arith.constant 0 : index
    %38 = vector.load %arg5[%c0_38, %c0_39] : memref<288x256xf32, #tpu.memory_space<vmem>>, vector<288x256xf32>
    tpu.vector_store %arg5[%c0_38, %c0_39], %37 {strides = array<i32>} : memref<288x256xf32, #tpu.memory_space<vmem>>, vector<288x256xf32>,
    %39 = vector.extract_strided_slice %3 {offsets = [0, 20], sizes = [3, 288], strides = [1, 1]} : vector<3x342xbf16> to vector<3x288xbf16>
    %c0_40 = arith.constant 0 : index
    %c0_41 = arith.constant 0 : index
    %40 = vector.load %arg5[%c0_40, %c0_41] : memref<288x256xf32, #tpu.memory_space<vmem>>, vector<288x256xf32>
    %c5 = arith.constant 5 : index
    %c0_42 = arith.constant 0 : index
    %c0_43 = arith.constant 0 : index
    %41 = vector.load %arg2[%c5, %c0_42, %c0_43] : memref<9x3x256xbf16, #tpu.memory_space<vmem>>, vector<1x3x256xbf16>
    %42 = vector.shape_cast %41 : vector<1x3x256xbf16> to vector<3x256xbf16>
    %cst_44 = arith.constant dense<0.000000e+00> : vector<288x256xf32>
    %43 = tpu.matmul %39, %42, %cst_44 {dimension_numbers = #tpu.dot_dimension_numbers<[0], [0], [1], [1], [0, 1, 1, 1], [], []>} : vector<3x288xbf16>, vector<3x256xbf16>, vector<288x256xf32> -> vector<288x256xf32>
    %44 = arith.addf %40, %43 : vector<288x256xf32>
    %c0_45 = arith.constant 0 : index
    %c0_46 = arith.constant 0 : index
    %45 = vector.load %arg5[%c0_45, %c0_46] : memref<288x256xf32, #tpu.memory_space<vmem>>, vector<288x256xf32>
    tpu.vector_store %arg5[%c0_45, %c0_46], %44 {strides = array<i32>} : memref<288x256xf32, #tpu.memory_space<vmem>>, vector<288x256xf32>,
    %46 = vector.extract_strided_slice %3 {offsets = [0, 36], sizes = [3, 288], strides = [1, 1]} : vector<3x342xbf16> to vector<3x288xbf16>
    %c0_47 = arith.constant 0 : index
    %c0_48 = arith.constant 0 : index
    %47 = vector.load %arg5[%c0_47, %c0_48] : memref<288x256xf32, #tpu.memory_space<vmem>>, vector<288x256xf32>
    %c6 = arith.constant 6 : index
    %c0_49 = arith.constant 0 : index
    %c0_50 = arith.constant 0 : index
    %48 = vector.load %arg2[%c6, %c0_49, %c0_50] : memref<9x3x256xbf16, #tpu.memory_space<vmem>>, vector<1x3x256xbf16>
    %49 = vector.shape_cast %48 : vector<1x3x256xbf16> to vector<3x256xbf16>
    %cst_51 = arith.constant dense<0.000000e+00> : vector<288x256xf32>
    %50 = tpu.matmul %46, %49, %cst_51 {dimension_numbers = #tpu.dot_dimension_numbers<[0], [0], [1], [1], [0, 1, 1, 1], [], []>} : vector<3x288xbf16>, vector<3x256xbf16>, vector<288x256xf32> -> vector<288x256xf32>
    %51 = arith.addf %47, %50 : vector<288x256xf32>
    %c0_52 = arith.constant 0 : index
    %c0_53 = arith.constant 0 : index
    %52 = vector.load %arg5[%c0_52, %c0_53] : memref<288x256xf32, #tpu.memory_space<vmem>>, vector<288x256xf32>
    tpu.vector_store %arg5[%c0_52, %c0_53], %51 {strides = array<i32>} : memref<288x256xf32, #tpu.memory_space<vmem>>, vector<288x256xf32>,
    %53 = vector.extract_strided_slice %3 {offsets = [0, 37], sizes = [3, 288], strides = [1, 1]} : vector<3x342xbf16> to vector<3x288xbf16>
    %c0_54 = arith.constant 0 : index
    %c0_55 = arith.constant 0 : index
    %54 = vector.load %arg5[%c0_54, %c0_55] : memref<288x256xf32, #tpu.memory_space<vmem>>, vector<288x256xf32>
    %c7 = arith.constant 7 : index
    %c0_56 = arith.constant 0 : index
    %c0_57 = arith.constant 0 : index
    %55 = vector.load %arg2[%c7, %c0_56, %c0_57] : memref<9x3x256xbf16, #tpu.memory_space<vmem>>, vector<1x3x256xbf16>
    %56 = vector.shape_cast %55 : vector<1x3x256xbf16> to vector<3x256xbf16>
    %cst_58 = arith.constant dense<0.000000e+00> : vector<288x256xf32>
    %57 = tpu.matmul %53, %56, %cst_58 {dimension_numbers = #tpu.dot_dimension_numbers<[0], [0], [1], [1], [0, 1, 1, 1], [], []>} : vector<3x288xbf16>, vector<3x256xbf16>, vector<288x256xf32> -> vector<288x256xf32>
    %58 = arith.addf %54, %57 : vector<288x256xf32>
    %c0_59 = arith.constant 0 : index
    %c0_60 = arith.constant 0 : index
    %59 = vector.load %arg5[%c0_59, %c0_60] : memref<288x256xf32, #tpu.memory_space<vmem>>, vector<288x256xf32>
    tpu.vector_store %arg5[%c0_59, %c0_60], %58 {strides = array<i32>} : memref<288x256xf32, #tpu.memory_space<vmem>>, vector<288x256xf32>,
    %60 = vector.extract_strided_slice %3 {offsets = [0, 38], sizes = [3, 288], strides = [1, 1]} : vector<3x342xbf16> to vector<3x288xbf16>
    %c0_61 = arith.constant 0 : index
    %c0_62 = arith.constant 0 : index
    %61 = vector.load %arg5[%c0_61, %c0_62] : memref<288x256xf32, #tpu.memory_space<vmem>>, vector<288x256xf32>
    %c8 = arith.constant 8 : index
    %c0_63 = arith.constant 0 : index
    %c0_64 = arith.constant 0 : index
    %62 = vector.load %arg2[%c8, %c0_63, %c0_64] : memref<9x3x256xbf16, #tpu.memory_space<vmem>>, vector<1x3x256xbf16>
    %63 = vector.shape_cast %62 : vector<1x3x256xbf16> to vector<3x256xbf16>
    %cst_65 = arith.constant dense<0.000000e+00> : vector<288x256xf32>
    %64 = tpu.matmul %60, %63, %cst_65 {dimension_numbers = #tpu.dot_dimension_numbers<[0], [0], [1], [1], [0, 1, 1, 1], [], []>} : vector<3x288xbf16>, vector<3x256xbf16>, vector<288x256xf32> -> vector<288x256xf32>
    %65 = arith.addf %61, %64 : vector<288x256xf32>
    %c0_66 = arith.constant 0 : index
    %c0_67 = arith.constant 0 : index
    %66 = vector.load %arg5[%c0_66, %c0_67] : memref<288x256xf32, #tpu.memory_space<vmem>>, vector<288x256xf32>
    tpu.vector_store %arg5[%c0_66, %c0_67], %65 {strides = array<i32>} : memref<288x256xf32, #tpu.memory_space<vmem>>, vector<288x256xf32>,
    %c0_68 = arith.constant 0 : index
    %c0_69 = arith.constant 0 : index
    %67 = vector.load %arg5[%c0_68, %c0_69] : memref<288x256xf32, #tpu.memory_space<vmem>>, vector<288x256xf32>
    %c0_70 = arith.constant 0 : index
    %c0_71 = arith.constant 0 : index
    %68 = vector.load %arg3[%c0_70, %c0_71] : memref<1x256xf32, #tpu.memory_space<vmem>>, vector<1x256xf32>
    %69 = vector.broadcast %68 : vector<1x256xf32> to vector<288x256xf32>
    %70 = arith.addf %67, %69 : vector<288x256xf32>
    %cst_72 = arith.constant 0.000000e+00 : f32
    %71 = vector.broadcast %cst_72 : f32 to vector<288x256xf32>
    %72 = arith.maximumf %70, %71 : vector<288x256xf32>
    %73 = tpu.iota {dimensions = array<i32: 0>} : vector<288x1xi32>
    %c18_i32 = arith.constant 18 : i32
    %c0_i32 = arith.constant 0 : i32
    %74 = arith.cmpi eq, %c18_i32, %c0_i32 : i32
    %c1_i32 = arith.constant 1 : i32
    %75 = arith.select %74, %c1_i32, %c18_i32 : i32
    %76 = vector.broadcast %75 : i32 to vector<288x1xi32>
    %77 = arith.remsi %73, %76 : vector<288x1xi32>
    %c0_i32_73 = arith.constant 0 : i32
    %78 = vector.broadcast %c0_i32_73 : i32 to vector<288x1xi32>
    %79 = arith.cmpi ne, %77, %78 : vector<288x1xi32>
    %c0_i32_74 = arith.constant 0 : i32
    %80 = vector.broadcast %c0_i32_74 : i32 to vector<288x1xi32>
    %81 = arith.cmpi slt, %77, %80 : vector<288x1xi32>
    %c0_i32_75 = arith.constant 0 : i32
    %82 = arith.cmpi slt, %75, %c0_i32_75 : i32
    %83 = vector.broadcast %82 : i1 to vector<288x1xi1>
    %84 = vector.broadcast %83 : vector<288x1xi1> to vector<288x1xi1>
    %85 = arith.xori %81, %84 : vector<288x1xi1>
    %86 = arith.andi %85, %79 : vector<288x1xi1>
    %87 = vector.broadcast %75 : i32 to vector<288x1xi32>
    %88 = arith.addi %77, %87 : vector<288x1xi32>
    %89 = arith.select %86, %88, %77 : vector<288x1xi1>, vector<288x1xi32>
    %c16_i32 = arith.constant 16 : i32
    %90 = vector.broadcast %c16_i32 : i32 to vector<288x1xi32>
    %91 = arith.cmpi slt, %89, %90 : vector<288x1xi32>
    %cst_76 = arith.constant 0.000000e+00 : f32
    %92 = vector.shape_cast %91 : vector<288x1xi1> to vector<288x1xi1>
    %93 = vector.broadcast %92 : vector<288x1xi1> to vector<288x256xi1>
    %94 = vector.broadcast %cst_76 : f32 to vector<288x256xf32>
    %95 = arith.select %93, %72, %94 : vector<288x256xi1>, vector<288x256xf32>
    %cst_77 = arith.constant dense<0.000000e+00> : vector<256xf32>
    %96 = vector.multi_reduction <add>, %95, %cst_77 [0] : vector<288x256xf32> to vector<256xf32>
    %97 = vector.shape_cast %96 : vector<256xf32> to vector<1x256xf32>
    %cst_78 = arith.constant 3.906250e-03 : f32
    %98 = vector.broadcast %cst_78 : f32 to vector<1x256xf32>
    %99 = arith.mulf %97, %98 : vector<1x256xf32>
    %100 = vector.shape_cast %99 : vector<1x256xf32> to vector<1x1x256xf32>
    %c0_79 = arith.constant 0 : index
    %c0_80 = arith.constant 0 : index
    %c0_81 = arith.constant 0 : index
    %101 = vector.load %arg4[%c0_79, %c0_80, %c0_81] : memref<1x1x256xf32, #tpu.memory_space<vmem>>, vector<1x1x256xf32>
    tpu.vector_store %arg4[%c0_79, %c0_80, %c0_81], %100 {strides = array<i32>} : memref<1x1x256xf32, #tpu.memory_space<vmem>>, vector<1x1x256xf32>,
    return
  }
  func.func @transform_0(%arg0: i32) -> (i32, i32, i32) {
    %c0_i32 = arith.constant 0 : i32
    %c0_i32_0 = arith.constant 0 : i32
    %c0_i32_1 = arith.constant 0 : i32
    return %arg0, %c0_i32, %c0_i32_0 : i32, i32, i32
  }
  func.func @transform_1(%arg0: i32) -> (i32, i32, i32) {
    %c0_i32 = arith.constant 0 : i32
    %c0_i32_0 = arith.constant 0 : i32
    %c0_i32_1 = arith.constant 0 : i32
    %c0_i32_2 = arith.constant 0 : i32
    return %c0_i32, %c0_i32_0, %c0_i32_1 : i32, i32, i32
  }
  func.func @transform_2(%arg0: i32) -> (i32, i32) {
    %c0_i32 = arith.constant 0 : i32
    %c0_i32_0 = arith.constant 0 : i32
    %c0_i32_1 = arith.constant 0 : i32
    return %c0_i32, %c0_i32_0 : i32, i32
  }
  func.func @transform_3(%arg0: i32) -> (i32, i32, i32) {
    %c0_i32 = arith.constant 0 : i32
    %c0_i32_0 = arith.constant 0 : i32
    %c0_i32_1 = arith.constant 0 : i32
    return %arg0, %c0_i32, %c0_i32_0 : i32, i32, i32
  }
}

module attributes {stable_mosaic.version = 11 : i64} {
  func.func @_head_kernel(%arg0: i32, %arg1: memref<8x256xbf16, #tpu.memory_space<vmem>>, %arg2: memref<256x256xbf16, #tpu.memory_space<vmem>>, %arg3: memref<1x256xf32, #tpu.memory_space<vmem>>, %arg4: memref<256x128xbf16, #tpu.memory_space<vmem>>, %arg5: memref<1x128xf32, #tpu.memory_space<vmem>>, %arg6: memref<8x128xf32, #tpu.memory_space<vmem>>) attributes {dimension_semantics = [#tpu.dimension_semantics<parallel>], iteration_bounds = array<i64: 1>, scalar_prefetch = 0 : i64, scratch_operands = 0 : i64, tpu.core_type = #tpu.core_type<tc>, window_params = [{transform_indices = @transform_0, window_bounds = array<i64: 8, 256>}, {pipeline_mode = #tpu.pipeline_mode<synchronous>, transform_indices = @transform_1, window_bounds = array<i64: 256, 256>}, {pipeline_mode = #tpu.pipeline_mode<synchronous>, transform_indices = @transform_2, window_bounds = array<i64: 1, 256>}, {pipeline_mode = #tpu.pipeline_mode<synchronous>, transform_indices = @transform_3, window_bounds = array<i64: 256, 128>}, {pipeline_mode = #tpu.pipeline_mode<synchronous>, transform_indices = @transform_4, window_bounds = array<i64: 1, 128>}, {transform_indices = @transform_5, window_bounds = array<i64: 8, 128>}]} {
    %c0 = arith.constant 0 : index
    %c0_0 = arith.constant 0 : index
    %0 = vector.load %arg1[%c0, %c0_0] : memref<8x256xbf16, #tpu.memory_space<vmem>>, vector<8x256xbf16>
    %c0_1 = arith.constant 0 : index
    %c0_2 = arith.constant 0 : index
    %1 = vector.load %arg2[%c0_1, %c0_2] : memref<256x256xbf16, #tpu.memory_space<vmem>>, vector<256x256xbf16>
    %cst = arith.constant dense<0.000000e+00> : vector<8x256xf32>
    %2 = tpu.matmul %0, %1, %cst {dimension_numbers = #tpu.dot_dimension_numbers<[1], [0], [0], [1], [0, 0, 1, 1], [], []>} : vector<8x256xbf16>, vector<256x256xbf16>, vector<8x256xf32> -> vector<8x256xf32>
    %c0_3 = arith.constant 0 : index
    %c0_4 = arith.constant 0 : index
    %3 = vector.load %arg3[%c0_3, %c0_4] : memref<1x256xf32, #tpu.memory_space<vmem>>, vector<1x256xf32>
    %4 = vector.broadcast %3 : vector<1x256xf32> to vector<8x256xf32>
    %5 = arith.addf %2, %4 : vector<8x256xf32>
    %cst_5 = arith.constant 0.000000e+00 : f32
    %6 = vector.broadcast %cst_5 : f32 to vector<8x256xf32>
    %7 = arith.maximumf %5, %6 : vector<8x256xf32>
    %8 = arith.truncf %7 : vector<8x256xf32> to vector<8x256xbf16>
    %c0_6 = arith.constant 0 : index
    %c0_7 = arith.constant 0 : index
    %9 = vector.load %arg4[%c0_6, %c0_7] : memref<256x128xbf16, #tpu.memory_space<vmem>>, vector<256x128xbf16>
    %cst_8 = arith.constant dense<0.000000e+00> : vector<8x128xf32>
    %10 = tpu.matmul %8, %9, %cst_8 {dimension_numbers = #tpu.dot_dimension_numbers<[1], [0], [0], [1], [0, 0, 1, 1], [], []>} : vector<8x256xbf16>, vector<256x128xbf16>, vector<8x128xf32> -> vector<8x128xf32>
    %c0_9 = arith.constant 0 : index
    %c0_10 = arith.constant 0 : index
    %11 = vector.load %arg5[%c0_9, %c0_10] : memref<1x128xf32, #tpu.memory_space<vmem>>, vector<1x128xf32>
    %12 = vector.broadcast %11 : vector<1x128xf32> to vector<8x128xf32>
    %13 = arith.addf %10, %12 : vector<8x128xf32>
    %14 = arith.mulf %13, %13 : vector<8x128xf32>
    %cst_11 = arith.constant dense<0.000000e+00> : vector<8xf32>
    %15 = vector.multi_reduction <add>, %14, %cst_11 [1] : vector<8x128xf32> to vector<8xf32>
    %16 = vector.shape_cast %15 : vector<8xf32> to vector<8x1xf32>
    %17 = math.sqrt %16 : vector<8x1xf32>
    %cst_12 = arith.constant 9.99999996E-13 : f32
    %18 = vector.broadcast %cst_12 : f32 to vector<8x1xf32>
    %19 = arith.maximumf %17, %18 : vector<8x1xf32>
    %20 = vector.broadcast %19 : vector<8x1xf32> to vector<8x128xf32>
    %21 = arith.divf %13, %20 : vector<8x128xf32>
    %c0_13 = arith.constant 0 : index
    %c0_14 = arith.constant 0 : index
    %22 = vector.load %arg6[%c0_13, %c0_14] : memref<8x128xf32, #tpu.memory_space<vmem>>, vector<8x128xf32>
    tpu.vector_store %arg6[%c0_13, %c0_14], %21 {strides = array<i32>} : memref<8x128xf32, #tpu.memory_space<vmem>>, vector<8x128xf32>,
    return
  }
  func.func @transform_0(%arg0: i32) -> (i32, i32) {
    %c0_i32 = arith.constant 0 : i32
    %c0_i32_0 = arith.constant 0 : i32
    return %arg0, %c0_i32 : i32, i32
  }
  func.func @transform_1(%arg0: i32) -> (i32, i32) {
    %c0_i32 = arith.constant 0 : i32
    %c0_i32_0 = arith.constant 0 : i32
    %c0_i32_1 = arith.constant 0 : i32
    return %c0_i32, %c0_i32_0 : i32, i32
  }
  func.func @transform_2(%arg0: i32) -> (i32, i32) {
    %c0_i32 = arith.constant 0 : i32
    %c0_i32_0 = arith.constant 0 : i32
    %c0_i32_1 = arith.constant 0 : i32
    return %c0_i32, %c0_i32_0 : i32, i32
  }
  func.func @transform_3(%arg0: i32) -> (i32, i32) {
    %c0_i32 = arith.constant 0 : i32
    %c0_i32_0 = arith.constant 0 : i32
    %c0_i32_1 = arith.constant 0 : i32
    return %c0_i32, %c0_i32_0 : i32, i32
  }
  func.func @transform_4(%arg0: i32) -> (i32, i32) {
    %c0_i32 = arith.constant 0 : i32
    %c0_i32_0 = arith.constant 0 : i32
    %c0_i32_1 = arith.constant 0 : i32
    return %c0_i32, %c0_i32_0 : i32, i32
  }
  func.func @transform_5(%arg0: i32) -> (i32, i32) {
    %c0_i32 = arith.constant 0 : i32
    %c0_i32_0 = arith.constant 0 : i32
    return %arg0, %c0_i32 : i32, i32
  }
}

module attributes {stable_mosaic.version = 11 : i64} {
  func.func @_lpos_kernel(%arg0: memref<8x128xf32, #tpu.memory_space<vmem>>, %arg1: memref<8x128xf32, #tpu.memory_space<vmem>>, %arg2: memref<8x128xf32, #tpu.memory_space<vmem>>) attributes {dimension_semantics = [], scalar_prefetch = 0 : i64, scratch_operands = 0 : i64, tpu.core_type = #tpu.core_type<tc>} {
    %c0 = arith.constant 0 : index
    %c0_0 = arith.constant 0 : index
    %0 = vector.load %arg0[%c0, %c0_0] : memref<8x128xf32, #tpu.memory_space<vmem>>, vector<8x128xf32>
    %c0_1 = arith.constant 0 : index
    %c0_2 = arith.constant 0 : index
    %1 = vector.load %arg1[%c0_1, %c0_2] : memref<8x128xf32, #tpu.memory_space<vmem>>, vector<8x128xf32>
    %2 = arith.mulf %0, %1 : vector<8x128xf32>
    %cst = arith.constant dense<0.000000e+00> : vector<8xf32>
    %3 = vector.multi_reduction <add>, %2, %cst [1] : vector<8x128xf32> to vector<8xf32>
    %4 = vector.shape_cast %3 : vector<8xf32> to vector<8x1xf32>
    %cst_3 = arith.constant 14.2857141 : f32
    %5 = vector.broadcast %cst_3 : f32 to vector<8x1xf32>
    %6 = arith.mulf %4, %5 : vector<8x1xf32>
    %7 = vector.shape_cast %6 : vector<8x1xf32> to vector<8x1xf32>
    %8 = vector.broadcast %7 : vector<8x1xf32> to vector<8x128xf32>
    %c0_4 = arith.constant 0 : index
    %c0_5 = arith.constant 0 : index
    %9 = vector.load %arg2[%c0_4, %c0_5] : memref<8x128xf32, #tpu.memory_space<vmem>>, vector<8x128xf32>
    tpu.vector_store %arg2[%c0_4, %c0_5], %8 {strides = array<i32>} : memref<8x128xf32, #tpu.memory_space<vmem>>, vector<8x128xf32>,
    return
  }
}

module attributes {stable_mosaic.version = 11 : i64} {
  func.func @_lneg_kernel(%arg0: i32, %arg1: i32, %arg2: memref<8x128xbf16, #tpu.memory_space<vmem>>, %arg3: memref<256x128xf32, #tpu.memory_space<vmem>>, %arg4: memref<8x256xf32, #tpu.memory_space<vmem>>) attributes {dimension_semantics = [#tpu.dimension_semantics<parallel>, #tpu.dimension_semantics<parallel>], iteration_bounds = array<i64: 1, 4>, scalar_prefetch = 0 : i64, scratch_operands = 0 : i64, tpu.core_type = #tpu.core_type<tc>, window_params = [{transform_indices = @transform_0, window_bounds = array<i64: 8, 128>}, {transform_indices = @transform_1, window_bounds = array<i64: 256, 128>}, {transform_indices = @transform_2, window_bounds = array<i64: 8, 256>}]} {
    %c0 = arith.constant 0 : index
    %c0_0 = arith.constant 0 : index
    %0 = vector.load %arg3[%c0, %c0_0] : memref<256x128xf32, #tpu.memory_space<vmem>>, vector<256x128xf32>
    %1 = arith.truncf %0 : vector<256x128xf32> to vector<256x128xbf16>
    %c0_1 = arith.constant 0 : index
    %c0_2 = arith.constant 0 : index
    %2 = vector.load %arg2[%c0_1, %c0_2] : memref<8x128xbf16, #tpu.memory_space<vmem>>, vector<8x128xbf16>
    %cst = arith.constant dense<0.000000e+00> : vector<8x256xf32>
    %3 = tpu.matmul %2, %1, %cst {dimension_numbers = #tpu.dot_dimension_numbers<[1], [1], [0], [0], [0, 0, 1, 0], [], []>} : vector<8x128xbf16>, vector<256x128xbf16>, vector<8x256xf32> -> vector<8x256xf32>
    %cst_3 = arith.constant 14.2857141 : f32
    %4 = vector.broadcast %cst_3 : f32 to vector<8x256xf32>
    %5 = arith.mulf %3, %4 : vector<8x256xf32>
    %c0_4 = arith.constant 0 : index
    %c0_5 = arith.constant 0 : index
    %6 = vector.load %arg4[%c0_4, %c0_5] : memref<8x256xf32, #tpu.memory_space<vmem>>, vector<8x256xf32>
    tpu.vector_store %arg4[%c0_4, %c0_5], %5 {strides = array<i32>} : memref<8x256xf32, #tpu.memory_space<vmem>>, vector<8x256xf32>,
    return
  }
  func.func @transform_0(%arg0: i32, %arg1: i32) -> (i32, i32) {
    %c0_i32 = arith.constant 0 : i32
    %c0_i32_0 = arith.constant 0 : i32
    return %arg0, %c0_i32 : i32, i32
  }
  func.func @transform_1(%arg0: i32, %arg1: i32) -> (i32, i32) {
    %c0_i32 = arith.constant 0 : i32
    %c0_i32_0 = arith.constant 0 : i32
    return %arg1, %c0_i32 : i32, i32
  }
  func.func @transform_2(%arg0: i32, %arg1: i32) -> (i32, i32) {
    %c0_i32 = arith.constant 0 : i32
    return %arg0, %arg1 : i32, i32
  }
}

module attributes {stable_mosaic.version = 11 : i64} {
  func.func @_enqueue_kernel(%arg0: memref<1xi32, #tpu.memory_space<smem>>, %arg1: memref<8x128xf32, #tpu.memory_space<vmem>>, %arg2: memref<1024x128xf32, #tpu.memory_space<any>>, %arg3: memref<1024x128xf32, #tpu.memory_space<any>>) attributes {dimension_semantics = [], scalar_prefetch = 0 : i64, scratch_operands = 0 : i64, tpu.core_type = #tpu.core_type<tc>} {
    %c0 = arith.constant 0 : index
    %0 = memref.load %arg0[%c0] : memref<1xi32, #tpu.memory_space<smem>>
    "tpu.region"() ({
      %1 = tpu.sem_alloc : memref<!tpu.dma_semaphore, #tpu.memory_space<semaphore_mem>>
      %c0_i32 = arith.constant 0 : i32
      %2 = tpu.memref_slice %arg3[%0, %c0_i32] : memref<1024x128xf32, #tpu.memory_space<any>> -> memref<8x128xf32, #tpu.memory_space<any>>
      tpu.enqueue_dma source(%arg1 : memref<8x128xf32, #tpu.memory_space<vmem>>) target(%2 : memref<8x128xf32, #tpu.memory_space<any>>) target_semaphore(%1 : memref<!tpu.dma_semaphore, #tpu.memory_space<semaphore_mem>>)
      %c0_i32_0 = arith.constant 0 : i32
      %3 = tpu.memref_slice %arg3[%0, %c0_i32_0] : memref<1024x128xf32, #tpu.memory_space<any>> -> memref<8x128xf32, #tpu.memory_space<any>>
      tpu.wait_dma2 semaphore(%1 : memref<!tpu.dma_semaphore, #tpu.memory_space<semaphore_mem>>) src(%arg1 : memref<8x128xf32, #tpu.memory_space<vmem>>) dst(%3 : memref<8x128xf32, #tpu.memory_space<any>>)
      tpu.yield
    }) : () -> ()
    return
  }
}

</mosaic_0001>

<llo_original>
// kernel: custom-call.1
$region0: #{custom-call.1}
  %s0 = inlined_call_operand.vmem [shape: f32[105856], index: 0, kind: output, shape index: {}]

// kernel: split.0
$region0: #{split.0}
  #allocation0 [shape = 'u32[2048]{0}', space=vmem, size = 0x2000, scoped, tag = 'scoped memory for split.0']
  #allocation1 [shape = 'u32[2048]{0}', space=vmem, size = 0x2000, scoped, tag = 'scoped memory for split.0']
  #allocation2 [shape = 'u32[2048]{0}', space=vmem, size = 0x2000, scoped, tag = 'scoped memory for split.0']
  #allocation3 [shape = 'u32[2048]{0}', space=vmem, size = 0x2000, scoped, tag = 'scoped memory for split.0']
  #allocation4 [shape = 'u32[2048]{0}', space=vmem, size = 0x2000, scoped, tag = 'scoped memory for split.0']
  #allocation5 [shape = 's32[1]{0}', space=sflag, size = 0x4, scoped, tag = 'scoped memory for split.0']
  %s0 = inlined_call_operand.vmem [shape: f32[105856], index: 0, kind: input, shape index: {}]
  %s1 = inlined_call_operand.vmem [shape: f32[6912], index: 1, kind: output, shape index: {}]
  %v2 = vld [vmem:[%s0] sm:$0xff]
  %s3 = scalar_lea.vmem %s0, 8
  %v4 = vld [vmem:[%s3] sm:$0xff]
  %vm5 = vcmask 1041408
  %v6 = vsel %vm5, %v4, %v2
  %v7 = vrot.slane %v6, 2
  %8 = vst [vmem:[%s1] sm:$0xff] %v7
  %s9 = scalar_lea.vmem %s0, 16
  %v10 = vld [vmem:[%s9] sm:$0xff]
  %vm11 = vcmask 1041408
  %v12 = vsel %vm11, %v10, %v4
  %v13 = vrot.slane %v12, 2
  %s14 = scalar_lea.vmem %s1, 8
  %15 = vst [vmem:[%s14] sm:$0xff] %v13
  %s16 = scalar_lea.vmem %s0, 24
  %v17 = vld [vmem:[%s16] sm:$0xff]
  %vm18 = vcmask 1041408
  %v19 = vsel %vm18, %v17, %v10
  %v20 = vrot.slane %v19, 2
  %s21 = scalar_lea.vmem %s1, 16
  %22 = vst [vmem:[%s21] sm:$0xff] %v20
  %s23 = scalar_lea.vmem %s0, 32
  %v24 = vld [vmem:[%s23] sm:$0xff]
  %vm25 = vcmask 1041408
  %v26 = vsel %vm25, %v24, %v17
  %v27 = vrot.slane %v26, 2
  %s28 = scalar_lea.vmem %s1, 24
  %29 = vst [vmem:[%s28] sm:$0xff] %v27
  %s30 = scalar_lea.vmem %s0, 40
  %v31 = vld [vmem:[%s30] sm:$0xff]
  %vm32 = vcmask 1041408
  %v33 = vsel %vm32, %v31, %v24
  %v34 = vrot.slane %v33, 2
  %s35 = scalar_lea.vmem %s1, 32
  %36 = vst [vmem:[%s35] sm:$0xff] %v34
  %s37 = scalar_lea.vmem %s0, 48
  %v38 = vld [vmem:[%s37] sm:$0xff]
  %vm39 = vcmask 1041408
  %v40 = vsel %vm39, %v38, %v31
  %v41 = vrot.slane %v40, 2
  %s42 = scalar_lea.vmem %s1, 40
  %43 = vst [vmem:[%s42] sm:$0xff] %v41
  %s44 = scalar_lea.vmem %s0, 56
  %v45 = vld [vmem:[%s44] sm:$0xff]
  %vm46 = vcmask 1041408
  %v47 = vsel %vm46, %v45, %v38
  %v48 = vrot.slane %v47, 2
  %s49 = scalar_lea.vmem %s1, 48
  %50 = vst [vmem:[%s49] sm:$0xff] %v48

// kernel: moco_forward.10
$region0: #{moco_forward.10}
  #allocation0 [shape = 'u32[]', space=smem, size = 0x4, offset = 0x4, fixed_abs, tag = 'smem constant byte address 0x4 - core index']
  #allocation1 [shape = 'u32[144,128]{1,0:T(1,128)}', space=vmem, size = 0x12000, scoped, tag = 'internal scratch']
  %s0 = inlined_call_operand.vmem [shape: f32[896,128], index: 0, kind: input, shape index: {}]
  %s1 = inlined_call_operand.vmem [shape: f32[896,128], index: 1, kind: input, shape index: {}]
  %s2 = inlined_call_operand.vmem [shape: f32[896,128], index: 2, kind: output, shape index: {}]
  %s3 = sld [smem:[#allocation0]]
  $region41: #{moco_forward.10} parent=0
    _
  %s5 = ssub.s32 1, %s3
  %s6 = scalar_select 0, %s5, %s3
  loop: start=0, step=1, limit=9
  $region2: #{moco_forward.10} parent=0 // loop_pre_header
    _
  $region3: #{moco_forward.10} parent=0 // loop_header
    %s8 = sphi 0, %s12
    %p9 = scmp.ge.s32.totalorder %s8, 9
    %s18 = sphi 0, %s20
    %s21 = sphi 0, %s18
    %s22 = sphi 0, %s21
    %s38 = sphi 0, %s22
    %s44 = sphi 0, %s46
    %s47 = sphi 0, %s44
    %s48 = sphi 0, %s47
    %s64 = sphi 0, %s48
    %s70 = sphi 0, %s72
    %s73 = sphi 0, %s70
    %s74 = sphi 0, %s73
    %s90 = sphi 0, %s74
  $region4: #{moco_forward.10} parent=0 // loop_header_branch
    %11 = sbr.rel (%p9) target = $region8
  $region5: #{moco_forward.10} parent=0 // loop_body
    %s13 = ssub.s32 %s8, 1
    %s14 = ssub.s32 %s8, 2
    %s15 = sadd.s32 %s8, 1
    %s16 = ssub.s32 %s8, %s15
    %p17 = scmp.eq.s32.totalorder %s16, 0
    %s19 = sadd.s32 %s18, 1
    %s20 = scalar_select %p17, %s18, %s19
    %p23 = pneg %p17
    %p24 = scmp.eq.s32.totalorder %s8, 6
    %p25 = por %p23, %p24
    %p26 = scmp.ne.s32.totalorder %s18, %s21
    %p27 = scmp.eq.s32.totalorder %s8, 0
    %p28 = por %p26, %p27
    %p29 = scmp.ne.s32.totalorder %s18, %s21
    %p30 = scmp.eq.s32.totalorder %s13, 6
    %p31 = por %p29, %p30
    %p32 = scmp.ne.s32.totalorder %s21, %s22
    %p33 = scmp.eq.s32.totalorder %s13, 0
    %p34 = por %p32, %p33
    %p35 = scmp.ne.s32.totalorder %s21, %s22
    %p36 = scmp.eq.s32.totalorder %s14, 6
    %p37 = por %p35, %p36
    %p39 = scmp.ne.s32.totalorder %s22, %s38
    %p40 = scmp.eq.s32.totalorder %s14, 0
    %p41 = por %p39, %p40
    %s42 = ssub.s32 %s8, %s15
    %p43 = scmp.eq.s32.totalorder %s42, 0
    %s45 = sadd.s32 %s44, 1
    %s46 = scalar_select %p43, %s44, %s45
    %p49 = pneg %p43
    %p50 = scmp.eq.s32.totalorder %s8, 6
    %p51 = por %p49, %p50
    %p52 = scmp.ne.s32.totalorder %s44, %s47
    %p53 = scmp.eq.s32.totalorder %s8, 0
    %p54 = por %p52, %p53
    %p55 = scmp.ne.s32.totalorder %s44, %s47
    %p56 = scmp.eq.s32.totalorder %s13, 6
    %p57 = por %p55, %p56
    %p58 = scmp.ne.s32.totalorder %s47, %s48
    %p59 = scmp.eq.s32.totalorder %s13, 0
    %p60 = por %p58, %p59
    %p61 = scmp.ne.s32.totalorder %s47, %s48
    %p62 = scmp.eq.s32.totalorder %s14, 6
    %p63 = por %p61, %p62
    %p65 = scmp.ne.s32.totalorder %s48, %s64
    %p66 = scmp.eq.s32.totalorder %s14, 0
    %p67 = por %p65, %p66
    %s68 = ssub.s32 %s8, %s15
    %p69 = scmp.eq.s32.totalorder %s68, 0
    %s71 = sadd.s32 %s70, 1
    %s72 = scalar_select %p69, %s70, %s71
    %p75 = pneg %p69
    %p76 = scmp.eq.s32.totalorder %s8, 6
    %p77 = por %p75, %p76
    %p78 = scmp.ne.s32.totalorder %s70, %s73
    %p79 = scmp.eq.s32.totalorder %s8, 0
    %p80 = por %p78, %p79
    %p81 = scmp.ne.s32.totalorder %s70, %s73
    %p82 = scmp.eq.s32.totalorder %s13, 6
    %p83 = por %p81, %p82
    %p84 = scmp.ne.s32.totalorder %s73, %s74
    %p85 = scmp.eq.s32.totalorder %s13, 0
    %p86 = por %p84, %p85
    %p87 = scmp.ne.s32.totalorder %s73, %s74
    %p88 = scmp.eq.s32.totalorder %s14, 6
    %p89 = por %p87, %p88
    %p91 = scmp.ne.s32.totalorder %s74, %s90
    %p92 = scmp.eq.s32.totalorder %s14, 0
    %p93 = por %p91, %p92
    %p94 = scmp.le.s32.totalorder 1, %s8
    %p95 = scmp.lt.s32.totalorder %s8, 8
    %p96 = pnand %p94, %p95
    %p97 = pneg %p96
    // Predicated region
    $region9: #{moco_forward.10} parent=5 // pred_check
      _
    $region10: #{moco_forward.10} parent=5 // pred_check_branch
      %99 = sbr.rel (%p96) target = $region12
    $region11: #{moco_forward.10} parent=5 // pred_region
      %s100 = ssub.s32 %s8, 1
    $region12: #{moco_forward.10} parent=5 // pred_fallthru
      _
    %p101 = scmp.lt.s32.totalorder %s8, 7
    // Predicated region
    $region13: #{moco_forward.10} parent=5 // pred_check
      %p102 = pneg %p101
    $region14: #{moco_forward.10} parent=5 // pred_check_branch
      %104 = sbr.rel (%p102) target = $region16
    $region15: #{moco_forward.10} parent=5 // pred_region
      // Predicated region
      $region17: #{moco_forward.10} parent=15 // pred_check
        %p105 = pneg %p28
      $region18: #{moco_forward.10} parent=15 // pred_check_branch
        %107 = sbr.rel (%p105) target = $region20
      $region19: #{moco_forward.10} parent=15 // pred_region
        %s108 = smul.u32 16, %s8
        %p109 = scmp.lt.s32.totalorder %s108, 111
        %s110 = scalar_select %p109, %s108, 111
        %s111 = smul.addr %s110, 8
        %s112 = scalar_lea.vmem %s0, %s111
        %s113 = smul.u32 16, %s8
      $region20: #{moco_forward.10} parent=15 // pred_fallthru
        _
      // Predicated region
      $region21: #{moco_forward.10} parent=15 // pred_check
        %p114 = pneg %p54
      $region22: #{moco_forward.10} parent=15 // pred_check_branch
        %116 = sbr.rel (%p114) target = $region24
      $region23: #{moco_forward.10} parent=15 // pred_region
        %s117 = smul.u32 16, %s8
        %p118 = scmp.lt.s32.totalorder %s117, 111
        %s119 = scalar_select %p118, %s117, 111
        %s120 = smul.addr %s119, 8
        %s121 = scalar_lea.vmem %s1, %s120
        %s122 = smul.u32 16, %s8
      $region24: #{moco_forward.10} parent=15 // pred_fallthru
        _
    $region16: #{moco_forward.10} parent=5 // pred_fallthru
      _
    %p123 = scmp.le.s32.totalorder 1, %s8
    %p124 = scmp.lt.s32.totalorder %s8, 8
    %p125 = pnand %p123, %p124
    %p126 = pneg %p125
    // Predicated region
    $region25: #{moco_forward.10} parent=5 // pred_check
      _
    $region26: #{moco_forward.10} parent=5 // pred_check_branch
      %128 = sbr.rel (%p125) target = $region28
    $region27: #{moco_forward.10} parent=5 // pred_region
      %s129 = ssub.s32 %s8, 1
      %s130 = smul.u32 16, %s13
      %p131 = scmp.lt.s32.totalorder %s130, 111
      %s132 = scalar_select %p131, %s130, 111
      %s133 = smul.addr %s132, 8
      %s134 = scalar_lea.vmem %s0, %s133
      %p135 = pneg %p34
      %p136 = pneg %p31
      %s137 = smul.u32 16, %s13
      %p138 = scmp.lt.s32.totalorder %s137, 111
      %s139 = scalar_select %p138, %s137, 111
      %s140 = smul.addr %s139, 8
      %s141 = scalar_lea.vmem %s1, %s140
      %p142 = pneg %p60
      %p143 = pneg %p57
      %p144 = pneg %p86
      %p145 = pneg %p83
      %s146 = smul.u32 16, %s13
      %p147 = scmp.lt.s32.totalorder %s146, 111
      %s148 = scalar_select %p147, %s146, 111
      %s149 = smul.addr %s148, 8
      %s150 = scalar_lea.vmem %s2, %s149
      %s151 = smul.u32 16, %s13
      %p152 = scmp.lt.s32.totalorder %s151, 111
      %s153 = scalar_select %p152, %s151, 111
      %s154 = smul.addr %s153, 8
      %s155 = scalar_lea.vmem %s0, %s154
      %s156 = smul.u32 16, %s13
      %s157 = smul.u32 16, %s13
      %p158 = scmp.lt.s32.totalorder %s157, 111
      %s159 = scalar_select %p158, %s157, 111
      %s160 = smul.addr %s159, 8
      %s161 = scalar_lea.vmem %s1, %s160
      %s162 = smul.u32 16, %s13
      %s163 = smul.u32 16, %s13
      %p164 = scmp.lt.s32.totalorder %s163, 111
      %s165 = scalar_select %p164, %s163, 111
      %s166 = smul.addr %s165, 8
      %s167 = scalar_lea.vmem %s2, %s166
      %s168 = smul.u32 16, %s13
      %v169 = vld [vmem:[%s161] sm:$0xff]
      %v170 = vld [vmem:[%s161 + $0x8] sm:$0xff]
      %v171 = vld [vmem:[%s161 + $0x10] sm:$0xff]
      %v172 = vld [vmem:[%s161 + $0x18] sm:$0xff]
      %v173 = vld [vmem:[%s161 + $0x20] sm:$0xff]
      %v174 = vld [vmem:[%s161 + $0x28] sm:$0xff]
      %v175 = vld [vmem:[%s161 + $0x30] sm:$0xff]
      %v176 = vld [vmem:[%s161 + $0x38] sm:$0xff]
      %v177 = vld [vmem:[%s161 + $0x40] sm:$0xff]
      %v178 = vld [vmem:[%s161 + $0x48] sm:$0xff]
      %v179 = vld [vmem:[%s161 + $0x50] sm:$0xff]
      %v180 = vld [vmem:[%s161 + $0x58] sm:$0xff]
      %v181 = vld [vmem:[%s161 + $0x60] sm:$0xff]
      %v182 = vld [vmem:[%s161 + $0x68] sm:$0xff]
      %v183 = vld [vmem:[%s161 + $0x70] sm:$0xff]
      %v184 = vld [vmem:[%s161 + $0x78] sm:$0xff]
      %v185 = vmul.f32 %v169, 0.999
      %v186 = vmul.f32 %v170, 0.999
      %v187 = vmul.f32 %v171, 0.999
      %v188 = vmul.f32 %v172, 0.999
      %v189 = vmul.f32 %v173, 0.999
      %v190 = vmul.f32 %v174, 0.999
      %v191 = vmul.f32 %v175, 0.999
      %v192 = vmul.f32 %v176, 0.999
      %v193 = vmul.f32 %v177, 0.999
      %v194 = vmul.f32 %v178, 0.999
      %v195 = vmul.f32 %v179, 0.999
      %v196 = vmul.f32 %v180, 0.999
      %v197 = vmul.f32 %v181, 0.999
      %v198 = vmul.f32 %v182, 0.999
      %v199 = vmul.f32 %v183, 0.999
      %v200 = vmul.f32 %v184, 0.999
      %v201 = vld [vmem:[%s155] sm:$0xff]
      %v202 = vld [vmem:[%s155 + $0x8] sm:$0xff]
      %v203 = vld [vmem:[%s155 + $0x10] sm:$0xff]
      %v204 = vld [vmem:[%s155 + $0x18] sm:$0xff]
      %v205 = vld [vmem:[%s155 + $0x20] sm:$0xff]
      %v206 = vld [vmem:[%s155 + $0x28] sm:$0xff]
      %v207 = vld [vmem:[%s155 + $0x30] sm:$0xff]
      %v208 = vld [vmem:[%s155 + $0x38] sm:$0xff]
      %v209 = vld [vmem:[%s155 + $0x40] sm:$0xff]
      %v210 = vld [vmem:[%s155 + $0x48] sm:$0xff]
      %v211 = vld [vmem:[%s155 + $0x50] sm:$0xff]
      %v212 = vld [vmem:[%s155 + $0x58] sm:$0xff]
      %v213 = vld [vmem:[%s155 + $0x60] sm:$0xff]
      %v214 = vld [vmem:[%s155 + $0x68] sm:$0xff]
      %v215 = vld [vmem:[%s155 + $0x70] sm:$0xff]
      %v216 = vld [vmem:[%s155 + $0x78] sm:$0xff]
      %v217 = vmul.f32 %v201, 0.001
      %v218 = vmul.f32 %v202, 0.001
      %v219 = vmul.f32 %v203, 0.001
      %v220 = vmul.f32 %v204, 0.001
      %v221 = vmul.f32 %v205, 0.001
      %v222 = vmul.f32 %v206, 0.001
      %v223 = vmul.f32 %v207, 0.001
      %v224 = vmul.f32 %v208, 0.001
      %v225 = vmul.f32 %v209, 0.001
      %v226 = vmul.f32 %v210, 0.001
      %v227 = vmul.f32 %v211, 0.001
      %v228 = vmul.f32 %v212, 0.001
      %v229 = vmul.f32 %v213, 0.001
      %v230 = vmul.f32 %v214, 0.001
      %v231 = vmul.f32 %v215, 0.001
      %v232 = vmul.f32 %v216, 0.001
      %v233 = vadd.f32 %v185, %v217
      %v234 = vadd.f32 %v186, %v218
      %v235 = vadd.f32 %v187, %v219
      %v236 = vadd.f32 %v188, %v220
      %v237 = vadd.f32 %v189, %v221
      %v238 = vadd.f32 %v190, %v222
      %v239 = vadd.f32 %v191, %v223
      %v240 = vadd.f32 %v192, %v224
      %v241 = vadd.f32 %v193, %v225
      %v242 = vadd.f32 %v194, %v226
      %v243 = vadd.f32 %v195, %v227
      %v244 = vadd.f32 %v196, %v228
      %v245 = vadd.f32 %v197, %v229
      %v246 = vadd.f32 %v198, %v230
      %v247 = vadd.f32 %v199, %v231
      %v248 = vadd.f32 %v200, %v232
      %249 = vst [vmem:[%s167] sm:$0xff] %v233
      %250 = vst [vmem:[%s167 + $0x8] sm:$0xff] %v234
      %251 = vst [vmem:[%s167 + $0x10] sm:$0xff] %v235
      %252 = vst [vmem:[%s167 + $0x18] sm:$0xff] %v236
      %253 = vst [vmem:[%s167 + $0x20] sm:$0xff] %v237
      %254 = vst [vmem:[%s167 + $0x28] sm:$0xff] %v238
      %255 = vst [vmem:[%s167 + $0x30] sm:$0xff] %v239
      %256 = vst [vmem:[%s167 + $0x38] sm:$0xff] %v240
      %257 = vst [vmem:[%s167 + $0x40] sm:$0xff] %v241
      %258 = vst [vmem:[%s167 + $0x48] sm:$0xff] %v242
      %259 = vst [vmem:[%s167 + $0x50] sm:$0xff] %v243
      %260 = vst [vmem:[%s167 + $0x58] sm:$0xff] %v244
      %261 = vst [vmem:[%s167 + $0x60] sm:$0xff] %v245
      %262 = vst [vmem:[%s167 + $0x68] sm:$0xff] %v246
      %263 = vst [vmem:[%s167 + $0x70] sm:$0xff] %v247
      %264 = vst [vmem:[%s167 + $0x78] sm:$0xff] %v248
      %s265 = smul.u32 16, %s13
      %p266 = scmp.lt.s32.totalorder %s265, 111
      %s267 = scalar_select %p266, %s265, 111
      %s268 = smul.addr %s267, 8
      %s269 = scalar_lea.vmem %s2, %s268
      // Predicated region
      $region29: #{moco_forward.10} parent=27 // pred_check
        %p270 = pneg %p83
      $region30: #{moco_forward.10} parent=27 // pred_check_branch
        %272 = sbr.rel (%p270) target = $region32
      $region31: #{moco_forward.10} parent=27 // pred_region
        %s273 = smul.u32 16, %s13
      $region32: #{moco_forward.10} parent=27 // pred_fallthru
        _
    $region28: #{moco_forward.10} parent=5 // pred_fallthru
      _
    %p274 = scmp.le.s32.totalorder 2, %s8
    // Predicated region
    $region33: #{moco_forward.10} parent=5 // pred_check
      %p275 = pneg %p274
    $region34: #{moco_forward.10} parent=5 // pred_check_branch
      %277 = sbr.rel (%p275) target = $region36
    $region35: #{moco_forward.10} parent=5 // pred_region
      %s278 = ssub.s32 %s8, 2
      // Predicated region
      $region37: #{moco_forward.10} parent=35 // pred_check
        %p279 = pneg %p89
      $region38: #{moco_forward.10} parent=35 // pred_check_branch
        %281 = sbr.rel (%p279) target = $region40
      $region39: #{moco_forward.10} parent=35 // pred_region
        %s282 = smul.u32 16, %s14
        %p283 = scmp.lt.s32.totalorder %s282, 111
        %s284 = scalar_select %p283, %s282, 111
        %s285 = smul.addr %s284, 8
        %s286 = scalar_lea.vmem %s2, %s285
      $region40: #{moco_forward.10} parent=35 // pred_fallthru
        _
    $region36: #{moco_forward.10} parent=5 // pred_fallthru
      _
  $region6: #{moco_forward.10} parent=0 // loop_footer
    %s12 = sadd.s32 1, %s8
  $region7: #{moco_forward.10} parent=0 // loop_footer_branch
    %7 = sbr.rel target = $region3
  $region8: #{moco_forward.10} parent=0 // loop_exit
    _

// kernel: split.1
$region0: #{split.1}
  #allocation0 [shape = 'u32[2048]{0}', space=vmem, size = 0x2000, scoped, tag = 'scoped memory for split.1']
  #allocation1 [shape = 'u32[2048]{0}', space=vmem, size = 0x2000, scoped, tag = 'scoped memory for split.1']
  #allocation2 [shape = 'u32[2048]{0}', space=vmem, size = 0x2000, scoped, tag = 'scoped memory for split.1']
  #allocation3 [shape = 'u32[2048]{0}', space=vmem, size = 0x2000, scoped, tag = 'scoped memory for split.1']
  #allocation4 [shape = 'u32[2048]{0}', space=vmem, size = 0x2000, scoped, tag = 'scoped memory for split.1']
  #allocation5 [shape = 's32[1]{0}', space=sflag, size = 0x4, scoped, tag = 'scoped memory for split.1']
  %s0 = inlined_call_operand.vmem [shape: f32[105856], index: 0, kind: input, shape index: {}]
  %s1 = inlined_call_operand.vmem [shape: f32[65536], index: 1, kind: output, shape index: {}]
  %s2 = scalar_lea.vmem %s0, 56
  %s3 = scalar_lea.vmem %s0, 56
  %s4 = scalar_lea.vmem %s0, 56
  %v5 = vld [vmem:[%s4] sm:$0xff]
  %s6 = scalar_lea.vmem %s4, 8
  %v7 = vld [vmem:[%s6] sm:$0xff]
  %vm8 = vcmask 1041408
  %v9 = vsel %vm8, %v7, %v5
  %v10 = vrot.slane %v9, 2
  %11 = vst [vmem:[%s1] sm:$0xff] %v10
  %s12 = scalar_lea.vmem %s4, 16
  %v13 = vld [vmem:[%s12] sm:$0xff]
  %vm14 = vcmask 1041408
  %v15 = vsel %vm14, %v13, %v7
  %v16 = vrot.slane %v15, 2
  %s17 = scalar_lea.vmem %s1, 8
  %18 = vst [vmem:[%s17] sm:$0xff] %v16
  %s19 = scalar_lea.vmem %s4, 24
  %v20 = vld [vmem:[%s19] sm:$0xff]
  %vm21 = vcmask 1041408
  %v22 = vsel %vm21, %v20, %v13
  %v23 = vrot.slane %v22, 2
  %s24 = scalar_lea.vmem %s1, 16
  %25 = vst [vmem:[%s24] sm:$0xff] %v23
  %s26 = scalar_lea.vmem %s4, 32
  %v27 = vld [vmem:[%s26] sm:$0xff]
  %vm28 = vcmask 1041408
  %v29 = vsel %vm28, %v27, %v20
  %v30 = vrot.slane %v29, 2
  %s31 = scalar_lea.vmem %s1, 24
  %32 = vst [vmem:[%s31] sm:$0xff] %v30
  %s33 = scalar_lea.vmem %s4, 40
  %v34 = vld [vmem:[%s33] sm:$0xff]
  %vm35 = vcmask 1041408
  %v36 = vsel %vm35, %v34, %v27
  %v37 = vrot.slane %v36, 2
  %s38 = scalar_lea.vmem %s1, 32
  %39 = vst [vmem:[%s38] sm:$0xff] %v37
  %s40 = scalar_lea.vmem %s4, 48
  %v41 = vld [vmem:[%s40] sm:$0xff]
  %vm42 = vcmask 1041408
  %v43 = vsel %vm42, %v41, %v34
  %v44 = vrot.slane %v43, 2
  %s45 = scalar_lea.vmem %s1, 40
  %46 = vst [vmem:[%s45] sm:$0xff] %v44
  %s47 = scalar_lea.vmem %s4, 56
  %v48 = vld [vmem:[%s47] sm:$0xff]
  %vm49 = vcmask 1041408
  %v50 = vsel %vm49, %v48, %v41
  %v51 = vrot.slane %v50, 2
  %s52 = scalar_lea.vmem %s1, 48
  %53 = vst [vmem:[%s52] sm:$0xff] %v51
  %s54 = scalar_lea.vmem %s4, 64
  %v55 = vld [vmem:[%s54] sm:$0xff]
  %vm56 = vcmask 1041408
  %v57 = vsel %vm56, %v55, %v48
  %v58 = vrot.slane %v57, 2
  %s59 = scalar_lea.vmem %s1, 56
  %60 = vst [vmem:[%s59] sm:$0xff] %v58
  %s61 = scalar_lea.vmem %s4, 72
  %v62 = vld [vmem:[%s61] sm:$0xff]
  %vm63 = vcmask 1041408
  %v64 = vsel %vm63, %v62, %v55
  %v65 = vrot.slane %v64, 2
  %s66 = scalar_lea.vmem %s1, 64
  %67 = vst [vmem:[%s66] sm:$0xff] %v65
  %s68 = scalar_lea.vmem %s4, 80
  %v69 = vld [vmem:[%s68] sm:$0xff]
  %vm70 = vcmask 1041408
  %v71 = vsel %vm70, %v69, %v62
  %v72 = vrot.slane %v71, 2
  %s73 = scalar_lea.vmem %s1, 72
  %74 = vst [vmem:[%s73] sm:$0xff] %v72
  %s75 = scalar_lea.vmem %s4, 88
  %v76 = vld [vmem:[%s75] sm:$0xff]
  %vm77 = vcmask 1041408
  %v78 = vsel %vm77, %v76, %v69
  %v79 = vrot.slane %v78, 2
  %s80 = scalar_lea.vmem %s1, 80
  %81 = vst [vmem:[%s80] sm:$0xff] %v79
  %s82 = scalar_lea.vmem %s4, 96
  %v83 = vld [vmem:[%s82] sm:$0xff]
  %vm84 = vcmask 1041408
  %v85 = vsel %vm84, %v83, %v76
  %v86 = vrot.slane %v85, 2
  %s87 = scalar_lea.vmem %s1, 88
  %88 = vst [vmem:[%s87] sm:$0xff] %v86
  %s89 = scalar_lea.vmem %s4, 104
  %v90 = vld [vmem:[%s89] sm:$0xff]
  %vm91 = vcmask 1041408
  %v92 = vsel %vm91, %v90, %v83
  %v93 = vrot.slane %v92, 2
  %s94 = scalar_lea.vmem %s1, 96
  %95 = vst [vmem:[%s94] sm:$0xff] %v93
  %s96 = scalar_lea.vmem %s4, 112
  %v97 = vld [vmem:[%s96] sm:$0xff]
  %vm98 = vcmask 1041408
  %v99 = vsel %vm98, %v97, %v90
  %v100 = vrot.slane %v99, 2
  %s101 = scalar_lea.vmem %s1, 104
  %102 = vst [vmem:[%s101] sm:$0xff] %v100
  %s103 = scalar_lea.vmem %s4, 120
  %v104 = vld [vmem:[%s103] sm:$0xff]
  %vm105 = vcmask 1041408
  %v106 = vsel %vm105, %v104, %v97
  %v107 = vrot.slane %v106, 2
  %s108 = scalar_lea.vmem %s1, 112
  %109 = vst [vmem:[%s108] sm:$0xff] %v107
  %s110 = scalar_lea.vmem %s4, 128
  %v111 = vld [vmem:[%s110] sm:$0xff]
  %vm112 = vcmask 1041408
  %v113 = vsel %vm112, %v111, %v104
  %v114 = vrot.slane %v113, 2
  %s115 = scalar_lea.vmem %s1, 120
  %116 = vst [vmem:[%s115] sm:$0xff] %v114
  %s117 = scalar_lea.vmem %s4, 136
  %v118 = vld [vmem:[%s117] sm:$0xff]
  %vm119 = vcmask 1041408
  %v120 = vsel %vm119, %v118, %v111
  %v121 = vrot.slane %v120, 2
  %s122 = scalar_lea.vmem %s1, 128
  %123 = vst [vmem:[%s122] sm:$0xff] %v121
  %s124 = scalar_lea.vmem %s4, 144
  %v125 = vld [vmem:[%s124] sm:$0xff]
  %vm126 = vcmask 1041408
  %v127 = vsel %vm126, %v125, %v118
  %v128 = vrot.slane %v127, 2
  %s129 = scalar_lea.vmem %s1, 136
  %130 = vst [vmem:[%s129] sm:$0xff] %v128
  %s131 = scalar_lea.vmem %s4, 152
  %v132 = vld [vmem:[%s131] sm:$0xff]
  %vm133 = vcmask 1041408
  %v134 = vsel %vm133, %v132, %v125
  %v135 = vrot.slane %v134, 2
  %s136 = scalar_lea.vmem %s1, 144
  %137 = vst [vmem:[%s136] sm:$0xff] %v135
  %s138 = scalar_lea.vmem %s4, 160
  %v139 = vld [vmem:[%s138] sm:$0xff]
  %vm140 = vcmask 1041408
  %v141 = vsel %vm140, %v139, %v132
  %v142 = vrot.slane %v141, 2
  %s143 = scalar_lea.vmem %s1, 152
  %144 = vst [vmem:[%s143] sm:$0xff] %v142
  %s145 = scalar_lea.vmem %s4, 168
  %v146 = vld [vmem:[%s145] sm:$0xff]
  %vm147 = vcmask 1041408
  %v148 = vsel %vm147, %v146, %v139
  %v149 = vrot.slane %v148, 2
  %s150 = scalar_lea.vmem %s1, 160
  %151 = vst [vmem:[%s150] sm:$0xff] %v149
  %s152 = scalar_lea.vmem %s4, 176
  %v153 = vld [vmem:[%s152] sm:$0xff]
  %vm154 = vcmask 1041408
  %v155 = vsel %vm154, %v153, %v146
  %v156 = vrot.slane %v155, 2
  %s157 = scalar_lea.vmem %s1, 168
  %158 = vst [vmem:[%s157] sm:$0xff] %v156
  %s159 = scalar_lea.vmem %s4, 184
  %v160 = vld [vmem:[%s159] sm:$0xff]
  %vm161 = vcmask 1041408
  %v162 = vsel %vm161, %v160, %v153
  %v163 = vrot.slane %v162, 2
  %s164 = scalar_lea.vmem %s1, 176
  %165 = vst [vmem:[%s164] sm:$0xff] %v163
  %s166 = scalar_lea.vmem %s4, 192
  %v167 = vld [vmem:[%s166] sm:$0xff]
  %vm168 = vcmask 1041408
  %v169 = vsel %vm168, %v167, %v160
  %v170 = vrot.slane %v169, 2
  %s171 = scalar_lea.vmem %s1, 184
  %172 = vst [vmem:[%s171] sm:$0xff] %v170
  %s173 = scalar_lea.vmem %s4, 200
  %v174 = vld [vmem:[%s173] sm:$0xff]
  %vm175 = vcmask 1041408
  %v176 = vsel %vm175, %v174, %v167
  %v177 = vrot.slane %v176, 2
  %s178 = scalar_lea.vmem %s1, 192
  %179 = vst [vmem:[%s178] sm:$0xff] %v177
  %s180 = scalar_lea.vmem %s4, 208
  %v181 = vld [vmem:[%s180] sm:$0xff]
  %vm182 = vcmask 1041408
  %v183 = vsel %vm182, %v181, %v174
  %v184 = vrot.slane %v183, 2
  %s185 = scalar_lea.vmem %s1, 200
  %186 = vst [vmem:[%s185] sm:$0xff] %v184
  %s187 = scalar_lea.vmem %s4, 216
  %v188 = vld [vmem:[%s187] sm:$0xff]
  %vm189 = vcmask 1041408
  %v190 = vsel %vm189, %v188, %v181
  %v191 = vrot.slane %v190, 2
  %s192 = scalar_lea.vmem %s1, 208
  %193 = vst [vmem:[%s192] sm:$0xff] %v191
  %s194 = scalar_lea.vmem %s4, 224
  %v195 = vld [vmem:[%s194] sm:$0xff]
  %vm196 = vcmask 1041408
  %v197 = vsel %vm196, %v195, %v188
  %v198 = vrot.slane %v197, 2
  %s199 = scalar_lea.vmem %s1, 216
  %200 = vst [vmem:[%s199] sm:$0xff] %v198
  %s201 = scalar_lea.vmem %s4, 232
  %v202 = vld [vmem:[%s201] sm:$0xff]
  %vm203 = vcmask 1041408
  %v204 = vsel %vm203, %v202, %v195
  %v205 = vrot.slane %v204, 2
  %s206 = scalar_lea.vmem %s1, 224
  %207 = vst [vmem:[%s206] sm:$0xff] %v205
  %s208 = scalar_lea.vmem %s4, 240
  %v209 = vld [vmem:[%s208] sm:$0xff]
  %vm210 = vcmask 1041408
  %v211 = vsel %vm210, %v209, %v202
  %v212 = vrot.slane %v211, 2
  %s213 = scalar_lea.vmem %s1, 232
  %214 = vst [vmem:[%s213] sm:$0xff] %v212
  %s215 = scalar_lea.vmem %s4, 248
  %v216 = vld [vmem:[%s215] sm:$0xff]
  %vm217 = vcmask 1041408
  %v218 = vsel %vm217, %v216, %v209
  %v219 = vrot.slane %v218, 2
  %s220 = scalar_lea.vmem %s1, 240
  %221 = vst [vmem:[%s220] sm:$0xff] %v219
  %s222 = scalar_lea.vmem %s4, 256
  %v223 = vld [vmem:[%s222] sm:$0xff]
  %vm224 = vcmask 1041408
  %v225 = vsel %vm224, %v223, %v216
  %v226 = vrot.slane %v225, 2
  %s227 = scalar_lea.vmem %s1, 248
  %228 = vst [vmem:[%s227] sm:$0xff] %v226
  %s229 = scalar_lea.vmem %s4, 264
  %v230 = vld [vmem:[%s229] sm:$0xff]
  %vm231 = vcmask 1041408
  %v232 = vsel %vm231, %v230, %v223
  %v233 = vrot.slane %v232, 2
  %s234 = scalar_lea.vmem %s1, 256
  %235 = vst [vmem:[%s234] sm:$0xff] %v233
  %s236 = scalar_lea.vmem %s4, 272
  %v237 = vld [vmem:[%s236] sm:$0xff]
  %vm238 = vcmask 1041408
  %v239 = vsel %vm238, %v237, %v230
  %v240 = vrot.slane %v239, 2
  %s241 = scalar_lea.vmem %s1, 264
  %242 = vst [vmem:[%s241] sm:$0xff] %v240
  %s243 = scalar_lea.vmem %s4, 280
  %v244 = vld [vmem:[%s243] sm:$0xff]
  %vm245 = vcmask 1041408
  %v246 = vsel %vm245, %v244, %v237
  %v247 = vrot.slane %v246, 2
  %s248 = scalar_lea.vmem %s1, 272
  %249 = vst [vmem:[%s248] sm:$0xff] %v247
  %s250 = scalar_lea.vmem %s4, 288
  %v251 = vld [vmem:[%s250] sm:$0xff]
  %vm252 = vcmask 1041408
  %v253 = vsel %vm252, %v251, %v244
  %v254 = vrot.slane %v253, 2
  %s255 = scalar_lea.vmem %s1, 280
  %256 = vst [vmem:[%s255] sm:$0xff] %v254
  %s257 = scalar_lea.vmem %s4, 296
  %v258 = vld [vmem:[%s257] sm:$0xff]
  %vm259 = vcmask 1041408
  %v260 = vsel %vm259, %v258, %v251
  %v261 = vrot.slane %v260, 2
  %s262 = scalar_lea.vmem %s1, 288
  %263 = vst [vmem:[%s262] sm:$0xff] %v261
  %s264 = scalar_lea.vmem %s4, 304
  %v265 = vld [vmem:[%s264] sm:$0xff]
  %vm266 = vcmask 1041408
  %v267 = vsel %vm266, %v265, %v258
  %v268 = vrot.slane %v267, 2
  %s269 = scalar_lea.vmem %s1, 296
  %270 = vst [vmem:[%s269] sm:$0xff] %v268
  %s271 = scalar_lea.vmem %s4, 312
  %v272 = vld [vmem:[%s271] sm:$0xff]
  %vm273 = vcmask 1041408
  %v274 = vsel %vm273, %v272, %v265
  %v275 = vrot.slane %v274, 2
  %s276 = scalar_lea.vmem %s1, 304
  %277 = vst [vmem:[%s276] sm:$0xff] %v275
  %s278 = scalar_lea.vmem %s4, 320
  %v279 = vld [vmem:[%s278] sm:$0xff]
  %vm280 = vcmask 1041408
  %v281 = vsel %vm280, %v279, %v272
  %v282 = vrot.slane %v281, 2
  %s283 = scalar_lea.vmem %s1, 312
  %284 = vst [vmem:[%s283] sm:$0xff] %v282
  %s285 = scalar_lea.vmem %s4, 328
  %v286 = vld [vmem:[%s285] sm:$0xff]
  %vm287 = vcmask 1041408
  %v288 = vsel %vm287, %v286, %v279
  %v289 = vrot.slane %v288, 2
  %s290 = scalar_lea.vmem %s1, 320
  %291 = vst [vmem:[%s290] sm:$0xff] %v289
  %s292 = scalar_lea.vmem %s4, 336
  %v293 = vld [vmem:[%s292] sm:$0xff]
  %vm294 = vcmask 1041408
  %v295 = vsel %vm294, %v293, %v286
  %v296 = vrot.slane %v295, 2
  %s297 = scalar_lea.vmem %s1, 328
  %298 = vst [vmem:[%s297] sm:$0xff] %v296
  %s299 = scalar_lea.vmem %s4, 344
  %v300 = vld [vmem:[%s299] sm:$0xff]
  %vm301 = vcmask 1041408
  %v302 = vsel %vm301, %v300, %v293
  %v303 = vrot.slane %v302, 2
  %s304 = scalar_lea.vmem %s1, 336
  %305 = vst [vmem:[%s304] sm:$0xff] %v303
  %s306 = scalar_lea.vmem %s4, 352
  %v307 = vld [vmem:[%s306] sm:$0xff]
  %vm308 = vcmask 1041408
  %v309 = vsel %vm308, %v307, %v300
  %v310 = vrot.slane %v309, 2
  %s311 = scalar_lea.vmem %s1, 344
  %312 = vst [vmem:[%s311] sm:$0xff] %v310
  %s313 = scalar_lea.vmem %s4, 360
  %v314 = vld [vmem:[%s313] sm:$0xff]
  %vm315 = vcmask 1041408
  %v316 = vsel %vm315, %v314, %v307
  %v317 = vrot.slane %v316, 2
  %s318 = scalar_lea.vmem %s1, 352
  %319 = vst [vmem:[%s318] sm:$0xff] %v317
  %s320 = scalar_lea.vmem %s4, 368
  %v321 = vld [vmem:[%s320] sm:$0xff]
  %vm322 = vcmask 1041408
  %v323 = vsel %vm322, %v321, %v314
  %v324 = vrot.slane %v323, 2
  %s325 = scalar_lea.vmem %s1, 360
  %326 = vst [vmem:[%s325] sm:$0xff] %v324
  %s327 = scalar_lea.vmem %s4, 376
  %v328 = vld [vmem:[%s327] sm:$0xff]
  %vm329 = vcmask 1041408
  %v330 = vsel %vm329, %v328, %v321
  %v331 = vrot.slane %v330, 2
  %s332 = scalar_lea.vmem %s1, 368
  %333 = vst [vmem:[%s332] sm:$0xff] %v331
  %s334 = scalar_lea.vmem %s4, 384
  %v335 = vld [vmem:[%s334] sm:$0xff]
  %vm336 = vcmask 1041408
  %v337 = vsel %vm336, %v335, %v328
  %v338 = vrot.slane %v337, 2
  %s339 = scalar_lea.vmem %s1, 376
  %340 = vst [vmem:[%s339] sm:$0xff] %v338
  %s341 = scalar_lea.vmem %s4, 392
  %v342 = vld [vmem:[%s341] sm:$0xff]
  %vm343 = vcmask 1041408
  %v344 = vsel %vm343, %v342, %v335
  %v345 = vrot.slane %v344, 2
  %s346 = scalar_lea.vmem %s1, 384
  %347 = vst [vmem:[%s346] sm:$0xff] %v345
  %s348 = scalar_lea.vmem %s4, 400
  %v349 = vld [vmem:[%s348] sm:$0xff]
  %vm350 = vcmask 1041408
  %v351 = vsel %vm350, %v349, %v342
  %v352 = vrot.slane %v351, 2
  %s353 = scalar_lea.vmem %s1, 392
  %354 = vst [vmem:[%s353] sm:$0xff] %v352
  %s355 = scalar_lea.vmem %s4, 408
  %v356 = vld [vmem:[%s355] sm:$0xff]
  %vm357 = vcmask 1041408
  %v358 = vsel %vm357, %v356, %v349
  %v359 = vrot.slane %v358, 2
  %s360 = scalar_lea.vmem %s1, 400
  %361 = vst [vmem:[%s360] sm:$0xff] %v359
  %s362 = scalar_lea.vmem %s4, 416
  %v363 = vld [vmem:[%s362] sm:$0xff]
  %vm364 = vcmask 1041408
  %v365 = vsel %vm364, %v363, %v356
  %v366 = vrot.slane %v365, 2
  %s367 = scalar_lea.vmem %s1, 408
  %368 = vst [vmem:[%s367] sm:$0xff] %v366
  %s369 = scalar_lea.vmem %s4, 424
  %v370 = vld [vmem:[%s369] sm:$0xff]
  %vm371 = vcmask 1041408
  %v372 = vsel %vm371, %v370, %v363
  %v373 = vrot.slane %v372, 2
  %s374 = scalar_lea.vmem %s1, 416
  %375 = vst [vmem:[%s374] sm:$0xff] %v373
  %s376 = scalar_lea.vmem %s4, 432
  %v377 = vld [vmem:[%s376] sm:$0xff]
  %vm378 = vcmask 1041408
  %v379 = vsel %vm378, %v377, %v370
  %v380 = vrot.slane %v379, 2
  %s381 = scalar_lea.vmem %s1, 424
  %382 = vst [vmem:[%s381] sm:$0xff] %v380
  %s383 = scalar_lea.vmem %s4, 440
  %v384 = vld [vmem:[%s383] sm:$0xff]
  %vm385 = vcmask 1041408
  %v386 = vsel %vm385, %v384, %v377
  %v387 = vrot.slane %v386, 2
  %s388 = scalar_lea.vmem %s1, 432
  %389 = vst [vmem:[%s388] sm:$0xff] %v387
  %s390 = scalar_lea.vmem %s4, 448
  %v391 = vld [vmem:[%s390] sm:$0xff]
  %vm392 = vcmask 1041408
  %v393 = vsel %vm392, %v391, %v384
  %v394 = vrot.slane %v393, 2
  %s395 = scalar_lea.vmem %s1, 440
  %396 = vst [vmem:[%s395] sm:$0xff] %v394
  %s397 = scalar_lea.vmem %s4, 456
  %v398 = vld [vmem:[%s397] sm:$0xff]
  %vm399 = vcmask 1041408
  %v400 = vsel %vm399, %v398, %v391
  %v401 = vrot.slane %v400, 2
  %s402 = scalar_lea.vmem %s1, 448
  %403 = vst [vmem:[%s402] sm:$0xff] %v401
  %s404 = scalar_lea.vmem %s4, 464
  %v405 = vld [vmem:[%s404] sm:$0xff]
  %vm406 = vcmask 1041408
  %v407 = vsel %vm406, %v405, %v398
  %v408 = vrot.slane %v407, 2
  %s409 = scalar_lea.vmem %s1, 456
  %410 = vst [vmem:[%s409] sm:$0xff] %v408
  %s411 = scalar_lea.vmem %s4, 472
  %v412 = vld [vmem:[%s411] sm:$0xff]
  %vm413 = vcmask 1041408
  %v414 = vsel %vm413, %v412, %v405
  %v415 = vrot.slane %v414, 2
  %s416 = scalar_lea.vmem %s1, 464
  %417 = vst [vmem:[%s416] sm:$0xff] %v415
  %s418 = scalar_lea.vmem %s4, 480
  %v419 = vld [vmem:[%s418] sm:$0xff]
  %vm420 = vcmask 1041408
  %v421 = vsel %vm420, %v419, %v412
  %v422 = vrot.slane %v421, 2
  %s423 = scalar_lea.vmem %s1, 472
  %424 = vst [vmem:[%s423] sm:$0xff] %v422
  %s425 = scalar_lea.vmem %s4, 488
  %v426 = vld [vmem:[%s425] sm:$0xff]
  %vm427 = vcmask 1041408
  %v428 = vsel %vm427, %v426, %v419
  %v429 = vrot.slane %v428, 2
  %s430 = scalar_lea.vmem %s1, 480
  %431 = vst [vmem:[%s430] sm:$0xff] %v429
  %s432 = scalar_lea.vmem %s4, 496
  %v433 = vld [vmem:[%s432] sm:$0xff]
  %vm434 = vcmask 1041408
  %v435 = vsel %vm434, %v433, %v426
  %v436 = vrot.slane %v435, 2
  %s437 = scalar_lea.vmem %s1, 488
  %438 = vst [vmem:[%s437] sm:$0xff] %v436
  %s439 = scalar_lea.vmem %s4, 504
  %v440 = vld [vmem:[%s439] sm:$0xff]
  %vm441 = vcmask 1041408
  %v442 = vsel %vm441, %v440, %v433
  %v443 = vrot.slane %v442, 2
  %s444 = scalar_lea.vmem %s1, 496
  %445 = vst [vmem:[%s444] sm:$0xff] %v443
  %s446 = scalar_lea.vmem %s4, 512
  %v447 = vld [vmem:[%s446] sm:$0xff]
  %vm448 = vcmask 1041408
  %v449 = vsel %vm448, %v447, %v440
  %v450 = vrot.slane %v449, 2
  %s451 = scalar_lea.vmem %s1, 504
  %452 = vst [vmem:[%s451] sm:$0xff] %v450

// kernel: split.3
$region0: #{split.3}
  #allocation0 [shape = 'u32[2048]{0}', space=vmem, size = 0x2000, scoped, tag = 'scoped memory for split.3']
  #allocation1 [shape = 'u32[2048]{0}', space=vmem, size = 0x2000, scoped, tag = 'scoped memory for split.3']
  #allocation2 [shape = 'u32[2048]{0}', space=vmem, size = 0x2000, scoped, tag = 'scoped memory for split.3']
  #allocation3 [shape = 'u32[2048]{0}', space=vmem, size = 0x2000, scoped, tag = 'scoped memory for split.3']
  #allocation4 [shape = 'u32[2048]{0}', space=vmem, size = 0x2000, scoped, tag = 'scoped memory for split.3']
  #allocation5 [shape = 's32[1]{0}', space=sflag, size = 0x4, scoped, tag = 'scoped memory for split.3']
  %s0 = inlined_call_operand.vmem [shape: f32[105856], index: 0, kind: input, shape index: {}]
  %s1 = inlined_call_operand.vmem [shape: f32[32768], index: 1, kind: output, shape index: {}]
  %s2 = scalar_lea.vmem %s0, 568
  %s3 = scalar_lea.vmem %s0, 568
  %s4 = scalar_lea.vmem %s0, 568
  %v5 = vld [vmem:[%s4] sm:$0xff]
  %s6 = scalar_lea.vmem %s4, 8
  %v7 = vld [vmem:[%s6] sm:$0xff]
  %vm8 = vcmask 1042432
  %v9 = vsel %vm8, %v7, %v5
  %v10 = vrot.slane %v9, 3
  %11 = vst [vmem:[%s1] sm:$0xff] %v10
  %s12 = scalar_lea.vmem %s4, 16
  %v13 = vld [vmem:[%s12] sm:$0xff]
  %vm14 = vcmask 1042432
  %v15 = vsel %vm14, %v13, %v7
  %v16 = vrot.slane %v15, 3
  %s17 = scalar_lea.vmem %s1, 8
  %18 = vst [vmem:[%s17] sm:$0xff] %v16
  %s19 = scalar_lea.vmem %s4, 24
  %v20 = vld [vmem:[%s19] sm:$0xff]
  %vm21 = vcmask 1042432
  %v22 = vsel %vm21, %v20, %v13
  %v23 = vrot.slane %v22, 3
  %s24 = scalar_lea.vmem %s1, 16
  %25 = vst [vmem:[%s24] sm:$0xff] %v23
  %s26 = scalar_lea.vmem %s4, 32
  %v27 = vld [vmem:[%s26] sm:$0xff]
  %vm28 = vcmask 1042432
  %v29 = vsel %vm28, %v27, %v20
  %v30 = vrot.slane %v29, 3
  %s31 = scalar_lea.vmem %s1, 24
  %32 = vst [vmem:[%s31] sm:$0xff] %v30
  %s33 = scalar_lea.vmem %s4, 40
  %v34 = vld [vmem:[%s33] sm:$0xff]
  %vm35 = vcmask 1042432
  %v36 = vsel %vm35, %v34, %v27
  %v37 = vrot.slane %v36, 3
  %s38 = scalar_lea.vmem %s1, 32
  %39 = vst [vmem:[%s38] sm:$0xff] %v37
  %s40 = scalar_lea.vmem %s4, 48
  %v41 = vld [vmem:[%s40] sm:$0xff]
  %vm42 = vcmask 1042432
  %v43 = vsel %vm42, %v41, %v34
  %v44 = vrot.slane %v43, 3
  %s45 = scalar_lea.vmem %s1, 40
  %46 = vst [vmem:[%s45] sm:$0xff] %v44
  %s47 = scalar_lea.vmem %s4, 56
  %v48 = vld [vmem:[%s47] sm:$0xff]
  %vm49 = vcmask 1042432
  %v50 = vsel %vm49, %v48, %v41
  %v51 = vrot.slane %v50, 3
  %s52 = scalar_lea.vmem %s1, 48
  %53 = vst [vmem:[%s52] sm:$0xff] %v51
  %s54 = scalar_lea.vmem %s4, 64
  %v55 = vld [vmem:[%s54] sm:$0xff]
  %vm56 = vcmask 1042432
  %v57 = vsel %vm56, %v55, %v48
  %v58 = vrot.slane %v57, 3
  %s59 = scalar_lea.vmem %s1, 56
  %60 = vst [vmem:[%s59] sm:$0xff] %v58
  %s61 = scalar_lea.vmem %s4, 72
  %v62 = vld [vmem:[%s61] sm:$0xff]
  %vm63 = vcmask 1042432
  %v64 = vsel %vm63, %v62, %v55
  %v65 = vrot.slane %v64, 3
  %s66 = scalar_lea.vmem %s1, 64
  %67 = vst [vmem:[%s66] sm:$0xff] %v65
  %s68 = scalar_lea.vmem %s4, 80
  %v69 = vld [vmem:[%s68] sm:$0xff]
  %vm70 = vcmask 1042432
  %v71 = vsel %vm70, %v69, %v62
  %v72 = vrot.slane %v71, 3
  %s73 = scalar_lea.vmem %s1, 72
  %74 = vst [vmem:[%s73] sm:$0xff] %v72
  %s75 = scalar_lea.vmem %s4, 88
  %v76 = vld [vmem:[%s75] sm:$0xff]
  %vm77 = vcmask 1042432
  %v78 = vsel %vm77, %v76, %v69
  %v79 = vrot.slane %v78, 3
  %s80 = scalar_lea.vmem %s1, 80
  %81 = vst [vmem:[%s80] sm:$0xff] %v79
  %s82 = scalar_lea.vmem %s4, 96
  %v83 = vld [vmem:[%s82] sm:$0xff]
  %vm84 = vcmask 1042432
  %v85 = vsel %vm84, %v83, %v76
  %v86 = vrot.slane %v85, 3
  %s87 = scalar_lea.vmem %s1, 88
  %88 = vst [vmem:[%s87] sm:$0xff] %v86
  %s89 = scalar_lea.vmem %s4, 104
  %v90 = vld [vmem:[%s89] sm:$0xff]
  %vm91 = vcmask 1042432
  %v92 = vsel %vm91, %v90, %v83
  %v93 = vrot.slane %v92, 3
  %s94 = scalar_lea.vmem %s1, 96
  %95 = vst [vmem:[%s94] sm:$0xff] %v93
  %s96 = scalar_lea.vmem %s4, 112
  %v97 = vld [vmem:[%s96] sm:$0xff]
  %vm98 = vcmask 1042432
  %v99 = vsel %vm98, %v97, %v90
  %v100 = vrot.slane %v99, 3
  %s101 = scalar_lea.vmem %s1, 104
  %102 = vst [vmem:[%s101] sm:$0xff] %v100
  %s103 = scalar_lea.vmem %s4, 120
  %v104 = vld [vmem:[%s103] sm:$0xff]
  %vm105 = vcmask 1042432
  %v106 = vsel %vm105, %v104, %v97
  %v107 = vrot.slane %v106, 3
  %s108 = scalar_lea.vmem %s1, 112
  %109 = vst [vmem:[%s108] sm:$0xff] %v107
  %s110 = scalar_lea.vmem %s4, 128
  %v111 = vld [vmem:[%s110] sm:$0xff]
  %vm112 = vcmask 1042432
  %v113 = vsel %vm112, %v111, %v104
  %v114 = vrot.slane %v113, 3
  %s115 = scalar_lea.vmem %s1, 120
  %116 = vst [vmem:[%s115] sm:$0xff] %v114
  %s117 = scalar_lea.vmem %s4, 136
  %v118 = vld [vmem:[%s117] sm:$0xff]
  %vm119 = vcmask 1042432
  %v120 = vsel %vm119, %v118, %v111
  %v121 = vrot.slane %v120, 3
  %s122 = scalar_lea.vmem %s1, 128
  %123 = vst [vmem:[%s122] sm:$0xff] %v121
  %s124 = scalar_lea.vmem %s4, 144
  %v125 = vld [vmem:[%s124] sm:$0xff]
  %vm126 = vcmask 1042432
  %v127 = vsel %vm126, %v125, %v118
  %v128 = vrot.slane %v127, 3
  %s129 = scalar_lea.vmem %s1, 136
  %130 = vst [vmem:[%s129] sm:$0xff] %v128
  %s131 = scalar_lea.vmem %s4, 152
  %v132 = vld [vmem:[%s131] sm:$0xff]
  %vm133 = vcmask 1042432
  %v134 = vsel %vm133, %v132, %v125
  %v135 = vrot.slane %v134, 3
  %s136 = scalar_lea.vmem %s1, 144
  %137 = vst [vmem:[%s136] sm:$0xff] %v135
  %s138 = scalar_lea.vmem %s4, 160
  %v139 = vld [vmem:[%s138] sm:$0xff]
  %vm140 = vcmask 1042432
  %v141 = vsel %vm140, %v139, %v132
  %v142 = vrot.slane %v141, 3
  %s143 = scalar_lea.vmem %s1, 152
  %144 = vst [vmem:[%s143] sm:$0xff] %v142
  %s145 = scalar_lea.vmem %s4, 168
  %v146 = vld [vmem:[%s145] sm:$0xff]
  %vm147 = vcmask 1042432
  %v148 = vsel %vm147, %v146, %v139
  %v149 = vrot.slane %v148, 3
  %s150 = scalar_lea.vmem %s1, 160
  %151 = vst [vmem:[%s150] sm:$0xff] %v149
  %s152 = scalar_lea.vmem %s4, 176
  %v153 = vld [vmem:[%s152] sm:$0xff]
  %vm154 = vcmask 1042432
  %v155 = vsel %vm154, %v153, %v146
  %v156 = vrot.slane %v155, 3
  %s157 = scalar_lea.vmem %s1, 168
  %158 = vst [vmem:[%s157] sm:$0xff] %v156
  %s159 = scalar_lea.vmem %s4, 184
  %v160 = vld [vmem:[%s159] sm:$0xff]
  %vm161 = vcmask 1042432
  %v162 = vsel %vm161, %v160, %v153
  %v163 = vrot.slane %v162, 3
  %s164 = scalar_lea.vmem %s1, 176
  %165 = vst [vmem:[%s164] sm:$0xff] %v163
  %s166 = scalar_lea.vmem %s4, 192
  %v167 = vld [vmem:[%s166] sm:$0xff]
  %vm168 = vcmask 1042432
  %v169 = vsel %vm168, %v167, %v160
  %v170 = vrot.slane %v169, 3
  %s171 = scalar_lea.vmem %s1, 184
  %172 = vst [vmem:[%s171] sm:$0xff] %v170
  %s173 = scalar_lea.vmem %s4, 200
  %v174 = vld [vmem:[%s173] sm:$0xff]
  %vm175 = vcmask 1042432
  %v176 = vsel %vm175, %v174, %v167
  %v177 = vrot.slane %v176, 3
  %s178 = scalar_lea.vmem %s1, 192
  %179 = vst [vmem:[%s178] sm:$0xff] %v177
  %s180 = scalar_lea.vmem %s4, 208
  %v181 = vld [vmem:[%s180] sm:$0xff]
  %vm182 = vcmask 1042432
  %v183 = vsel %vm182, %v181, %v174
  %v184 = vrot.slane %v183, 3
  %s185 = scalar_lea.vmem %s1, 200
  %186 = vst [vmem:[%s185] sm:$0xff] %v184
  %s187 = scalar_lea.vmem %s4, 216
  %v188 = vld [vmem:[%s187] sm:$0xff]
  %vm189 = vcmask 1042432
  %v190 = vsel %vm189, %v188, %v181
  %v191 = vrot.slane %v190, 3
  %s192 = scalar_lea.vmem %s1, 208
  %193 = vst [vmem:[%s192] sm:$0xff] %v191
  %s194 = scalar_lea.vmem %s4, 224
  %v195 = vld [vmem:[%s194] sm:$0xff]
  %vm196 = vcmask 1042432
  %v197 = vsel %vm196, %v195, %v188
  %v198 = vrot.slane %v197, 3
  %s199 = scalar_lea.vmem %s1, 216
  %200 = vst [vmem:[%s199] sm:$0xff] %v198
  %s201 = scalar_lea.vmem %s4, 232
  %v202 = vld [vmem:[%s201] sm:$0xff]
  %vm203 = vcmask 1042432
  %v204 = vsel %vm203, %v202, %v195
  %v205 = vrot.slane %v204, 3
  %s206 = scalar_lea.vmem %s1, 224
  %207 = vst [vmem:[%s206] sm:$0xff] %v205
  %s208 = scalar_lea.vmem %s4, 240
  %v209 = vld [vmem:[%s208] sm:$0xff]
  %vm210 = vcmask 1042432
  %v211 = vsel %vm210, %v209, %v202
  %v212 = vrot.slane %v211, 3
  %s213 = scalar_lea.vmem %s1, 232
  %214 = vst [vmem:[%s213] sm:$0xff] %v212
  %s215 = scalar_lea.vmem %s4, 248
  %v216 = vld [vmem:[%s215] sm:$0xff]
  %vm217 = vcmask 1042432
  %v218 = vsel %vm217, %v216, %v209
  %v219 = vrot.slane %v218, 3
  %s220 = scalar_lea.vmem %s1, 240
  %221 = vst [vmem:[%s220] sm:$0xff] %v219
  %s222 = scalar_lea.vmem %s4, 256
  %v223 = vld [vmem:[%s222] sm:$0xff]
  %vm224 = vcmask 1042432
  %v225 = vsel %vm224, %v223, %v216
  %v226 = vrot.slane %v225, 3
  %s227 = scalar_lea.vmem %s1, 248
  %228 = vst [vmem:[%s227] sm:$0xff] %v226

// kernel: split.2
$region0: #{split.2}
  #allocation0 [shape = 'u32[2048]{0}', space=vmem, size = 0x2000, scoped, tag = 'scoped memory for split.2']
  #allocation1 [shape = 'u32[2048]{0}', space=vmem, size = 0x2000, scoped, tag = 'scoped memory for split.2']
  #allocation2 [shape = 'u32[2048]{0}', space=vmem, size = 0x2000, scoped, tag = 'scoped memory for split.2']
  #allocation3 [shape = 'u32[2048]{0}', space=vmem, size = 0x2000, scoped, tag = 'scoped memory for split.2']
  #allocation4 [shape = 'u32[2048]{0}', space=vmem, size = 0x2000, scoped, tag = 'scoped memory for split.2']
  #allocation5 [shape = 's32[1]{0}', space=sflag, size = 0x4, scoped, tag = 'scoped memory for split.2']
  %s0 = inlined_call_operand.vmem [shape: f32[105856], index: 0, kind: input, shape index: {}]
  %s1 = inlined_call_operand.vmem [shape: f32[256], index: 1, kind: output, shape index: {}]
  %s2 = scalar_lea.vmem %s0, 56
  %s3 = scalar_lea.vmem %s0, 56
  %s4 = scalar_lea.vmem %s0, 56
  %v5 = vld [vmem:[%s4] sm:$0xff]
  %6 = vst [vmem:[%s1] sm:$0x3] %v5

// kernel: moco_forward.12
$region0: #{moco_forward.12}
  #allocation0 [shape = 'u32[]', space=smem, size = 0x4, offset = 0x4, fixed_abs, tag = 'smem constant byte address 0x4 - core index']
  #allocation1 [shape = 'u32[144,128]{1,0:T(1,128)}', space=vmem, size = 0x12000, scoped, tag = 'internal scratch']
  %s0 = inlined_call_operand.vmem [shape: bf16[8,256], index: 0, kind: input, shape index: {}]
  %s1 = inlined_call_operand.vmem [shape: bf16[256,256], index: 1, kind: input, shape index: {}]
  %s2 = inlined_call_operand.vmem [shape: f32[1,256], index: 2, kind: input, shape index: {}]
  %s3 = inlined_call_operand.vmem [shape: bf16[256,128], index: 3, kind: input, shape index: {}]
  %s4 = inlined_call_operand.vmem [shape: f32[1,128], index: 4, kind: input, shape index: {}]
  %s5 = inlined_call_operand.vmem [shape: f32[8,128], index: 5, kind: output, shape index: {}]
  %s6 = sld [smem:[#allocation0]]
  $region30: #{moco_forward.12} parent=0
    _
  %s8 = ssub.s32 1, %s6
  %s9 = scalar_select 0, %s8, %s6
  // Predicated region
  $region2: #{moco_forward.12} parent=0 // pred_check
    _
  $region3: #{moco_forward.12} parent=0 // pred_check_branch
    %11 = sbr.rel (0) target = $region5
  $region4: #{moco_forward.12} parent=0 // pred_region
    _
  $region5: #{moco_forward.12} parent=0 // pred_fallthru
    _
  // Predicated region
  $region6: #{moco_forward.12} parent=0 // pred_check
    _
  $region7: #{moco_forward.12} parent=0 // pred_check_branch
    %13 = sbr.rel (0) target = $region9
  $region8: #{moco_forward.12} parent=0 // pred_region
    _
  $region9: #{moco_forward.12} parent=0 // pred_fallthru
    _
  // Predicated region
  $region10: #{moco_forward.12} parent=0 // pred_check
    _
  $region11: #{moco_forward.12} parent=0 // pred_check_branch
    %15 = sbr.rel (0) target = $region13
  $region12: #{moco_forward.12} parent=0 // pred_region
    _
  $region13: #{moco_forward.12} parent=0 // pred_fallthru
    _
  // Predicated region
  $region14: #{moco_forward.12} parent=0 // pred_check
    _
  $region15: #{moco_forward.12} parent=0 // pred_check_branch
    %17 = sbr.rel (0) target = $region17
  $region16: #{moco_forward.12} parent=0 // pred_region
    _
  $region17: #{moco_forward.12} parent=0 // pred_fallthru
    _
  // Predicated region
  $region18: #{moco_forward.12} parent=0 // pred_check
    _
  $region19: #{moco_forward.12} parent=0 // pred_check_branch
    %19 = sbr.rel (0) target = $region21
  $region20: #{moco_forward.12} parent=0 // pred_region
    _
  $region21: #{moco_forward.12} parent=0 // pred_fallthru
    _
  %v21 = vld [vmem:[%s0] sm:$0xff]
  %v22 = vld [vmem:[%s1] sm:$0xff]
  %v23 = vld [vmem:[%s1 + $0x8] sm:$0xff]
  %v24 = vld [vmem:[%s1 + $0x10] sm:$0xff]
  %v25 = vld [vmem:[%s1 + $0x18] sm:$0xff]
  %v26 = vld [vmem:[%s1 + $0x20] sm:$0xff]
  %v27 = vld [vmem:[%s1 + $0x28] sm:$0xff]
  %v28 = vld [vmem:[%s1 + $0x30] sm:$0xff]
  %v29 = vld [vmem:[%s1 + $0x38] sm:$0xff]
  %v30 = vld [vmem:[%s1 + $0x40] sm:$0xff]
  %v31 = vld [vmem:[%s1 + $0x48] sm:$0xff]
  %v32 = vld [vmem:[%s1 + $0x50] sm:$0xff]
  %v33 = vld [vmem:[%s1 + $0x58] sm:$0xff]
  %v34 = vld [vmem:[%s1 + $0x60] sm:$0xff]
  %v35 = vld [vmem:[%s1 + $0x68] sm:$0xff]
  %v36 = vld [vmem:[%s1 + $0x70] sm:$0xff]
  %v37 = vld [vmem:[%s1 + $0x78] sm:$0xff]
  %v38 = vld [vmem:[%s1 + $0x80] sm:$0xff]
  %v39 = vld [vmem:[%s1 + $0x88] sm:$0xff]
  %v40 = vld [vmem:[%s1 + $0x90] sm:$0xff]
  %v41 = vld [vmem:[%s1 + $0x98] sm:$0xff]
  %v42 = vld [vmem:[%s1 + $0xa0] sm:$0xff]
  %v43 = vld [vmem:[%s1 + $0xa8] sm:$0xff]
  %v44 = vld [vmem:[%s1 + $0xb0] sm:$0xff]
  %v45 = vld [vmem:[%s1 + $0xb8] sm:$0xff]
  %v46 = vld [vmem:[%s1 + $0xc0] sm:$0xff]
  %v47 = vld [vmem:[%s1 + $0xc8] sm:$0xff]
  %v48 = vld [vmem:[%s1 + $0xd0] sm:$0xff]
  %v49 = vld [vmem:[%s1 + $0xd8] sm:$0xff]
  %v50 = vld [vmem:[%s1 + $0xe0] sm:$0xff]
  %v51 = vld [vmem:[%s1 + $0xe8] sm:$0xff]
  %v52 = vld [vmem:[%s1 + $0xf0] sm:$0xff]
  %v53 = vld [vmem:[%s1 + $0xf8] sm:$0xff]
  %v54 = vld [vmem:[%s2] sm:$0x3]
  %v56 = vlaneseq
  %v57 = vshrl.u32 %v56, 7
  %v58 = vsub.s32 0, %v57
  %v59 = vrot.slane %v54, %v58
  %v60 = vlaneseq
  %v61 = vshrl.u32 %v60, 7
  %v62 = vsub.s32 1, %v61
  %v63 = vrot.slane %v54, %v62
  %v67 = vunpack.c.l.b16 %v21
  %v68 = vunpack.c.h.b16 %v21
  %v69 = vpack.c.b16 %v67, %v67
  %v70 = vpack.c.b16 %v68, %v68
  %v105 = vunpack.c.l.b16 %v22
  %v106 = vunpack.c.h.b16 %v22
  %v107 = vunpack.c.l.b16 %v23
  %v108 = vunpack.c.h.b16 %v23
  %v109 = vunpack.c.l.b16 %v24
  %v110 = vunpack.c.h.b16 %v24
  %v111 = vunpack.c.l.b16 %v25
  %v112 = vunpack.c.h.b16 %v25
  %v113 = vunpack.c.l.b16 %v26
  %v114 = vunpack.c.h.b16 %v26
  %v115 = vunpack.c.l.b16 %v27
  %v116 = vunpack.c.h.b16 %v27
  %v117 = vunpack.c.l.b16 %v28
  %v118 = vunpack.c.h.b16 %v28
  %v119 = vunpack.c.l.b16 %v29
  %v120 = vunpack.c.h.b16 %v29
  %v121 = vunpack.c.l.b16 %v30
  %v122 = vunpack.c.h.b16 %v30
  %v123 = vunpack.c.l.b16 %v31
  %v124 = vunpack.c.h.b16 %v31
  %v125 = vunpack.c.l.b16 %v32
  %v126 = vunpack.c.h.b16 %v32
  %v127 = vunpack.c.l.b16 %v33
  %v128 = vunpack.c.h.b16 %v33
  %v129 = vunpack.c.l.b16 %v34
  %v130 = vunpack.c.h.b16 %v34
  %v131 = vunpack.c.l.b16 %v35
  %v132 = vunpack.c.h.b16 %v35
  %v133 = vunpack.c.l.b16 %v36
  %v134 = vunpack.c.h.b16 %v36
  %v135 = vunpack.c.l.b16 %v37
  %v136 = vunpack.c.h.b16 %v37
  %v137 = vunpack.c.l.b16 %v38
  %v138 = vunpack.c.h.b16 %v38
  %v139 = vunpack.c.l.b16 %v39
  %v140 = vunpack.c.h.b16 %v39
  %v141 = vunpack.c.l.b16 %v40
  %v142 = vunpack.c.h.b16 %v40
  %v143 = vunpack.c.l.b16 %v41
  %v144 = vunpack.c.h.b16 %v41
  %v145 = vunpack.c.l.b16 %v42
  %v146 = vunpack.c.h.b16 %v42
  %v147 = vunpack.c.l.b16 %v43
  %v148 = vunpack.c.h.b16 %v43
  %v149 = vunpack.c.l.b16 %v44
  %v150 = vunpack.c.h.b16 %v44
  %v151 = vunpack.c.l.b16 %v45
  %v152 = vunpack.c.h.b16 %v45
  %v153 = vunpack.c.l.b16 %v46
  %v154 = vunpack.c.h.b16 %v46
  %v155 = vunpack.c.l.b16 %v47
  %v156 = vunpack.c.h.b16 %v47
  %v157 = vunpack.c.l.b16 %v48
  %v158 = vunpack.c.h.b16 %v48
  %v159 = vunpack.c.l.b16 %v49
  %v160 = vunpack.c.h.b16 %v49
  %v161 = vunpack.c.l.b16 %v50
  %v162 = vunpack.c.h.b16 %v50
  %v163 = vunpack.c.l.b16 %v51
  %v164 = vunpack.c.h.b16 %v51
  %v165 = vunpack.c.l.b16 %v52
  %v166 = vunpack.c.h.b16 %v52
  %v167 = vunpack.c.l.b16 %v53
  %v168 = vunpack.c.h.b16 %v53
  %v169 = vpack.c.b16 %v107, %v105
  %v170 = vpack.c.b16 %v108, %v106
  %v171 = vpack.c.b16 %v111, %v109
  %v172 = vpack.c.b16 %v112, %v110
  %v173 = vpack.c.b16 %v115, %v113
  %v174 = vpack.c.b16 %v116, %v114
  %v175 = vpack.c.b16 %v119, %v117
  %v176 = vpack.c.b16 %v120, %v118
  %v177 = vpack.c.b16 %v123, %v121
  %v178 = vpack.c.b16 %v124, %v122
  %v179 = vpack.c.b16 %v127, %v125
  %v180 = vpack.c.b16 %v128, %v126
  %v181 = vpack.c.b16 %v131, %v129
  %v182 = vpack.c.b16 %v132, %v130
  %v183 = vpack.c.b16 %v135, %v133
  %v184 = vpack.c.b16 %v136, %v134
  %v185 = vpack.c.b16 %v139, %v137
  %v186 = vpack.c.b16 %v140, %v138
  %v187 = vpack.c.b16 %v143, %v141
  %v188 = vpack.c.b16 %v144, %v142
  %v189 = vpack.c.b16 %v147, %v145
  %v190 = vpack.c.b16 %v148, %v146
  %v191 = vpack.c.b16 %v151, %v149
  %v192 = vpack.c.b16 %v152, %v150
  %v193 = vpack.c.b16 %v155, %v153
  %v194 = vpack.c.b16 %v156, %v154
  %v195 = vpack.c.b16 %v159, %v157
  %v196 = vpack.c.b16 %v160, %v158
  %v197 = vpack.c.b16 %v163, %v161
  %v198 = vpack.c.b16 %v164, %v162
  %v199 = vpack.c.b16 %v167, %v165
  %v200 = vpack.c.b16 %v168, %v166
  %233 = vmatprep.subr.bf16.mxu0 %v170
  %234 = vmatpush1.bf16.msra.mxu0 %v169
  %235 = vmatprep.subr.bf16.mxu0 %v172
  %236 = vmatpush1.bf16.msra.mxu0 %v171
  %237 = vmatprep.subr.bf16.mxu0 %v174
  %238 = vmatpush1.bf16.msra.mxu0 %v173
  %239 = vmatprep.subr.bf16.mxu0 %v176
  %240 = vmatpush1.bf16.msra.mxu0 %v175
  %241 = vmatprep.subr.bf16.mxu0 %v178
  %242 = vmatpush1.bf16.msra.mxu0 %v177
  %243 = vmatprep.subr.bf16.mxu0 %v180
  %244 = vmatpush1.bf16.msra.mxu0 %v179
  %245 = vmatprep.subr.bf16.mxu0 %v182
  %246 = vmatpush1.bf16.msra.mxu0 %v181
  %247 = vmatprep.subr.bf16.mxu0 %v184
  %248 = vmatpush1.bf16.msra.mxu0 %v183
  %249 = vmatprep.subr.bf16.mxu0 %v186
  %250 = vmatpush1.bf16.msra.mxu0 %v185
  %251 = vmatprep.subr.bf16.mxu0 %v188
  %252 = vmatpush1.bf16.msra.mxu0 %v187
  %253 = vmatprep.subr.bf16.mxu0 %v190
  %254 = vmatpush1.bf16.msra.mxu0 %v189
  %255 = vmatprep.subr.bf16.mxu0 %v192
  %256 = vmatpush1.bf16.msra.mxu0 %v191
  %257 = vmatprep.subr.bf16.mxu0 %v194
  %258 = vmatpush1.bf16.msra.mxu0 %v193
  %259 = vmatprep.subr.bf16.mxu0 %v196
  %260 = vmatpush1.bf16.msra.mxu0 %v195
  %261 = vmatprep.subr.bf16.mxu0 %v198
  %262 = vmatpush1.bf16.msra.mxu0 %v197
  %263 = vmatprep.subr.bf16.mxu0 %v200
  %264 = vmatpush1.bf16.msra.mxu0 %v199
  %265 = vmatprep.mubr.bf16.mxu0 %v70
  %266 = vmatmul.mubr.bf16.gmra.mrb[0].mxu0 %v69
  %v267 = vpop.f32.mrb[0].mxu0
  %v268 = vadd.f32 %v59, %v267
  %v269 = vpop.f32.mrb[0].mxu0
  %v270 = vadd.f32 %v63, %v269
  %v271 = vpop.f32.mrb[0].mxu0
  %v272 = vpop.f32.mrb[0].mxu0
  %273 = vdwg.mxu0
  %v274 = vmax.f32 %v268, 0.0
  %v275 = vmax.f32 %v270, 0.0
  %v276 = vpack.c.bf16 %v274, %v274
  %v277 = vpack.c.bf16 %v275, %v275
  %v278 = vld [vmem:[%s3] sm:$0xf]
  %v279 = vld [vmem:[%s3 + $0x4] sm:$0xf]
  %v280 = vld [vmem:[%s3 + $0x8] sm:$0xf]
  %v281 = vld [vmem:[%s3 + $0xc] sm:$0xf]
  %v282 = vld [vmem:[%s3 + $0x10] sm:$0xf]
  %v283 = vld [vmem:[%s3 + $0x14] sm:$0xf]
  %v284 = vld [vmem:[%s3 + $0x18] sm:$0xf]
  %v285 = vld [vmem:[%s3 + $0x1c] sm:$0xf]
  %v286 = vld [vmem:[%s3 + $0x20] sm:$0xf]
  %v287 = vld [vmem:[%s3 + $0x24] sm:$0xf]
  %v288 = vld [vmem:[%s3 + $0x28] sm:$0xf]
  %v289 = vld [vmem:[%s3 + $0x2c] sm:$0xf]
  %v290 = vld [vmem:[%s3 + $0x30] sm:$0xf]
  %v291 = vld [vmem:[%s3 + $0x34] sm:$0xf]
  %v292 = vld [vmem:[%s3 + $0x38] sm:$0xf]
  %v293 = vld [vmem:[%s3 + $0x3c] sm:$0xf]
  %v294 = vld [vmem:[%s3 + $0x40] sm:$0xf]
  %v295 = vld [vmem:[%s3 + $0x44] sm:$0xf]
  %v296 = vld [vmem:[%s3 + $0x48] sm:$0xf]
  %v297 = vld [vmem:[%s3 + $0x4c] sm:$0xf]
  %v298 = vld [vmem:[%s3 + $0x50] sm:$0xf]
  %v299 = vld [vmem:[%s3 + $0x54] sm:$0xf]
  %v300 = vld [vmem:[%s3 + $0x58] sm:$0xf]
  %v301 = vld [vmem:[%s3 + $0x5c] sm:$0xf]
  %v302 = vld [vmem:[%s3 + $0x60] sm:$0xf]
  %v303 = vld [vmem:[%s3 + $0x64] sm:$0xf]
  %v304 = vld [vmem:[%s3 + $0x68] sm:$0xf]
  %v305 = vld [vmem:[%s3 + $0x6c] sm:$0xf]
  %v306 = vld [vmem:[%s3 + $0x70] sm:$0xf]
  %v307 = vld [vmem:[%s3 + $0x74] sm:$0xf]
  %v308 = vld [vmem:[%s3 + $0x78] sm:$0xf]
  %v309 = vld [vmem:[%s3 + $0x7c] sm:$0xf]
  %v310 = vld [vmem:[%s4] sm:$0x1]
  %v312 = vlaneseq
  %v313 = vshrl.u32 %v312, 7
  %v314 = vsub.s32 0, %v313
  %v315 = vrot.slane %v310, %v314
  %v349 = vunpack.c.l.b16 %v278
  %v350 = vunpack.c.l.b16 %v279
  %v351 = vunpack.c.l.b16 %v280
  %v352 = vunpack.c.l.b16 %v281
  %v353 = vunpack.c.l.b16 %v282
  %v354 = vunpack.c.l.b16 %v283
  %v355 = vunpack.c.l.b16 %v284
  %v356 = vunpack.c.l.b16 %v285
  %v357 = vunpack.c.l.b16 %v286
  %v358 = vunpack.c.l.b16 %v287
  %v359 = vunpack.c.l.b16 %v288
  %v360 = vunpack.c.l.b16 %v289
  %v361 = vunpack.c.l.b16 %v290
  %v362 = vunpack.c.l.b16 %v291
  %v363 = vunpack.c.l.b16 %v292
  %v364 = vunpack.c.l.b16 %v293
  %v365 = vunpack.c.l.b16 %v294
  %v366 = vunpack.c.l.b16 %v295
  %v367 = vunpack.c.l.b16 %v296
  %v368 = vunpack.c.l.b16 %v297
  %v369 = vunpack.c.l.b16 %v298
  %v370 = vunpack.c.l.b16 %v299
  %v371 = vunpack.c.l.b16 %v300
  %v372 = vunpack.c.l.b16 %v301
  %v373 = vunpack.c.l.b16 %v302
  %v374 = vunpack.c.l.b16 %v303
  %v375 = vunpack.c.l.b16 %v304
  %v376 = vunpack.c.l.b16 %v305
  %v377 = vunpack.c.l.b16 %v306
  %v378 = vunpack.c.l.b16 %v307
  %v379 = vunpack.c.l.b16 %v308
  %v380 = vunpack.c.l.b16 %v309
  %v381 = vpack.c.b16 %v350, %v349
  %v382 = vpack.c.b16 %v352, %v351
  %v383 = vpack.c.b16 %v354, %v353
  %v384 = vpack.c.b16 %v356, %v355
  %v385 = vpack.c.b16 %v358, %v357
  %v386 = vpack.c.b16 %v360, %v359
  %v387 = vpack.c.b16 %v362, %v361
  %v388 = vpack.c.b16 %v364, %v363
  %v389 = vpack.c.b16 %v366, %v365
  %v390 = vpack.c.b16 %v368, %v367
  %v391 = vpack.c.b16 %v370, %v369
  %v392 = vpack.c.b16 %v372, %v371
  %v393 = vpack.c.b16 %v374, %v373
  %v394 = vpack.c.b16 %v376, %v375
  %v395 = vpack.c.b16 %v378, %v377
  %v396 = vpack.c.b16 %v380, %v379
  %413 = vmatprep.subr.bf16.mxu0 0
  %414 = vmatpush1.bf16.msra.mxu0 %v381
  %415 = vmatprep.subr.bf16.mxu0 0
  %416 = vmatpush1.bf16.msra.mxu0 %v382
  %417 = vmatprep.subr.bf16.mxu0 0
  %418 = vmatpush1.bf16.msra.mxu0 %v383
  %419 = vmatprep.subr.bf16.mxu0 0
  %420 = vmatpush1.bf16.msra.mxu0 %v384
  %421 = vmatprep.subr.bf16.mxu0 0
  %422 = vmatpush1.bf16.msra.mxu0 %v385
  %423 = vmatprep.subr.bf16.mxu0 0
  %424 = vmatpush1.bf16.msra.mxu0 %v386
  %425 = vmatprep.subr.bf16.mxu0 0
  %426 = vmatpush1.bf16.msra.mxu0 %v387
  %427 = vmatprep.subr.bf16.mxu0 0
  %428 = vmatpush1.bf16.msra.mxu0 %v388
  %429 = vmatprep.subr.bf16.mxu0 0
  %430 = vmatpush1.bf16.msra.mxu0 %v389
  %431 = vmatprep.subr.bf16.mxu0 0
  %432 = vmatpush1.bf16.msra.mxu0 %v390
  %433 = vmatprep.subr.bf16.mxu0 0
  %434 = vmatpush1.bf16.msra.mxu0 %v391
  %435 = vmatprep.subr.bf16.mxu0 0
  %436 = vmatpush1.bf16.msra.mxu0 %v392
  %437 = vmatprep.subr.bf16.mxu0 0
  %438 = vmatpush1.bf16.msra.mxu0 %v393
  %439 = vmatprep.subr.bf16.mxu0 0
  %440 = vmatpush1.bf16.msra.mxu0 %v394
  %441 = vmatprep.subr.bf16.mxu0 0
  %442 = vmatpush1.bf16.msra.mxu0 %v395
  %443 = vmatprep.subr.bf16.mxu0 0
  %444 = vmatpush1.bf16.msra.mxu0 %v396
  %445 = vmatprep.mubr.bf16.mxu0 %v277
  %446 = vmatmul.mubr.bf16.gmra.mrb[0].mxu0 %v276
  %v447 = vpop.f32.mrb[0].mxu0
  %v448 = vadd.f32 %v315, %v447
  %v449 = vpop.f32.mrb[0].mxu0
  %v450 = vpop.f32.mrb[0].mxu0
  %v451 = vpop.f32.mrb[0].mxu0
  %452 = vdwg.mxu0
  %v453 = vmul.f32 %v448, %v448
  %454 = vadd.xlane.f32.xlu0 %v453
  %v455 = vpop.xlane.xlu0 %454
  %v456 = vrsqrt.pop %v455
  %v457 = vmul.f32 %v455, %v456
  %vm458 = vcmp.eq.f32.partialorder %v455, inf
  %v459 = vsel %vm458, %v455, %v457
  %vm460 = vcmp.eq.f32.partialorder %v455, 0.0
  %v461 = vand.u32 %v455, 2147483648
  %v462 = vsel %vm460, %v461, %v459
  %v463 = vmax.f32 %v462, 1e-12
  %v464 = vrcp.pop %v463
  %v465 = vmul.f32 %v448, %v464
  %466 = vst [vmem:[%s5] sm:$0xff] %v465
  // Predicated region
  $region22: #{moco_forward.12} parent=0 // pred_check
    _
  $region23: #{moco_forward.12} parent=0 // pred_check_branch
    %468 = sbr.rel (0) target = $region25
  $region24: #{moco_forward.12} parent=0 // pred_region
    _
  $region25: #{moco_forward.12} parent=0 // pred_fallthru
    _
  // Predicated region
  $region26: #{moco_forward.12} parent=0 // pred_check
    _
  $region27: #{moco_forward.12} parent=0 // pred_check_branch
    %470 = sbr.rel (0) target = $region29
  $region28: #{moco_forward.12} parent=0 // pred_region
    _
  $region29: #{moco_forward.12} parent=0 // pred_fallthru
    _

// kernel: moco_forward.13
$region0: #{moco_forward.13}
  #allocation0 [shape = 'u32[]', space=smem, size = 0x4, offset = 0x4, fixed_abs, tag = 'smem constant byte address 0x4 - core index']
  #allocation1 [shape = 'u32[144,128]{1,0:T(1,128)}', space=vmem, size = 0x12000, scoped, tag = 'internal scratch']
  %s0 = inlined_call_operand.vmem [shape: f32[8,128], index: 0, kind: input, shape index: {}]
  %s1 = inlined_call_operand.vmem [shape: f32[8,128], index: 1, kind: input, shape index: {}]
  %s2 = inlined_call_operand.vmem [shape: f32[8,128], index: 2, kind: output, shape index: {}]
  %s3 = sld [smem:[#allocation0]]
  $region18: #{moco_forward.13} parent=0
    _
  %s5 = ssub.s32 1, %s3
  %s6 = scalar_select 0, %s5, %s3
  // Predicated region
  $region2: #{moco_forward.13} parent=0 // pred_check
    _
  $region3: #{moco_forward.13} parent=0 // pred_check_branch
    %8 = sbr.rel (0) target = $region5
  $region4: #{moco_forward.13} parent=0 // pred_region
    _
  $region5: #{moco_forward.13} parent=0 // pred_fallthru
    _
  // Predicated region
  $region6: #{moco_forward.13} parent=0 // pred_check
    _
  $region7: #{moco_forward.13} parent=0 // pred_check_branch
    %10 = sbr.rel (0) target = $region9
  $region8: #{moco_forward.13} parent=0 // pred_region
    _
  $region9: #{moco_forward.13} parent=0 // pred_fallthru
    _
  %v11 = vld [vmem:[%s0] sm:$0xff]
  %v12 = vld [vmem:[%s1] sm:$0xff]
  %v13 = vmul.f32 %v11, %v12
  %14 = vadd.xlane.f32.xlu0 %v13
  %v15 = vpop.xlane.xlu0 %14
  %v16 = vmul.f32 %v15, 14.285714
  %17 = vst [vmem:[%s2] sm:$0xff] %v16
  // Predicated region
  $region10: #{moco_forward.13} parent=0 // pred_check
    _
  $region11: #{moco_forward.13} parent=0 // pred_check_branch
    %19 = sbr.rel (0) target = $region13
  $region12: #{moco_forward.13} parent=0 // pred_region
    _
  $region13: #{moco_forward.13} parent=0 // pred_fallthru
    _
  // Predicated region
  $region14: #{moco_forward.13} parent=0 // pred_check
    _
  $region15: #{moco_forward.13} parent=0 // pred_check_branch
    %21 = sbr.rel (0) target = $region17
  $region16: #{moco_forward.13} parent=0 // pred_region
    _
  $region17: #{moco_forward.13} parent=0 // pred_fallthru
    _

// kernel: moco_forward.14
$region0: #{moco_forward.14}
  #allocation0 [shape = 'u32[]', space=smem, size = 0x4, offset = 0x4, fixed_abs, tag = 'smem constant byte address 0x4 - core index']
  #allocation1 [shape = 'u32[144,128]{1,0:T(1,128)}', space=vmem, size = 0x12000, scoped, tag = 'internal scratch']
  %s0 = inlined_call_operand.vmem [shape: bf16[8,128], index: 0, kind: input, shape index: {}]
  %s1 = inlined_call_operand.vmem [shape: f32[1024,128], index: 1, kind: input, shape index: {}]
  %s2 = inlined_call_operand.vmem [shape: f32[8,1024], index: 2, kind: output, shape index: {}]
  %s3 = sld [smem:[#allocation0]]
  $region41: #{moco_forward.14} parent=0
    _
  %s5 = ssub.s32 1, %s3
  %s6 = scalar_select 0, %s5, %s3
  loop: start=0, step=1, limit=6
  $region2: #{moco_forward.14} parent=0 // loop_pre_header
    _
  $region3: #{moco_forward.14} parent=0 // loop_header
    %s8 = sphi 0, %s12
    %p9 = scmp.ge.s32.totalorder %s8, 6
    %s15 = sphi 0, %s27
    %s16 = sphi 0, %s23
    %s17 = sphi 0, %s15
    %s18 = sphi 0, %s16
    %s19 = sphi 0, %s17
    %s20 = sphi 0, %s18
    %s30 = sphi 0, %s32
    %s33 = sphi 0, %s30
    %s34 = sphi 0, %s33
    %s50 = sphi 0, %s34
    %s56 = sphi 0, %s58
    %s59 = sphi 0, %s56
    %s60 = sphi 0, %s59
    %s76 = sphi 0, %s60
    %s84 = sphi 0, %s86
    %s87 = sphi 0, %s84
    %s88 = sphi 0, %s87
    %s104 = sphi 0, %s88
  $region4: #{moco_forward.14} parent=0 // loop_header_branch
    %11 = sbr.rel (%p9) target = $region8
  $region5: #{moco_forward.14} parent=0 // loop_body
    %s13 = ssub.s32 %s8, 1
    %s14 = ssub.s32 %s8, 2
    %s21 = sadd.s32 1, %s16
    %p22 = scmp.ge.s32.totalorder %s21, 4
    %s23 = scalar_select %p22, 0, %s21
    %s24 = sadd.s32 1, %s15
    %s25 = scalar_select %p22, %s24, %s15
    %p26 = scmp.ge.s32.totalorder %s25, 1
    %s27 = scalar_select %p26, 0, %s25
    %s28 = ssub.s32 %s15, %s27
    %p29 = scmp.eq.s32.totalorder %s28, 0
    %s31 = sadd.s32 %s30, 1
    %s32 = scalar_select %p29, %s30, %s31
    %p35 = pneg %p29
    %p36 = scmp.eq.s32.totalorder %s8, 3
    %p37 = por %p35, %p36
    %p38 = scmp.ne.s32.totalorder %s30, %s33
    %p39 = scmp.eq.s32.totalorder %s8, 0
    %p40 = por %p38, %p39
    %p41 = scmp.ne.s32.totalorder %s30, %s33
    %p42 = scmp.eq.s32.totalorder %s13, 3
    %p43 = por %p41, %p42
    %p44 = scmp.ne.s32.totalorder %s33, %s34
    %p45 = scmp.eq.s32.totalorder %s13, 0
    %p46 = por %p44, %p45
    %p47 = scmp.ne.s32.totalorder %s33, %s34
    %p48 = scmp.eq.s32.totalorder %s14, 3
    %p49 = por %p47, %p48
    %p51 = scmp.ne.s32.totalorder %s34, %s50
    %p52 = scmp.eq.s32.totalorder %s14, 0
    %p53 = por %p51, %p52
    %s54 = ssub.s32 %s16, %s23
    %p55 = scmp.eq.s32.totalorder %s54, 0
    %s57 = sadd.s32 %s56, 1
    %s58 = scalar_select %p55, %s56, %s57
    %p61 = pneg %p55
    %p62 = scmp.eq.s32.totalorder %s8, 3
    %p63 = por %p61, %p62
    %p64 = scmp.ne.s32.totalorder %s56, %s59
    %p65 = scmp.eq.s32.totalorder %s8, 0
    %p66 = por %p64, %p65
    %p67 = scmp.ne.s32.totalorder %s56, %s59
    %p68 = scmp.eq.s32.totalorder %s13, 3
    %p69 = por %p67, %p68
    %p70 = scmp.ne.s32.totalorder %s59, %s60
    %p71 = scmp.eq.s32.totalorder %s13, 0
    %p72 = por %p70, %p71
    %p73 = scmp.ne.s32.totalorder %s59, %s60
    %p74 = scmp.eq.s32.totalorder %s14, 3
    %p75 = por %p73, %p74
    %p77 = scmp.ne.s32.totalorder %s60, %s76
    %p78 = scmp.eq.s32.totalorder %s14, 0
    %p79 = por %p77, %p78
    %s80 = ssub.s32 %s15, %s27
    %s81 = ssub.s32 %s16, %s23
    %s82 = sor.u32 %s80, %s81
    %p83 = scmp.eq.s32.totalorder %s82, 0
    %s85 = sadd.s32 %s84, 1
    %s86 = scalar_select %p83, %s84, %s85
    %p89 = pneg %p83
    %p90 = scmp.eq.s32.totalorder %s8, 3
    %p91 = por %p89, %p90
    %p92 = scmp.ne.s32.totalorder %s84, %s87
    %p93 = scmp.eq.s32.totalorder %s8, 0
    %p94 = por %p92, %p93
    %p95 = scmp.ne.s32.totalorder %s84, %s87
    %p96 = scmp.eq.s32.totalorder %s13, 3
    %p97 = por %p95, %p96
    %p98 = scmp.ne.s32.totalorder %s87, %s88
    %p99 = scmp.eq.s32.totalorder %s13, 0
    %p100 = por %p98, %p99
    %p101 = scmp.ne.s32.totalorder %s87, %s88
    %p102 = scmp.eq.s32.totalorder %s14, 3
    %p103 = por %p101, %p102
    %p105 = scmp.ne.s32.totalorder %s88, %s104
    %p106 = scmp.eq.s32.totalorder %s14, 0
    %p107 = por %p105, %p106
    %p108 = scmp.le.s32.totalorder 1, %s8
    %p109 = scmp.lt.s32.totalorder %s8, 5
    %p110 = pnand %p108, %p109
    %p111 = pneg %p110
    // Predicated region
    $region9: #{moco_forward.14} parent=5 // pred_check
      _
    $region10: #{moco_forward.14} parent=5 // pred_check_branch
      %113 = sbr.rel (%p110) target = $region12
    $region11: #{moco_forward.14} parent=5 // pred_region
      %s114 = ssub.s32 %s8, 1
      // Predicated region
      $region13: #{moco_forward.14} parent=11 // pred_check
        %p115 = pneg %p46
      $region14: #{moco_forward.14} parent=11 // pred_check_branch
        %117 = sbr.rel (%p115) target = $region16
      $region15: #{moco_forward.14} parent=11 // pred_region
        %p118 = scmp.lt.s32.totalorder %s17, 0
        %s119 = scalar_select %p118, %s17, 0
        %s120 = smul.addr %s119, 4
        %s121 = scalar_lea.vmem %s0, %s120
      $region16: #{moco_forward.14} parent=11 // pred_fallthru
        _
    $region12: #{moco_forward.14} parent=5 // pred_fallthru
      _
    %p122 = scmp.lt.s32.totalorder %s8, 4
    // Predicated region
    $region17: #{moco_forward.14} parent=5 // pred_check
      %p123 = pneg %p122
    $region18: #{moco_forward.14} parent=5 // pred_check_branch
      %125 = sbr.rel (%p123) target = $region20
    $region19: #{moco_forward.14} parent=5 // pred_region
      // Predicated region
      $region21: #{moco_forward.14} parent=19 // pred_check
        %p126 = pneg %p66
      $region22: #{moco_forward.14} parent=19 // pred_check_branch
        %128 = sbr.rel (%p126) target = $region24
      $region23: #{moco_forward.14} parent=19 // pred_region
        %s129 = smul.u32 32, %s16
        %p130 = scmp.lt.s32.totalorder %s129, 127
        %s131 = scalar_select %p130, %s129, 127
        %s132 = smul.addr %s131, 8
        %s133 = scalar_lea.vmem %s1, %s132
        %s134 = smul.u32 32, %s16
      $region24: #{moco_forward.14} parent=19 // pred_fallthru
        _
    $region20: #{moco_forward.14} parent=5 // pred_fallthru
      _
    %p135 = scmp.le.s32.totalorder 1, %s8
    %p136 = scmp.lt.s32.totalorder %s8, 5
    %p137 = pnand %p135, %p136
    %p138 = pneg %p137
    // Predicated region
    $region25: #{moco_forward.14} parent=5 // pred_check
      _
    $region26: #{moco_forward.14} parent=5 // pred_check_branch
      %140 = sbr.rel (%p137) target = $region28
    $region27: #{moco_forward.14} parent=5 // pred_region
      %s141 = ssub.s32 %s8, 1
      %p142 = scmp.lt.s32.totalorder %s17, 0
      %s143 = scalar_select %p142, %s17, 0
      %s144 = smul.addr %s143, 4
      %s145 = scalar_lea.vmem %s0, %s144
      %p146 = pneg %p46
      %p147 = pneg %p43
      %s148 = smul.u32 32, %s18
      %p149 = scmp.lt.s32.totalorder %s148, 127
      %s150 = scalar_select %p149, %s148, 127
      %s151 = smul.addr %s150, 8
      %s152 = scalar_lea.vmem %s1, %s151
      %p153 = pneg %p72
      %p154 = pneg %p69
      %p155 = pneg %p100
      %p156 = pneg %p97
      %s157 = smul.u32 2, %s18
      %p158 = scmp.lt.s32.totalorder %s17, 0
      %s159 = scalar_select %p158, %s17, 0
      %p160 = scmp.lt.s32.totalorder %s157, 7
      %s161 = scalar_select %p160, %s157, 7
      %s162 = smul.addr %s159, 8
      %s163 = sadd.s32 %s161, %s162
      %s164 = smul.addr %s163, 8
      %s165 = scalar_lea.vmem %s2, %s164
      %p166 = scmp.lt.s32.totalorder %s17, 0
      %s167 = scalar_select %p166, %s17, 0
      %s168 = smul.addr %s167, 4
      %s169 = scalar_lea.vmem %s0, %s168
      %s170 = smul.u32 32, %s18
      %p171 = scmp.lt.s32.totalorder %s170, 127
      %s172 = scalar_select %p171, %s170, 127
      %s173 = smul.addr %s172, 8
      %s174 = scalar_lea.vmem %s1, %s173
      %s175 = smul.u32 32, %s18
      %s176 = smul.u32 2, %s18
      %p177 = scmp.lt.s32.totalorder %s17, 0
      %s178 = scalar_select %p177, %s17, 0
      %p179 = scmp.lt.s32.totalorder %s176, 7
      %s180 = scalar_select %p179, %s176, 7
      %s181 = smul.addr %s178, 8
      %s182 = sadd.s32 %s180, %s181
      %s183 = smul.addr %s182, 8
      %s184 = scalar_lea.vmem %s2, %s183
      %s185 = smul.u32 2, %s18
      %v187 = vld [vmem:[%s174] sm:$0xff]
      %v188 = vld [vmem:[%s174 + $0x8] sm:$0xff]
      %v189 = vld [vmem:[%s174 + $0x10] sm:$0xff]
      %v190 = vld [vmem:[%s174 + $0x18] sm:$0xff]
      %v191 = vld [vmem:[%s174 + $0x20] sm:$0xff]
      %v192 = vld [vmem:[%s174 + $0x28] sm:$0xff]
      %v193 = vld [vmem:[%s174 + $0x30] sm:$0xff]
      %v194 = vld [vmem:[%s174 + $0x38] sm:$0xff]
      %v195 = vld [vmem:[%s174 + $0x40] sm:$0xff]
      %v196 = vld [vmem:[%s174 + $0x48] sm:$0xff]
      %v197 = vld [vmem:[%s174 + $0x50] sm:$0xff]
      %v198 = vld [vmem:[%s174 + $0x58] sm:$0xff]
      %v199 = vld [vmem:[%s174 + $0x60] sm:$0xff]
      %v200 = vld [vmem:[%s174 + $0x68] sm:$0xff]
      %v201 = vld [vmem:[%s174 + $0x70] sm:$0xff]
      %v202 = vld [vmem:[%s174 + $0x78] sm:$0xff]
      %v203 = vld [vmem:[%s174 + $0x80] sm:$0xff]
      %v204 = vld [vmem:[%s174 + $0x88] sm:$0xff]
      %v205 = vld [vmem:[%s174 + $0x90] sm:$0xff]
      %v206 = vld [vmem:[%s174 + $0x98] sm:$0xff]
      %v207 = vld [vmem:[%s174 + $0xa0] sm:$0xff]
      %v208 = vld [vmem:[%s174 + $0xa8] sm:$0xff]
      %v209 = vld [vmem:[%s174 + $0xb0] sm:$0xff]
      %v210 = vld [vmem:[%s174 + $0xb8] sm:$0xff]
      %v211 = vld [vmem:[%s174 + $0xc0] sm:$0xff]
      %v212 = vld [vmem:[%s174 + $0xc8] sm:$0xff]
      %v213 = vld [vmem:[%s174 + $0xd0] sm:$0xff]
      %v214 = vld [vmem:[%s174 + $0xd8] sm:$0xff]
      %v215 = vld [vmem:[%s174 + $0xe0] sm:$0xff]
      %v216 = vld [vmem:[%s174 + $0xe8] sm:$0xff]
      %v217 = vld [vmem:[%s174 + $0xf0] sm:$0xff]
      %v218 = vld [vmem:[%s174 + $0xf8] sm:$0xff]
      %v219 = vpack.c.bf16 %v188, %v187
      %v220 = vpack.c.bf16 %v190, %v189
      %v221 = vpack.c.bf16 %v192, %v191
      %v222 = vpack.c.bf16 %v194, %v193
      %v223 = vpack.c.bf16 %v196, %v195
      %v224 = vpack.c.bf16 %v198, %v197
      %v225 = vpack.c.bf16 %v200, %v199
      %v226 = vpack.c.bf16 %v202, %v201
      %v227 = vpack.c.bf16 %v204, %v203
      %v228 = vpack.c.bf16 %v206, %v205
      %v229 = vpack.c.bf16 %v208, %v207
      %v230 = vpack.c.bf16 %v210, %v209
      %v231 = vpack.c.bf16 %v212, %v211
      %v232 = vpack.c.bf16 %v214, %v213
      %v233 = vpack.c.bf16 %v216, %v215
      %v234 = vpack.c.bf16 %v218, %v217
      %v235 = vld [vmem:[%s169] sm:$0xf]
      %236 = vmatprep.subr.bf16.mxu0 0
      %237 = vmatpush1.bf16.xpose.msra.mxu0 %v219
      %238 = vmatprep.subr.bf16.mxu0 0
      %239 = vmatpush1.bf16.xpose.msra.mxu0 %v220
      %240 = vmatprep.subr.bf16.mxu0 0
      %241 = vmatpush1.bf16.xpose.msra.mxu0 %v221
      %242 = vmatprep.subr.bf16.mxu0 0
      %243 = vmatpush1.bf16.xpose.msra.mxu0 %v222
      %244 = vmatprep.subr.bf16.mxu0 0
      %245 = vmatpush1.bf16.xpose.msra.mxu0 %v223
      %246 = vmatprep.subr.bf16.mxu0 0
      %247 = vmatpush1.bf16.xpose.msra.mxu0 %v224
      %248 = vmatprep.subr.bf16.mxu0 0
      %249 = vmatpush1.bf16.xpose.msra.mxu0 %v225
      %250 = vmatprep.subr.bf16.mxu0 0
      %251 = vmatpush1.bf16.xpose.msra.mxu0 %v226
      %252 = vmatprep.subr.bf16.mxu0 0
      %253 = vmatpush1.bf16.xpose.msra.mxu0 %v227
      %254 = vmatprep.subr.bf16.mxu0 0
      %255 = vmatpush1.bf16.xpose.msra.mxu0 %v228
      %256 = vmatprep.subr.bf16.mxu0 0
      %257 = vmatpush1.bf16.xpose.msra.mxu0 %v229
      %258 = vmatprep.subr.bf16.mxu0 0
      %259 = vmatpush1.bf16.xpose.msra.mxu0 %v230
      %260 = vmatprep.subr.bf16.mxu0 0
      %261 = vmatpush1.bf16.xpose.msra.mxu0 %v231
      %262 = vmatprep.subr.bf16.mxu0 0
      %263 = vmatpush1.bf16.xpose.msra.mxu0 %v232
      %264 = vmatprep.subr.bf16.mxu0 0
      %265 = vmatpush1.bf16.xpose.msra.mxu0 %v233
      %266 = vmatprep.subr.bf16.mxu0 0
      %267 = vmatpush1.bf16.xpose.msra.mxu0 %v234
      %268 = vmatprep.mubr.bf16.mxu0 0
      %269 = vmatmul.mubr.bf16.gmra.mrb[0].mxu0 %v235
      %v270 = vpop.f32.mrb[0].mxu0
      %v271 = vadd.f32 0.0, %v270
      %v272 = vpop.f32.mrb[0].mxu0
      %v273 = vadd.f32 0.0, %v272
      %v274 = vpop.f32.mrb[0].mxu0
      %v275 = vpop.f32.mrb[0].mxu0
      %276 = vdwg.mxu0
      %v277 = vmul.f32 %v271, 14.285714
      %v278 = vmul.f32 %v273, 14.285714
      %279 = vst [vmem:[%s184] sm:$0xff] %v277
      %280 = vst [vmem:[%s184 + $0x8] sm:$0xff] %v278
      %s281 = smul.u32 2, %s18
      %p282 = scmp.lt.s32.totalorder %s17, 0
      %s283 = scalar_select %p282, %s17, 0
      %p284 = scmp.lt.s32.totalorder %s281, 7
      %s285 = scalar_select %p284, %s281, 7
      %s286 = smul.addr %s283, 8
      %s287 = sadd.s32 %s285, %s286
      %s288 = smul.addr %s287, 8
      %s289 = scalar_lea.vmem %s2, %s288
      // Predicated region
      $region29: #{moco_forward.14} parent=27 // pred_check
        %p290 = pneg %p97
      $region30: #{moco_forward.14} parent=27 // pred_check_branch
        %292 = sbr.rel (%p290) target = $region32
      $region31: #{moco_forward.14} parent=27 // pred_region
        %s293 = smul.u32 2, %s18
      $region32: #{moco_forward.14} parent=27 // pred_fallthru
        _
    $region28: #{moco_forward.14} parent=5 // pred_fallthru
      _
    %p294 = scmp.le.s32.totalorder 2, %s8
    // Predicated region
    $region33: #{moco_forward.14} parent=5 // pred_check
      %p295 = pneg %p294
    $region34: #{moco_forward.14} parent=5 // pred_check_branch
      %297 = sbr.rel (%p295) target = $region36
    $region35: #{moco_forward.14} parent=5 // pred_region
      %s298 = ssub.s32 %s8, 2
      // Predicated region
      $region37: #{moco_forward.14} parent=35 // pred_check
        %p299 = pneg %p103
      $region38: #{moco_forward.14} parent=35 // pred_check_branch
        %301 = sbr.rel (%p299) target = $region40
      $region39: #{moco_forward.14} parent=35 // pred_region
        %s302 = smul.u32 2, %s20
        %p303 = scmp.lt.s32.totalorder %s19, 0
        %s304 = scalar_select %p303, %s19, 0
        %p305 = scmp.lt.s32.totalorder %s302, 7
        %s306 = scalar_select %p305, %s302, 7
        %s307 = smul.addr %s304, 8
        %s308 = sadd.s32 %s306, %s307
        %s309 = smul.addr %s308, 8
        %s310 = scalar_lea.vmem %s2, %s309
      $region40: #{moco_forward.14} parent=35 // pred_fallthru
        _
    $region36: #{moco_forward.14} parent=5 // pred_fallthru
      _
  $region6: #{moco_forward.14} parent=0 // loop_footer
    %s12 = sadd.s32 1, %s8
  $region7: #{moco_forward.14} parent=0 // loop_footer_branch
    %7 = sbr.rel target = $region3
  $region8: #{moco_forward.14} parent=0 // loop_exit
    _

// kernel: moco_forward.15
$region0: #{moco_forward.15}
  #allocation0 [shape = 'u32[]', space=smem, size = 0x4, offset = 0x4, fixed_abs, tag = 'smem constant byte address 0x4 - core index']
  #allocation1 [shape = 'u32[144,128]{1,0:T(1,128)}', space=vmem, size = 0x12000, scoped, tag = 'internal scratch']
  #allocation2 [shape = 's32[1]{0:T(128)S(6)}', space=smem, size = 0x200, scoped, tag = 'scoped memory for moco_forward.15']
  #allocation4 [shape = 's32[]', space=sflag, size = 0x4, offset = 0, fixed_abs, tag = 'sflag constant byte address 0x0 - dummy sync flag']
  %s0 = inlined_call_operand.<no memory space> [shape: s32[1], index: 0, kind: input, shape index: {}]
  %s1 = inlined_call_operand.vmem [shape: f32[8,128], index: 1, kind: input, shape index: {}]
  %s2 = inlined_call_operand.vmem [shape: f32[1024,128], index: 2, kind: input, shape index: {}, may-alias: {2,3}]
  %s3 = inlined_call_operand.vmem [shape: f32[1024,128], index: 3, kind: output, shape index: {}, may-alias: {2,3}]
  %s4 = sld [smem:[#allocation0]]
  $region45: #{moco_forward.15} parent=0
    _
  %s6 = ssub.s32 1, %s4
  %s7 = scalar_select 0, %s6, %s4
  %8 = sst [smem:[#allocation2]] %s0
  // Predicated region
  $region2: #{moco_forward.15} parent=0 // pred_check
    _
  $region3: #{moco_forward.15} parent=0 // pred_check_branch
    %10 = sbr.rel (0) target = $region5
  $region4: #{moco_forward.15} parent=0 // pred_region
    _
  $region5: #{moco_forward.15} parent=0 // pred_fallthru
    _
  // Predicated region
  $region6: #{moco_forward.15} parent=0 // pred_check
    _
  $region7: #{moco_forward.15} parent=0 // pred_check_branch
    %12 = sbr.rel (0) target = $region9
  $region8: #{moco_forward.15} parent=0 // pred_region
    _
  $region9: #{moco_forward.15} parent=0 // pred_fallthru
    _
  %s13 = sld [smem:[#allocation2]]
  $region10: #{moco_forward.15} parent=0
    #allocation3 [shape = 's32[1]{0}', space=sflag, size = 0x4, scoped, tag = 'scoped memory for moco_forward.15']
    %s14 = scalar_lea.vmem %s3, %s13
    %p16 = scmp.lt.u32.totalorder 8, 8
    %p17 = pneg %p16
    // Predicated region
    $region11: #{moco_forward.15} parent=10 // pred_check
      _
    $region12: #{moco_forward.15} parent=10 // pred_check_branch
      %19 = sbr.rel (%p16) target = $region14
    $region13: #{moco_forward.15} parent=10 // pred_region
      %s34 = sand.u32 8, 7
      %p35 = scmp.eq.s32.totalorder %s34, 0
      // Predicated region
      $region26: #{moco_forward.15} parent=13 // pred_check
        %p36 = pneg %p35
      $region27: #{moco_forward.15} parent=13 // pred_check_branch
        %38 = sbr.rel (%p36) target = $region29
      $region28: #{moco_forward.15} parent=13 // pred_region
        loop: start=0, step=1, limit=1
        $region30: #{moco_forward.15} parent=28 // loop_pre_header
          _
        $region31: #{moco_forward.15} parent=28 // loop_header
          %s40 = sphi 0, %s44
          %p41 = scmp.ge.s32.totalorder %s40, 1
          %s45 = sphi %s1, %s1
          %s46 = sphi %s14, %s14
        $region32: #{moco_forward.15} parent=28 // loop_header_branch
          %43 = sbr.rel (%p41) target = $region36
        $region33: #{moco_forward.15} parent=28 // loop_body
          %v47 = vld [vmem:[%s45] sm:$0xff]
          %48 = vst [vmem:[%s46] sm:$0xff] %v47
        $region34: #{moco_forward.15} parent=28 // loop_footer
          %s44 = sadd.s32 1, %s40
        $region35: #{moco_forward.15} parent=28 // loop_footer_branch
          %39 = sbr.rel target = $region31
        $region36: #{moco_forward.15} parent=28 // loop_exit
          _
      $region29: #{moco_forward.15} parent=13 // pred_fallthru
        _
      %p49 = pneg %p35
      // Predicated region
      $region37: #{moco_forward.15} parent=13 // pred_check
        _
      $region38: #{moco_forward.15} parent=13 // pred_check_branch
        %51 = sbr.rel (%p35) target = $region40
      $region39: #{moco_forward.15} parent=13 // pred_region
        %s52 = sand.u32 8, 7
      $region40: #{moco_forward.15} parent=13 // pred_fallthru
        _
    $region14: #{moco_forward.15} parent=10 // pred_fallthru
      _
    // Predicated region
    $region15: #{moco_forward.15} parent=10 // pred_check
      %p20 = pneg %p16
    $region16: #{moco_forward.15} parent=10 // pred_check_branch
      %22 = sbr.rel (%p20) target = $region18
    $region17: #{moco_forward.15} parent=10 // pred_region
      %s23 = sshllo.u32 0, 8
      loop: start=0, step=1, limit=1
      $region19: #{moco_forward.15} parent=17 // loop_pre_header
        _
      $region20: #{moco_forward.15} parent=17 // loop_header
        %s25 = sphi 0, %s29
        %p26 = scmp.ge.s32.totalorder %s25, 1
        %s30 = sphi %s1, %s1
        %s31 = sphi %s14, %s14
      $region21: #{moco_forward.15} parent=17 // loop_header_branch
        %28 = sbr.rel (%p26) target = $region25
      $region22: #{moco_forward.15} parent=17 // loop_body
        %v32 = vld [vmem:[%s30] sm:%s23]
        %33 = vst [vmem:[%s31] sm:%s23] %v32
      $region23: #{moco_forward.15} parent=17 // loop_footer
        %s29 = sadd.s32 1, %s25
      $region24: #{moco_forward.15} parent=17 // loop_footer_branch
        %24 = sbr.rel target = $region20
      $region25: #{moco_forward.15} parent=17 // loop_exit
        _
    $region18: #{moco_forward.15} parent=10 // pred_fallthru
      _
    // Predicated region
    $region41: #{moco_forward.15} parent=10 // pred_check
      _
    $region42: #{moco_forward.15} parent=10 // pred_check_branch
      %55 = sbr.rel (0) target = $region44
    $region43: #{moco_forward.15} parent=10 // pred_region
      %56 = vsyncadd [#allocation3], 128
    $region44: #{moco_forward.15} parent=10 // pred_fallthru
      _
    %s57 = smul.u32 8, 1
    %s58 = sshll.u32 %s57, 4
    %59 = dma.done [#allocation3], %s58

// kernel: split.4
$region0: #{split.4}
  #allocation0 [shape = 'u32[2048]{0}', space=vmem, size = 0x2000, scoped, tag = 'scoped memory for split.4']
  #allocation1 [shape = 'u32[2048]{0}', space=vmem, size = 0x2000, scoped, tag = 'scoped memory for split.4']
  #allocation2 [shape = 'u32[2048]{0}', space=vmem, size = 0x2000, scoped, tag = 'scoped memory for split.4']
  #allocation3 [shape = 'u32[2048]{0}', space=vmem, size = 0x2000, scoped, tag = 'scoped memory for split.4']
  #allocation4 [shape = 'u32[2048]{0}', space=vmem, size = 0x2000, scoped, tag = 'scoped memory for split.4']
  #allocation7 [shape = 's32[1]{0}', space=sflag, size = 0x4, scoped, tag = 'scoped memory for split.4']
  %s0 = inlined_call_operand.vmem [shape: f32[105856], index: 0, kind: input, shape index: {}]
  %s1 = inlined_call_operand.hbm [shape: f32[128], index: 1, kind: output, shape index: {}]
  $region1: #{split.4} parent=0
    #allocation5 [shape = 'u8[512]{0}', space=vmem, size = 0x400, scoped, tag = 'operand span for operand 1']
    #allocation6 [shape = 's32[1]{0}', space=sflag, size = 0x4, scoped, tag = 'scoped memory for split.4']
    %2 = vsyncpa [#allocation6], 0
    %s3 = scalar_lea.vmem %s0, 568
    %s4 = scalar_lea.vmem %s0, 568
    %s5 = scalar_lea.vmem %s0, 568
    %v6 = vld [vmem:[%s5] sm:$0xff]
    %vm7 = vcmask 1041408
    %v8 = vsel %vm7, 0, %v6
    %v9 = vrot.slane %v8, 2
    %10 = vst [vmem:[#allocation5] sm:$0x1] %v9
    %s12 = ssub.s32 16, 16
    %13 = vsyncadd [#allocation6], %s12
    %s15 = sshll.u32 [#allocation5], 4
    %s16 = int_to_ptr.vmem [resolvable:$true] %s15
    %18 = dma.vmem_to_hbm [thread:$0]  %s16, 16, %s1, [#allocation6]
    %19 = dma.done [#allocation6], 16
    %20 = vsyncpa [#allocation6], 1

// kernel: moco_forward.11
$region0: #{moco_forward.11}
  #allocation0 [shape = 'u32[]', space=smem, size = 0x4, offset = 0x4, fixed_abs, tag = 'smem constant byte address 0x4 - core index']
  #allocation1 [shape = 'u32[144,128]{1,0:T(1,128)}', space=vmem, size = 0x12000, scoped, tag = 'internal scratch']
  #allocation2 [shape = 'f32[288,256]{1,0:T(8,128)}', space=vmem, size = 0x48000, scoped, tag = 'scratch operand']
  %s0 = inlined_call_operand.vmem [shape: bf16[8,3,342], index: 0, kind: input, shape index: {}]
  %s1 = inlined_call_operand.vmem [shape: bf16[9,3,256], index: 1, kind: input, shape index: {}]
  %s2 = inlined_call_operand.vmem [shape: f32[1,256], index: 2, kind: input, shape index: {}]
  %s3 = inlined_call_operand.vmem [shape: f32[8,1,256], index: 3, kind: output, shape index: {}]
  %s4 = sld [smem:[#allocation0]]
  $region45: #{moco_forward.11} parent=0
    _
  %s6 = ssub.s32 1, %s4
  %s7 = scalar_select 0, %s6, %s4
  loop: start=0, step=1, limit=10
  $region2: #{moco_forward.11} parent=0 // loop_pre_header
    _
  $region3: #{moco_forward.11} parent=0 // loop_header
    %s9 = sphi 0, %s13
    %p10 = scmp.ge.s32.totalorder %s9, 10
    %s19 = sphi 0, %s21
    %s22 = sphi 0, %s19
    %s23 = sphi 0, %s22
    %s39 = sphi 0, %s23
    %s43 = sphi 0, %s43
    %s45 = sphi 0, %s43
    %s46 = sphi 0, %s45
    %s60 = sphi 0, %s46
    %s64 = sphi 0, %s64
    %s66 = sphi 0, %s64
    %s67 = sphi 0, %s66
    %s81 = sphi 0, %s67
    %s87 = sphi 0, %s89
    %s90 = sphi 0, %s87
    %s91 = sphi 0, %s90
    %s107 = sphi 0, %s91
  $region4: #{moco_forward.11} parent=0 // loop_header_branch
    %12 = sbr.rel (%p10) target = $region8
  $region5: #{moco_forward.11} parent=0 // loop_body
    %s14 = ssub.s32 %s9, 1
    %s15 = ssub.s32 %s9, 2
    %s16 = sadd.s32 %s9, 1
    %s17 = ssub.s32 %s9, %s16
    %p18 = scmp.eq.s32.totalorder %s17, 0
    %s20 = sadd.s32 %s19, 1
    %s21 = scalar_select %p18, %s19, %s20
    %p24 = pneg %p18
    %p25 = scmp.eq.s32.totalorder %s9, 7
    %p26 = por %p24, %p25
    %p27 = scmp.ne.s32.totalorder %s19, %s22
    %p28 = scmp.eq.s32.totalorder %s9, 0
    %p29 = por %p27, %p28
    %p30 = scmp.ne.s32.totalorder %s19, %s22
    %p31 = scmp.eq.s32.totalorder %s14, 7
    %p32 = por %p30, %p31
    %p33 = scmp.ne.s32.totalorder %s22, %s23
    %p34 = scmp.eq.s32.totalorder %s14, 0
    %p35 = por %p33, %p34
    %p36 = scmp.ne.s32.totalorder %s22, %s23
    %p37 = scmp.eq.s32.totalorder %s15, 7
    %p38 = por %p36, %p37
    %p40 = scmp.ne.s32.totalorder %s23, %s39
    %p41 = scmp.eq.s32.totalorder %s15, 0
    %p42 = por %p40, %p41
    %s44 = sadd.s32 %s43, 1
    %p47 = scmp.eq.s32.totalorder %s9, 7
    %p48 = scmp.ne.s32.totalorder %s43, %s45
    %p49 = scmp.eq.s32.totalorder %s9, 0
    %p50 = por %p48, %p49
    %p51 = scmp.ne.s32.totalorder %s43, %s45
    %p52 = scmp.eq.s32.totalorder %s14, 7
    %p53 = por %p51, %p52
    %p54 = scmp.ne.s32.totalorder %s45, %s46
    %p55 = scmp.eq.s32.totalorder %s14, 0
    %p56 = por %p54, %p55
    %p57 = scmp.ne.s32.totalorder %s45, %s46
    %p58 = scmp.eq.s32.totalorder %s15, 7
    %p59 = por %p57, %p58
    %p61 = scmp.ne.s32.totalorder %s46, %s60
    %p62 = scmp.eq.s32.totalorder %s15, 0
    %p63 = por %p61, %p62
    %s65 = sadd.s32 %s64, 1
    %p68 = scmp.eq.s32.totalorder %s9, 7
    %p69 = scmp.ne.s32.totalorder %s64, %s66
    %p70 = scmp.eq.s32.totalorder %s9, 0
    %p71 = por %p69, %p70
    %p72 = scmp.ne.s32.totalorder %s64, %s66
    %p73 = scmp.eq.s32.totalorder %s14, 7
    %p74 = por %p72, %p73
    %p75 = scmp.ne.s32.totalorder %s66, %s67
    %p76 = scmp.eq.s32.totalorder %s14, 0
    %p77 = por %p75, %p76
    %p78 = scmp.ne.s32.totalorder %s66, %s67
    %p79 = scmp.eq.s32.totalorder %s15, 7
    %p80 = por %p78, %p79
    %p82 = scmp.ne.s32.totalorder %s67, %s81
    %p83 = scmp.eq.s32.totalorder %s15, 0
    %p84 = por %p82, %p83
    %s85 = ssub.s32 %s9, %s16
    %p86 = scmp.eq.s32.totalorder %s85, 0
    %s88 = sadd.s32 %s87, 1
    %s89 = scalar_select %p86, %s87, %s88
    %p92 = pneg %p86
    %p93 = scmp.eq.s32.totalorder %s9, 7
    %p94 = por %p92, %p93
    %p95 = scmp.ne.s32.totalorder %s87, %s90
    %p96 = scmp.eq.s32.totalorder %s9, 0
    %p97 = por %p95, %p96
    %p98 = scmp.ne.s32.totalorder %s87, %s90
    %p99 = scmp.eq.s32.totalorder %s14, 7
    %p100 = por %p98, %p99
    %p101 = scmp.ne.s32.totalorder %s90, %s91
    %p102 = scmp.eq.s32.totalorder %s14, 0
    %p103 = por %p101, %p102
    %p104 = scmp.ne.s32.totalorder %s90, %s91
    %p105 = scmp.eq.s32.totalorder %s15, 7
    %p106 = por %p104, %p105
    %p108 = scmp.ne.s32.totalorder %s91, %s107
    %p109 = scmp.eq.s32.totalorder %s15, 0
    %p110 = por %p108, %p109
    %p111 = scmp.le.s32.totalorder 1, %s9
    %p112 = scmp.lt.s32.totalorder %s9, 9
    %p113 = pnand %p111, %p112
    %p114 = pneg %p113
    // Predicated region
    $region9: #{moco_forward.11} parent=5 // pred_check
      _
    $region10: #{moco_forward.11} parent=5 // pred_check_branch
      %116 = sbr.rel (%p113) target = $region12
    $region11: #{moco_forward.11} parent=5 // pred_region
      %s117 = ssub.s32 %s9, 1
      // Predicated region
      $region13: #{moco_forward.11} parent=11 // pred_check
        %p118 = pneg %p56
      $region14: #{moco_forward.11} parent=11 // pred_check_branch
        %120 = sbr.rel (%p118) target = $region16
      $region15: #{moco_forward.11} parent=11 // pred_region
        _
      $region16: #{moco_forward.11} parent=11 // pred_fallthru
        _
      // Predicated region
      $region17: #{moco_forward.11} parent=11 // pred_check
        %p121 = pneg %p77
      $region18: #{moco_forward.11} parent=11 // pred_check_branch
        %123 = sbr.rel (%p121) target = $region20
      $region19: #{moco_forward.11} parent=11 // pred_region
        _
      $region20: #{moco_forward.11} parent=11 // pred_fallthru
        _
    $region12: #{moco_forward.11} parent=5 // pred_fallthru
      _
    %p124 = scmp.lt.s32.totalorder %s9, 8
    // Predicated region
    $region21: #{moco_forward.11} parent=5 // pred_check
      %p125 = pneg %p124
    $region22: #{moco_forward.11} parent=5 // pred_check_branch
      %127 = sbr.rel (%p125) target = $region24
    $region23: #{moco_forward.11} parent=5 // pred_region
      // Predicated region
      $region25: #{moco_forward.11} parent=23 // pred_check
        %p128 = pneg %p29
      $region26: #{moco_forward.11} parent=23 // pred_check_branch
        %130 = sbr.rel (%p128) target = $region28
      $region27: #{moco_forward.11} parent=23 // pred_region
        %p131 = scmp.lt.s32.totalorder %s9, 7
        %s132 = scalar_select %p131, %s9, 7
        %s133 = smul.addr %s132, 3
        %s134 = smul.addr %s133, 2
        %s135 = scalar_lea.vmem %s0, %s134
      $region28: #{moco_forward.11} parent=23 // pred_fallthru
        _
    $region24: #{moco_forward.11} parent=5 // pred_fallthru
      _
    %p136 = scmp.le.s32.totalorder 1, %s9
    %p137 = scmp.lt.s32.totalorder %s9, 9
    %p138 = pnand %p136, %p137
    %p139 = pneg %p138
    // Predicated region
    $region29: #{moco_forward.11} parent=5 // pred_check
      _
    $region30: #{moco_forward.11} parent=5 // pred_check_branch
      %141 = sbr.rel (%p138) target = $region32
    $region31: #{moco_forward.11} parent=5 // pred_region
      %s142 = ssub.s32 %s9, 1
      %p143 = scmp.lt.s32.totalorder %s14, 7
      %s144 = scalar_select %p143, %s14, 7
      %s145 = smul.addr %s144, 3
      %s146 = smul.addr %s145, 2
      %s147 = scalar_lea.vmem %s0, %s146
      %p148 = pneg %p35
      %p149 = pneg %p32
      %p150 = pneg %p56
      %p151 = pneg %p53
      %p152 = pneg %p77
      %p153 = pneg %p74
      %p154 = pneg %p103
      %p155 = pneg %p100
      %p156 = scmp.lt.s32.totalorder %s14, 7
      %s157 = scalar_select %p156, %s14, 7
      %s158 = smul.addr %s157, 2
      %s159 = scalar_lea.vmem %s3, %s158
      %p160 = scmp.lt.s32.totalorder %s14, 7
      %s161 = scalar_select %p160, %s14, 7
      %s162 = smul.addr %s161, 3
      %s163 = smul.addr %s162, 2
      %s164 = scalar_lea.vmem %s0, %s163
      %p165 = scmp.lt.s32.totalorder %s14, 7
      %s166 = scalar_select %p165, %s14, 7
      %s167 = smul.addr %s166, 2
      %s168 = scalar_lea.vmem %s3, %s167
      %170 = vst [vmem:[#allocation2] sm:$0xff] 0.0
      %171 = vst [vmem:[#allocation2 + $0x8] sm:$0xff] 0.0
      %172 = vst [vmem:[#allocation2 + $0x10] sm:$0xff] 0.0
      %173 = vst [vmem:[#allocation2 + $0x18] sm:$0xff] 0.0
      %174 = vst [vmem:[#allocation2 + $0x20] sm:$0xff] 0.0
      %175 = vst [vmem:[#allocation2 + $0x28] sm:$0xff] 0.0
      %176 = vst [vmem:[#allocation2 + $0x30] sm:$0xff] 0.0
      %177 = vst [vmem:[#allocation2 + $0x38] sm:$0xff] 0.0
      %178 = vst [vmem:[#allocation2 + $0x40] sm:$0xff] 0.0
      %179 = vst [vmem:[#allocation2 + $0x48] sm:$0xff] 0.0
      %180 = vst [vmem:[#allocation2 + $0x50] sm:$0xff] 0.0
      %181 = vst [vmem:[#allocation2 + $0x58] sm:$0xff] 0.0
      %182 = vst [vmem:[#allocation2 + $0x60] sm:$0xff] 0.0
      %183 = vst [vmem:[#allocation2 + $0x68] sm:$0xff] 0.0
      %184 = vst [vmem:[#allocation2 + $0x70] sm:$0xff] 0.0
      %185 = vst [vmem:[#allocation2 + $0x78] sm:$0xff] 0.0
      %186 = vst [vmem:[#allocation2 + $0x80] sm:$0xff] 0.0
      %187 = vst [vmem:[#allocation2 + $0x88] sm:$0xff] 0.0
      %188 = vst [vmem:[#allocation2 + $0x90] sm:$0xff] 0.0
      %189 = vst [vmem:[#allocation2 + $0x98] sm:$0xff] 0.0
      %190 = vst [vmem:[#allocation2 + $0xa0] sm:$0xff] 0.0
      %191 = vst [vmem:[#allocation2 + $0xa8] sm:$0xff] 0.0
      %192 = vst [vmem:[#allocation2 + $0xb0] sm:$0xff] 0.0
      %193 = vst [vmem:[#allocation2 + $0xb8] sm:$0xff] 0.0
      %194 = vst [vmem:[#allocation2 + $0xc0] sm:$0xff] 0.0
      %195 = vst [vmem:[#allocation2 + $0xc8] sm:$0xff] 0.0
      %196 = vst [vmem:[#allocation2 + $0xd0] sm:$0xff] 0.0
      %197 = vst [vmem:[#allocation2 + $0xd8] sm:$0xff] 0.0
      %198 = vst [vmem:[#allocation2 + $0xe0] sm:$0xff] 0.0
      %199 = vst [vmem:[#allocation2 + $0xe8] sm:$0xff] 0.0
      %200 = vst [vmem:[#allocation2 + $0xf0] sm:$0xff] 0.0
      %201 = vst [vmem:[#allocation2 + $0xf8] sm:$0xff] 0.0
      %202 = vst [vmem:[#allocation2 + $0x100] sm:$0xff] 0.0
      %203 = vst [vmem:[#allocation2 + $0x108] sm:$0xff] 0.0
      %204 = vst [vmem:[#allocation2 + $0x110] sm:$0xff] 0.0
      %205 = vst [vmem:[#allocation2 + $0x118] sm:$0xff] 0.0
      %206 = vst [vmem:[#allocation2 + $0x120] sm:$0xff] 0.0
      %207 = vst [vmem:[#allocation2 + $0x128] sm:$0xff] 0.0
      %208 = vst [vmem:[#allocation2 + $0x130] sm:$0xff] 0.0
      %209 = vst [vmem:[#allocation2 + $0x138] sm:$0xff] 0.0
      %210 = vst [vmem:[#allocation2 + $0x140] sm:$0xff] 0.0
      %211 = vst [vmem:[#allocation2 + $0x148] sm:$0xff] 0.0
      %212 = vst [vmem:[#allocation2 + $0x150] sm:$0xff] 0.0
      %213 = vst [vmem:[#allocation2 + $0x158] sm:$0xff] 0.0
      %214 = vst [vmem:[#allocation2 + $0x160] sm:$0xff] 0.0
      %215 = vst [vmem:[#allocation2 + $0x168] sm:$0xff] 0.0
      %216 = vst [vmem:[#allocation2 + $0x170] sm:$0xff] 0.0
      %217 = vst [vmem:[#allocation2 + $0x178] sm:$0xff] 0.0
      %218 = vst [vmem:[#allocation2 + $0x180] sm:$0xff] 0.0
      %219 = vst [vmem:[#allocation2 + $0x188] sm:$0xff] 0.0
      %220 = vst [vmem:[#allocation2 + $0x190] sm:$0xff] 0.0
      %221 = vst [vmem:[#allocation2 + $0x198] sm:$0xff] 0.0
      %222 = vst [vmem:[#allocation2 + $0x1a0] sm:$0xff] 0.0
      %223 = vst [vmem:[#allocation2 + $0x1a8] sm:$0xff] 0.0
      %224 = vst [vmem:[#allocation2 + $0x1b0] sm:$0xff] 0.0
      %225 = vst [vmem:[#allocation2 + $0x1b8] sm:$0xff] 0.0
      %226 = vst [vmem:[#allocation2 + $0x1c0] sm:$0xff] 0.0
      %227 = vst [vmem:[#allocation2 + $0x1c8] sm:$0xff] 0.0
      %228 = vst [vmem:[#allocation2 + $0x1d0] sm:$0xff] 0.0
      %229 = vst [vmem:[#allocation2 + $0x1d8] sm:$0xff] 0.0
      %230 = vst [vmem:[#allocation2 + $0x1e0] sm:$0xff] 0.0
      %231 = vst [vmem:[#allocation2 + $0x1e8] sm:$0xff] 0.0
      %232 = vst [vmem:[#allocation2 + $0x1f0] sm:$0xff] 0.0
      %233 = vst [vmem:[#allocation2 + $0x1f8] sm:$0xff] 0.0
      %234 = vst [vmem:[#allocation2 + $0x200] sm:$0xff] 0.0
      %235 = vst [vmem:[#allocation2 + $0x208] sm:$0xff] 0.0
      %236 = vst [vmem:[#allocation2 + $0x210] sm:$0xff] 0.0
      %237 = vst [vmem:[#allocation2 + $0x218] sm:$0xff] 0.0
      %238 = vst [vmem:[#allocation2 + $0x220] sm:$0xff] 0.0
      %239 = vst [vmem:[#allocation2 + $0x228] sm:$0xff] 0.0
      %240 = vst [vmem:[#allocation2 + $0x230] sm:$0xff] 0.0
      %241 = vst [vmem:[#allocation2 + $0x238] sm:$0xff] 0.0
      %v242 = vld [vmem:[%s164] sm:$0x3f]
      %v243 = vld [vmem:[#allocation2] sm:$0xff]
      %v244 = vld [vmem:[#allocation2 + $0x8] sm:$0xff]
      %v245 = vld [vmem:[#allocation2 + $0x10] sm:$0xff]
      %v246 = vld [vmem:[#allocation2 + $0x18] sm:$0xff]
      %v247 = vld [vmem:[#allocation2 + $0x20] sm:$0xff]
      %v248 = vld [vmem:[#allocation2 + $0x28] sm:$0xff]
      %v249 = vld [vmem:[#allocation2 + $0x30] sm:$0xff]
      %v250 = vld [vmem:[#allocation2 + $0x38] sm:$0xff]
      %v251 = vld [vmem:[#allocation2 + $0x40] sm:$0xff]
      %v252 = vld [vmem:[#allocation2 + $0x48] sm:$0xff]
      %v253 = vld [vmem:[#allocation2 + $0x50] sm:$0xff]
      %v254 = vld [vmem:[#allocation2 + $0x58] sm:$0xff]
      %v255 = vld [vmem:[#allocation2 + $0x60] sm:$0xff]
      %v256 = vld [vmem:[#allocation2 + $0x68] sm:$0xff]
      %v257 = vld [vmem:[#allocation2 + $0x70] sm:$0xff]
      %v258 = vld [vmem:[#allocation2 + $0x78] sm:$0xff]
      %v259 = vld [vmem:[#allocation2 + $0x80] sm:$0xff]
      %v260 = vld [vmem:[#allocation2 + $0x88] sm:$0xff]
      %v261 = vld [vmem:[#allocation2 + $0x90] sm:$0xff]
      %v262 = vld [vmem:[#allocation2 + $0x98] sm:$0xff]
      %v263 = vld [vmem:[#allocation2 + $0xa0] sm:$0xff]
      %v264 = vld [vmem:[#allocation2 + $0xa8] sm:$0xff]
      %v265 = vld [vmem:[#allocation2 + $0xb0] sm:$0xff]
      %v266 = vld [vmem:[#allocation2 + $0xb8] sm:$0xff]
      %v267 = vld [vmem:[#allocation2 + $0xc0] sm:$0xff]
      %v268 = vld [vmem:[#allocation2 + $0xc8] sm:$0xff]
      %v269 = vld [vmem:[#allocation2 + $0xd0] sm:$0xff]
      %v270 = vld [vmem:[#allocation2 + $0xd8] sm:$0xff]
      %v271 = vld [vmem:[#allocation2 + $0xe0] sm:$0xff]
      %v272 = vld [vmem:[#allocation2 + $0xe8] sm:$0xff]
      %v273 = vld [vmem:[#allocation2 + $0xf0] sm:$0xff]
      %v274 = vld [vmem:[#allocation2 + $0xf8] sm:$0xff]
      %v275 = vld [vmem:[#allocation2 + $0x100] sm:$0xff]
      %v276 = vld [vmem:[#allocation2 + $0x108] sm:$0xff]
      %v277 = vld [vmem:[#allocation2 + $0x110] sm:$0xff]
      %v278 = vld [vmem:[#allocation2 + $0x118] sm:$0xff]
      %v279 = vld [vmem:[#allocation2 + $0x120] sm:$0xff]
      %v280 = vld [vmem:[#allocation2 + $0x128] sm:$0xff]
      %v281 = vld [vmem:[#allocation2 + $0x130] sm:$0xff]
      %v282 = vld [vmem:[#allocation2 + $0x138] sm:$0xff]
      %v283 = vld [vmem:[#allocation2 + $0x140] sm:$0xff]
      %v284 = vld [vmem:[#allocation2 + $0x148] sm:$0xff]
      %v285 = vld [vmem:[#allocation2 + $0x150] sm:$0xff]
      %v286 = vld [vmem:[#allocation2 + $0x158] sm:$0xff]
      %v287 = vld [vmem:[#allocation2 + $0x160] sm:$0xff]
      %v288 = vld [vmem:[#allocation2 + $0x168] sm:$0xff]
      %v289 = vld [vmem:[#allocation2 + $0x170] sm:$0xff]
      %v290 = vld [vmem:[#allocation2 + $0x178] sm:$0xff]
      %v291 = vld [vmem:[#allocation2 + $0x180] sm:$0xff]
      %v292 = vld [vmem:[#allocation2 + $0x188] sm:$0xff]
      %v293 = vld [vmem:[#allocation2 + $0x190] sm:$0xff]
      %v294 = vld [vmem:[#allocation2 + $0x198] sm:$0xff]
      %v295 = vld [vmem:[#allocation2 + $0x1a0] sm:$0xff]
      %v296 = vld [vmem:[#allocation2 + $0x1a8] sm:$0xff]
      %v297 = vld [vmem:[#allocation2 + $0x1b0] sm:$0xff]
      %v298 = vld [vmem:[#allocation2 + $0x1b8] sm:$0xff]
      %v299 = vld [vmem:[#allocation2 + $0x1c0] sm:$0xff]
      %v300 = vld [vmem:[#allocation2 + $0x1c8] sm:$0xff]
      %v301 = vld [vmem:[#allocation2 + $0x1d0] sm:$0xff]
      %v302 = vld [vmem:[#allocation2 + $0x1d8] sm:$0xff]
      %v303 = vld [vmem:[#allocation2 + $0x1e0] sm:$0xff]
      %v304 = vld [vmem:[#allocation2 + $0x1e8] sm:$0xff]
      %v305 = vld [vmem:[#allocation2 + $0x1f0] sm:$0xff]
      %v306 = vld [vmem:[#allocation2 + $0x1f8] sm:$0xff]
      %v307 = vld [vmem:[#allocation2 + $0x200] sm:$0xff]
      %v308 = vld [vmem:[#allocation2 + $0x208] sm:$0xff]
      %v309 = vld [vmem:[#allocation2 + $0x210] sm:$0xff]
      %v310 = vld [vmem:[#allocation2 + $0x218] sm:$0xff]
      %v311 = vld [vmem:[#allocation2 + $0x220] sm:$0xff]
      %v312 = vld [vmem:[#allocation2 + $0x228] sm:$0xff]
      %v313 = vld [vmem:[#allocation2 + $0x230] sm:$0xff]
      %v314 = vld [vmem:[#allocation2 + $0x238] sm:$0xff]
      %v315 = vld [vmem:[%s1] sm:$0xf]
      %v317 = vcombine.high %v242, %v242
      %v319 = vunpack.c.l.s4 1983009808
      %v320 = vunpack.c.0.s8 %v319
      %v321 = vlaneseq
      %v322 = vshrl.u32 %v321, 7
      %v323 = vsub.s32 %v320, %v322
      %v324 = vrot.slane %v242, %v323
      %v326 = vunpack.c.l.s4 1983009808
      %v327 = vunpack.c.0.s8 %v326
      %v328 = vlaneseq
      %v329 = vshrl.u32 %v328, 7
      %v330 = vsub.s32 %v327, %v329
      %v331 = vrot.slane %v317, %v330
      %v332 = vcombine.high %v324, %v324
      %336 = vxpose.xlu0.c.b16.start [1/8] %v324, 128
      %337 = vxpose.xlu0.c.b16.cont [2/8] 0, 128
      %338 = vxpose.xlu0.c.b16.cont [3/8] 0, 128
      %339 = vxpose.xlu0.c.b16.cont [4/8] 0, 128
      %340 = vxpose.xlu0.c.b16.cont [5/8] 0, 128
      %341 = vxpose.xlu0.c.b16.cont [6/8] 0, 128
      %342 = vxpose.xlu0.c.b16.cont [7/8] 0, 128
      %343 = vxpose.xlu0.c.b16.end [8/8] 0, 128
      %v344 = vpop.trf.xlu0
      %v345 = vpop.trf.xlu0
      %v346 = vpop.trf.xlu0
      %v347 = vpop.trf.xlu0
      %v348 = vpop.trf.xlu0
      %v349 = vpop.trf.xlu0
      %v350 = vpop.trf.xlu0
      %v351 = vpop.trf.xlu0
      %352 = vxpose.xlu0.c.b16.start [1/8] %v332, 128
      %353 = vxpose.xlu0.c.b16.cont [2/8] 0, 128
      %354 = vxpose.xlu0.c.b16.cont [3/8] 0, 128
      %355 = vxpose.xlu0.c.b16.cont [4/8] 0, 128
      %356 = vxpose.xlu0.c.b16.cont [5/8] 0, 128
      %357 = vxpose.xlu0.c.b16.cont [6/8] 0, 128
      %358 = vxpose.xlu0.c.b16.cont [7/8] 0, 128
      %359 = vxpose.xlu0.c.b16.end [8/8] 0, 128
      %v360 = vpop.trf.xlu0
      %v361 = vpop.trf.xlu0
      %v362 = vpop.trf.xlu0
      %v363 = vpop.trf.xlu0
      %v364 = vpop.trf.xlu0
      %v365 = vpop.trf.xlu0
      %v366 = vpop.trf.xlu0
      %v367 = vpop.trf.xlu0
      %368 = vxpose.xlu0.c.b16.start [1/8] %v331, 128
      %369 = vxpose.xlu0.c.b16.cont [2/8] 0, 128
      %370 = vxpose.xlu0.c.b16.cont [3/8] 0, 128
      %371 = vxpose.xlu0.c.b16.cont [4/8] 0, 128
      %372 = vxpose.xlu0.c.b16.cont [5/8] 0, 128
      %373 = vxpose.xlu0.c.b16.cont [6/8] 0, 128
      %374 = vxpose.xlu0.c.b16.cont [7/8] 0, 128
      %375 = vxpose.xlu0.c.b16.end [8/8] 0, 128
      %v376 = vpop.trf.xlu0
      %v377 = vpop.trf.xlu0
      %v378 = vpop.trf.xlu0
      %v379 = vpop.trf.xlu0
      %v380 = vpop.trf.xlu0
      %v381 = vpop.trf.xlu0
      %v382 = vpop.trf.xlu0
      %v383 = vpop.trf.xlu0
      %v386 = vunpack.c.l.s4 1983009808
      %v387 = vunpack.c.0.s8 %v386
      %v388 = vlaneseq
      %v389 = vshrl.u32 %v388, 7
      %v390 = vsub.s32 %v387, %v389
      %v391 = vrot.slane %v315, %v390
      %v392 = vcombine.high %v391, %v391
      %vm393 = vcmask 23552
      %v395 = vsel %vm393, %v344, 0
      %v398 = vsel %vm393, %v345, 0
      %v401 = vsel %vm393, %v346, 0
      %v404 = vsel %vm393, %v347, 0
      %v407 = vsel %vm393, %v348, 0
      %v410 = vsel %vm393, %v349, 0
      %v413 = vsel %vm393, %v350, 0
      %v416 = vsel %vm393, %v351, 0
      %v419 = vsel %vm393, %v360, 0
      %v422 = vsel %vm393, %v361, 0
      %v425 = vsel %vm393, %v362, 0
      %v428 = vsel %vm393, %v363, 0
      %v431 = vsel %vm393, %v364, 0
      %v434 = vsel %vm393, %v365, 0
      %v437 = vsel %vm393, %v366, 0
      %v440 = vsel %vm393, %v367, 0
      %v443 = vsel %vm393, %v376, 0
      %v446 = vsel %vm393, %v377, 0
      %vm448 = vcmask 1040384
      %vm449 = vcmask 1041408
      %v450 = vsel %vm448, 4294967295, 65535
      %v451 = vsel %vm449, %v450, 0
      %v453 = vand.u32 %v391, %v451
      %v456 = vand.u32 %v392, %v451
      %458 = vmatprep.subr.bf16.mxu0 %v456
      %459 = vmatpush1.bf16.msra.mxu0 %v453
      %460 = vmatprep.subr.bf16.mxu0 0
      %461 = vmatpush1.bf16.msra.mxu0 0
      %462 = vmatprep.subr.bf16.mxu0 0
      %463 = vmatpush1.bf16.msra.mxu0 0
      %464 = vmatprep.subr.bf16.mxu0 0
      %465 = vmatpush1.bf16.msra.mxu0 0
      %466 = vmatprep.subr.bf16.mxu0 0
      %467 = vmatpush1.bf16.msra.mxu0 0
      %468 = vmatprep.subr.bf16.mxu0 0
      %469 = vmatpush1.bf16.msra.mxu0 0
      %470 = vmatprep.subr.bf16.mxu0 0
      %471 = vmatpush1.bf16.msra.mxu0 0
      %472 = vmatprep.subr.bf16.mxu0 0
      %473 = vmatpush1.bf16.msra.mxu0 0
      %474 = vmatprep.subr.bf16.mxu0 0
      %475 = vmatpush1.bf16.msra.mxu0 0
      %476 = vmatprep.subr.bf16.mxu0 0
      %477 = vmatpush1.bf16.msra.mxu0 0
      %478 = vmatprep.subr.bf16.mxu0 0
      %479 = vmatpush1.bf16.msra.mxu0 0
      %480 = vmatprep.subr.bf16.mxu0 0
      %481 = vmatpush1.bf16.msra.mxu0 0
      %482 = vmatprep.subr.bf16.mxu0 0
      %483 = vmatpush1.bf16.msra.mxu0 0
      %484 = vmatprep.subr.bf16.mxu0 0
      %485 = vmatpush1.bf16.msra.mxu0 0
      %486 = vmatprep.subr.bf16.mxu0 0
      %487 = vmatpush1.bf16.msra.mxu0 0
      %488 = vmatprep.subr.bf16.mxu0 0
      %489 = vmatpush1.bf16.msra.mxu0 0
      %490 = vmatprep.mubr.bf16.mxu0 0
      %491 = vmatmul.mubr.bf16.gmra.mrb[0].mxu0 %v395
      %v492 = vpop.f32.mrb[0].mxu0
      %v493 = vadd.f32 0.0, %v492
      %v494 = vpop.f32.mrb[0].mxu0
      %v495 = vadd.f32 0.0, %v494
      %v496 = vpop.f32.mrb[0].mxu0
      %v497 = vadd.f32 0.0, %v496
      %v498 = vpop.f32.mrb[0].mxu0
      %v499 = vadd.f32 0.0, %v498
      %500 = vmatprep.mubr.bf16.mxu0 0
      %501 = vmatmul.mubr.bf16.gmra.mrb[0].mxu0 %v398
      %v502 = vpop.f32.mrb[0].mxu0
      %v503 = vadd.f32 0.0, %v502
      %v504 = vpop.f32.mrb[0].mxu0
      %v505 = vadd.f32 0.0, %v504
      %v506 = vpop.f32.mrb[0].mxu0
      %v507 = vadd.f32 0.0, %v506
      %v508 = vpop.f32.mrb[0].mxu0
      %v509 = vadd.f32 0.0, %v508
      %510 = vmatprep.mubr.bf16.mxu0 0
      %511 = vmatmul.mubr.bf16.gmra.mrb[0].mxu0 %v401
      %v512 = vpop.f32.mrb[0].mxu0
      %v513 = vadd.f32 0.0, %v512
      %v514 = vpop.f32.mrb[0].mxu0
      %v515 = vadd.f32 0.0, %v514
      %v516 = vpop.f32.mrb[0].mxu0
      %v517 = vadd.f32 0.0, %v516
      %v518 = vpop.f32.mrb[0].mxu0
      %v519 = vadd.f32 0.0, %v518
      %520 = vmatprep.mubr.bf16.mxu0 0
      %521 = vmatmul.mubr.bf16.gmra.mrb[0].mxu0 %v404
      %v522 = vpop.f32.mrb[0].mxu0
      %v523 = vadd.f32 0.0, %v522
      %v524 = vpop.f32.mrb[0].mxu0
      %v525 = vadd.f32 0.0, %v524
      %v526 = vpop.f32.mrb[0].mxu0
      %v527 = vadd.f32 0.0, %v526
      %v528 = vpop.f32.mrb[0].mxu0
      %v529 = vadd.f32 0.0, %v528
      %530 = vmatprep.mubr.bf16.mxu0 0
      %531 = vmatmul.mubr.bf16.gmra.mrb[0].mxu0 %v407
      %v532 = vpop.f32.mrb[0].mxu0
      %v533 = vadd.f32 0.0, %v532
      %v534 = vpop.f32.mrb[0].mxu0
      %v535 = vadd.f32 0.0, %v534
      %v536 = vpop.f32.mrb[0].mxu0
      %v537 = vadd.f32 0.0, %v536
      %v538 = vpop.f32.mrb[0].mxu0
      %v539 = vadd.f32 0.0, %v538
      %540 = vmatprep.mubr.bf16.mxu0 0
      %541 = vmatmul.mubr.bf16.gmra.mrb[0].mxu0 %v410
      %v542 = vpop.f32.mrb[0].mxu0
      %v543 = vadd.f32 0.0, %v542
      %v544 = vpop.f32.mrb[0].mxu0
      %v545 = vadd.f32 0.0, %v544
      %v546 = vpop.f32.mrb[0].mxu0
      %v547 = vadd.f32 0.0, %v546
      %v548 = vpop.f32.mrb[0].mxu0
      %v549 = vadd.f32 0.0, %v548
      %550 = vmatprep.mubr.bf16.mxu0 0
      %551 = vmatmul.mubr.bf16.gmra.mrb[0].mxu0 %v413
      %v552 = vpop.f32.mrb[0].mxu0
      %v553 = vadd.f32 0.0, %v552
      %v554 = vpop.f32.mrb[0].mxu0
      %v555 = vadd.f32 0.0, %v554
      %v556 = vpop.f32.mrb[0].mxu0
      %v557 = vadd.f32 0.0, %v556
      %v558 = vpop.f32.mrb[0].mxu0
      %v559 = vadd.f32 0.0, %v558
      %560 = vmatprep.mubr.bf16.mxu0 0
      %561 = vmatmul.mubr.bf16.gmra.mrb[0].mxu0 %v416
      %v562 = vpop.f32.mrb[0].mxu0
      %v563 = vadd.f32 0.0, %v562
      %v564 = vpop.f32.mrb[0].mxu0
      %v565 = vadd.f32 0.0, %v564
      %v566 = vpop.f32.mrb[0].mxu0
      %v567 = vadd.f32 0.0, %v566
      %v568 = vpop.f32.mrb[0].mxu0
      %v569 = vadd.f32 0.0, %v568
      %570 = vmatprep.mubr.bf16.mxu0 0
      %571 = vmatmul.mubr.bf16.gmra.mrb[0].mxu0 %v419
      %v572 = vpop.f32.mrb[0].mxu0
      %v573 = vadd.f32 0.0, %v572
      %v574 = vpop.f32.mrb[0].mxu0
      %v575 = vadd.f32 0.0, %v574
      %v576 = vpop.f32.mrb[0].mxu0
      %v577 = vadd.f32 0.0, %v576
      %v578 = vpop.f32.mrb[0].mxu0
      %v579 = vadd.f32 0.0, %v578
      %580 = vmatprep.mubr.bf16.mxu0 0
      %581 = vmatmul.mubr.bf16.gmra.mrb[0].mxu0 %v422
      %v582 = vpop.f32.mrb[0].mxu0
      %v583 = vadd.f32 0.0, %v582
      %v584 = vpop.f32.mrb[0].mxu0
      %v585 = vadd.f32 0.0, %v584
      %v586 = vpop.f32.mrb[0].mxu0
      %v587 = vadd.f32 0.0, %v586
      %v588 = vpop.f32.mrb[0].mxu0
      %v589 = vadd.f32 0.0, %v588
      %590 = vmatprep.mubr.bf16.mxu0 0
      %591 = vmatmul.mubr.bf16.gmra.mrb[0].mxu0 %v425
      %v592 = vpop.f32.mrb[0].mxu0
      %v593 = vadd.f32 0.0, %v592
      %v594 = vpop.f32.mrb[0].mxu0
      %v595 = vadd.f32 0.0, %v594
      %v596 = vpop.f32.mrb[0].mxu0
      %v597 = vadd.f32 0.0, %v596
      %v598 = vpop.f32.mrb[0].mxu0
      %v599 = vadd.f32 0.0, %v598
      %600 = vmatprep.mubr.bf16.mxu0 0
      %601 = vmatmul.mubr.bf16.gmra.mrb[0].mxu0 %v428
      %v602 = vpop.f32.mrb[0].mxu0
      %v603 = vadd.f32 0.0, %v602
      %v604 = vpop.f32.mrb[0].mxu0
      %v605 = vadd.f32 0.0, %v604
      %v606 = vpop.f32.mrb[0].mxu0
      %v607 = vadd.f32 0.0, %v606
      %v608 = vpop.f32.mrb[0].mxu0
      %v609 = vadd.f32 0.0, %v608
      %610 = vmatprep.mubr.bf16.mxu0 0
      %611 = vmatmul.mubr.bf16.gmra.mrb[0].mxu0 %v431
      %v612 = vpop.f32.mrb[0].mxu0
      %v613 = vadd.f32 0.0, %v612
      %v614 = vpop.f32.mrb[0].mxu0
      %v615 = vadd.f32 0.0, %v614
      %v616 = vpop.f32.mrb[0].mxu0
      %v617 = vadd.f32 0.0, %v616
      %v618 = vpop.f32.mrb[0].mxu0
      %v619 = vadd.f32 0.0, %v618
      %620 = vmatprep.mubr.bf16.mxu0 0
      %621 = vmatmul.mubr.bf16.gmra.mrb[0].mxu0 %v434
      %v622 = vpop.f32.mrb[0].mxu0
      %v623 = vadd.f32 0.0, %v622
      %v624 = vpop.f32.mrb[0].mxu0
      %v625 = vadd.f32 0.0, %v624
      %v626 = vpop.f32.mrb[0].mxu0
      %v627 = vadd.f32 0.0, %v626
      %v628 = vpop.f32.mrb[0].mxu0
      %v629 = vadd.f32 0.0, %v628
      %630 = vmatprep.mubr.bf16.mxu0 0
      %631 = vmatmul.mubr.bf16.gmra.mrb[0].mxu0 %v437
      %v632 = vpop.f32.mrb[0].mxu0
      %v633 = vadd.f32 0.0, %v632
      %v634 = vpop.f32.mrb[0].mxu0
      %v635 = vadd.f32 0.0, %v634
      %v636 = vpop.f32.mrb[0].mxu0
      %v637 = vadd.f32 0.0, %v636
      %v638 = vpop.f32.mrb[0].mxu0
      %v639 = vadd.f32 0.0, %v638
      %640 = vmatprep.mubr.bf16.mxu0 0
      %641 = vmatmul.mubr.bf16.gmra.mrb[0].mxu0 %v440
      %v642 = vpop.f32.mrb[0].mxu0
      %v643 = vadd.f32 0.0, %v642
      %v644 = vpop.f32.mrb[0].mxu0
      %v645 = vadd.f32 0.0, %v644
      %v646 = vpop.f32.mrb[0].mxu0
      %v647 = vadd.f32 0.0, %v646
      %v648 = vpop.f32.mrb[0].mxu0
      %v649 = vadd.f32 0.0, %v648
      %650 = vmatprep.mubr.bf16.mxu0 0
      %651 = vmatmul.mubr.bf16.gmra.mrb[0].mxu0 %v443
      %v652 = vpop.f32.mrb[0].mxu0
      %v653 = vadd.f32 0.0, %v652
      %v654 = vpop.f32.mrb[0].mxu0
      %v655 = vadd.f32 0.0, %v654
      %v656 = vpop.f32.mrb[0].mxu0
      %v657 = vadd.f32 0.0, %v656
      %v658 = vpop.f32.mrb[0].mxu0
      %v659 = vadd.f32 0.0, %v658
      %660 = vmatprep.mubr.bf16.mxu0 0
      %661 = vmatmul.mubr.bf16.gmra.mrb[0].mxu0 %v446
      %v662 = vpop.f32.mrb[0].mxu0
      %v663 = vadd.f32 0.0, %v662
      %v664 = vpop.f32.mrb[0].mxu0
      %v665 = vadd.f32 0.0, %v664
      %v666 = vpop.f32.mrb[0].mxu0
      %v667 = vadd.f32 0.0, %v666
      %v668 = vpop.f32.mrb[0].mxu0
      %v669 = vadd.f32 0.0, %v668
      %670 = vdwg.mxu0
      %v671 = vadd.f32 %v243, %v493
      %v672 = vadd.f32 %v244, %v495
      %v673 = vadd.f32 %v245, %v497
      %v674 = vadd.f32 %v246, %v499
      %v675 = vadd.f32 %v247, %v503
      %v676 = vadd.f32 %v248, %v505
      %v677 = vadd.f32 %v249, %v507
      %v678 = vadd.f32 %v250, %v509
      %v679 = vadd.f32 %v251, %v513
      %v680 = vadd.f32 %v252, %v515
      %v681 = vadd.f32 %v253, %v517
      %v682 = vadd.f32 %v254, %v519
      %v683 = vadd.f32 %v255, %v523
      %v684 = vadd.f32 %v256, %v525
      %v685 = vadd.f32 %v257, %v527
      %v686 = vadd.f32 %v258, %v529
      %v687 = vadd.f32 %v259, %v533
      %v688 = vadd.f32 %v260, %v535
      %v689 = vadd.f32 %v261, %v537
      %v690 = vadd.f32 %v262, %v539
      %v691 = vadd.f32 %v263, %v543
      %v692 = vadd.f32 %v264, %v545
      %v693 = vadd.f32 %v265, %v547
      %v694 = vadd.f32 %v266, %v549
      %v695 = vadd.f32 %v267, %v553
      %v696 = vadd.f32 %v268, %v555
      %v697 = vadd.f32 %v269, %v557
      %v698 = vadd.f32 %v270, %v559
      %v699 = vadd.f32 %v271, %v563
      %v700 = vadd.f32 %v272, %v565
      %v701 = vadd.f32 %v273, %v567
      %v702 = vadd.f32 %v274, %v569
      %v703 = vadd.f32 %v275, %v573
      %v704 = vadd.f32 %v276, %v575
      %v705 = vadd.f32 %v277, %v577
      %v706 = vadd.f32 %v278, %v579
      %v707 = vadd.f32 %v279, %v583
      %v708 = vadd.f32 %v280, %v585
      %v709 = vadd.f32 %v281, %v587
      %v710 = vadd.f32 %v282, %v589
      %v711 = vadd.f32 %v283, %v593
      %v712 = vadd.f32 %v284, %v595
      %v713 = vadd.f32 %v285, %v597
      %v714 = vadd.f32 %v286, %v599
      %v715 = vadd.f32 %v287, %v603
      %v716 = vadd.f32 %v288, %v605
      %v717 = vadd.f32 %v289, %v607
      %v718 = vadd.f32 %v290, %v609
      %v719 = vadd.f32 %v291, %v613
      %v720 = vadd.f32 %v292, %v615
      %v721 = vadd.f32 %v293, %v617
      %v722 = vadd.f32 %v294, %v619
      %v723 = vadd.f32 %v295, %v623
      %v724 = vadd.f32 %v296, %v625
      %v725 = vadd.f32 %v297, %v627
      %v726 = vadd.f32 %v298, %v629
      %v727 = vadd.f32 %v299, %v633
      %v728 = vadd.f32 %v300, %v635
      %v729 = vadd.f32 %v301, %v637
      %v730 = vadd.f32 %v302, %v639
      %v731 = vadd.f32 %v303, %v643
      %v732 = vadd.f32 %v304, %v645
      %v733 = vadd.f32 %v305, %v647
      %v734 = vadd.f32 %v306, %v649
      %v735 = vadd.f32 %v307, %v653
      %v736 = vadd.f32 %v308, %v655
      %v737 = vadd.f32 %v309, %v657
      %v738 = vadd.f32 %v310, %v659
      %v739 = vadd.f32 %v311, %v663
      %v740 = vadd.f32 %v312, %v665
      %v741 = vadd.f32 %v313, %v667
      %v742 = vadd.f32 %v314, %v669
      %743 = vst [vmem:[#allocation2] sm:$0xff] %v671
      %744 = vst [vmem:[#allocation2 + $0x8] sm:$0xff] %v672
      %745 = vst [vmem:[#allocation2 + $0x10] sm:$0xff] %v673
      %746 = vst [vmem:[#allocation2 + $0x18] sm:$0xff] %v674
      %747 = vst [vmem:[#allocation2 + $0x20] sm:$0xff] %v675
      %748 = vst [vmem:[#allocation2 + $0x28] sm:$0xff] %v676
      %749 = vst [vmem:[#allocation2 + $0x30] sm:$0xff] %v677
      %750 = vst [vmem:[#allocation2 + $0x38] sm:$0xff] %v678
      %751 = vst [vmem:[#allocation2 + $0x40] sm:$0xff] %v679
      %752 = vst [vmem:[#allocation2 + $0x48] sm:$0xff] %v680
      %753 = vst [vmem:[#allocation2 + $0x50] sm:$0xff] %v681
      %754 = vst [vmem:[#allocation2 + $0x58] sm:$0xff] %v682
      %755 = vst [vmem:[#allocation2 + $0x60] sm:$0xff] %v683
      %756 = vst [vmem:[#allocation2 + $0x68] sm:$0xff] %v684
      %757 = vst [vmem:[#allocation2 + $0x70] sm:$0xff] %v685
      %758 = vst [vmem:[#allocation2 + $0x78] sm:$0xff] %v686
      %759 = vst [vmem:[#allocation2 + $0x80] sm:$0xff] %v687
      %760 = vst [vmem:[#allocation2 + $0x88] sm:$0xff] %v688
      %761 = vst [vmem:[#allocation2 + $0x90] sm:$0xff] %v689
      %762 = vst [vmem:[#allocation2 + $0x98] sm:$0xff] %v690
      %763 = vst [vmem:[#allocation2 + $0xa0] sm:$0xff] %v691
      %764 = vst [vmem:[#allocation2 + $0xa8] sm:$0xff] %v692
      %765 = vst [vmem:[#allocation2 + $0xb0] sm:$0xff] %v693
      %766 = vst [vmem:[#allocation2 + $0xb8] sm:$0xff] %v694
      %767 = vst [vmem:[#allocation2 + $0xc0] sm:$0xff] %v695
      %768 = vst [vmem:[#allocation2 + $0xc8] sm:$0xff] %v696
      %769 = vst [vmem:[#allocation2 + $0xd0] sm:$0xff] %v697
      %770 = vst [vmem:[#allocation2 + $0xd8] sm:$0xff] %v698
      %771 = vst [vmem:[#allocation2 + $0xe0] sm:$0xff] %v699
      %772 = vst [vmem:[#allocation2 + $0xe8] sm:$0xff] %v700
      %773 = vst [vmem:[#allocation2 + $0xf0] sm:$0xff] %v701
      %774 = vst [vmem:[#allocation2 + $0xf8] sm:$0xff] %v702
      %775 = vst [vmem:[#allocation2 + $0x100] sm:$0xff] %v703
      %776 = vst [vmem:[#allocation2 + $0x108] sm:$0xff] %v704
      %777 = vst [vmem:[#allocation2 + $0x110] sm:$0xff] %v705
      %778 = vst [vmem:[#allocation2 + $0x118] sm:$0xff] %v706
      %779 = vst [vmem:[#allocation2 + $0x120] sm:$0xff] %v707
      %780 = vst [vmem:[#allocation2 + $0x128] sm:$0xff] %v708
      %781 = vst [vmem:[#allocation2 + $0x130] sm:$0xff] %v709
      %782 = vst [vmem:[#allocation2 + $0x138] sm:$0xff] %v710
      %783 = vst [vmem:[#allocation2 + $0x140] sm:$0xff] %v711
      %784 = vst [vmem:[#allocation2 + $0x148] sm:$0xff] %v712
      %785 = vst [vmem:[#allocation2 + $0x150] sm:$0xff] %v713
      %786 = vst [vmem:[#allocation2 + $0x158] sm:$0xff] %v714
      %787 = vst [vmem:[#allocation2 + $0x160] sm:$0xff] %v715
      %788 = vst [vmem:[#allocation2 + $0x168] sm:$0xff] %v716
      %789 = vst [vmem:[#allocation2 + $0x170] sm:$0xff] %v717
      %790 = vst [vmem:[#allocation2 + $0x178] sm:$0xff] %v718
      %791 = vst [vmem:[#allocation2 + $0x180] sm:$0xff] %v719
      %792 = vst [vmem:[#allocation2 + $0x188] sm:$0xff] %v720
      %793 = vst [vmem:[#allocation2 + $0x190] sm:$0xff] %v721
      %794 = vst [vmem:[#allocation2 + $0x198] sm:$0xff] %v722
      %795 = vst [vmem:[#allocation2 + $0x1a0] sm:$0xff] %v723
      %796 = vst [vmem:[#allocation2 + $0x1a8] sm:$0xff] %v724
      %797 = vst [vmem:[#allocation2 + $0x1b0] sm:$0xff] %v725
      %798 = vst [vmem:[#allocation2 + $0x1b8] sm:$0xff] %v726
      %799 = vst [vmem:[#allocation2 + $0x1c0] sm:$0xff] %v727
      %800 = vst [vmem:[#allocation2 + $0x1c8] sm:$0xff] %v728
      %801 = vst [vmem:[#allocation2 + $0x1d0] sm:$0xff] %v729
      %802 = vst [vmem:[#allocation2 + $0x1d8] sm:$0xff] %v730
      %803 = vst [vmem:[#allocation2 + $0x1e0] sm:$0xff] %v731
      %804 = vst [vmem:[#allocation2 + $0x1e8] sm:$0xff] %v732
      %805 = vst [vmem:[#allocation2 + $0x1f0] sm:$0xff] %v733
      %806 = vst [vmem:[#allocation2 + $0x1f8] sm:$0xff] %v734
      %807 = vst [vmem:[#allocation2 + $0x200] sm:$0xff] %v735
      %808 = vst [vmem:[#allocation2 + $0x208] sm:$0xff] %v736
      %809 = vst [vmem:[#allocation2 + $0x210] sm:$0xff] %v737
      %810 = vst [vmem:[#allocation2 + $0x218] sm:$0xff] %v738
      %811 = vst [vmem:[#allocation2 + $0x220] sm:$0xff] %v739
      %812 = vst [vmem:[#allocation2 + $0x228] sm:$0xff] %v740
      %813 = vst [vmem:[#allocation2 + $0x230] sm:$0xff] %v741
      %814 = vst [vmem:[#allocation2 + $0x238] sm:$0xff] %v742
      %v815 = vld [vmem:[#allocation2] sm:$0xff]
      %v816 = vld [vmem:[#allocation2 + $0x8] sm:$0xff]
      %v817 = vld [vmem:[#allocation2 + $0x10] sm:$0xff]
      %v818 = vld [vmem:[#allocation2 + $0x18] sm:$0xff]
      %v819 = vld [vmem:[#allocation2 + $0x20] sm:$0xff]
      %v820 = vld [vmem:[#allocation2 + $0x28] sm:$0xff]
      %v821 = vld [vmem:[#allocation2 + $0x30] sm:$0xff]
      %v822 = vld [vmem:[#allocation2 + $0x38] sm:$0xff]
      %v823 = vld [vmem:[#allocation2 + $0x40] sm:$0xff]
      %v824 = vld [vmem:[#allocation2 + $0x48] sm:$0xff]
      %v825 = vld [vmem:[#allocation2 + $0x50] sm:$0xff]
      %v826 = vld [vmem:[#allocation2 + $0x58] sm:$0xff]
      %v827 = vld [vmem:[#allocation2 + $0x60] sm:$0xff]
      %v828 = vld [vmem:[#allocation2 + $0x68] sm:$0xff]
      %v829 = vld [vmem:[#allocation2 + $0x70] sm:$0xff]
      %v830 = vld [vmem:[#allocation2 + $0x78] sm:$0xff]
      %v831 = vld [vmem:[#allocation2 + $0x80] sm:$0xff]
      %v832 = vld [vmem:[#allocation2 + $0x88] sm:$0xff]
      %v833 = vld [vmem:[#allocation2 + $0x90] sm:$0xff]
      %v834 = vld [vmem:[#allocation2 + $0x98] sm:$0xff]
      %v835 = vld [vmem:[#allocation2 + $0xa0] sm:$0xff]
      %v836 = vld [vmem:[#allocation2 + $0xa8] sm:$0xff]
      %v837 = vld [vmem:[#allocation2 + $0xb0] sm:$0xff]
      %v838 = vld [vmem:[#allocation2 + $0xb8] sm:$0xff]
      %v839 = vld [vmem:[#allocation2 + $0xc0] sm:$0xff]
      %v840 = vld [vmem:[#allocation2 + $0xc8] sm:$0xff]
      %v841 = vld [vmem:[#allocation2 + $0xd0] sm:$0xff]
      %v842 = vld [vmem:[#allocation2 + $0xd8] sm:$0xff]
      %v843 = vld [vmem:[#allocation2 + $0xe0] sm:$0xff]
      %v844 = vld [vmem:[#allocation2 + $0xe8] sm:$0xff]
      %v845 = vld [vmem:[#allocation2 + $0xf0] sm:$0xff]
      %v846 = vld [vmem:[#allocation2 + $0xf8] sm:$0xff]
      %v847 = vld [vmem:[#allocation2 + $0x100] sm:$0xff]
      %v848 = vld [vmem:[#allocation2 + $0x108] sm:$0xff]
      %v849 = vld [vmem:[#allocation2 + $0x110] sm:$0xff]
      %v850 = vld [vmem:[#allocation2 + $0x118] sm:$0xff]
      %v851 = vld [vmem:[#allocation2 + $0x120] sm:$0xff]
      %v852 = vld [vmem:[#allocation2 + $0x128] sm:$0xff]
      %v853 = vld [vmem:[#allocation2 + $0x130] sm:$0xff]
      %v854 = vld [vmem:[#allocation2 + $0x138] sm:$0xff]
      %v855 = vld [vmem:[#allocation2 + $0x140] sm:$0xff]
      %v856 = vld [vmem:[#allocation2 + $0x148] sm:$0xff]
      %v857 = vld [vmem:[#allocation2 + $0x150] sm:$0xff]
      %v858 = vld [vmem:[#allocation2 + $0x158] sm:$0xff]
      %v859 = vld [vmem:[#allocation2 + $0x160] sm:$0xff]
      %v860 = vld [vmem:[#allocation2 + $0x168] sm:$0xff]
      %v861 = vld [vmem:[#allocation2 + $0x170] sm:$0xff]
      %v862 = vld [vmem:[#allocation2 + $0x178] sm:$0xff]
      %v863 = vld [vmem:[#allocation2 + $0x180] sm:$0xff]
      %v864 = vld [vmem:[#allocation2 + $0x188] sm:$0xff]
      %v865 = vld [vmem:[#allocation2 + $0x190] sm:$0xff]
      %v866 = vld [vmem:[#allocation2 + $0x198] sm:$0xff]
      %v867 = vld [vmem:[#allocation2 + $0x1a0] sm:$0xff]
      %v868 = vld [vmem:[#allocation2 + $0x1a8] sm:$0xff]
      %v869 = vld [vmem:[#allocation2 + $0x1b0] sm:$0xff]
      %v870 = vld [vmem:[#allocation2 + $0x1b8] sm:$0xff]
      %v871 = vld [vmem:[#allocation2 + $0x1c0] sm:$0xff]
      %v872 = vld [vmem:[#allocation2 + $0x1c8] sm:$0xff]
      %v873 = vld [vmem:[#allocation2 + $0x1d0] sm:$0xff]
      %v874 = vld [vmem:[#allocation2 + $0x1d8] sm:$0xff]
      %v875 = vld [vmem:[#allocation2 + $0x1e0] sm:$0xff]
      %v876 = vld [vmem:[#allocation2 + $0x1e8] sm:$0xff]
      %v877 = vld [vmem:[#allocation2 + $0x1f0] sm:$0xff]
      %v878 = vld [vmem:[#allocation2 + $0x1f8] sm:$0xff]
      %v879 = vld [vmem:[#allocation2 + $0x200] sm:$0xff]
      %v880 = vld [vmem:[#allocation2 + $0x208] sm:$0xff]
      %v881 = vld [vmem:[#allocation2 + $0x210] sm:$0xff]
      %v882 = vld [vmem:[#allocation2 + $0x218] sm:$0xff]
      %v883 = vld [vmem:[#allocation2 + $0x220] sm:$0xff]
      %v884 = vld [vmem:[#allocation2 + $0x228] sm:$0xff]
      %v885 = vld [vmem:[#allocation2 + $0x230] sm:$0xff]
      %v886 = vld [vmem:[#allocation2 + $0x238] sm:$0xff]
      %s887 = scalar_lea.vmem %s1, 4
      %v888 = vld [vmem:[%s887] sm:$0xf]
      %889 = vrot.lane.b32.xlu0 %v324, 127
      %v890 = vpop.permute.xlu0 %889
      %891 = vrot.lane.b32.xlu0 %v332, 127
      %v892 = vpop.permute.xlu0 %891
      %893 = vrot.lane.b32.xlu0 %v331, 127
      %v894 = vpop.permute.xlu0 %893
      %vm895 = vcmask 1039360
      %v896 = vsel %vm895, %v890, %v892
      %v897 = vsel %vm895, %v892, %v894
      %901 = vxpose.xlu0.c.b16.start [1/8] %v896, 128
      %902 = vxpose.xlu0.c.b16.cont [2/8] 0, 128
      %903 = vxpose.xlu0.c.b16.cont [3/8] 0, 128
      %904 = vxpose.xlu0.c.b16.cont [4/8] 0, 128
      %905 = vxpose.xlu0.c.b16.cont [5/8] 0, 128
      %906 = vxpose.xlu0.c.b16.cont [6/8] 0, 128
      %907 = vxpose.xlu0.c.b16.cont [7/8] 0, 128
      %908 = vxpose.xlu0.c.b16.end [8/8] 0, 128
      %v909 = vpop.trf.xlu0
      %v910 = vpop.trf.xlu0
      %v911 = vpop.trf.xlu0
      %v912 = vpop.trf.xlu0
      %v913 = vpop.trf.xlu0
      %v914 = vpop.trf.xlu0
      %v915 = vpop.trf.xlu0
      %v916 = vpop.trf.xlu0
      %917 = vxpose.xlu0.c.b16.start [1/8] %v897, 128
      %918 = vxpose.xlu0.c.b16.cont [2/8] 0, 128
      %919 = vxpose.xlu0.c.b16.cont [3/8] 0, 128
      %920 = vxpose.xlu0.c.b16.cont [4/8] 0, 128
      %921 = vxpose.xlu0.c.b16.cont [5/8] 0, 128
      %922 = vxpose.xlu0.c.b16.cont [6/8] 0, 128
      %923 = vxpose.xlu0.c.b16.cont [7/8] 0, 128
      %924 = vxpose.xlu0.c.b16.end [8/8] 0, 128
      %v925 = vpop.trf.xlu0
      %v926 = vpop.trf.xlu0
      %v927 = vpop.trf.xlu0
      %v928 = vpop.trf.xlu0
      %v929 = vpop.trf.xlu0
      %v930 = vpop.trf.xlu0
      %v931 = vpop.trf.xlu0
      %v932 = vpop.trf.xlu0
      %933 = vxpose.xlu0.c.b16.start [1/8] %v894, 128
      %934 = vxpose.xlu0.c.b16.cont [2/8] 0, 128
      %935 = vxpose.xlu0.c.b16.cont [3/8] 0, 128
      %936 = vxpose.xlu0.c.b16.cont [4/8] 0, 128
      %937 = vxpose.xlu0.c.b16.cont [5/8] 0, 128
      %938 = vxpose.xlu0.c.b16.cont [6/8] 0, 128
      %939 = vxpose.xlu0.c.b16.cont [7/8] 0, 128
      %940 = vxpose.xlu0.c.b16.end [8/8] 0, 128
      %v941 = vpop.trf.xlu0
      %v942 = vpop.trf.xlu0
      %v943 = vpop.trf.xlu0
      %v944 = vpop.trf.xlu0
      %v945 = vpop.trf.xlu0
      %v946 = vpop.trf.xlu0
      %v947 = vpop.trf.xlu0
      %v948 = vpop.trf.xlu0
      %v951 = vunpack.c.l.s4 1983009808
      %v952 = vunpack.c.0.s8 %v951
      %v953 = vlaneseq
      %v954 = vshrl.u32 %v953, 7
      %v955 = vsub.s32 %v952, %v954
      %v956 = vrot.slane %v888, %v955
      %v957 = vcombine.high %v956, %v956
      %v959 = vsel %vm393, %v909, 0
      %v962 = vsel %vm393, %v910, 0
      %v965 = vsel %vm393, %v911, 0
      %v968 = vsel %vm393, %v912, 0
      %v971 = vsel %vm393, %v913, 0
      %v974 = vsel %vm393, %v914, 0
      %v977 = vsel %vm393, %v915, 0
      %v980 = vsel %vm393, %v916, 0
      %v983 = vsel %vm393, %v925, 0
      %v986 = vsel %vm393, %v926, 0
      %v989 = vsel %vm393, %v927, 0
      %v992 = vsel %vm393, %v928, 0
      %v995 = vsel %vm393, %v929, 0
      %v998 = vsel %vm393, %v930, 0
      %v1001 = vsel %vm393, %v931, 0
      %v1004 = vsel %vm393, %v932, 0
      %v1007 = vsel %vm393, %v941, 0
      %v1010 = vsel %vm393, %v942, 0
      %v1013 = vand.u32 %v956, %v451
      %v1016 = vand.u32 %v957, %v451
      %1018 = vmatprep.subr.bf16.mxu0 %v1016
      %1019 = vmatpush1.bf16.msra.mxu0 %v1013
      %1020 = vmatprep.subr.bf16.mxu0 0
      %1021 = vmatpush1.bf16.msra.mxu0 0
      %1022 = vmatprep.subr.bf16.mxu0 0
      %1023 = vmatpush1.bf16.msra.mxu0 0
      %1024 = vmatprep.subr.bf16.mxu0 0
      %1025 = vmatpush1.bf16.msra.mxu0 0
      %1026 = vmatprep.subr.bf16.mxu0 0
      %1027 = vmatpush1.bf16.msra.mxu0 0
      %1028 = vmatprep.subr.bf16.mxu0 0
      %1029 = vmatpush1.bf16.msra.mxu0 0
      %1030 = vmatprep.subr.bf16.mxu0 0
      %1031 = vmatpush1.bf16.msra.mxu0 0
      %1032 = vmatprep.subr.bf16.mxu0 0
      %1033 = vmatpush1.bf16.msra.mxu0 0
      %1034 = vmatprep.subr.bf16.mxu0 0
      %1035 = vmatpush1.bf16.msra.mxu0 0
      %1036 = vmatprep.subr.bf16.mxu0 0
      %1037 = vmatpush1.bf16.msra.mxu0 0
      %1038 = vmatprep.subr.bf16.mxu0 0
      %1039 = vmatpush1.bf16.msra.mxu0 0
      %1040 = vmatprep.subr.bf16.mxu0 0
      %1041 = vmatpush1.bf16.msra.mxu0 0
      %1042 = vmatprep.subr.bf16.mxu0 0
      %1043 = vmatpush1.bf16.msra.mxu0 0
      %1044 = vmatprep.subr.bf16.mxu0 0
      %1045 = vmatpush1.bf16.msra.mxu0 0
      %1046 = vmatprep.subr.bf16.mxu0 0
      %1047 = vmatpush1.bf16.msra.mxu0 0
      %1048 = vmatprep.subr.bf16.mxu0 0
      %1049 = vmatpush1.bf16.msra.mxu0 0
      %1050 = vmatprep.mubr.bf16.mxu0 0
      %1051 = vmatmul.mubr.bf16.gmra.mrb[0].mxu0 %v959
      %v1052 = vpop.f32.mrb[0].mxu0
      %v1053 = vadd.f32 0.0, %v1052
      %v1054 = vpop.f32.mrb[0].mxu0
      %v1055 = vadd.f32 0.0, %v1054
      %v1056 = vpop.f32.mrb[0].mxu0
      %v1057 = vadd.f32 0.0, %v1056
      %v1058 = vpop.f32.mrb[0].mxu0
      %v1059 = vadd.f32 0.0, %v1058
      %1060 = vmatprep.mubr.bf16.mxu0 0
      %1061 = vmatmul.mubr.bf16.gmra.mrb[0].mxu0 %v962
      %v1062 = vpop.f32.mrb[0].mxu0
      %v1063 = vadd.f32 0.0, %v1062
      %v1064 = vpop.f32.mrb[0].mxu0
      %v1065 = vadd.f32 0.0, %v1064
      %v1066 = vpop.f32.mrb[0].mxu0
      %v1067 = vadd.f32 0.0, %v1066
      %v1068 = vpop.f32.mrb[0].mxu0
      %v1069 = vadd.f32 0.0, %v1068
      %1070 = vmatprep.mubr.bf16.mxu0 0
      %1071 = vmatmul.mubr.bf16.gmra.mrb[0].mxu0 %v965
      %v1072 = vpop.f32.mrb[0].mxu0
      %v1073 = vadd.f32 0.0, %v1072
      %v1074 = vpop.f32.mrb[0].mxu0
      %v1075 = vadd.f32 0.0, %v1074
      %v1076 = vpop.f32.mrb[0].mxu0
      %v1077 = vadd.f32 0.0, %v1076
      %v1078 = vpop.f32.mrb[0].mxu0
      %v1079 = vadd.f32 0.0, %v1078
      %1080 = vmatprep.mubr.bf16.mxu0 0
      %1081 = vmatmul.mubr.bf16.gmra.mrb[0].mxu0 %v968
      %v1082 = vpop.f32.mrb[0].mxu0
      %v1083 = vadd.f32 0.0, %v1082
      %v1084 = vpop.f32.mrb[0].mxu0
      %v1085 = vadd.f32 0.0, %v1084
      %v1086 = vpop.f32.mrb[0].mxu0
      %v1087 = vadd.f32 0.0, %v1086
      %v1088 = vpop.f32.mrb[0].mxu0
      %v1089 = vadd.f32 0.0, %v1088
      %1090 = vmatprep.mubr.bf16.mxu0 0
      %1091 = vmatmul.mubr.bf16.gmra.mrb[0].mxu0 %v971
      %v1092 = vpop.f32.mrb[0].mxu0
      %v1093 = vadd.f32 0.0, %v1092
      %v1094 = vpop.f32.mrb[0].mxu0
      %v1095 = vadd.f32 0.0, %v1094
      %v1096 = vpop.f32.mrb[0].mxu0
      %v1097 = vadd.f32 0.0, %v1096
      %v1098 = vpop.f32.mrb[0].mxu0
      %v1099 = vadd.f32 0.0, %v1098
      %1100 = vmatprep.mubr.bf16.mxu0 0
      %1101 = vmatmul.mubr.bf16.gmra.mrb[0].mxu0 %v974
      %v1102 = vpop.f32.mrb[0].mxu0
      %v1103 = vadd.f32 0.0, %v1102
      %v1104 = vpop.f32.mrb[0].mxu0
      %v1105 = vadd.f32 0.0, %v1104
      %v1106 = vpop.f32.mrb[0].mxu0
      %v1107 = vadd.f32 0.0, %v1106
      %v1108 = vpop.f32.mrb[0].mxu0
      %v1109 = vadd.f32 0.0, %v1108
      %1110 = vmatprep.mubr.bf16.mxu0 0
      %1111 = vmatmul.mubr.bf16.gmra.mrb[0].mxu0 %v977
      %v1112 = vpop.f32.mrb[0].mxu0
      %v1113 = vadd.f32 0.0, %v1112
      %v1114 = vpop.f32.mrb[0].mxu0
      %v1115 = vadd.f32 0.0, %v1114
      %v1116 = vpop.f32.mrb[0].mxu0
      %v1117 = vadd.f32 0.0, %v1116
      %v1118 = vpop.f32.mrb[0].mxu0
      %v1119 = vadd.f32 0.0, %v1118
      %1120 = vmatprep.mubr.bf16.mxu0 0
      %1121 = vmatmul.mubr.bf16.gmra.mrb[0].mxu0 %v980
      %v1122 = vpop.f32.mrb[0].mxu0
      %v1123 = vadd.f32 0.0, %v1122
      %v1124 = vpop.f32.mrb[0].mxu0
      %v1125 = vadd.f32 0.0, %v1124
      %v1126 = vpop.f32.mrb[0].mxu0
      %v1127 = vadd.f32 0.0, %v1126
      %v1128 = vpop.f32.mrb[0].mxu0
      %v1129 = vadd.f32 0.0, %v1128
      %1130 = vmatprep.mubr.bf16.mxu0 0
      %1131 = vmatmul.mubr.bf16.gmra.mrb[0].mxu0 %v983
      %v1132 = vpop.f32.mrb[0].mxu0
      %v1133 = vadd.f32 0.0, %v1132
      %v1134 = vpop.f32.mrb[0].mxu0
      %v1135 = vadd.f32 0.0, %v1134
      %v1136 = vpop.f32.mrb[0].mxu0
      %v1137 = vadd.f32 0.0, %v1136
      %v1138 = vpop.f32.mrb[0].mxu0
      %v1139 = vadd.f32 0.0, %v1138
      %1140 = vmatprep.mubr.bf16.mxu0 0
      %1141 = vmatmul.mubr.bf16.gmra.mrb[0].mxu0 %v986
      %v1142 = vpop.f32.mrb[0].mxu0
      %v1143 = vadd.f32 0.0, %v1142
      %v1144 = vpop.f32.mrb[0].mxu0
      %v1145 = vadd.f32 0.0, %v1144
      %v1146 = vpop.f32.mrb[0].mxu0
      %v1147 = vadd.f32 0.0, %v1146
      %v1148 = vpop.f32.mrb[0].mxu0
      %v1149 = vadd.f32 0.0, %v1148
      %1150 = vmatprep.mubr.bf16.mxu0 0
      %1151 = vmatmul.mubr.bf16.gmra.mrb[0].mxu0 %v989
      %v1152 = vpop.f32.mrb[0].mxu0
      %v1153 = vadd.f32 0.0, %v1152
      %v1154 = vpop.f32.mrb[0].mxu0
      %v1155 = vadd.f32 0.0, %v1154
      %v1156 = vpop.f32.mrb[0].mxu0
      %v1157 = vadd.f32 0.0, %v1156
      %v1158 = vpop.f32.mrb[0].mxu0
      %v1159 = vadd.f32 0.0, %v1158
      %1160 = vmatprep.mubr.bf16.mxu0 0
      %1161 = vmatmul.mubr.bf16.gmra.mrb[0].mxu0 %v992
      %v1162 = vpop.f32.mrb[0].mxu0
      %v1163 = vadd.f32 0.0, %v1162
      %v1164 = vpop.f32.mrb[0].mxu0
      %v1165 = vadd.f32 0.0, %v1164
      %v1166 = vpop.f32.mrb[0].mxu0
      %v1167 = vadd.f32 0.0, %v1166
      %v1168 = vpop.f32.mrb[0].mxu0
      %v1169 = vadd.f32 0.0, %v1168
      %1170 = vmatprep.mubr.bf16.mxu0 0
      %1171 = vmatmul.mubr.bf16.gmra.mrb[0].mxu0 %v995
      %v1172 = vpop.f32.mrb[0].mxu0
      %v1173 = vadd.f32 0.0, %v1172
      %v1174 = vpop.f32.mrb[0].mxu0
      %v1175 = vadd.f32 0.0, %v1174
      %v1176 = vpop.f32.mrb[0].mxu0
      %v1177 = vadd.f32 0.0, %v1176
      %v1178 = vpop.f32.mrb[0].mxu0
      %v1179 = vadd.f32 0.0, %v1178
      %1180 = vmatprep.mubr.bf16.mxu0 0
      %1181 = vmatmul.mubr.bf16.gmra.mrb[0].mxu0 %v998
      %v1182 = vpop.f32.mrb[0].mxu0
      %v1183 = vadd.f32 0.0, %v1182
      %v1184 = vpop.f32.mrb[0].mxu0
      %v1185 = vadd.f32 0.0, %v1184
      %v1186 = vpop.f32.mrb[0].mxu0
      %v1187 = vadd.f32 0.0, %v1186
      %v1188 = vpop.f32.mrb[0].mxu0
      %v1189 = vadd.f32 0.0, %v1188
      %1190 = vmatprep.mubr.bf16.mxu0 0
      %1191 = vmatmul.mubr.bf16.gmra.mrb[0].mxu0 %v1001
      %v1192 = vpop.f32.mrb[0].mxu0
      %v1193 = vadd.f32 0.0, %v1192
      %v1194 = vpop.f32.mrb[0].mxu0
      %v1195 = vadd.f32 0.0, %v1194
      %v1196 = vpop.f32.mrb[0].mxu0
      %v1197 = vadd.f32 0.0, %v1196
      %v1198 = vpop.f32.mrb[0].mxu0
      %v1199 = vadd.f32 0.0, %v1198
      %1200 = vmatprep.mubr.bf16.mxu0 0
      %1201 = vmatmul.mubr.bf16.gmra.mrb[0].mxu0 %v1004
      %v1202 = vpop.f32.mrb[0].mxu0
      %v1203 = vadd.f32 0.0, %v1202
      %v1204 = vpop.f32.mrb[0].mxu0
      %v1205 = vadd.f32 0.0, %v1204
      %v1206 = vpop.f32.mrb[0].mxu0
      %v1207 = vadd.f32 0.0, %v1206
      %v1208 = vpop.f32.mrb[0].mxu0
      %v1209 = vadd.f32 0.0, %v1208
      %1210 = vmatprep.mubr.bf16.mxu0 0
      %1211 = vmatmul.mubr.bf16.gmra.mrb[0].mxu0 %v1007
      %v1212 = vpop.f32.mrb[0].mxu0
      %v1213 = vadd.f32 0.0, %v1212
      %v1214 = vpop.f32.mrb[0].mxu0
      %v1215 = vadd.f32 0.0, %v1214
      %v1216 = vpop.f32.mrb[0].mxu0
      %v1217 = vadd.f32 0.0, %v1216
      %v1218 = vpop.f32.mrb[0].mxu0
      %v1219 = vadd.f32 0.0, %v1218
      %1220 = vmatprep.mubr.bf16.mxu0 0
      %1221 = vmatmul.mubr.bf16.gmra.mrb[0].mxu0 %v1010
      %v1222 = vpop.f32.mrb[0].mxu0
      %v1223 = vadd.f32 0.0, %v1222
      %v1224 = vpop.f32.mrb[0].mxu0
      %v1225 = vadd.f32 0.0, %v1224
      %v1226 = vpop.f32.mrb[0].mxu0
      %v1227 = vadd.f32 0.0, %v1226
      %v1228 = vpop.f32.mrb[0].mxu0
      %v1229 = vadd.f32 0.0, %v1228
      %1230 = vdwg.mxu0
      %v1231 = vadd.f32 %v815, %v1053
      %v1232 = vadd.f32 %v816, %v1055
      %v1233 = vadd.f32 %v817, %v1057
      %v1234 = vadd.f32 %v818, %v1059
      %v1235 = vadd.f32 %v819, %v1063
      %v1236 = vadd.f32 %v820, %v1065
      %v1237 = vadd.f32 %v821, %v1067
      %v1238 = vadd.f32 %v822, %v1069
      %v1239 = vadd.f32 %v823, %v1073
      %v1240 = vadd.f32 %v824, %v1075
      %v1241 = vadd.f32 %v825, %v1077
      %v1242 = vadd.f32 %v826, %v1079
      %v1243 = vadd.f32 %v827, %v1083
      %v1244 = vadd.f32 %v828, %v1085
      %v1245 = vadd.f32 %v829, %v1087
      %v1246 = vadd.f32 %v830, %v1089
      %v1247 = vadd.f32 %v831, %v1093
      %v1248 = vadd.f32 %v832, %v1095
      %v1249 = vadd.f32 %v833, %v1097
      %v1250 = vadd.f32 %v834, %v1099
      %v1251 = vadd.f32 %v835, %v1103
      %v1252 = vadd.f32 %v836, %v1105
      %v1253 = vadd.f32 %v837, %v1107
      %v1254 = vadd.f32 %v838, %v1109
      %v1255 = vadd.f32 %v839, %v1113
      %v1256 = vadd.f32 %v840, %v1115
      %v1257 = vadd.f32 %v841, %v1117
      %v1258 = vadd.f32 %v842, %v1119
      %v1259 = vadd.f32 %v843, %v1123
      %v1260 = vadd.f32 %v844, %v1125
      %v1261 = vadd.f32 %v845, %v1127
      %v1262 = vadd.f32 %v846, %v1129
      %v1263 = vadd.f32 %v847, %v1133
      %v1264 = vadd.f32 %v848, %v1135
      %v1265 = vadd.f32 %v849, %v1137
      %v1266 = vadd.f32 %v850, %v1139
      %v1267 = vadd.f32 %v851, %v1143
      %v1268 = vadd.f32 %v852, %v1145
      %v1269 = vadd.f32 %v853, %v1147
      %v1270 = vadd.f32 %v854, %v1149
      %v1271 = vadd.f32 %v855, %v1153
      %v1272 = vadd.f32 %v856, %v1155
      %v1273 = vadd.f32 %v857, %v1157
      %v1274 = vadd.f32 %v858, %v1159
      %v1275 = vadd.f32 %v859, %v1163
      %v1276 = vadd.f32 %v860, %v1165
      %v1277 = vadd.f32 %v861, %v1167
      %v1278 = vadd.f32 %v862, %v1169
      %v1279 = vadd.f32 %v863, %v1173
      %v1280 = vadd.f32 %v864, %v1175
      %v1281 = vadd.f32 %v865, %v1177
      %v1282 = vadd.f32 %v866, %v1179
      %v1283 = vadd.f32 %v867, %v1183
      %v1284 = vadd.f32 %v868, %v1185
      %v1285 = vadd.f32 %v869, %v1187
      %v1286 = vadd.f32 %v870, %v1189
      %v1287 = vadd.f32 %v871, %v1193
      %v1288 = vadd.f32 %v872, %v1195
      %v1289 = vadd.f32 %v873, %v1197
      %v1290 = vadd.f32 %v874, %v1199
      %v1291 = vadd.f32 %v875, %v1203
      %v1292 = vadd.f32 %v876, %v1205
      %v1293 = vadd.f32 %v877, %v1207
      %v1294 = vadd.f32 %v878, %v1209
      %v1295 = vadd.f32 %v879, %v1213
      %v1296 = vadd.f32 %v880, %v1215
      %v1297 = vadd.f32 %v881, %v1217
      %v1298 = vadd.f32 %v882, %v1219
      %v1299 = vadd.f32 %v883, %v1223
      %v1300 = vadd.f32 %v884, %v1225
      %v1301 = vadd.f32 %v885, %v1227
      %v1302 = vadd.f32 %v886, %v1229
      %1303 = vst [vmem:[#allocation2] sm:$0xff] %v1231
      %1304 = vst [vmem:[#allocation2 + $0x8] sm:$0xff] %v1232
      %1305 = vst [vmem:[#allocation2 + $0x10] sm:$0xff] %v1233
      %1306 = vst [vmem:[#allocation2 + $0x18] sm:$0xff] %v1234
      %1307 = vst [vmem:[#allocation2 + $0x20] sm:$0xff] %v1235
      %1308 = vst [vmem:[#allocation2 + $0x28] sm:$0xff] %v1236
      %1309 = vst [vmem:[#allocation2 + $0x30] sm:$0xff] %v1237
      %1310 = vst [vmem:[#allocation2 + $0x38] sm:$0xff] %v1238
      %1311 = vst [vmem:[#allocation2 + $0x40] sm:$0xff] %v1239
      %1312 = vst [vmem:[#allocation2 + $0x48] sm:$0xff] %v1240
      %1313 = vst [vmem:[#allocation2 + $0x50] sm:$0xff] %v1241
      %1314 = vst [vmem:[#allocation2 + $0x58] sm:$0xff] %v1242
      %1315 = vst [vmem:[#allocation2 + $0x60] sm:$0xff] %v1243
      %1316 = vst [vmem:[#allocation2 + $0x68] sm:$0xff] %v1244
      %1317 = vst [vmem:[#allocation2 + $0x70] sm:$0xff] %v1245
      %1318 = vst [vmem:[#allocation2 + $0x78] sm:$0xff] %v1246
      %1319 = vst [vmem:[#allocation2 + $0x80] sm:$0xff] %v1247
      %1320 = vst [vmem:[#allocation2 + $0x88] sm:$0xff] %v1248
      %1321 = vst [vmem:[#allocation2 + $0x90] sm:$0xff] %v1249
      %1322 = vst [vmem:[#allocation2 + $0x98] sm:$0xff] %v1250
      %1323 = vst [vmem:[#allocation2 + $0xa0] sm:$0xff] %v1251
      %1324 = vst [vmem:[#allocation2 + $0xa8] sm:$0xff] %v1252
      %1325 = vst [vmem:[#allocation2 + $0xb0] sm:$0xff] %v1253
      %1326 = vst [vmem:[#allocation2 + $0xb8] sm:$0xff] %v1254
      %1327 = vst [vmem:[#allocation2 + $0xc0] sm:$0xff] %v1255
      %1328 = vst [vmem:[#allocation2 + $0xc8] sm:$0xff] %v1256
      %1329 = vst [vmem:[#allocation2 + $0xd0] sm:$0xff] %v1257
      %1330 = vst [vmem:[#allocation2 + $0xd8] sm:$0xff] %v1258
      %1331 = vst [vmem:[#allocation2 + $0xe0] sm:$0xff] %v1259
      %1332 = vst [vmem:[#allocation2 + $0xe8] sm:$0xff] %v1260
      %1333 = vst [vmem:[#allocation2 + $0xf0] sm:$0xff] %v1261
      %1334 = vst [vmem:[#allocation2 + $0xf8] sm:$0xff] %v1262
      %1335 = vst [vmem:[#allocation2 + $0x100] sm:$0xff] %v1263
      %1336 = vst [vmem:[#allocation2 + $0x108] sm:$0xff] %v1264
      %1337 = vst [vmem:[#allocation2 + $0x110] sm:$0xff] %v1265
      %1338 = vst [vmem:[#allocation2 + $0x118] sm:$0xff] %v1266
      %1339 = vst [vmem:[#allocation2 + $0x120] sm:$0xff] %v1267
      %1340 = vst [vmem:[#allocation2 + $0x128] sm:$0xff] %v1268
      %1341 = vst [vmem:[#allocation2 + $0x130] sm:$0xff] %v1269
      %1342 = vst [vmem:[#allocation2 + $0x138] sm:$0xff] %v1270
      %1343 = vst [vmem:[#allocation2 + $0x140] sm:$0xff] %v1271
      %1344 = vst [vmem:[#allocation2 + $0x148] sm:$0xff] %v1272
      %1345 = vst [vmem:[#allocation2 + $0x150] sm:$0xff] %v1273
      %1346 = vst [vmem:[#allocation2 + $0x158] sm:$0xff] %v1274
      %1347 = vst [vmem:[#allocation2 + $0x160] sm:$0xff] %v1275
      %1348 = vst [vmem:[#allocation2 + $0x168] sm:$0xff] %v1276
      %1349 = vst [vmem:[#allocation2 + $0x170] sm:$0xff] %v1277
      %1350 = vst [vmem:[#allocation2 + $0x178] sm:$0xff] %v1278
      %1351 = vst [vmem:[#allocation2 + $0x180] sm:$0xff] %v1279
      %1352 = vst [vmem:[#allocation2 + $0x188] sm:$0xff] %v1280
      %1353 = vst [vmem:[#allocation2 + $0x190] sm:$0xff] %v1281
      %1354 = vst [vmem:[#allocation2 + $0x198] sm:$0xff] %v1282
      %1355 = vst [vmem:[#allocation2 + $0x1a0] sm:$0xff] %v1283
      %1356 = vst [vmem:[#allocation2 + $0x1a8] sm:$0xff] %v1284
      %1357 = vst [vmem:[#allocation2 + $0x1b0] sm:$0xff] %v1285
      %1358 = vst [vmem:[#allocation2 + $0x1b8] sm:$0xff] %v1286
      %1359 = vst [vmem:[#allocation2 + $0x1c0] sm:$0xff] %v1287
      %1360 = vst [vmem:[#allocation2 + $0x1c8] sm:$0xff] %v1288
      %1361 = vst [vmem:[#allocation2 + $0x1d0] sm:$0xff] %v1289
      %1362 = vst [vmem:[#allocation2 + $0x1d8] sm:$0xff] %v1290
      %1363 = vst [vmem:[#allocation2 + $0x1e0] sm:$0xff] %v1291
      %1364 = vst [vmem:[#allocation2 + $0x1e8] sm:$0xff] %v1292
      %1365 = vst [vmem:[#allocation2 + $0x1f0] sm:$0xff] %v1293
      %1366 = vst [vmem:[#allocation2 + $0x1f8] sm:$0xff] %v1294
      %1367 = vst [vmem:[#allocation2 + $0x200] sm:$0xff] %v1295
      %1368 = vst [vmem:[#allocation2 + $0x208] sm:$0xff] %v1296
      %1369 = vst [vmem:[#allocation2 + $0x210] sm:$0xff] %v1297
      %1370 = vst [vmem:[#allocation2 + $0x218] sm:$0xff] %v1298
      %1371 = vst [vmem:[#allocation2 + $0x220] sm:$0xff] %v1299
      %1372 = vst [vmem:[#allocation2 + $0x228] sm:$0xff] %v1300
      %1373 = vst [vmem:[#allocation2 + $0x230] sm:$0xff] %v1301
      %1374 = vst [vmem:[#allocation2 + $0x238] sm:$0xff] %v1302
      %v1375 = vld [vmem:[#allocation2] sm:$0xff]
      %v1376 = vld [vmem:[#allocation2 + $0x8] sm:$0xff]
      %v1377 = vld [vmem:[#allocation2 + $0x10] sm:$0xff]
      %v1378 = vld [vmem:[#allocation2 + $0x18] sm:$0xff]
      %v1379 = vld [vmem:[#allocation2 + $0x20] sm:$0xff]
      %v1380 = vld [vmem:[#allocation2 + $0x28] sm:$0xff]
      %v1381 = vld [vmem:[#allocation2 + $0x30] sm:$0xff]
      %v1382 = vld [vmem:[#allocation2 + $0x38] sm:$0xff]
      %v1383 = vld [vmem:[#allocation2 + $0x40] sm:$0xff]
      %v1384 = vld [vmem:[#allocation2 + $0x48] sm:$0xff]
      %v1385 = vld [vmem:[#allocation2 + $0x50] sm:$0xff]
      %v1386 = vld [vmem:[#allocation2 + $0x58] sm:$0xff]
      %v1387 = vld [vmem:[#allocation2 + $0x60] sm:$0xff]
      %v1388 = vld [vmem:[#allocation2 + $0x68] sm:$0xff]
      %v1389 = vld [vmem:[#allocation2 + $0x70] sm:$0xff]
      %v1390 = vld [vmem:[#allocation2 + $0x78] sm:$0xff]
      %v1391 = vld [vmem:[#allocation2 + $0x80] sm:$0xff]
      %v1392 = vld [vmem:[#allocation2 + $0x88] sm:$0xff]
      %v1393 = vld [vmem:[#allocation2 + $0x90] sm:$0xff]
      %v1394 = vld [vmem:[#allocation2 + $0x98] sm:$0xff]
      %v1395 = vld [vmem:[#allocation2 + $0xa0] sm:$0xff]
      %v1396 = vld [vmem:[#allocation2 + $0xa8] sm:$0xff]
      %v1397 = vld [vmem:[#allocation2 + $0xb0] sm:$0xff]
      %v1398 = vld [vmem:[#allocation2 + $0xb8] sm:$0xff]
      %v1399 = vld [vmem:[#allocation2 + $0xc0] sm:$0xff]
      %v1400 = vld [vmem:[#allocation2 + $0xc8] sm:$0xff]
      %v1401 = vld [vmem:[#allocation2 + $0xd0] sm:$0xff]
      %v1402 = vld [vmem:[#allocation2 + $0xd8] sm:$0xff]
      %v1403 = vld [vmem:[#allocation2 + $0xe0] sm:$0xff]
      %v1404 = vld [vmem:[#allocation2 + $0xe8] sm:$0xff]
      %v1405 = vld [vmem:[#allocation2 + $0xf0] sm:$0xff]
      %v1406 = vld [vmem:[#allocation2 + $0xf8] sm:$0xff]
      %v1407 = vld [vmem:[#allocation2 + $0x100] sm:$0xff]
      %v1408 = vld [vmem:[#allocation2 + $0x108] sm:$0xff]
      %v1409 = vld [vmem:[#allocation2 + $0x110] sm:$0xff]
      %v1410 = vld [vmem:[#allocation2 + $0x118] sm:$0xff]
      %v1411 = vld [vmem:[#allocation2 + $0x120] sm:$0xff]
      %v1412 = vld [vmem:[#allocation2 + $0x128] sm:$0xff]
      %v1413 = vld [vmem:[#allocation2 + $0x130] sm:$0xff]
      %v1414 = vld [vmem:[#allocation2 + $0x138] sm:$0xff]
      %v1415 = vld [vmem:[#allocation2 + $0x140] sm:$0xff]
      %v1416 = vld [vmem:[#allocation2 + $0x148] sm:$0xff]
      %v1417 = vld [vmem:[#allocation2 + $0x150] sm:$0xff]
      %v1418 = vld [vmem:[#allocation2 + $0x158] sm:$0xff]
      %v1419 = vld [vmem:[#allocation2 + $0x160] sm:$0xff]
      %v1420 = vld [vmem:[#allocation2 + $0x168] sm:$0xff]
      %v1421 = vld [vmem:[#allocation2 + $0x170] sm:$0xff]
      %v1422 = vld [vmem:[#allocation2 + $0x178] sm:$0xff]
      %v1423 = vld [vmem:[#allocation2 + $0x180] sm:$0xff]
      %v1424 = vld [vmem:[#allocation2 + $0x188] sm:$0xff]
      %v1425 = vld [vmem:[#allocation2 + $0x190] sm:$0xff]
      %v1426 = vld [vmem:[#allocation2 + $0x198] sm:$0xff]
      %v1427 = vld [vmem:[#allocation2 + $0x1a0] sm:$0xff]
      %v1428 = vld [vmem:[#allocation2 + $0x1a8] sm:$0xff]
      %v1429 = vld [vmem:[#allocation2 + $0x1b0] sm:$0xff]
      %v1430 = vld [vmem:[#allocation2 + $0x1b8] sm:$0xff]
      %v1431 = vld [vmem:[#allocation2 + $0x1c0] sm:$0xff]
      %v1432 = vld [vmem:[#allocation2 + $0x1c8] sm:$0xff]
      %v1433 = vld [vmem:[#allocation2 + $0x1d0] sm:$0xff]
      %v1434 = vld [vmem:[#allocation2 + $0x1d8] sm:$0xff]
      %v1435 = vld [vmem:[#allocation2 + $0x1e0] sm:$0xff]
      %v1436 = vld [vmem:[#allocation2 + $0x1e8] sm:$0xff]
      %v1437 = vld [vmem:[#allocation2 + $0x1f0] sm:$0xff]
      %v1438 = vld [vmem:[#allocation2 + $0x1f8] sm:$0xff]
      %v1439 = vld [vmem:[#allocation2 + $0x200] sm:$0xff]
      %v1440 = vld [vmem:[#allocation2 + $0x208] sm:$0xff]
      %v1441 = vld [vmem:[#allocation2 + $0x210] sm:$0xff]
      %v1442 = vld [vmem:[#allocation2 + $0x218] sm:$0xff]
      %v1443 = vld [vmem:[#allocation2 + $0x220] sm:$0xff]
      %v1444 = vld [vmem:[#allocation2 + $0x228] sm:$0xff]
      %v1445 = vld [vmem:[#allocation2 + $0x230] sm:$0xff]
      %v1446 = vld [vmem:[#allocation2 + $0x238] sm:$0xff]
      %s1447 = scalar_lea.vmem %s1, 8
      %v1448 = vld [vmem:[%s1447] sm:$0xf]
      %1449 = vrot.lane.b32.xlu0 %v324, 126
      %v1450 = vpop.permute.xlu0 %1449
      %1451 = vrot.lane.b32.xlu0 %v332, 126
      %v1452 = vpop.permute.xlu0 %1451
      %1453 = vrot.lane.b32.xlu0 %v331, 126
      %v1454 = vpop.permute.xlu0 %1453
      %vm1455 = vcmask 1031168
      %v1456 = vsel %vm1455, %v1450, %v1452
      %v1457 = vsel %vm1455, %v1452, %v1454
      %1461 = vxpose.xlu0.c.b16.start [1/8] %v1456, 128
      %1462 = vxpose.xlu0.c.b16.cont [2/8] 0, 128
      %1463 = vxpose.xlu0.c.b16.cont [3/8] 0, 128
      %1464 = vxpose.xlu0.c.b16.cont [4/8] 0, 128
      %1465 = vxpose.xlu0.c.b16.cont [5/8] 0, 128
      %1466 = vxpose.xlu0.c.b16.cont [6/8] 0, 128
      %1467 = vxpose.xlu0.c.b16.cont [7/8] 0, 128
      %1468 = vxpose.xlu0.c.b16.end [8/8] 0, 128
      %v1469 = vpop.trf.xlu0
      %v1470 = vpop.trf.xlu0
      %v1471 = vpop.trf.xlu0
      %v1472 = vpop.trf.xlu0
      %v1473 = vpop.trf.xlu0
      %v1474 = vpop.trf.xlu0
      %v1475 = vpop.trf.xlu0
      %v1476 = vpop.trf.xlu0
      %1477 = vxpose.xlu0.c.b16.start [1/8] %v1457, 128
      %1478 = vxpose.xlu0.c.b16.cont [2/8] 0, 128
      %1479 = vxpose.xlu0.c.b16.cont [3/8] 0, 128
      %1480 = vxpose.xlu0.c.b16.cont [4/8] 0, 128
      %1481 = vxpose.xlu0.c.b16.cont [5/8] 0, 128
      %1482 = vxpose.xlu0.c.b16.cont [6/8] 0, 128
      %1483 = vxpose.xlu0.c.b16.cont [7/8] 0, 128
      %1484 = vxpose.xlu0.c.b16.end [8/8] 0, 128
      %v1485 = vpop.trf.xlu0
      %v1486 = vpop.trf.xlu0
      %v1487 = vpop.trf.xlu0
      %v1488 = vpop.trf.xlu0
      %v1489 = vpop.trf.xlu0
      %v1490 = vpop.trf.xlu0
      %v1491 = vpop.trf.xlu0
      %v1492 = vpop.trf.xlu0
      %1493 = vxpose.xlu0.c.b16.start [1/8] %v1454, 128
      %1494 = vxpose.xlu0.c.b16.cont [2/8] 0, 128
      %1495 = vxpose.xlu0.c.b16.cont [3/8] 0, 128
      %1496 = vxpose.xlu0.c.b16.cont [4/8] 0, 128
      %1497 = vxpose.xlu0.c.b16.cont [5/8] 0, 128
      %1498 = vxpose.xlu0.c.b16.cont [6/8] 0, 128
      %1499 = vxpose.xlu0.c.b16.cont [7/8] 0, 128
      %1500 = vxpose.xlu0.c.b16.end [8/8] 0, 128
      %v1501 = vpop.trf.xlu0
      %v1502 = vpop.trf.xlu0
      %v1503 = vpop.trf.xlu0
      %v1504 = vpop.trf.xlu0
      %v1505 = vpop.trf.xlu0
      %v1506 = vpop.trf.xlu0
      %v1507 = vpop.trf.xlu0
      %v1508 = vpop.trf.xlu0
      %v1511 = vunpack.c.l.s4 1983009808
      %v1512 = vunpack.c.0.s8 %v1511
      %v1513 = vlaneseq
      %v1514 = vshrl.u32 %v1513, 7
      %v1515 = vsub.s32 %v1512, %v1514
      %v1516 = vrot.slane %v1448, %v1515
      %v1517 = vcombine.high %v1516, %v1516
      %v1519 = vsel %vm393, %v1469, 0
      %v1522 = vsel %vm393, %v1470, 0
      %v1525 = vsel %vm393, %v1471, 0
      %v1528 = vsel %vm393, %v1472, 0
      %v1531 = vsel %vm393, %v1473, 0
      %v1534 = vsel %vm393, %v1474, 0
      %v1537 = vsel %vm393, %v1475, 0
      %v1540 = vsel %vm393, %v1476, 0
      %v1543 = vsel %vm393, %v1485, 0
      %v1546 = vsel %vm393, %v1486, 0
      %v1549 = vsel %vm393, %v1487, 0
      %v1552 = vsel %vm393, %v1488, 0
      %v1555 = vsel %vm393, %v1489, 0
      %v1558 = vsel %vm393, %v1490, 0
      %v1561 = vsel %vm393, %v1491, 0
      %v1564 = vsel %vm393, %v1492, 0
      %v1567 = vsel %vm393, %v1501, 0
      %v1570 = vsel %vm393, %v1502, 0
      %v1573 = vand.u32 %v1516, %v451
      %v1576 = vand.u32 %v1517, %v451
      %1578 = vmatprep.subr.bf16.mxu0 %v1576
      %1579 = vmatpush1.bf16.msra.mxu0 %v1573
      %1580 = vmatprep.subr.bf16.mxu0 0
      %1581 = vmatpush1.bf16.msra.mxu0 0
      %1582 = vmatprep.subr.bf16.mxu0 0
      %1583 = vmatpush1.bf16.msra.mxu0 0
      %1584 = vmatprep.subr.bf16.mxu0 0
      %1585 = vmatpush1.bf16.msra.mxu0 0
      %1586 = vmatprep.subr.bf16.mxu0 0
      %1587 = vmatpush1.bf16.msra.mxu0 0
      %1588 = vmatprep.subr.bf16.mxu0 0
      %1589 = vmatpush1.bf16.msra.mxu0 0
      %1590 = vmatprep.subr.bf16.mxu0 0
      %1591 = vmatpush1.bf16.msra.mxu0 0
      %1592 = vmatprep.subr.bf16.mxu0 0
      %1593 = vmatpush1.bf16.msra.mxu0 0
      %1594 = vmatprep.subr.bf16.mxu0 0
      %1595 = vmatpush1.bf16.msra.mxu0 0
      %1596 = vmatprep.subr.bf16.mxu0 0
      %1597 = vmatpush1.bf16.msra.mxu0 0
      %1598 = vmatprep.subr.bf16.mxu0 0
      %1599 = vmatpush1.bf16.msra.mxu0 0
      %1600 = vmatprep.subr.bf16.mxu0 0
      %1601 = vmatpush1.bf16.msra.mxu0 0
      %1602 = vmatprep.subr.bf16.mxu0 0
      %1603 = vmatpush1.bf16.msra.mxu0 0
      %1604 = vmatprep.subr.bf16.mxu0 0
      %1605 = vmatpush1.bf16.msra.mxu0 0
      %1606 = vmatprep.subr.bf16.mxu0 0
      %1607 = vmatpush1.bf16.msra.mxu0 0
      %1608 = vmatprep.subr.bf16.mxu0 0
      %1609 = vmatpush1.bf16.msra.mxu0 0
      %1610 = vmatprep.mubr.bf16.mxu0 0
      %1611 = vmatmul.mubr.bf16.gmra.mrb[0].mxu0 %v1519
      %v1612 = vpop.f32.mrb[0].mxu0
      %v1613 = vadd.f32 0.0, %v1612
      %v1614 = vpop.f32.mrb[0].mxu0
      %v1615 = vadd.f32 0.0, %v1614
      %v1616 = vpop.f32.mrb[0].mxu0
      %v1617 = vadd.f32 0.0, %v1616
      %v1618 = vpop.f32.mrb[0].mxu0
      %v1619 = vadd.f32 0.0, %v1618
      %1620 = vmatprep.mubr.bf16.mxu0 0
      %1621 = vmatmul.mubr.bf16.gmra.mrb[0].mxu0 %v1522
      %v1622 = vpop.f32.mrb[0].mxu0
      %v1623 = vadd.f32 0.0, %v1622
      %v1624 = vpop.f32.mrb[0].mxu0
      %v1625 = vadd.f32 0.0, %v1624
      %v1626 = vpop.f32.mrb[0].mxu0
      %v1627 = vadd.f32 0.0, %v1626
      %v1628 = vpop.f32.mrb[0].mxu0
      %v1629 = vadd.f32 0.0, %v1628
      %1630 = vmatprep.mubr.bf16.mxu0 0
      %1631 = vmatmul.mubr.bf16.gmra.mrb[0].mxu0 %v1525
      %v1632 = vpop.f32.mrb[0].mxu0
      %v1633 = vadd.f32 0.0, %v1632
      %v1634 = vpop.f32.mrb[0].mxu0
      %v1635 = vadd.f32 0.0, %v1634
      %v1636 = vpop.f32.mrb[0].mxu0
      %v1637 = vadd.f32 0.0, %v1636
      %v1638 = vpop.f32.mrb[0].mxu0
      %v1639 = vadd.f32 0.0, %v1638
      %1640 = vmatprep.mubr.bf16.mxu0 0
      %1641 = vmatmul.mubr.bf16.gmra.mrb[0].mxu0 %v1528
      %v1642 = vpop.f32.mrb[0].mxu0
      %v1643 = vadd.f32 0.0, %v1642
      %v1644 = vpop.f32.mrb[0].mxu0
      %v1645 = vadd.f32 0.0, %v1644
      %v1646 = vpop.f32.mrb[0].mxu0
      %v1647 = vadd.f32 0.0, %v1646
      %v1648 = vpop.f32.mrb[0].mxu0
      %v1649 = vadd.f32 0.0, %v1648
      %1650 = vmatprep.mubr.bf16.mxu0 0
      %1651 = vmatmul.mubr.bf16.gmra.mrb[0].mxu0 %v1531
      %v1652 = vpop.f32.mrb[0].mxu0
      %v1653 = vadd.f32 0.0, %v1652
      %v1654 = vpop.f32.mrb[0].mxu0
      %v1655 = vadd.f32 0.0, %v1654
      %v1656 = vpop.f32.mrb[0].mxu0
      %v1657 = vadd.f32 0.0, %v1656
      %v1658 = vpop.f32.mrb[0].mxu0
      %v1659 = vadd.f32 0.0, %v1658
      %1660 = vmatprep.mubr.bf16.mxu0 0
      %1661 = vmatmul.mubr.bf16.gmra.mrb[0].mxu0 %v1534
      %v1662 = vpop.f32.mrb[0].mxu0
      %v1663 = vadd.f32 0.0, %v1662
      %v1664 = vpop.f32.mrb[0].mxu0
      %v1665 = vadd.f32 0.0, %v1664
      %v1666 = vpop.f32.mrb[0].mxu0
      %v1667 = vadd.f32 0.0, %v1666
      %v1668 = vpop.f32.mrb[0].mxu0
      %v1669 = vadd.f32 0.0, %v1668
      %1670 = vmatprep.mubr.bf16.mxu0 0
      %1671 = vmatmul.mubr.bf16.gmra.mrb[0].mxu0 %v1537
      %v1672 = vpop.f32.mrb[0].mxu0
      %v1673 = vadd.f32 0.0, %v1672
      %v1674 = vpop.f32.mrb[0].mxu0
      %v1675 = vadd.f32 0.0, %v1674
      %v1676 = vpop.f32.mrb[0].mxu0
      %v1677 = vadd.f32 0.0, %v1676
      %v1678 = vpop.f32.mrb[0].mxu0
      %v1679 = vadd.f32 0.0, %v1678
      %1680 = vmatprep.mubr.bf16.mxu0 0
      %1681 = vmatmul.mubr.bf16.gmra.mrb[0].mxu0 %v1540
      %v1682 = vpop.f32.mrb[0].mxu0
      %v1683 = vadd.f32 0.0, %v1682
      %v1684 = vpop.f32.mrb[0].mxu0
      %v1685 = vadd.f32 0.0, %v1684
      %v1686 = vpop.f32.mrb[0].mxu0
      %v1687 = vadd.f32 0.0, %v1686
      %v1688 = vpop.f32.mrb[0].mxu0
      %v1689 = vadd.f32 0.0, %v1688
      %1690 = vmatprep.mubr.bf16.mxu0 0
      %1691 = vmatmul.mubr.bf16.gmra.mrb[0].mxu0 %v1543
      %v1692 = vpop.f32.mrb[0].mxu0
      %v1693 = vadd.f32 0.0, %v1692
      %v1694 = vpop.f32.mrb[0].mxu0
      %v1695 = vadd.f32 0.0, %v1694
      %v1696 = vpop.f32.mrb[0].mxu0
      %v1697 = vadd.f32 0.0, %v1696
      %v1698 = vpop.f32.mrb[0].mxu0
      %v1699 = vadd.f32 0.0, %v1698
      %1700 = vmatprep.mubr.bf16.mxu0 0
      %1701 = vmatmul.mubr.bf16.gmra.mrb[0].mxu0 %v1546
      %v1702 = vpop.f32.mrb[0].mxu0
      %v1703 = vadd.f32 0.0, %v1702
      %v1704 = vpop.f32.mrb[0].mxu0
      %v1705 = vadd.f32 0.0, %v1704
      %v1706 = vpop.f32.mrb[0].mxu0
      %v1707 = vadd.f32 0.0, %v1706
      %v1708 = vpop.f32.mrb[0].mxu0
      %v1709 = vadd.f32 0.0, %v1708
      %1710 = vmatprep.mubr.bf16.mxu0 0
      %1711 = vmatmul.mubr.bf16.gmra.mrb[0].mxu0 %v1549
      %v1712 = vpop.f32.mrb[0].mxu0
      %v1713 = vadd.f32 0.0, %v1712
      %v1714 = vpop.f32.mrb[0].mxu0
      %v1715 = vadd.f32 0.0, %v1714
      %v1716 = vpop.f32.mrb[0].mxu0
      %v1717 = vadd.f32 0.0, %v1716
      %v1718 = vpop.f32.mrb[0].mxu0
      %v1719 = vadd.f32 0.0, %v1718
      %1720 = vmatprep.mubr.bf16.mxu0 0
      %1721 = vmatmul.mubr.bf16.gmra.mrb[0].mxu0 %v1552
      %v1722 = vpop.f32.mrb[0].mxu0
      %v1723 = vadd.f32 0.0, %v1722
      %v1724 = vpop.f32.mrb[0].mxu0
      %v1725 = vadd.f32 0.0, %v1724
      %v1726 = vpop.f32.mrb[0].mxu0
      %v1727 = vadd.f32 0.0, %v1726
      %v1728 = vpop.f32.mrb[0].mxu0
      %v1729 = vadd.f32 0.0, %v1728
      %1730 = vmatprep.mubr.bf16.mxu0 0
      %1731 = vmatmul.mubr.bf16.gmra.mrb[0].mxu0 %v1555
      %v1732 = vpop.f32.mrb[0].mxu0
      %v1733 = vadd.f32 0.0, %v1732
      %v1734 = vpop.f32.mrb[0].mxu0
      %v1735 = vadd.f32 0.0, %v1734
      %v1736 = vpop.f32.mrb[0].mxu0
      %v1737 = vadd.f32 0.0, %v1736
      %v1738 = vpop.f32.mrb[0].mxu0
      %v1739 = vadd.f32 0.0, %v1738
      %1740 = vmatprep.mubr.bf16.mxu0 0
      %1741 = vmatmul.mubr.bf16.gmra.mrb[0].mxu0 %v1558
      %v1742 = vpop.f32.mrb[0].mxu0
      %v1743 = vadd.f32 0.0, %v1742
      %v1744 = vpop.f32.mrb[0].mxu0
      %v1745 = vadd.f32 0.0, %v1744
      %v1746 = vpop.f32.mrb[0].mxu0
      %v1747 = vadd.f32 0.0, %v1746
      %v1748 = vpop.f32.mrb[0].mxu0
      %v1749 = vadd.f32 0.0, %v1748
      %1750 = vmatprep.mubr.bf16.mxu0 0
      %1751 = vmatmul.mubr.bf16.gmra.mrb[0].mxu0 %v1561
      %v1752 = vpop.f32.mrb[0].mxu0
      %v1753 = vadd.f32 0.0, %v1752
      %v1754 = vpop.f32.mrb[0].mxu0
      %v1755 = vadd.f32 0.0, %v1754
      %v1756 = vpop.f32.mrb[0].mxu0
      %v1757 = vadd.f32 0.0, %v1756
      %v1758 = vpop.f32.mrb[0].mxu0
      %v1759 = vadd.f32 0.0, %v1758
      %1760 = vmatprep.mubr.bf16.mxu0 0
      %1761 = vmatmul.mubr.bf16.gmra.mrb[0].mxu0 %v1564
      %v1762 = vpop.f32.mrb[0].mxu0
      %v1763 = vadd.f32 0.0, %v1762
      %v1764 = vpop.f32.mrb[0].mxu0
      %v1765 = vadd.f32 0.0, %v1764
      %v1766 = vpop.f32.mrb[0].mxu0
      %v1767 = vadd.f32 0.0, %v1766
      %v1768 = vpop.f32.mrb[0].mxu0
      %v1769 = vadd.f32 0.0, %v1768
      %1770 = vmatprep.mubr.bf16.mxu0 0
      %1771 = vmatmul.mubr.bf16.gmra.mrb[0].mxu0 %v1567
      %v1772 = vpop.f32.mrb[0].mxu0
      %v1773 = vadd.f32 0.0, %v1772
      %v1774 = vpop.f32.mrb[0].mxu0
      %v1775 = vadd.f32 0.0, %v1774
      %v1776 = vpop.f32.mrb[0].mxu0
      %v1777 = vadd.f32 0.0, %v1776
      %v1778 = vpop.f32.mrb[0].mxu0
      %v1779 = vadd.f32 0.0, %v1778
      %1780 = vmatprep.mubr.bf16.mxu0 0
      %1781 = vmatmul.mubr.bf16.gmra.mrb[0].mxu0 %v1570
      %v1782 = vpop.f32.mrb[0].mxu0
      %v1783 = vadd.f32 0.0, %v1782
      %v1784 = vpop.f32.mrb[0].mxu0
      %v1785 = vadd.f32 0.0, %v1784
      %v1786 = vpop.f32.mrb[0].mxu0
      %v1787 = vadd.f32 0.0, %v1786
      %v1788 = vpop.f32.mrb[0].mxu0
      %v1789 = vadd.f32 0.0, %v1788
      %1790 = vdwg.mxu0
      %v1791 = vadd.f32 %v1375, %v1613
      %v1792 = vadd.f32 %v1376, %v1615
      %v1793 = vadd.f32 %v1377, %v1617
      %v1794 = vadd.f32 %v1378, %v1619
      %v1795 = vadd.f32 %v1379, %v1623
      %v1796 = vadd.f32 %v1380, %v1625
      %v1797 = vadd.f32 %v1381, %v1627
      %v1798 = vadd.f32 %v1382, %v1629
      %v1799 = vadd.f32 %v1383, %v1633
      %v1800 = vadd.f32 %v1384, %v1635
      %v1801 = vadd.f32 %v1385, %v1637
      %v1802 = vadd.f32 %v1386, %v1639
      %v1803 = vadd.f32 %v1387, %v1643
      %v1804 = vadd.f32 %v1388, %v1645
      %v1805 = vadd.f32 %v1389, %v1647
      %v1806 = vadd.f32 %v1390, %v1649
      %v1807 = vadd.f32 %v1391, %v1653
      %v1808 = vadd.f32 %v1392, %v1655
      %v1809 = vadd.f32 %v1393, %v1657
      %v1810 = vadd.f32 %v1394, %v1659
      %v1811 = vadd.f32 %v1395, %v1663
      %v1812 = vadd.f32 %v1396, %v1665
      %v1813 = vadd.f32 %v1397, %v1667
      %v1814 = vadd.f32 %v1398, %v1669
      %v1815 = vadd.f32 %v1399, %v1673
      %v1816 = vadd.f32 %v1400, %v1675
      %v1817 = vadd.f32 %v1401, %v1677
      %v1818 = vadd.f32 %v1402, %v1679
      %v1819 = vadd.f32 %v1403, %v1683
      %v1820 = vadd.f32 %v1404, %v1685
      %v1821 = vadd.f32 %v1405, %v1687
      %v1822 = vadd.f32 %v1406, %v1689
      %v1823 = vadd.f32 %v1407, %v1693
      %v1824 = vadd.f32 %v1408, %v1695
      %v1825 = vadd.f32 %v1409, %v1697
      %v1826 = vadd.f32 %v1410, %v1699
      %v1827 = vadd.f32 %v1411, %v1703
      %v1828 = vadd.f32 %v1412, %v1705
      %v1829 = vadd.f32 %v1413, %v1707
      %v1830 = vadd.f32 %v1414, %v1709
      %v1831 = vadd.f32 %v1415, %v1713
      %v1832 = vadd.f32 %v1416, %v1715
      %v1833 = vadd.f32 %v1417, %v1717
      %v1834 = vadd.f32 %v1418, %v1719
      %v1835 = vadd.f32 %v1419, %v1723
      %v1836 = vadd.f32 %v1420, %v1725
      %v1837 = vadd.f32 %v1421, %v1727
      %v1838 = vadd.f32 %v1422, %v1729
      %v1839 = vadd.f32 %v1423, %v1733
      %v1840 = vadd.f32 %v1424, %v1735
      %v1841 = vadd.f32 %v1425, %v1737
      %v1842 = vadd.f32 %v1426, %v1739
      %v1843 = vadd.f32 %v1427, %v1743
      %v1844 = vadd.f32 %v1428, %v1745
      %v1845 = vadd.f32 %v1429, %v1747
      %v1846 = vadd.f32 %v1430, %v1749
      %v1847 = vadd.f32 %v1431, %v1753
      %v1848 = vadd.f32 %v1432, %v1755
      %v1849 = vadd.f32 %v1433, %v1757
      %v1850 = vadd.f32 %v1434, %v1759
      %v1851 = vadd.f32 %v1435, %v1763
      %v1852 = vadd.f32 %v1436, %v1765
      %v1853 = vadd.f32 %v1437, %v1767
      %v1854 = vadd.f32 %v1438, %v1769
      %v1855 = vadd.f32 %v1439, %v1773
      %v1856 = vadd.f32 %v1440, %v1775
      %v1857 = vadd.f32 %v1441, %v1777
      %v1858 = vadd.f32 %v1442, %v1779
      %v1859 = vadd.f32 %v1443, %v1783
      %v1860 = vadd.f32 %v1444, %v1785
      %v1861 = vadd.f32 %v1445, %v1787
      %v1862 = vadd.f32 %v1446, %v1789
      %1863 = vst [vmem:[#allocation2] sm:$0xff] %v1791
      %1864 = vst [vmem:[#allocation2 + $0x8] sm:$0xff] %v1792
      %1865 = vst [vmem:[#allocation2 + $0x10] sm:$0xff] %v1793
      %1866 = vst [vmem:[#allocation2 + $0x18] sm:$0xff] %v1794
      %1867 = vst [vmem:[#allocation2 + $0x20] sm:$0xff] %v1795
      %1868 = vst [vmem:[#allocation2 + $0x28] sm:$0xff] %v1796
      %1869 = vst [vmem:[#allocation2 + $0x30] sm:$0xff] %v1797
      %1870 = vst [vmem:[#allocation2 + $0x38] sm:$0xff] %v1798
      %1871 = vst [vmem:[#allocation2 + $0x40] sm:$0xff] %v1799
      %1872 = vst [vmem:[#allocation2 + $0x48] sm:$0xff] %v1800
      %1873 = vst [vmem:[#allocation2 + $0x50] sm:$0xff] %v1801
      %1874 = vst [vmem:[#allocation2 + $0x58] sm:$0xff] %v1802
      %1875 = vst [vmem:[#allocation2 + $0x60] sm:$0xff] %v1803
      %1876 = vst [vmem:[#allocation2 + $0x68] sm:$0xff] %v1804
      %1877 = vst [vmem:[#allocation2 + $0x70] sm:$0xff] %v1805
      %1878 = vst [vmem:[#allocation2 + $0x78] sm:$0xff] %v1806
      %1879 = vst [vmem:[#allocation2 + $0x80] sm:$0xff] %v1807
      %1880 = vst [vmem:[#allocation2 + $0x88] sm:$0xff] %v1808
      %1881 = vst [vmem:[#allocation2 + $0x90] sm:$0xff] %v1809
      %1882 = vst [vmem:[#allocation2 + $0x98] sm:$0xff] %v1810
      %1883 = vst [vmem:[#allocation2 + $0xa0] sm:$0xff] %v1811
      %1884 = vst [vmem:[#allocation2 + $0xa8] sm:$0xff] %v1812
      %1885 = vst [vmem:[#allocation2 + $0xb0] sm:$0xff] %v1813
      %1886 = vst [vmem:[#allocation2 + $0xb8] sm:$0xff] %v1814
      %1887 = vst [vmem:[#allocation2 + $0xc0] sm:$0xff] %v1815
      %1888 = vst [vmem:[#allocation2 + $0xc8] sm:$0xff] %v1816
      %1889 = vst [vmem:[#allocation2 + $0xd0] sm:$0xff] %v1817
      %1890 = vst [vmem:[#allocation2 + $0xd8] sm:$0xff] %v1818
      %1891 = vst [vmem:[#allocation2 + $0xe0] sm:$0xff] %v1819
      %1892 = vst [vmem:[#allocation2 + $0xe8] sm:$0xff] %v1820
      %1893 = vst [vmem:[#allocation2 + $0xf0] sm:$0xff] %v1821
      %1894 = vst [vmem:[#allocation2 + $0xf8] sm:$0xff] %v1822
      %1895 = vst [vmem:[#allocation2 + $0x100] sm:$0xff] %v1823
      %1896 = vst [vmem:[#allocation2 + $0x108] sm:$0xff] %v1824
      %1897 = vst [vmem:[#allocation2 + $0x110] sm:$0xff] %v1825
      %1898 = vst [vmem:[#allocation2 + $0x118] sm:$0xff] %v1826
      %1899 = vst [vmem:[#allocation2 + $0x120] sm:$0xff] %v1827
      %1900 = vst [vmem:[#allocation2 + $0x128] sm:$0xff] %v1828
      %1901 = vst [vmem:[#allocation2 + $0x130] sm:$0xff] %v1829
      %1902 = vst [vmem:[#allocation2 + $0x138] sm:$0xff] %v1830
      %1903 = vst [vmem:[#allocation2 + $0x140] sm:$0xff] %v1831
      %1904 = vst [vmem:[#allocation2 + $0x148] sm:$0xff] %v1832
      %1905 = vst [vmem:[#allocation2 + $0x150] sm:$0xff] %v1833
      %1906 = vst [vmem:[#allocation2 + $0x158] sm:$0xff] %v1834
      %1907 = vst [vmem:[#allocation2 + $0x160] sm:$0xff] %v1835
      %1908 = vst [vmem:[#allocation2 + $0x168] sm:$0xff] %v1836
      %1909 = vst [vmem:[#allocation2 + $0x170] sm:$0xff] %v1837
      %1910 = vst [vmem:[#allocation2 + $0x178] sm:$0xff] %v1838
      %1911 = vst [vmem:[#allocation2 + $0x180] sm:$0xff] %v1839
      %1912 = vst [vmem:[#allocation2 + $0x188] sm:$0xff] %v1840
      %1913 = vst [vmem:[#allocation2 + $0x190] sm:$0xff] %v1841
      %1914 = vst [vmem:[#allocation2 + $0x198] sm:$0xff] %v1842
      %1915 = vst [vmem:[#allocation2 + $0x1a0] sm:$0xff] %v1843
      %1916 = vst [vmem:[#allocation2 + $0x1a8] sm:$0xff] %v1844
      %1917 = vst [vmem:[#allocation2 + $0x1b0] sm:$0xff] %v1845
      %1918 = vst [vmem:[#allocation2 + $0x1b8] sm:$0xff] %v1846
      %1919 = vst [vmem:[#allocation2 + $0x1c0] sm:$0xff] %v1847
      %1920 = vst [vmem:[#allocation2 + $0x1c8] sm:$0xff] %v1848
      %1921 = vst [vmem:[#allocation2 + $0x1d0] sm:$0xff] %v1849
      %1922 = vst [vmem:[#allocation2 + $0x1d8] sm:$0xff] %v1850
      %1923 = vst [vmem:[#allocation2 + $0x1e0] sm:$0xff] %v1851
      %1924 = vst [vmem:[#allocation2 + $0x1e8] sm:$0xff] %v1852
      %1925 = vst [vmem:[#allocation2 + $0x1f0] sm:$0xff] %v1853
      %1926 = vst [vmem:[#allocation2 + $0x1f8] sm:$0xff] %v1854
      %1927 = vst [vmem:[#allocation2 + $0x200] sm:$0xff] %v1855
      %1928 = vst [vmem:[#allocation2 + $0x208] sm:$0xff] %v1856
      %1929 = vst [vmem:[#allocation2 + $0x210] sm:$0xff] %v1857
      %1930 = vst [vmem:[#allocation2 + $0x218] sm:$0xff] %v1858
      %1931 = vst [vmem:[#allocation2 + $0x220] sm:$0xff] %v1859
      %1932 = vst [vmem:[#allocation2 + $0x228] sm:$0xff] %v1860
      %1933 = vst [vmem:[#allocation2 + $0x230] sm:$0xff] %v1861
      %1934 = vst [vmem:[#allocation2 + $0x238] sm:$0xff] %v1862
      %v1935 = vld [vmem:[#allocation2] sm:$0xff]
      %v1936 = vld [vmem:[#allocation2 + $0x8] sm:$0xff]
      %v1937 = vld [vmem:[#allocation2 + $0x10] sm:$0xff]
      %v1938 = vld [vmem:[#allocation2 + $0x18] sm:$0xff]
      %v1939 = vld [vmem:[#allocation2 + $0x20] sm:$0xff]
      %v1940 = vld [vmem:[#allocation2 + $0x28] sm:$0xff]
      %v1941 = vld [vmem:[#allocation2 + $0x30] sm:$0xff]
      %v1942 = vld [vmem:[#allocation2 + $0x38] sm:$0xff]
      %v1943 = vld [vmem:[#allocation2 + $0x40] sm:$0xff]
      %v1944 = vld [vmem:[#allocation2 + $0x48] sm:$0xff]
      %v1945 = vld [vmem:[#allocation2 + $0x50] sm:$0xff]
      %v1946 = vld [vmem:[#allocation2 + $0x58] sm:$0xff]
      %v1947 = vld [vmem:[#allocation2 + $0x60] sm:$0xff]
      %v1948 = vld [vmem:[#allocation2 + $0x68] sm:$0xff]
      %v1949 = vld [vmem:[#allocation2 + $0x70] sm:$0xff]
      %v1950 = vld [vmem:[#allocation2 + $0x78] sm:$0xff]
      %v1951 = vld [vmem:[#allocation2 + $0x80] sm:$0xff]
      %v1952 = vld [vmem:[#allocation2 + $0x88] sm:$0xff]
      %v1953 = vld [vmem:[#allocation2 + $0x90] sm:$0xff]
      %v1954 = vld [vmem:[#allocation2 + $0x98] sm:$0xff]
      %v1955 = vld [vmem:[#allocation2 + $0xa0] sm:$0xff]
      %v1956 = vld [vmem:[#allocation2 + $0xa8] sm:$0xff]
      %v1957 = vld [vmem:[#allocation2 + $0xb0] sm:$0xff]
      %v1958 = vld [vmem:[#allocation2 + $0xb8] sm:$0xff]
      %v1959 = vld [vmem:[#allocation2 + $0xc0] sm:$0xff]
      %v1960 = vld [vmem:[#allocation2 + $0xc8] sm:$0xff]
      %v1961 = vld [vmem:[#allocation2 + $0xd0] sm:$0xff]
      %v1962 = vld [vmem:[#allocation2 + $0xd8] sm:$0xff]
      %v1963 = vld [vmem:[#allocation2 + $0xe0] sm:$0xff]
      %v1964 = vld [vmem:[#allocation2 + $0xe8] sm:$0xff]
      %v1965 = vld [vmem:[#allocation2 + $0xf0] sm:$0xff]
      %v1966 = vld [vmem:[#allocation2 + $0xf8] sm:$0xff]
      %v1967 = vld [vmem:[#allocation2 + $0x100] sm:$0xff]
      %v1968 = vld [vmem:[#allocation2 + $0x108] sm:$0xff]
      %v1969 = vld [vmem:[#allocation2 + $0x110] sm:$0xff]
      %v1970 = vld [vmem:[#allocation2 + $0x118] sm:$0xff]
      %v1971 = vld [vmem:[#allocation2 + $0x120] sm:$0xff]
      %v1972 = vld [vmem:[#allocation2 + $0x128] sm:$0xff]
      %v1973 = vld [vmem:[#allocation2 + $0x130] sm:$0xff]
      %v1974 = vld [vmem:[#allocation2 + $0x138] sm:$0xff]
      %v1975 = vld [vmem:[#allocation2 + $0x140] sm:$0xff]
      %v1976 = vld [vmem:[#allocation2 + $0x148] sm:$0xff]
      %v1977 = vld [vmem:[#allocation2 + $0x150] sm:$0xff]
      %v1978 = vld [vmem:[#allocation2 + $0x158] sm:$0xff]
      %v1979 = vld [vmem:[#allocation2 + $0x160] sm:$0xff]
      %v1980 = vld [vmem:[#allocation2 + $0x168] sm:$0xff]
      %v1981 = vld [vmem:[#allocation2 + $0x170] sm:$0xff]
      %v1982 = vld [vmem:[#allocation2 + $0x178] sm:$0xff]
      %v1983 = vld [vmem:[#allocation2 + $0x180] sm:$0xff]
      %v1984 = vld [vmem:[#allocation2 + $0x188] sm:$0xff]
      %v1985 = vld [vmem:[#allocation2 + $0x190] sm:$0xff]
      %v1986 = vld [vmem:[#allocation2 + $0x198] sm:$0xff]
      %v1987 = vld [vmem:[#allocation2 + $0x1a0] sm:$0xff]
      %v1988 = vld [vmem:[#allocation2 + $0x1a8] sm:$0xff]
      %v1989 = vld [vmem:[#allocation2 + $0x1b0] sm:$0xff]
      %v1990 = vld [vmem:[#allocation2 + $0x1b8] sm:$0xff]
      %v1991 = vld [vmem:[#allocation2 + $0x1c0] sm:$0xff]
      %v1992 = vld [vmem:[#allocation2 + $0x1c8] sm:$0xff]
      %v1993 = vld [vmem:[#allocation2 + $0x1d0] sm:$0xff]
      %v1994 = vld [vmem:[#allocation2 + $0x1d8] sm:$0xff]
      %v1995 = vld [vmem:[#allocation2 + $0x1e0] sm:$0xff]
      %v1996 = vld [vmem:[#allocation2 + $0x1e8] sm:$0xff]
      %v1997 = vld [vmem:[#allocation2 + $0x1f0] sm:$0xff]
      %v1998 = vld [vmem:[#allocation2 + $0x1f8] sm:$0xff]
      %v1999 = vld [vmem:[#allocation2 + $0x200] sm:$0xff]
      %v2000 = vld [vmem:[#allocation2 + $0x208] sm:$0xff]
      %v2001 = vld [vmem:[#allocation2 + $0x210] sm:$0xff]
      %v2002 = vld [vmem:[#allocation2 + $0x218] sm:$0xff]
      %v2003 = vld [vmem:[#allocation2 + $0x220] sm:$0xff]
      %v2004 = vld [vmem:[#allocation2 + $0x228] sm:$0xff]
      %v2005 = vld [vmem:[#allocation2 + $0x230] sm:$0xff]
      %v2006 = vld [vmem:[#allocation2 + $0x238] sm:$0xff]
      %s2007 = scalar_lea.vmem %s1, 12
      %v2008 = vld [vmem:[%s2007] sm:$0xf]
      %2009 = vrot.lane.b32.xlu0 %v324, 110
      %v2010 = vpop.permute.xlu0 %2009
      %2011 = vrot.lane.b32.xlu0 %v332, 110
      %v2012 = vpop.permute.xlu0 %2011
      %2013 = vrot.lane.b32.xlu0 %v331, 110
      %v2014 = vpop.permute.xlu0 %2013
      %vm2015 = vcmask 900096
      %v2016 = vsel %vm2015, %v2010, %v2012
      %v2017 = vsel %vm2015, %v2012, %v2014
      %2021 = vxpose.xlu0.c.b16.start [1/8] %v2016, 128
      %2022 = vxpose.xlu0.c.b16.cont [2/8] 0, 128
      %2023 = vxpose.xlu0.c.b16.cont [3/8] 0, 128
      %2024 = vxpose.xlu0.c.b16.cont [4/8] 0, 128
      %2025 = vxpose.xlu0.c.b16.cont [5/8] 0, 128
      %2026 = vxpose.xlu0.c.b16.cont [6/8] 0, 128
      %2027 = vxpose.xlu0.c.b16.cont [7/8] 0, 128
      %2028 = vxpose.xlu0.c.b16.end [8/8] 0, 128
      %v2029 = vpop.trf.xlu0
      %v2030 = vpop.trf.xlu0
      %v2031 = vpop.trf.xlu0
      %v2032 = vpop.trf.xlu0
      %v2033 = vpop.trf.xlu0
      %v2034 = vpop.trf.xlu0
      %v2035 = vpop.trf.xlu0
      %v2036 = vpop.trf.xlu0
      %2037 = vxpose.xlu0.c.b16.start [1/8] %v2017, 128
      %2038 = vxpose.xlu0.c.b16.cont [2/8] 0, 128
      %2039 = vxpose.xlu0.c.b16.cont [3/8] 0, 128
      %2040 = vxpose.xlu0.c.b16.cont [4/8] 0, 128
      %2041 = vxpose.xlu0.c.b16.cont [5/8] 0, 128
      %2042 = vxpose.xlu0.c.b16.cont [6/8] 0, 128
      %2043 = vxpose.xlu0.c.b16.cont [7/8] 0, 128
      %2044 = vxpose.xlu0.c.b16.end [8/8] 0, 128
      %v2045 = vpop.trf.xlu0
      %v2046 = vpop.trf.xlu0
      %v2047 = vpop.trf.xlu0
      %v2048 = vpop.trf.xlu0
      %v2049 = vpop.trf.xlu0
      %v2050 = vpop.trf.xlu0
      %v2051 = vpop.trf.xlu0
      %v2052 = vpop.trf.xlu0
      %2053 = vxpose.xlu0.c.b16.start [1/8] %v2014, 128
      %2054 = vxpose.xlu0.c.b16.cont [2/8] 0, 128
      %2055 = vxpose.xlu0.c.b16.cont [3/8] 0, 128
      %2056 = vxpose.xlu0.c.b16.cont [4/8] 0, 128
      %2057 = vxpose.xlu0.c.b16.cont [5/8] 0, 128
      %2058 = vxpose.xlu0.c.b16.cont [6/8] 0, 128
      %2059 = vxpose.xlu0.c.b16.cont [7/8] 0, 128
      %2060 = vxpose.xlu0.c.b16.end [8/8] 0, 128
      %v2061 = vpop.trf.xlu0
      %v2062 = vpop.trf.xlu0
      %v2063 = vpop.trf.xlu0
      %v2064 = vpop.trf.xlu0
      %v2065 = vpop.trf.xlu0
      %v2066 = vpop.trf.xlu0
      %v2067 = vpop.trf.xlu0
      %v2068 = vpop.trf.xlu0
      %v2071 = vunpack.c.l.s4 1983009808
      %v2072 = vunpack.c.0.s8 %v2071
      %v2073 = vlaneseq
      %v2074 = vshrl.u32 %v2073, 7
      %v2075 = vsub.s32 %v2072, %v2074
      %v2076 = vrot.slane %v2008, %v2075
      %v2077 = vcombine.high %v2076, %v2076
      %v2079 = vsel %vm393, %v2029, 0
      %v2082 = vsel %vm393, %v2030, 0
      %v2085 = vsel %vm393, %v2031, 0
      %v2088 = vsel %vm393, %v2032, 0
      %v2091 = vsel %vm393, %v2033, 0
      %v2094 = vsel %vm393, %v2034, 0
      %v2097 = vsel %vm393, %v2035, 0
      %v2100 = vsel %vm393, %v2036, 0
      %v2103 = vsel %vm393, %v2045, 0
      %v2106 = vsel %vm393, %v2046, 0
      %v2109 = vsel %vm393, %v2047, 0
      %v2112 = vsel %vm393, %v2048, 0
      %v2115 = vsel %vm393, %v2049, 0
      %v2118 = vsel %vm393, %v2050, 0
      %v2121 = vsel %vm393, %v2051, 0
      %v2124 = vsel %vm393, %v2052, 0
      %v2127 = vsel %vm393, %v2061, 0
      %v2130 = vsel %vm393, %v2062, 0
      %v2133 = vand.u32 %v2076, %v451
      %v2136 = vand.u32 %v2077, %v451
      %2138 = vmatprep.subr.bf16.mxu0 %v2136
      %2139 = vmatpush1.bf16.msra.mxu0 %v2133
      %2140 = vmatprep.subr.bf16.mxu0 0
      %2141 = vmatpush1.bf16.msra.mxu0 0
      %2142 = vmatprep.subr.bf16.mxu0 0
      %2143 = vmatpush1.bf16.msra.mxu0 0
      %2144 = vmatprep.subr.bf16.mxu0 0
      %2145 = vmatpush1.bf16.msra.mxu0 0
      %2146 = vmatprep.subr.bf16.mxu0 0
      %2147 = vmatpush1.bf16.msra.mxu0 0
      %2148 = vmatprep.subr.bf16.mxu0 0
      %2149 = vmatpush1.bf16.msra.mxu0 0
      %2150 = vmatprep.subr.bf16.mxu0 0
      %2151 = vmatpush1.bf16.msra.mxu0 0
      %2152 = vmatprep.subr.bf16.mxu0 0
      %2153 = vmatpush1.bf16.msra.mxu0 0
      %2154 = vmatprep.subr.bf16.mxu0 0
      %2155 = vmatpush1.bf16.msra.mxu0 0
      %2156 = vmatprep.subr.bf16.mxu0 0
      %2157 = vmatpush1.bf16.msra.mxu0 0
      %2158 = vmatprep.subr.bf16.mxu0 0
      %2159 = vmatpush1.bf16.msra.mxu0 0
      %2160 = vmatprep.subr.bf16.mxu0 0
      %2161 = vmatpush1.bf16.msra.mxu0 0
      %2162 = vmatprep.subr.bf16.mxu0 0
      %2163 = vmatpush1.bf16.msra.mxu0 0
      %2164 = vmatprep.subr.bf16.mxu0 0
      %2165 = vmatpush1.bf16.msra.mxu0 0
      %2166 = vmatprep.subr.bf16.mxu0 0
      %2167 = vmatpush1.bf16.msra.mxu0 0
      %2168 = vmatprep.subr.bf16.mxu0 0
      %2169 = vmatpush1.bf16.msra.mxu0 0
      %2170 = vmatprep.mubr.bf16.mxu0 0
      %2171 = vmatmul.mubr.bf16.gmra.mrb[0].mxu0 %v2079
      %v2172 = vpop.f32.mrb[0].mxu0
      %v2173 = vadd.f32 0.0, %v2172
      %v2174 = vpop.f32.mrb[0].mxu0
      %v2175 = vadd.f32 0.0, %v2174
      %v2176 = vpop.f32.mrb[0].mxu0
      %v2177 = vadd.f32 0.0, %v2176
      %v2178 = vpop.f32.mrb[0].mxu0
      %v2179 = vadd.f32 0.0, %v2178
      %2180 = vmatprep.mubr.bf16.mxu0 0
      %2181 = vmatmul.mubr.bf16.gmra.mrb[0].mxu0 %v2082
      %v2182 = vpop.f32.mrb[0].mxu0
      %v2183 = vadd.f32 0.0, %v2182
      %v2184 = vpop.f32.mrb[0].mxu0
      %v2185 = vadd.f32 0.0, %v2184
      %v2186 = vpop.f32.mrb[0].mxu0
      %v2187 = vadd.f32 0.0, %v2186
      %v2188 = vpop.f32.mrb[0].mxu0
      %v2189 = vadd.f32 0.0, %v2188
      %2190 = vmatprep.mubr.bf16.mxu0 0
      %2191 = vmatmul.mubr.bf16.gmra.mrb[0].mxu0 %v2085
      %v2192 = vpop.f32.mrb[0].mxu0
      %v2193 = vadd.f32 0.0, %v2192
      %v2194 = vpop.f32.mrb[0].mxu0
      %v2195 = vadd.f32 0.0, %v2194
      %v2196 = vpop.f32.mrb[0].mxu0
      %v2197 = vadd.f32 0.0, %v2196
      %v2198 = vpop.f32.mrb[0].mxu0
      %v2199 = vadd.f32 0.0, %v2198
      %2200 = vmatprep.mubr.bf16.mxu0 0
      %2201 = vmatmul.mubr.bf16.gmra.mrb[0].mxu0 %v2088
      %v2202 = vpop.f32.mrb[0].mxu0
      %v2203 = vadd.f32 0.0, %v2202
      %v2204 = vpop.f32.mrb[0].mxu0
      %v2205 = vadd.f32 0.0, %v2204
      %v2206 = vpop.f32.mrb[0].mxu0
      %v2207 = vadd.f32 0.0, %v2206
      %v2208 = vpop.f32.mrb[0].mxu0
      %v2209 = vadd.f32 0.0, %v2208
      %2210 = vmatprep.mubr.bf16.mxu0 0
      %2211 = vmatmul.mubr.bf16.gmra.mrb[0].mxu0 %v2091
      %v2212 = vpop.f32.mrb[0].mxu0
      %v2213 = vadd.f32 0.0, %v2212
      %v2214 = vpop.f32.mrb[0].mxu0
      %v2215 = vadd.f32 0.0, %v2214
      %v2216 = vpop.f32.mrb[0].mxu0
      %v2217 = vadd.f32 0.0, %v2216
      %v2218 = vpop.f32.mrb[0].mxu0
      %v2219 = vadd.f32 0.0, %v2218
      %2220 = vmatprep.mubr.bf16.mxu0 0
      %2221 = vmatmul.mubr.bf16.gmra.mrb[0].mxu0 %v2094
      %v2222 = vpop.f32.mrb[0].mxu0
      %v2223 = vadd.f32 0.0, %v2222
      %v2224 = vpop.f32.mrb[0].mxu0
      %v2225 = vadd.f32 0.0, %v2224
      %v2226 = vpop.f32.mrb[0].mxu0
      %v2227 = vadd.f32 0.0, %v2226
      %v2228 = vpop.f32.mrb[0].mxu0
      %v2229 = vadd.f32 0.0, %v2228
      %2230 = vmatprep.mubr.bf16.mxu0 0
      %2231 = vmatmul.mubr.bf16.gmra.mrb[0].mxu0 %v2097
      %v2232 = vpop.f32.mrb[0].mxu0
      %v2233 = vadd.f32 0.0, %v2232
      %v2234 = vpop.f32.mrb[0].mxu0
      %v2235 = vadd.f32 0.0, %v2234
      %v2236 = vpop.f32.mrb[0].mxu0
      %v2237 = vadd.f32 0.0, %v2236
      %v2238 = vpop.f32.mrb[0].mxu0
      %v2239 = vadd.f32 0.0, %v2238
      %2240 = vmatprep.mubr.bf16.mxu0 0
      %2241 = vmatmul.mubr.bf16.gmra.mrb[0].mxu0 %v2100
      %v2242 = vpop.f32.mrb[0].mxu0
      %v2243 = vadd.f32 0.0, %v2242
      %v2244 = vpop.f32.mrb[0].mxu0
      %v2245 = vadd.f32 0.0, %v2244
      %v2246 = vpop.f32.mrb[0].mxu0
      %v2247 = vadd.f32 0.0, %v2246
      %v2248 = vpop.f32.mrb[0].mxu0
      %v2249 = vadd.f32 0.0, %v2248
      %2250 = vmatprep.mubr.bf16.mxu0 0
      %2251 = vmatmul.mubr.bf16.gmra.mrb[0].mxu0 %v2103
      %v2252 = vpop.f32.mrb[0].mxu0
      %v2253 = vadd.f32 0.0, %v2252
      %v2254 = vpop.f32.mrb[0].mxu0
      %v2255 = vadd.f32 0.0, %v2254
      %v2256 = vpop.f32.mrb[0].mxu0
      %v2257 = vadd.f32 0.0, %v2256
      %v2258 = vpop.f32.mrb[0].mxu0
      %v2259 = vadd.f32 0.0, %v2258
      %2260 = vmatprep.mubr.bf16.mxu0 0
      %2261 = vmatmul.mubr.bf16.gmra.mrb[0].mxu0 %v2106
      %v2262 = vpop.f32.mrb[0].mxu0
      %v2263 = vadd.f32 0.0, %v2262
      %v2264 = vpop.f32.mrb[0].mxu0
      %v2265 = vadd.f32 0.0, %v2264
      %v2266 = vpop.f32.mrb[0].mxu0
      %v2267 = vadd.f32 0.0, %v2266
      %v2268 = vpop.f32.mrb[0].mxu0
      %v2269 = vadd.f32 0.0, %v2268
      %2270 = vmatprep.mubr.bf16.mxu0 0
      %2271 = vmatmul.mubr.bf16.gmra.mrb[0].mxu0 %v2109
      %v2272 = vpop.f32.mrb[0].mxu0
      %v2273 = vadd.f32 0.0, %v2272
      %v2274 = vpop.f32.mrb[0].mxu0
      %v2275 = vadd.f32 0.0, %v2274
      %v2276 = vpop.f32.mrb[0].mxu0
      %v2277 = vadd.f32 0.0, %v2276
      %v2278 = vpop.f32.mrb[0].mxu0
      %v2279 = vadd.f32 0.0, %v2278
      %2280 = vmatprep.mubr.bf16.mxu0 0
      %2281 = vmatmul.mubr.bf16.gmra.mrb[0].mxu0 %v2112
      %v2282 = vpop.f32.mrb[0].mxu0
      %v2283 = vadd.f32 0.0, %v2282
      %v2284 = vpop.f32.mrb[0].mxu0
      %v2285 = vadd.f32 0.0, %v2284
      %v2286 = vpop.f32.mrb[0].mxu0
      %v2287 = vadd.f32 0.0, %v2286
      %v2288 = vpop.f32.mrb[0].mxu0
      %v2289 = vadd.f32 0.0, %v2288
      %2290 = vmatprep.mubr.bf16.mxu0 0
      %2291 = vmatmul.mubr.bf16.gmra.mrb[0].mxu0 %v2115
      %v2292 = vpop.f32.mrb[0].mxu0
      %v2293 = vadd.f32 0.0, %v2292
      %v2294 = vpop.f32.mrb[0].mxu0
      %v2295 = vadd.f32 0.0, %v2294
      %v2296 = vpop.f32.mrb[0].mxu0
      %v2297 = vadd.f32 0.0, %v2296
      %v2298 = vpop.f32.mrb[0].mxu0
      %v2299 = vadd.f32 0.0, %v2298
      %2300 = vmatprep.mubr.bf16.mxu0 0
      %2301 = vmatmul.mubr.bf16.gmra.mrb[0].mxu0 %v2118
      %v2302 = vpop.f32.mrb[0].mxu0
      %v2303 = vadd.f32 0.0, %v2302
      %v2304 = vpop.f32.mrb[0].mxu0
      %v2305 = vadd.f32 0.0, %v2304
      %v2306 = vpop.f32.mrb[0].mxu0
      %v2307 = vadd.f32 0.0, %v2306
      %v2308 = vpop.f32.mrb[0].mxu0
      %v2309 = vadd.f32 0.0, %v2308
      %2310 = vmatprep.mubr.bf16.mxu0 0
      %2311 = vmatmul.mubr.bf16.gmra.mrb[0].mxu0 %v2121
      %v2312 = vpop.f32.mrb[0].mxu0
      %v2313 = vadd.f32 0.0, %v2312
      %v2314 = vpop.f32.mrb[0].mxu0
      %v2315 = vadd.f32 0.0, %v2314
      %v2316 = vpop.f32.mrb[0].mxu0
      %v2317 = vadd.f32 0.0, %v2316
      %v2318 = vpop.f32.mrb[0].mxu0
      %v2319 = vadd.f32 0.0, %v2318
      %2320 = vmatprep.mubr.bf16.mxu0 0
      %2321 = vmatmul.mubr.bf16.gmra.mrb[0].mxu0 %v2124
      %v2322 = vpop.f32.mrb[0].mxu0
      %v2323 = vadd.f32 0.0, %v2322
      %v2324 = vpop.f32.mrb[0].mxu0
      %v2325 = vadd.f32 0.0, %v2324
      %v2326 = vpop.f32.mrb[0].mxu0
      %v2327 = vadd.f32 0.0, %v2326
      %v2328 = vpop.f32.mrb[0].mxu0
      %v2329 = vadd.f32 0.0, %v2328
      %2330 = vmatprep.mubr.bf16.mxu0 0
      %2331 = vmatmul.mubr.bf16.gmra.mrb[0].mxu0 %v2127
      %v2332 = vpop.f32.mrb[0].mxu0
      %v2333 = vadd.f32 0.0, %v2332
      %v2334 = vpop.f32.mrb[0].mxu0
      %v2335 = vadd.f32 0.0, %v2334
      %v2336 = vpop.f32.mrb[0].mxu0
      %v2337 = vadd.f32 0.0, %v2336
      %v2338 = vpop.f32.mrb[0].mxu0
      %v2339 = vadd.f32 0.0, %v2338
      %2340 = vmatprep.mubr.bf16.mxu0 0
      %2341 = vmatmul.mubr.bf16.gmra.mrb[0].mxu0 %v2130
      %v2342 = vpop.f32.mrb[0].mxu0
      %v2343 = vadd.f32 0.0, %v2342
      %v2344 = vpop.f32.mrb[0].mxu0
      %v2345 = vadd.f32 0.0, %v2344
      %v2346 = vpop.f32.mrb[0].mxu0
      %v2347 = vadd.f32 0.0, %v2346
      %v2348 = vpop.f32.mrb[0].mxu0
      %v2349 = vadd.f32 0.0, %v2348
      %2350 = vdwg.mxu0
      %v2351 = vadd.f32 %v1935, %v2173
      %v2352 = vadd.f32 %v1936, %v2175
      %v2353 = vadd.f32 %v1937, %v2177
      %v2354 = vadd.f32 %v1938, %v2179
      %v2355 = vadd.f32 %v1939, %v2183
      %v2356 = vadd.f32 %v1940, %v2185
      %v2357 = vadd.f32 %v1941, %v2187
      %v2358 = vadd.f32 %v1942, %v2189
      %v2359 = vadd.f32 %v1943, %v2193
      %v2360 = vadd.f32 %v1944, %v2195
      %v2361 = vadd.f32 %v1945, %v2197
      %v2362 = vadd.f32 %v1946, %v2199
      %v2363 = vadd.f32 %v1947, %v2203
      %v2364 = vadd.f32 %v1948, %v2205
      %v2365 = vadd.f32 %v1949, %v2207
      %v2366 = vadd.f32 %v1950, %v2209
      %v2367 = vadd.f32 %v1951, %v2213
      %v2368 = vadd.f32 %v1952, %v2215
      %v2369 = vadd.f32 %v1953, %v2217
      %v2370 = vadd.f32 %v1954, %v2219
      %v2371 = vadd.f32 %v1955, %v2223
      %v2372 = vadd.f32 %v1956, %v2225
      %v2373 = vadd.f32 %v1957, %v2227
      %v2374 = vadd.f32 %v1958, %v2229
      %v2375 = vadd.f32 %v1959, %v2233
      %v2376 = vadd.f32 %v1960, %v2235
      %v2377 = vadd.f32 %v1961, %v2237
      %v2378 = vadd.f32 %v1962, %v2239
      %v2379 = vadd.f32 %v1963, %v2243
      %v2380 = vadd.f32 %v1964, %v2245
      %v2381 = vadd.f32 %v1965, %v2247
      %v2382 = vadd.f32 %v1966, %v2249
      %v2383 = vadd.f32 %v1967, %v2253
      %v2384 = vadd.f32 %v1968, %v2255
      %v2385 = vadd.f32 %v1969, %v2257
      %v2386 = vadd.f32 %v1970, %v2259
      %v2387 = vadd.f32 %v1971, %v2263
      %v2388 = vadd.f32 %v1972, %v2265
      %v2389 = vadd.f32 %v1973, %v2267
      %v2390 = vadd.f32 %v1974, %v2269
      %v2391 = vadd.f32 %v1975, %v2273
      %v2392 = vadd.f32 %v1976, %v2275
      %v2393 = vadd.f32 %v1977, %v2277
      %v2394 = vadd.f32 %v1978, %v2279
      %v2395 = vadd.f32 %v1979, %v2283
      %v2396 = vadd.f32 %v1980, %v2285
      %v2397 = vadd.f32 %v1981, %v2287
      %v2398 = vadd.f32 %v1982, %v2289
      %v2399 = vadd.f32 %v1983, %v2293
      %v2400 = vadd.f32 %v1984, %v2295
      %v2401 = vadd.f32 %v1985, %v2297
      %v2402 = vadd.f32 %v1986, %v2299
      %v2403 = vadd.f32 %v1987, %v2303
      %v2404 = vadd.f32 %v1988, %v2305
      %v2405 = vadd.f32 %v1989, %v2307
      %v2406 = vadd.f32 %v1990, %v2309
      %v2407 = vadd.f32 %v1991, %v2313
      %v2408 = vadd.f32 %v1992, %v2315
      %v2409 = vadd.f32 %v1993, %v2317
      %v2410 = vadd.f32 %v1994, %v2319
      %v2411 = vadd.f32 %v1995, %v2323
      %v2412 = vadd.f32 %v1996, %v2325
      %v2413 = vadd.f32 %v1997, %v2327
      %v2414 = vadd.f32 %v1998, %v2329
      %v2415 = vadd.f32 %v1999, %v2333
      %v2416 = vadd.f32 %v2000, %v2335
      %v2417 = vadd.f32 %v2001, %v2337
      %v2418 = vadd.f32 %v2002, %v2339
      %v2419 = vadd.f32 %v2003, %v2343
      %v2420 = vadd.f32 %v2004, %v2345
      %v2421 = vadd.f32 %v2005, %v2347
      %v2422 = vadd.f32 %v2006, %v2349
      %2423 = vst [vmem:[#allocation2] sm:$0xff] %v2351
      %2424 = vst [vmem:[#allocation2 + $0x8] sm:$0xff] %v2352
      %2425 = vst [vmem:[#allocation2 + $0x10] sm:$0xff] %v2353
      %2426 = vst [vmem:[#allocation2 + $0x18] sm:$0xff] %v2354
      %2427 = vst [vmem:[#allocation2 + $0x20] sm:$0xff] %v2355
      %2428 = vst [vmem:[#allocation2 + $0x28] sm:$0xff] %v2356
      %2429 = vst [vmem:[#allocation2 + $0x30] sm:$0xff] %v2357
      %2430 = vst [vmem:[#allocation2 + $0x38] sm:$0xff] %v2358
      %2431 = vst [vmem:[#allocation2 + $0x40] sm:$0xff] %v2359
      %2432 = vst [vmem:[#allocation2 + $0x48] sm:$0xff] %v2360
      %2433 = vst [vmem:[#allocation2 + $0x50] sm:$0xff] %v2361
      %2434 = vst [vmem:[#allocation2 + $0x58] sm:$0xff] %v2362
      %2435 = vst [vmem:[#allocation2 + $0x60] sm:$0xff] %v2363
      %2436 = vst [vmem:[#allocation2 + $0x68] sm:$0xff] %v2364
      %2437 = vst [vmem:[#allocation2 + $0x70] sm:$0xff] %v2365
      %2438 = vst [vmem:[#allocation2 + $0x78] sm:$0xff] %v2366
      %2439 = vst [vmem:[#allocation2 + $0x80] sm:$0xff] %v2367
      %2440 = vst [vmem:[#allocation2 + $0x88] sm:$0xff] %v2368
      %2441 = vst [vmem:[#allocation2 + $0x90] sm:$0xff] %v2369
      %2442 = vst [vmem:[#allocation2 + $0x98] sm:$0xff] %v2370
      %2443 = vst [vmem:[#allocation2 + $0xa0] sm:$0xff] %v2371
      %2444 = vst [vmem:[#allocation2 + $0xa8] sm:$0xff] %v2372
      %2445 = vst [vmem:[#allocation2 + $0xb0] sm:$0xff] %v2373
      %2446 = vst [vmem:[#allocation2 + $0xb8] sm:$0xff] %v2374
      %2447 = vst [vmem:[#allocation2 + $0xc0] sm:$0xff] %v2375
      %2448 = vst [vmem:[#allocation2 + $0xc8] sm:$0xff] %v2376
      %2449 = vst [vmem:[#allocation2 + $0xd0] sm:$0xff] %v2377
      %2450 = vst [vmem:[#allocation2 + $0xd8] sm:$0xff] %v2378
      %2451 = vst [vmem:[#allocation2 + $0xe0] sm:$0xff] %v2379
      %2452 = vst [vmem:[#allocation2 + $0xe8] sm:$0xff] %v2380
      %2453 = vst [vmem:[#allocation2 + $0xf0] sm:$0xff] %v2381
      %2454 = vst [vmem:[#allocation2 + $0xf8] sm:$0xff] %v2382
      %2455 = vst [vmem:[#allocation2 + $0x100] sm:$0xff] %v2383
      %2456 = vst [vmem:[#allocation2 + $0x108] sm:$0xff] %v2384
      %2457 = vst [vmem:[#allocation2 + $0x110] sm:$0xff] %v2385
      %2458 = vst [vmem:[#allocation2 + $0x118] sm:$0xff] %v2386
      %2459 = vst [vmem:[#allocation2 + $0x120] sm:$0xff] %v2387
      %2460 = vst [vmem:[#allocation2 + $0x128] sm:$0xff] %v2388
      %2461 = vst [vmem:[#allocation2 + $0x130] sm:$0xff] %v2389
      %2462 = vst [vmem:[#allocation2 + $0x138] sm:$0xff] %v2390
      %2463 = vst [vmem:[#allocation2 + $0x140] sm:$0xff] %v2391
      %2464 = vst [vmem:[#allocation2 + $0x148] sm:$0xff] %v2392
      %2465 = vst [vmem:[#allocation2 + $0x150] sm:$0xff] %v2393
      %2466 = vst [vmem:[#allocation2 + $0x158] sm:$0xff] %v2394
      %2467 = vst [vmem:[#allocation2 + $0x160] sm:$0xff] %v2395
      %2468 = vst [vmem:[#allocation2 + $0x168] sm:$0xff] %v2396
      %2469 = vst [vmem:[#allocation2 + $0x170] sm:$0xff] %v2397
      %2470 = vst [vmem:[#allocation2 + $0x178] sm:$0xff] %v2398
      %2471 = vst [vmem:[#allocation2 + $0x180] sm:$0xff] %v2399
      %2472 = vst [vmem:[#allocation2 + $0x188] sm:$0xff] %v2400
      %2473 = vst [vmem:[#allocation2 + $0x190] sm:$0xff] %v2401
      %2474 = vst [vmem:[#allocation2 + $0x198] sm:$0xff] %v2402
      %2475 = vst [vmem:[#allocation2 + $0x1a0] sm:$0xff] %v2403
      %2476 = vst [vmem:[#allocation2 + $0x1a8] sm:$0xff] %v2404
      %2477 = vst [vmem:[#allocation2 + $0x1b0] sm:$0xff] %v2405
      %2478 = vst [vmem:[#allocation2 + $0x1b8] sm:$0xff] %v2406
      %2479 = vst [vmem:[#allocation2 + $0x1c0] sm:$0xff] %v2407
      %2480 = vst [vmem:[#allocation2 + $0x1c8] sm:$0xff] %v2408
      %2481 = vst [vmem:[#allocation2 + $0x1d0] sm:$0xff] %v2409
      %2482 = vst [vmem:[#allocation2 + $0x1d8] sm:$0xff] %v2410
      %2483 = vst [vmem:[#allocation2 + $0x1e0] sm:$0xff] %v2411
      %2484 = vst [vmem:[#allocation2 + $0x1e8] sm:$0xff] %v2412
      %2485 = vst [vmem:[#allocation2 + $0x1f0] sm:$0xff] %v2413
      %2486 = vst [vmem:[#allocation2 + $0x1f8] sm:$0xff] %v2414
      %2487 = vst [vmem:[#allocation2 + $0x200] sm:$0xff] %v2415
      %2488 = vst [vmem:[#allocation2 + $0x208] sm:$0xff] %v2416
      %2489 = vst [vmem:[#allocation2 + $0x210] sm:$0xff] %v2417
      %2490 = vst [vmem:[#allocation2 + $0x218] sm:$0xff] %v2418
      %2491 = vst [vmem:[#allocation2 + $0x220] sm:$0xff] %v2419
      %2492 = vst [vmem:[#allocation2 + $0x228] sm:$0xff] %v2420
      %2493 = vst [vmem:[#allocation2 + $0x230] sm:$0xff] %v2421
      %2494 = vst [vmem:[#allocation2 + $0x238] sm:$0xff] %v2422
      %v2495 = vld [vmem:[#allocation2] sm:$0xff]
      %v2496 = vld [vmem:[#allocation2 + $0x8] sm:$0xff]
      %v2497 = vld [vmem:[#allocation2 + $0x10] sm:$0xff]
      %v2498 = vld [vmem:[#allocation2 + $0x18] sm:$0xff]
      %v2499 = vld [vmem:[#allocation2 + $0x20] sm:$0xff]
      %v2500 = vld [vmem:[#allocation2 + $0x28] sm:$0xff]
      %v2501 = vld [vmem:[#allocation2 + $0x30] sm:$0xff]
      %v2502 = vld [vmem:[#allocation2 + $0x38] sm:$0xff]
      %v2503 = vld [vmem:[#allocation2 + $0x40] sm:$0xff]
      %v2504 = vld [vmem:[#allocation2 + $0x48] sm:$0xff]
      %v2505 = vld [vmem:[#allocation2 + $0x50] sm:$0xff]
      %v2506 = vld [vmem:[#allocation2 + $0x58] sm:$0xff]
      %v2507 = vld [vmem:[#allocation2 + $0x60] sm:$0xff]
      %v2508 = vld [vmem:[#allocation2 + $0x68] sm:$0xff]
      %v2509 = vld [vmem:[#allocation2 + $0x70] sm:$0xff]
      %v2510 = vld [vmem:[#allocation2 + $0x78] sm:$0xff]
      %v2511 = vld [vmem:[#allocation2 + $0x80] sm:$0xff]
      %v2512 = vld [vmem:[#allocation2 + $0x88] sm:$0xff]
      %v2513 = vld [vmem:[#allocation2 + $0x90] sm:$0xff]
      %v2514 = vld [vmem:[#allocation2 + $0x98] sm:$0xff]
      %v2515 = vld [vmem:[#allocation2 + $0xa0] sm:$0xff]
      %v2516 = vld [vmem:[#allocation2 + $0xa8] sm:$0xff]
      %v2517 = vld [vmem:[#allocation2 + $0xb0] sm:$0xff]
      %v2518 = vld [vmem:[#allocation2 + $0xb8] sm:$0xff]
      %v2519 = vld [vmem:[#allocation2 + $0xc0] sm:$0xff]
      %v2520 = vld [vmem:[#allocation2 + $0xc8] sm:$0xff]
      %v2521 = vld [vmem:[#allocation2 + $0xd0] sm:$0xff]
      %v2522 = vld [vmem:[#allocation2 + $0xd8] sm:$0xff]
      %v2523 = vld [vmem:[#allocation2 + $0xe0] sm:$0xff]
      %v2524 = vld [vmem:[#allocation2 + $0xe8] sm:$0xff]
      %v2525 = vld [vmem:[#allocation2 + $0xf0] sm:$0xff]
      %v2526 = vld [vmem:[#allocation2 + $0xf8] sm:$0xff]
      %v2527 = vld [vmem:[#allocation2 + $0x100] sm:$0xff]
      %v2528 = vld [vmem:[#allocation2 + $0x108] sm:$0xff]
      %v2529 = vld [vmem:[#allocation2 + $0x110] sm:$0xff]
      %v2530 = vld [vmem:[#allocation2 + $0x118] sm:$0xff]
      %v2531 = vld [vmem:[#allocation2 + $0x120] sm:$0xff]
      %v2532 = vld [vmem:[#allocation2 + $0x128] sm:$0xff]
      %v2533 = vld [vmem:[#allocation2 + $0x130] sm:$0xff]
      %v2534 = vld [vmem:[#allocation2 + $0x138] sm:$0xff]
      %v2535 = vld [vmem:[#allocation2 + $0x140] sm:$0xff]
      %v2536 = vld [vmem:[#allocation2 + $0x148] sm:$0xff]
      %v2537 = vld [vmem:[#allocation2 + $0x150] sm:$0xff]
      %v2538 = vld [vmem:[#allocation2 + $0x158] sm:$0xff]
      %v2539 = vld [vmem:[#allocation2 + $0x160] sm:$0xff]
      %v2540 = vld [vmem:[#allocation2 + $0x168] sm:$0xff]
      %v2541 = vld [vmem:[#allocation2 + $0x170] sm:$0xff]
      %v2542 = vld [vmem:[#allocation2 + $0x178] sm:$0xff]
      %v2543 = vld [vmem:[#allocation2 + $0x180] sm:$0xff]
      %v2544 = vld [vmem:[#allocation2 + $0x188] sm:$0xff]
      %v2545 = vld [vmem:[#allocation2 + $0x190] sm:$0xff]
      %v2546 = vld [vmem:[#allocation2 + $0x198] sm:$0xff]
      %v2547 = vld [vmem:[#allocation2 + $0x1a0] sm:$0xff]
      %v2548 = vld [vmem:[#allocation2 + $0x1a8] sm:$0xff]
      %v2549 = vld [vmem:[#allocation2 + $0x1b0] sm:$0xff]
      %v2550 = vld [vmem:[#allocation2 + $0x1b8] sm:$0xff]
      %v2551 = vld [vmem:[#allocation2 + $0x1c0] sm:$0xff]
      %v2552 = vld [vmem:[#allocation2 + $0x1c8] sm:$0xff]
      %v2553 = vld [vmem:[#allocation2 + $0x1d0] sm:$0xff]
      %v2554 = vld [vmem:[#allocation2 + $0x1d8] sm:$0xff]
      %v2555 = vld [vmem:[#allocation2 + $0x1e0] sm:$0xff]
      %v2556 = vld [vmem:[#allocation2 + $0x1e8] sm:$0xff]
      %v2557 = vld [vmem:[#allocation2 + $0x1f0] sm:$0xff]
      %v2558 = vld [vmem:[#allocation2 + $0x1f8] sm:$0xff]
      %v2559 = vld [vmem:[#allocation2 + $0x200] sm:$0xff]
      %v2560 = vld [vmem:[#allocation2 + $0x208] sm:$0xff]
      %v2561 = vld [vmem:[#allocation2 + $0x210] sm:$0xff]
      %v2562 = vld [vmem:[#allocation2 + $0x218] sm:$0xff]
      %v2563 = vld [vmem:[#allocation2 + $0x220] sm:$0xff]
      %v2564 = vld [vmem:[#allocation2 + $0x228] sm:$0xff]
      %v2565 = vld [vmem:[#allocation2 + $0x230] sm:$0xff]
      %v2566 = vld [vmem:[#allocation2 + $0x238] sm:$0xff]
      %s2567 = scalar_lea.vmem %s1, 16
      %v2568 = vld [vmem:[%s2567] sm:$0xf]
      %2569 = vrot.lane.b32.xlu0 %v324, 109
      %v2570 = vpop.permute.xlu0 %2569
      %2571 = vrot.lane.b32.xlu0 %v332, 109
      %v2572 = vpop.permute.xlu0 %2571
      %2573 = vrot.lane.b32.xlu0 %v331, 109
      %v2574 = vpop.permute.xlu0 %2573
      %vm2575 = vcmask 891904
      %v2576 = vsel %vm2575, %v2570, %v2572
      %v2577 = vsel %vm2575, %v2572, %v2574
      %2581 = vxpose.xlu0.c.b16.start [1/8] %v2576, 128
      %2582 = vxpose.xlu0.c.b16.cont [2/8] 0, 128
      %2583 = vxpose.xlu0.c.b16.cont [3/8] 0, 128
      %2584 = vxpose.xlu0.c.b16.cont [4/8] 0, 128
      %2585 = vxpose.xlu0.c.b16.cont [5/8] 0, 128
      %2586 = vxpose.xlu0.c.b16.cont [6/8] 0, 128
      %2587 = vxpose.xlu0.c.b16.cont [7/8] 0, 128
      %2588 = vxpose.xlu0.c.b16.end [8/8] 0, 128
      %v2589 = vpop.trf.xlu0
      %v2590 = vpop.trf.xlu0
      %v2591 = vpop.trf.xlu0
      %v2592 = vpop.trf.xlu0
      %v2593 = vpop.trf.xlu0
      %v2594 = vpop.trf.xlu0
      %v2595 = vpop.trf.xlu0
      %v2596 = vpop.trf.xlu0
      %2597 = vxpose.xlu0.c.b16.start [1/8] %v2577, 128
      %2598 = vxpose.xlu0.c.b16.cont [2/8] 0, 128
      %2599 = vxpose.xlu0.c.b16.cont [3/8] 0, 128
      %2600 = vxpose.xlu0.c.b16.cont [4/8] 0, 128
      %2601 = vxpose.xlu0.c.b16.cont [5/8] 0, 128
      %2602 = vxpose.xlu0.c.b16.cont [6/8] 0, 128
      %2603 = vxpose.xlu0.c.b16.cont [7/8] 0, 128
      %2604 = vxpose.xlu0.c.b16.end [8/8] 0, 128
      %v2605 = vpop.trf.xlu0
      %v2606 = vpop.trf.xlu0
      %v2607 = vpop.trf.xlu0
      %v2608 = vpop.trf.xlu0
      %v2609 = vpop.trf.xlu0
      %v2610 = vpop.trf.xlu0
      %v2611 = vpop.trf.xlu0
      %v2612 = vpop.trf.xlu0
      %2613 = vxpose.xlu0.c.b16.start [1/8] %v2574, 128
      %2614 = vxpose.xlu0.c.b16.cont [2/8] 0, 128
      %2615 = vxpose.xlu0.c.b16.cont [3/8] 0, 128
      %2616 = vxpose.xlu0.c.b16.cont [4/8] 0, 128
      %2617 = vxpose.xlu0.c.b16.cont [5/8] 0, 128
      %2618 = vxpose.xlu0.c.b16.cont [6/8] 0, 128
      %2619 = vxpose.xlu0.c.b16.cont [7/8] 0, 128
      %2620 = vxpose.xlu0.c.b16.end [8/8] 0, 128
      %v2621 = vpop.trf.xlu0
      %v2622 = vpop.trf.xlu0
      %v2623 = vpop.trf.xlu0
      %v2624 = vpop.trf.xlu0
      %v2625 = vpop.trf.xlu0
      %v2626 = vpop.trf.xlu0
      %v2627 = vpop.trf.xlu0
      %v2628 = vpop.trf.xlu0
      %v2631 = vunpack.c.l.s4 1983009808
      %v2632 = vunpack.c.0.s8 %v2631
      %v2633 = vlaneseq
      %v2634 = vshrl.u32 %v2633, 7
      %v2635 = vsub.s32 %v2632, %v2634
      %v2636 = vrot.slane %v2568, %v2635
      %v2637 = vcombine.high %v2636, %v2636
      %v2639 = vsel %vm393, %v2589, 0
      %v2642 = vsel %vm393, %v2590, 0
      %v2645 = vsel %vm393, %v2591, 0
      %v2648 = vsel %vm393, %v2592, 0
      %v2651 = vsel %vm393, %v2593, 0
      %v2654 = vsel %vm393, %v2594, 0
      %v2657 = vsel %vm393, %v2595, 0
      %v2660 = vsel %vm393, %v2596, 0
      %v2663 = vsel %vm393, %v2605, 0
      %v2666 = vsel %vm393, %v2606, 0
      %v2669 = vsel %vm393, %v2607, 0
      %v2672 = vsel %vm393, %v2608, 0
      %v2675 = vsel %vm393, %v2609, 0
      %v2678 = vsel %vm393, %v2610, 0
      %v2681 = vsel %vm393, %v2611, 0
      %v2684 = vsel %vm393, %v2612, 0
      %v2687 = vsel %vm393, %v2621, 0
      %v2690 = vsel %vm393, %v2622, 0
      %v2693 = vand.u32 %v2636, %v451
      %v2696 = vand.u32 %v2637, %v451
      %2698 = vmatprep.subr.bf16.mxu0 %v2696
      %2699 = vmatpush1.bf16.msra.mxu0 %v2693
      %2700 = vmatprep.subr.bf16.mxu0 0
      %2701 = vmatpush1.bf16.msra.mxu0 0
      %2702 = vmatprep.subr.bf16.mxu0 0
      %2703 = vmatpush1.bf16.msra.mxu0 0
      %2704 = vmatprep.subr.bf16.mxu0 0
      %2705 = vmatpush1.bf16.msra.mxu0 0
      %2706 = vmatprep.subr.bf16.mxu0 0
      %2707 = vmatpush1.bf16.msra.mxu0 0
      %2708 = vmatprep.subr.bf16.mxu0 0
      %2709 = vmatpush1.bf16.msra.mxu0 0
      %2710 = vmatprep.subr.bf16.mxu0 0
      %2711 = vmatpush1.bf16.msra.mxu0 0
      %2712 = vmatprep.subr.bf16.mxu0 0
      %2713 = vmatpush1.bf16.msra.mxu0 0
      %2714 = vmatprep.subr.bf16.mxu0 0
      %2715 = vmatpush1.bf16.msra.mxu0 0
      %2716 = vmatprep.subr.bf16.mxu0 0
      %2717 = vmatpush1.bf16.msra.mxu0 0
      %2718 = vmatprep.subr.bf16.mxu0 0
      %2719 = vmatpush1.bf16.msra.mxu0 0
      %2720 = vmatprep.subr.bf16.mxu0 0
      %2721 = vmatpush1.bf16.msra.mxu0 0
      %2722 = vmatprep.subr.bf16.mxu0 0
      %2723 = vmatpush1.bf16.msra.mxu0 0
      %2724 = vmatprep.subr.bf16.mxu0 0
      %2725 = vmatpush1.bf16.msra.mxu0 0
      %2726 = vmatprep.subr.bf16.mxu0 0
      %2727 = vmatpush1.bf16.msra.mxu0 0
      %2728 = vmatprep.subr.bf16.mxu0 0
      %2729 = vmatpush1.bf16.msra.mxu0 0
      %2730 = vmatprep.mubr.bf16.mxu0 0
      %2731 = vmatmul.mubr.bf16.gmra.mrb[0].mxu0 %v2639
      %v2732 = vpop.f32.mrb[0].mxu0
      %v2733 = vadd.f32 0.0, %v2732
      %v2734 = vpop.f32.mrb[0].mxu0
      %v2735 = vadd.f32 0.0, %v2734
      %v2736 = vpop.f32.mrb[0].mxu0
      %v2737 = vadd.f32 0.0, %v2736
      %v2738 = vpop.f32.mrb[0].mxu0
      %v2739 = vadd.f32 0.0, %v2738
      %2740 = vmatprep.mubr.bf16.mxu0 0
      %2741 = vmatmul.mubr.bf16.gmra.mrb[0].mxu0 %v2642
      %v2742 = vpop.f32.mrb[0].mxu0
      %v2743 = vadd.f32 0.0, %v2742
      %v2744 = vpop.f32.mrb[0].mxu0
      %v2745 = vadd.f32 0.0, %v2744
      %v2746 = vpop.f32.mrb[0].mxu0
      %v2747 = vadd.f32 0.0, %v2746
      %v2748 = vpop.f32.mrb[0].mxu0
      %v2749 = vadd.f32 0.0, %v2748
      %2750 = vmatprep.mubr.bf16.mxu0 0
      %2751 = vmatmul.mubr.bf16.gmra.mrb[0].mxu0 %v2645
      %v2752 = vpop.f32.mrb[0].mxu0
      %v2753 = vadd.f32 0.0, %v2752
      %v2754 = vpop.f32.mrb[0].mxu0
      %v2755 = vadd.f32 0.0, %v2754
      %v2756 = vpop.f32.mrb[0].mxu0
      %v2757 = vadd.f32 0.0, %v2756
      %v2758 = vpop.f32.mrb[0].mxu0
      %v2759 = vadd.f32 0.0, %v2758
      %2760 = vmatprep.mubr.bf16.mxu0 0
      %2761 = vmatmul.mubr.bf16.gmra.mrb[0].mxu0 %v2648
      %v2762 = vpop.f32.mrb[0].mxu0
      %v2763 = vadd.f32 0.0, %v2762
      %v2764 = vpop.f32.mrb[0].mxu0
      %v2765 = vadd.f32 0.0, %v2764
      %v2766 = vpop.f32.mrb[0].mxu0
      %v2767 = vadd.f32 0.0, %v2766
      %v2768 = vpop.f32.mrb[0].mxu0
      %v2769 = vadd.f32 0.0, %v2768
      %2770 = vmatprep.mubr.bf16.mxu0 0
      %2771 = vmatmul.mubr.bf16.gmra.mrb[0].mxu0 %v2651
      %v2772 = vpop.f32.mrb[0].mxu0
      %v2773 = vadd.f32 0.0, %v2772
      %v2774 = vpop.f32.mrb[0].mxu0
      %v2775 = vadd.f32 0.0, %v2774
      %v2776 = vpop.f32.mrb[0].mxu0
      %v2777 = vadd.f32 0.0, %v2776
      %v2778 = vpop.f32.mrb[0].mxu0
      %v2779 = vadd.f32 0.0, %v2778
      %2780 = vmatprep.mubr.bf16.mxu0 0
      %2781 = vmatmul.mubr.bf16.gmra.mrb[0].mxu0 %v2654
      %v2782 = vpop.f32.mrb[0].mxu0
      %v2783 = vadd.f32 0.0, %v2782
      %v2784 = vpop.f32.mrb[0].mxu0
      %v2785 = vadd.f32 0.0, %v2784
      %v2786 = vpop.f32.mrb[0].mxu0
      %v2787 = vadd.f32 0.0, %v2786
      %v2788 = vpop.f32.mrb[0].mxu0
      %v2789 = vadd.f32 0.0, %v2788
      %2790 = vmatprep.mubr.bf16.mxu0 0
      %2791 = vmatmul.mubr.bf16.gmra.mrb[0].mxu0 %v2657
      %v2792 = vpop.f32.mrb[0].mxu0
      %v2793 = vadd.f32 0.0, %v2792
      %v2794 = vpop.f32.mrb[0].mxu0
      %v2795 = vadd.f32 0.0, %v2794
      %v2796 = vpop.f32.mrb[0].mxu0
      %v2797 = vadd.f32 0.0, %v2796
      %v2798 = vpop.f32.mrb[0].mxu0
      %v2799 = vadd.f32 0.0, %v2798
      %2800 = vmatprep.mubr.bf16.mxu0 0
      %2801 = vmatmul.mubr.bf16.gmra.mrb[0].mxu0 %v2660
      %v2802 = vpop.f32.mrb[0].mxu0
      %v2803 = vadd.f32 0.0, %v2802
      %v2804 = vpop.f32.mrb[0].mxu0
      %v2805 = vadd.f32 0.0, %v2804
      %v2806 = vpop.f32.mrb[0].mxu0
      %v2807 = vadd.f32 0.0, %v2806
      %v2808 = vpop.f32.mrb[0].mxu0
      %v2809 = vadd.f32 0.0, %v2808
      %2810 = vmatprep.mubr.bf16.mxu0 0
      %2811 = vmatmul.mubr.bf16.gmra.mrb[0].mxu0 %v2663
      %v2812 = vpop.f32.mrb[0].mxu0
      %v2813 = vadd.f32 0.0, %v2812
      %v2814 = vpop.f32.mrb[0].mxu0
      %v2815 = vadd.f32 0.0, %v2814
      %v2816 = vpop.f32.mrb[0].mxu0
      %v2817 = vadd.f32 0.0, %v2816
      %v2818 = vpop.f32.mrb[0].mxu0
      %v2819 = vadd.f32 0.0, %v2818
      %2820 = vmatprep.mubr.bf16.mxu0 0
      %2821 = vmatmul.mubr.bf16.gmra.mrb[0].mxu0 %v2666
      %v2822 = vpop.f32.mrb[0].mxu0
      %v2823 = vadd.f32 0.0, %v2822
      %v2824 = vpop.f32.mrb[0].mxu0
      %v2825 = vadd.f32 0.0, %v2824
      %v2826 = vpop.f32.mrb[0].mxu0
      %v2827 = vadd.f32 0.0, %v2826
      %v2828 = vpop.f32.mrb[0].mxu0
      %v2829 = vadd.f32 0.0, %v2828
      %2830 = vmatprep.mubr.bf16.mxu0 0
      %2831 = vmatmul.mubr.bf16.gmra.mrb[0].mxu0 %v2669
      %v2832 = vpop.f32.mrb[0].mxu0
      %v2833 = vadd.f32 0.0, %v2832
      %v2834 = vpop.f32.mrb[0].mxu0
      %v2835 = vadd.f32 0.0, %v2834
      %v2836 = vpop.f32.mrb[0].mxu0
      %v2837 = vadd.f32 0.0, %v2836
      %v2838 = vpop.f32.mrb[0].mxu0
      %v2839 = vadd.f32 0.0, %v2838
      %2840 = vmatprep.mubr.bf16.mxu0 0
      %2841 = vmatmul.mubr.bf16.gmra.mrb[0].mxu0 %v2672
      %v2842 = vpop.f32.mrb[0].mxu0
      %v2843 = vadd.f32 0.0, %v2842
      %v2844 = vpop.f32.mrb[0].mxu0
      %v2845 = vadd.f32 0.0, %v2844
      %v2846 = vpop.f32.mrb[0].mxu0
      %v2847 = vadd.f32 0.0, %v2846
      %v2848 = vpop.f32.mrb[0].mxu0
      %v2849 = vadd.f32 0.0, %v2848
      %2850 = vmatprep.mubr.bf16.mxu0 0
      %2851 = vmatmul.mubr.bf16.gmra.mrb[0].mxu0 %v2675
      %v2852 = vpop.f32.mrb[0].mxu0
      %v2853 = vadd.f32 0.0, %v2852
      %v2854 = vpop.f32.mrb[0].mxu0
      %v2855 = vadd.f32 0.0, %v2854
      %v2856 = vpop.f32.mrb[0].mxu0
      %v2857 = vadd.f32 0.0, %v2856
      %v2858 = vpop.f32.mrb[0].mxu0
      %v2859 = vadd.f32 0.0, %v2858
      %2860 = vmatprep.mubr.bf16.mxu0 0
      %2861 = vmatmul.mubr.bf16.gmra.mrb[0].mxu0 %v2678
      %v2862 = vpop.f32.mrb[0].mxu0
      %v2863 = vadd.f32 0.0, %v2862
      %v2864 = vpop.f32.mrb[0].mxu0
      %v2865 = vadd.f32 0.0, %v2864
      %v2866 = vpop.f32.mrb[0].mxu0
      %v2867 = vadd.f32 0.0, %v2866
      %v2868 = vpop.f32.mrb[0].mxu0
      %v2869 = vadd.f32 0.0, %v2868
      %2870 = vmatprep.mubr.bf16.mxu0 0
      %2871 = vmatmul.mubr.bf16.gmra.mrb[0].mxu0 %v2681
      %v2872 = vpop.f32.mrb[0].mxu0
      %v2873 = vadd.f32 0.0, %v2872
      %v2874 = vpop.f32.mrb[0].mxu0
      %v2875 = vadd.f32 0.0, %v2874
      %v2876 = vpop.f32.mrb[0].mxu0
      %v2877 = vadd.f32 0.0, %v2876
      %v2878 = vpop.f32.mrb[0].mxu0
      %v2879 = vadd.f32 0.0, %v2878
      %2880 = vmatprep.mubr.bf16.mxu0 0
      %2881 = vmatmul.mubr.bf16.gmra.mrb[0].mxu0 %v2684
      %v2882 = vpop.f32.mrb[0].mxu0
      %v2883 = vadd.f32 0.0, %v2882
      %v2884 = vpop.f32.mrb[0].mxu0
      %v2885 = vadd.f32 0.0, %v2884
      %v2886 = vpop.f32.mrb[0].mxu0
      %v2887 = vadd.f32 0.0, %v2886
      %v2888 = vpop.f32.mrb[0].mxu0
      %v2889 = vadd.f32 0.0, %v2888
      %2890 = vmatprep.mubr.bf16.mxu0 0
      %2891 = vmatmul.mubr.bf16.gmra.mrb[0].mxu0 %v2687
      %v2892 = vpop.f32.mrb[0].mxu0
      %v2893 = vadd.f32 0.0, %v2892
      %v2894 = vpop.f32.mrb[0].mxu0
      %v2895 = vadd.f32 0.0, %v2894
      %v2896 = vpop.f32.mrb[0].mxu0
      %v2897 = vadd.f32 0.0, %v2896
      %v2898 = vpop.f32.mrb[0].mxu0
      %v2899 = vadd.f32 0.0, %v2898
      %2900 = vmatprep.mubr.bf16.mxu0 0
      %2901 = vmatmul.mubr.bf16.gmra.mrb[0].mxu0 %v2690
      %v2902 = vpop.f32.mrb[0].mxu0
      %v2903 = vadd.f32 0.0, %v2902
      %v2904 = vpop.f32.mrb[0].mxu0
      %v2905 = vadd.f32 0.0, %v2904
      %v2906 = vpop.f32.mrb[0].mxu0
      %v2907 = vadd.f32 0.0, %v2906
      %v2908 = vpop.f32.mrb[0].mxu0
      %v2909 = vadd.f32 0.0, %v2908
      %2910 = vdwg.mxu0
      %v2911 = vadd.f32 %v2495, %v2733
      %v2912 = vadd.f32 %v2496, %v2735
      %v2913 = vadd.f32 %v2497, %v2737
      %v2914 = vadd.f32 %v2498, %v2739
      %v2915 = vadd.f32 %v2499, %v2743
      %v2916 = vadd.f32 %v2500, %v2745
      %v2917 = vadd.f32 %v2501, %v2747
      %v2918 = vadd.f32 %v2502, %v2749
      %v2919 = vadd.f32 %v2503, %v2753
      %v2920 = vadd.f32 %v2504, %v2755
      %v2921 = vadd.f32 %v2505, %v2757
      %v2922 = vadd.f32 %v2506, %v2759
      %v2923 = vadd.f32 %v2507, %v2763
      %v2924 = vadd.f32 %v2508, %v2765
      %v2925 = vadd.f32 %v2509, %v2767
      %v2926 = vadd.f32 %v2510, %v2769
      %v2927 = vadd.f32 %v2511, %v2773
      %v2928 = vadd.f32 %v2512, %v2775
      %v2929 = vadd.f32 %v2513, %v2777
      %v2930 = vadd.f32 %v2514, %v2779
      %v2931 = vadd.f32 %v2515, %v2783
      %v2932 = vadd.f32 %v2516, %v2785
      %v2933 = vadd.f32 %v2517, %v2787
      %v2934 = vadd.f32 %v2518, %v2789
      %v2935 = vadd.f32 %v2519, %v2793
      %v2936 = vadd.f32 %v2520, %v2795
      %v2937 = vadd.f32 %v2521, %v2797
      %v2938 = vadd.f32 %v2522, %v2799
      %v2939 = vadd.f32 %v2523, %v2803
      %v2940 = vadd.f32 %v2524, %v2805
      %v2941 = vadd.f32 %v2525, %v2807
      %v2942 = vadd.f32 %v2526, %v2809
      %v2943 = vadd.f32 %v2527, %v2813
      %v2944 = vadd.f32 %v2528, %v2815
      %v2945 = vadd.f32 %v2529, %v2817
      %v2946 = vadd.f32 %v2530, %v2819
      %v2947 = vadd.f32 %v2531, %v2823
      %v2948 = vadd.f32 %v2532, %v2825
      %v2949 = vadd.f32 %v2533, %v2827
      %v2950 = vadd.f32 %v2534, %v2829
      %v2951 = vadd.f32 %v2535, %v2833
      %v2952 = vadd.f32 %v2536, %v2835
      %v2953 = vadd.f32 %v2537, %v2837
      %v2954 = vadd.f32 %v2538, %v2839
      %v2955 = vadd.f32 %v2539, %v2843
      %v2956 = vadd.f32 %v2540, %v2845
      %v2957 = vadd.f32 %v2541, %v2847
      %v2958 = vadd.f32 %v2542, %v2849
      %v2959 = vadd.f32 %v2543, %v2853
      %v2960 = vadd.f32 %v2544, %v2855
      %v2961 = vadd.f32 %v2545, %v2857
      %v2962 = vadd.f32 %v2546, %v2859
      %v2963 = vadd.f32 %v2547, %v2863
      %v2964 = vadd.f32 %v2548, %v2865
      %v2965 = vadd.f32 %v2549, %v2867
      %v2966 = vadd.f32 %v2550, %v2869
      %v2967 = vadd.f32 %v2551, %v2873
      %v2968 = vadd.f32 %v2552, %v2875
      %v2969 = vadd.f32 %v2553, %v2877
      %v2970 = vadd.f32 %v2554, %v2879
      %v2971 = vadd.f32 %v2555, %v2883
      %v2972 = vadd.f32 %v2556, %v2885
      %v2973 = vadd.f32 %v2557, %v2887
      %v2974 = vadd.f32 %v2558, %v2889
      %v2975 = vadd.f32 %v2559, %v2893
      %v2976 = vadd.f32 %v2560, %v2895
      %v2977 = vadd.f32 %v2561, %v2897
      %v2978 = vadd.f32 %v2562, %v2899
      %v2979 = vadd.f32 %v2563, %v2903
      %v2980 = vadd.f32 %v2564, %v2905
      %v2981 = vadd.f32 %v2565, %v2907
      %v2982 = vadd.f32 %v2566, %v2909
      %2983 = vst [vmem:[#allocation2] sm:$0xff] %v2911
      %2984 = vst [vmem:[#allocation2 + $0x8] sm:$0xff] %v2912
      %2985 = vst [vmem:[#allocation2 + $0x10] sm:$0xff] %v2913
      %2986 = vst [vmem:[#allocation2 + $0x18] sm:$0xff] %v2914
      %2987 = vst [vmem:[#allocation2 + $0x20] sm:$0xff] %v2915
      %2988 = vst [vmem:[#allocation2 + $0x28] sm:$0xff] %v2916
      %2989 = vst [vmem:[#allocation2 + $0x30] sm:$0xff] %v2917
      %2990 = vst [vmem:[#allocation2 + $0x38] sm:$0xff] %v2918
      %2991 = vst [vmem:[#allocation2 + $0x40] sm:$0xff] %v2919
      %2992 = vst [vmem:[#allocation2 + $0x48] sm:$0xff] %v2920
      %2993 = vst [vmem:[#allocation2 + $0x50] sm:$0xff] %v2921
      %2994 = vst [vmem:[#allocation2 + $0x58] sm:$0xff] %v2922
      %2995 = vst [vmem:[#allocation2 + $0x60] sm:$0xff] %v2923
      %2996 = vst [vmem:[#allocation2 + $0x68] sm:$0xff] %v2924
      %2997 = vst [vmem:[#allocation2 + $0x70] sm:$0xff] %v2925
      %2998 = vst [vmem:[#allocation2 + $0x78] sm:$0xff] %v2926
      %2999 = vst [vmem:[#allocation2 + $0x80] sm:$0xff] %v2927
      %3000 = vst [vmem:[#allocation2 + $0x88] sm:$0xff] %v2928
      %3001 = vst [vmem:[#allocation2 + $0x90] sm:$0xff] %v2929
      %3002 = vst [vmem:[#allocation2 + $0x98] sm:$0xff] %v2930
      %3003 = vst [vmem:[#allocation2 + $0xa0] sm:$0xff] %v2931
      %3004 = vst [vmem:[#allocation2 + $0xa8] sm:$0xff] %v2932
      %3005 = vst [vmem:[#allocation2 + $0xb0] sm:$0xff] %v2933
      %3006 = vst [vmem:[#allocation2 + $0xb8] sm:$0xff] %v2934
      %3007 = vst [vmem:[#allocation2 + $0xc0] sm:$0xff] %v2935
      %3008 = vst [vmem:[#allocation2 + $0xc8] sm:$0xff] %v2936
      %3009 = vst [vmem:[#allocation2 + $0xd0] sm:$0xff] %v2937
      %3010 = vst [vmem:[#allocation2 + $0xd8] sm:$0xff] %v2938
      %3011 = vst [vmem:[#allocation2 + $0xe0] sm:$0xff] %v2939
      %3012 = vst [vmem:[#allocation2 + $0xe8] sm:$0xff] %v2940
      %3013 = vst [vmem:[#allocation2 + $0xf0] sm:$0xff] %v2941
      %3014 = vst [vmem:[#allocation2 + $0xf8] sm:$0xff] %v2942
      %3015 = vst [vmem:[#allocation2 + $0x100] sm:$0xff] %v2943
      %3016 = vst [vmem:[#allocation2 + $0x108] sm:$0xff] %v2944
      %3017 = vst [vmem:[#allocation2 + $0x110] sm:$0xff] %v2945
      %3018 = vst [vmem:[#allocation2 + $0x118] sm:$0xff] %v2946
      %3019 = vst [vmem:[#allocation2 + $0x120] sm:$0xff] %v2947
      %3020 = vst [vmem:[#allocation2 + $0x128] sm:$0xff] %v2948
      %3021 = vst [vmem:[#allocation2 + $0x130] sm:$0xff] %v2949
      %3022 = vst [vmem:[#allocation2 + $0x138] sm:$0xff] %v2950
      %3023 = vst [vmem:[#allocation2 + $0x140] sm:$0xff] %v2951
      %3024 = vst [vmem:[#allocation2 + $0x148] sm:$0xff] %v2952
      %3025 = vst [vmem:[#allocation2 + $0x150] sm:$0xff] %v2953
      %3026 = vst [vmem:[#allocation2 + $0x158] sm:$0xff] %v2954
      %3027 = vst [vmem:[#allocation2 + $0x160] sm:$0xff] %v2955
      %3028 = vst [vmem:[#allocation2 + $0x168] sm:$0xff] %v2956
      %3029 = vst [vmem:[#allocation2 + $0x170] sm:$0xff] %v2957
      %3030 = vst [vmem:[#allocation2 + $0x178] sm:$0xff] %v2958
      %3031 = vst [vmem:[#allocation2 + $0x180] sm:$0xff] %v2959
      %3032 = vst [vmem:[#allocation2 + $0x188] sm:$0xff] %v2960
      %3033 = vst [vmem:[#allocation2 + $0x190] sm:$0xff] %v2961
      %3034 = vst [vmem:[#allocation2 + $0x198] sm:$0xff] %v2962
      %3035 = vst [vmem:[#allocation2 + $0x1a0] sm:$0xff] %v2963
      %3036 = vst [vmem:[#allocation2 + $0x1a8] sm:$0xff] %v2964
      %3037 = vst [vmem:[#allocation2 + $0x1b0] sm:$0xff] %v2965
      %3038 = vst [vmem:[#allocation2 + $0x1b8] sm:$0xff] %v2966
      %3039 = vst [vmem:[#allocation2 + $0x1c0] sm:$0xff] %v2967
      %3040 = vst [vmem:[#allocation2 + $0x1c8] sm:$0xff] %v2968
      %3041 = vst [vmem:[#allocation2 + $0x1d0] sm:$0xff] %v2969
      %3042 = vst [vmem:[#allocation2 + $0x1d8] sm:$0xff] %v2970
      %3043 = vst [vmem:[#allocation2 + $0x1e0] sm:$0xff] %v2971
      %3044 = vst [vmem:[#allocation2 + $0x1e8] sm:$0xff] %v2972
      %3045 = vst [vmem:[#allocation2 + $0x1f0] sm:$0xff] %v2973
      %3046 = vst [vmem:[#allocation2 + $0x1f8] sm:$0xff] %v2974
      %3047 = vst [vmem:[#allocation2 + $0x200] sm:$0xff] %v2975
      %3048 = vst [vmem:[#allocation2 + $0x208] sm:$0xff] %v2976
      %3049 = vst [vmem:[#allocation2 + $0x210] sm:$0xff] %v2977
      %3050 = vst [vmem:[#allocation2 + $0x218] sm:$0xff] %v2978
      %3051 = vst [vmem:[#allocation2 + $0x220] sm:$0xff] %v2979
      %3052 = vst [vmem:[#allocation2 + $0x228] sm:$0xff] %v2980
      %3053 = vst [vmem:[#allocation2 + $0x230] sm:$0xff] %v2981
      %3054 = vst [vmem:[#allocation2 + $0x238] sm:$0xff] %v2982
      %v3055 = vld [vmem:[#allocation2] sm:$0xff]
      %v3056 = vld [vmem:[#allocation2 + $0x8] sm:$0xff]
      %v3057 = vld [vmem:[#allocation2 + $0x10] sm:$0xff]
      %v3058 = vld [vmem:[#allocation2 + $0x18] sm:$0xff]
      %v3059 = vld [vmem:[#allocation2 + $0x20] sm:$0xff]
      %v3060 = vld [vmem:[#allocation2 + $0x28] sm:$0xff]
      %v3061 = vld [vmem:[#allocation2 + $0x30] sm:$0xff]
      %v3062 = vld [vmem:[#allocation2 + $0x38] sm:$0xff]
      %v3063 = vld [vmem:[#allocation2 + $0x40] sm:$0xff]
      %v3064 = vld [vmem:[#allocation2 + $0x48] sm:$0xff]
      %v3065 = vld [vmem:[#allocation2 + $0x50] sm:$0xff]
      %v3066 = vld [vmem:[#allocation2 + $0x58] sm:$0xff]
      %v3067 = vld [vmem:[#allocation2 + $0x60] sm:$0xff]
      %v3068 = vld [vmem:[#allocation2 + $0x68] sm:$0xff]
      %v3069 = vld [vmem:[#allocation2 + $0x70] sm:$0xff]
      %v3070 = vld [vmem:[#allocation2 + $0x78] sm:$0xff]
      %v3071 = vld [vmem:[#allocation2 + $0x80] sm:$0xff]
      %v3072 = vld [vmem:[#allocation2 + $0x88] sm:$0xff]
      %v3073 = vld [vmem:[#allocation2 + $0x90] sm:$0xff]
      %v3074 = vld [vmem:[#allocation2 + $0x98] sm:$0xff]
      %v3075 = vld [vmem:[#allocation2 + $0xa0] sm:$0xff]
      %v3076 = vld [vmem:[#allocation2 + $0xa8] sm:$0xff]
      %v3077 = vld [vmem:[#allocation2 + $0xb0] sm:$0xff]
      %v3078 = vld [vmem:[#allocation2 + $0xb8] sm:$0xff]
      %v3079 = vld [vmem:[#allocation2 + $0xc0] sm:$0xff]
      %v3080 = vld [vmem:[#allocation2 + $0xc8] sm:$0xff]
      %v3081 = vld [vmem:[#allocation2 + $0xd0] sm:$0xff]
      %v3082 = vld [vmem:[#allocation2 + $0xd8] sm:$0xff]
      %v3083 = vld [vmem:[#allocation2 + $0xe0] sm:$0xff]
      %v3084 = vld [vmem:[#allocation2 + $0xe8] sm:$0xff]
      %v3085 = vld [vmem:[#allocation2 + $0xf0] sm:$0xff]
      %v3086 = vld [vmem:[#allocation2 + $0xf8] sm:$0xff]
      %v3087 = vld [vmem:[#allocation2 + $0x100] sm:$0xff]
      %v3088 = vld [vmem:[#allocation2 + $0x108] sm:$0xff]
      %v3089 = vld [vmem:[#allocation2 + $0x110] sm:$0xff]
      %v3090 = vld [vmem:[#allocation2 + $0x118] sm:$0xff]
      %v3091 = vld [vmem:[#allocation2 + $0x120] sm:$0xff]
      %v3092 = vld [vmem:[#allocation2 + $0x128] sm:$0xff]
      %v3093 = vld [vmem:[#allocation2 + $0x130] sm:$0xff]
      %v3094 = vld [vmem:[#allocation2 + $0x138] sm:$0xff]
      %v3095 = vld [vmem:[#allocation2 + $0x140] sm:$0xff]
      %v3096 = vld [vmem:[#allocation2 + $0x148] sm:$0xff]
      %v3097 = vld [vmem:[#allocation2 + $0x150] sm:$0xff]
      %v3098 = vld [vmem:[#allocation2 + $0x158] sm:$0xff]
      %v3099 = vld [vmem:[#allocation2 + $0x160] sm:$0xff]
      %v3100 = vld [vmem:[#allocation2 + $0x168] sm:$0xff]
      %v3101 = vld [vmem:[#allocation2 + $0x170] sm:$0xff]
      %v3102 = vld [vmem:[#allocation2 + $0x178] sm:$0xff]
      %v3103 = vld [vmem:[#allocation2 + $0x180] sm:$0xff]
      %v3104 = vld [vmem:[#allocation2 + $0x188] sm:$0xff]
      %v3105 = vld [vmem:[#allocation2 + $0x190] sm:$0xff]
      %v3106 = vld [vmem:[#allocation2 + $0x198] sm:$0xff]
      %v3107 = vld [vmem:[#allocation2 + $0x1a0] sm:$0xff]
      %v3108 = vld [vmem:[#allocation2 + $0x1a8] sm:$0xff]
      %v3109 = vld [vmem:[#allocation2 + $0x1b0] sm:$0xff]
      %v3110 = vld [vmem:[#allocation2 + $0x1b8] sm:$0xff]
      %v3111 = vld [vmem:[#allocation2 + $0x1c0] sm:$0xff]
      %v3112 = vld [vmem:[#allocation2 + $0x1c8] sm:$0xff]
      %v3113 = vld [vmem:[#allocation2 + $0x1d0] sm:$0xff]
      %v3114 = vld [vmem:[#allocation2 + $0x1d8] sm:$0xff]
      %v3115 = vld [vmem:[#allocation2 + $0x1e0] sm:$0xff]
      %v3116 = vld [vmem:[#allocation2 + $0x1e8] sm:$0xff]
      %v3117 = vld [vmem:[#allocation2 + $0x1f0] sm:$0xff]
      %v3118 = vld [vmem:[#allocation2 + $0x1f8] sm:$0xff]
      %v3119 = vld [vmem:[#allocation2 + $0x200] sm:$0xff]
      %v3120 = vld [vmem:[#allocation2 + $0x208] sm:$0xff]
      %v3121 = vld [vmem:[#allocation2 + $0x210] sm:$0xff]
      %v3122 = vld [vmem:[#allocation2 + $0x218] sm:$0xff]
      %v3123 = vld [vmem:[#allocation2 + $0x220] sm:$0xff]
      %v3124 = vld [vmem:[#allocation2 + $0x228] sm:$0xff]
      %v3125 = vld [vmem:[#allocation2 + $0x230] sm:$0xff]
      %v3126 = vld [vmem:[#allocation2 + $0x238] sm:$0xff]
      %s3127 = scalar_lea.vmem %s1, 20
      %v3128 = vld [vmem:[%s3127] sm:$0xf]
      %3129 = vrot.lane.b32.xlu0 %v324, 108
      %v3130 = vpop.permute.xlu0 %3129
      %3131 = vrot.lane.b32.xlu0 %v332, 108
      %v3132 = vpop.permute.xlu0 %3131
      %3133 = vrot.lane.b32.xlu0 %v331, 108
      %v3134 = vpop.permute.xlu0 %3133
      %vm3135 = vcmask 883712
      %v3136 = vsel %vm3135, %v3130, %v3132
      %v3137 = vsel %vm3135, %v3132, %v3134
      %3141 = vxpose.xlu0.c.b16.start [1/8] %v3136, 128
      %3142 = vxpose.xlu0.c.b16.cont [2/8] 0, 128
      %3143 = vxpose.xlu0.c.b16.cont [3/8] 0, 128
      %3144 = vxpose.xlu0.c.b16.cont [4/8] 0, 128
      %3145 = vxpose.xlu0.c.b16.cont [5/8] 0, 128
      %3146 = vxpose.xlu0.c.b16.cont [6/8] 0, 128
      %3147 = vxpose.xlu0.c.b16.cont [7/8] 0, 128
      %3148 = vxpose.xlu0.c.b16.end [8/8] 0, 128
      %v3149 = vpop.trf.xlu0
      %v3150 = vpop.trf.xlu0
      %v3151 = vpop.trf.xlu0
      %v3152 = vpop.trf.xlu0
      %v3153 = vpop.trf.xlu0
      %v3154 = vpop.trf.xlu0
      %v3155 = vpop.trf.xlu0
      %v3156 = vpop.trf.xlu0
      %3157 = vxpose.xlu0.c.b16.start [1/8] %v3137, 128
      %3158 = vxpose.xlu0.c.b16.cont [2/8] 0, 128
      %3159 = vxpose.xlu0.c.b16.cont [3/8] 0, 128
      %3160 = vxpose.xlu0.c.b16.cont [4/8] 0, 128
      %3161 = vxpose.xlu0.c.b16.cont [5/8] 0, 128
      %3162 = vxpose.xlu0.c.b16.cont [6/8] 0, 128
      %3163 = vxpose.xlu0.c.b16.cont [7/8] 0, 128
      %3164 = vxpose.xlu0.c.b16.end [8/8] 0, 128
      %v3165 = vpop.trf.xlu0
      %v3166 = vpop.trf.xlu0
      %v3167 = vpop.trf.xlu0
      %v3168 = vpop.trf.xlu0
      %v3169 = vpop.trf.xlu0
      %v3170 = vpop.trf.xlu0
      %v3171 = vpop.trf.xlu0
      %v3172 = vpop.trf.xlu0
      %3173 = vxpose.xlu0.c.b16.start [1/8] %v3134, 128
      %3174 = vxpose.xlu0.c.b16.cont [2/8] 0, 128
      %3175 = vxpose.xlu0.c.b16.cont [3/8] 0, 128
      %3176 = vxpose.xlu0.c.b16.cont [4/8] 0, 128
      %3177 = vxpose.xlu0.c.b16.cont [5/8] 0, 128
      %3178 = vxpose.xlu0.c.b16.cont [6/8] 0, 128
      %3179 = vxpose.xlu0.c.b16.cont [7/8] 0, 128
      %3180 = vxpose.xlu0.c.b16.end [8/8] 0, 128
      %v3181 = vpop.trf.xlu0
      %v3182 = vpop.trf.xlu0
      %v3183 = vpop.trf.xlu0
      %v3184 = vpop.trf.xlu0
      %v3185 = vpop.trf.xlu0
      %v3186 = vpop.trf.xlu0
      %v3187 = vpop.trf.xlu0
      %v3188 = vpop.trf.xlu0
      %v3191 = vunpack.c.l.s4 1983009808
      %v3192 = vunpack.c.0.s8 %v3191
      %v3193 = vlaneseq
      %v3194 = vshrl.u32 %v3193, 7
      %v3195 = vsub.s32 %v3192, %v3194
      %v3196 = vrot.slane %v3128, %v3195
      %v3197 = vcombine.high %v3196, %v3196
      %v3199 = vsel %vm393, %v3149, 0
      %v3202 = vsel %vm393, %v3150, 0
      %v3205 = vsel %vm393, %v3151, 0
      %v3208 = vsel %vm393, %v3152, 0
      %v3211 = vsel %vm393, %v3153, 0
      %v3214 = vsel %vm393, %v3154, 0
      %v3217 = vsel %vm393, %v3155, 0
      %v3220 = vsel %vm393, %v3156, 0
      %v3223 = vsel %vm393, %v3165, 0
      %v3226 = vsel %vm393, %v3166, 0
      %v3229 = vsel %vm393, %v3167, 0
      %v3232 = vsel %vm393, %v3168, 0
      %v3235 = vsel %vm393, %v3169, 0
      %v3238 = vsel %vm393, %v3170, 0
      %v3241 = vsel %vm393, %v3171, 0
      %v3244 = vsel %vm393, %v3172, 0
      %v3247 = vsel %vm393, %v3181, 0
      %v3250 = vsel %vm393, %v3182, 0
      %v3253 = vand.u32 %v3196, %v451
      %v3256 = vand.u32 %v3197, %v451
      %3258 = vmatprep.subr.bf16.mxu0 %v3256
      %3259 = vmatpush1.bf16.msra.mxu0 %v3253
      %3260 = vmatprep.subr.bf16.mxu0 0
      %3261 = vmatpush1.bf16.msra.mxu0 0
      %3262 = vmatprep.subr.bf16.mxu0 0
      %3263 = vmatpush1.bf16.msra.mxu0 0
      %3264 = vmatprep.subr.bf16.mxu0 0
      %3265 = vmatpush1.bf16.msra.mxu0 0
      %3266 = vmatprep.subr.bf16.mxu0 0
      %3267 = vmatpush1.bf16.msra.mxu0 0
      %3268 = vmatprep.subr.bf16.mxu0 0
      %3269 = vmatpush1.bf16.msra.mxu0 0
      %3270 = vmatprep.subr.bf16.mxu0 0
      %3271 = vmatpush1.bf16.msra.mxu0 0
      %3272 = vmatprep.subr.bf16.mxu0 0
      %3273 = vmatpush1.bf16.msra.mxu0 0
      %3274 = vmatprep.subr.bf16.mxu0 0
      %3275 = vmatpush1.bf16.msra.mxu0 0
      %3276 = vmatprep.subr.bf16.mxu0 0
      %3277 = vmatpush1.bf16.msra.mxu0 0
      %3278 = vmatprep.subr.bf16.mxu0 0
      %3279 = vmatpush1.bf16.msra.mxu0 0
      %3280 = vmatprep.subr.bf16.mxu0 0
      %3281 = vmatpush1.bf16.msra.mxu0 0
      %3282 = vmatprep.subr.bf16.mxu0 0
      %3283 = vmatpush1.bf16.msra.mxu0 0
      %3284 = vmatprep.subr.bf16.mxu0 0
      %3285 = vmatpush1.bf16.msra.mxu0 0
      %3286 = vmatprep.subr.bf16.mxu0 0
      %3287 = vmatpush1.bf16.msra.mxu0 0
      %3288 = vmatprep.subr.bf16.mxu0 0
      %3289 = vmatpush1.bf16.msra.mxu0 0
      %3290 = vmatprep.mubr.bf16.mxu0 0
      %3291 = vmatmul.mubr.bf16.gmra.mrb[0].mxu0 %v3199
      %v3292 = vpop.f32.mrb[0].mxu0
      %v3293 = vadd.f32 0.0, %v3292
      %v3294 = vpop.f32.mrb[0].mxu0
      %v3295 = vadd.f32 0.0, %v3294
      %v3296 = vpop.f32.mrb[0].mxu0
      %v3297 = vadd.f32 0.0, %v3296
      %v3298 = vpop.f32.mrb[0].mxu0
      %v3299 = vadd.f32 0.0, %v3298
      %3300 = vmatprep.mubr.bf16.mxu0 0
      %3301 = vmatmul.mubr.bf16.gmra.mrb[0].mxu0 %v3202
      %v3302 = vpop.f32.mrb[0].mxu0
      %v3303 = vadd.f32 0.0, %v3302
      %v3304 = vpop.f32.mrb[0].mxu0
      %v3305 = vadd.f32 0.0, %v3304
      %v3306 = vpop.f32.mrb[0].mxu0
      %v3307 = vadd.f32 0.0, %v3306
      %v3308 = vpop.f32.mrb[0].mxu0
      %v3309 = vadd.f32 0.0, %v3308
      %3310 = vmatprep.mubr.bf16.mxu0 0
      %3311 = vmatmul.mubr.bf16.gmra.mrb[0].mxu0 %v3205
      %v3312 = vpop.f32.mrb[0].mxu0
      %v3313 = vadd.f32 0.0, %v3312
      %v3314 = vpop.f32.mrb[0].mxu0
      %v3315 = vadd.f32 0.0, %v3314
      %v3316 = vpop.f32.mrb[0].mxu0
      %v3317 = vadd.f32 0.0, %v3316
      %v3318 = vpop.f32.mrb[0].mxu0
      %v3319 = vadd.f32 0.0, %v3318
      %3320 = vmatprep.mubr.bf16.mxu0 0
      %3321 = vmatmul.mubr.bf16.gmra.mrb[0].mxu0 %v3208
      %v3322 = vpop.f32.mrb[0].mxu0
      %v3323 = vadd.f32 0.0, %v3322
      %v3324 = vpop.f32.mrb[0].mxu0
      %v3325 = vadd.f32 0.0, %v3324
      %v3326 = vpop.f32.mrb[0].mxu0
      %v3327 = vadd.f32 0.0, %v3326
      %v3328 = vpop.f32.mrb[0].mxu0
      %v3329 = vadd.f32 0.0, %v3328
      %3330 = vmatprep.mubr.bf16.mxu0 0
      %3331 = vmatmul.mubr.bf16.gmra.mrb[0].mxu0 %v3211
      %v3332 = vpop.f32.mrb[0].mxu0
      %v3333 = vadd.f32 0.0, %v3332
      %v3334 = vpop.f32.mrb[0].mxu0
      %v3335 = vadd.f32 0.0, %v3334
      %v3336 = vpop.f32.mrb[0].mxu0
      %v3337 = vadd.f32 0.0, %v3336
      %v3338 = vpop.f32.mrb[0].mxu0
      %v3339 = vadd.f32 0.0, %v3338
      %3340 = vmatprep.mubr.bf16.mxu0 0
      %3341 = vmatmul.mubr.bf16.gmra.mrb[0].mxu0 %v3214
      %v3342 = vpop.f32.mrb[0].mxu0
      %v3343 = vadd.f32 0.0, %v3342
      %v3344 = vpop.f32.mrb[0].mxu0
      %v3345 = vadd.f32 0.0, %v3344
      %v3346 = vpop.f32.mrb[0].mxu0
      %v3347 = vadd.f32 0.0, %v3346
      %v3348 = vpop.f32.mrb[0].mxu0
      %v3349 = vadd.f32 0.0, %v3348
      %3350 = vmatprep.mubr.bf16.mxu0 0
      %3351 = vmatmul.mubr.bf16.gmra.mrb[0].mxu0 %v3217
      %v3352 = vpop.f32.mrb[0].mxu0
      %v3353 = vadd.f32 0.0, %v3352
      %v3354 = vpop.f32.mrb[0].mxu0
      %v3355 = vadd.f32 0.0, %v3354
      %v3356 = vpop.f32.mrb[0].mxu0
      %v3357 = vadd.f32 0.0, %v3356
      %v3358 = vpop.f32.mrb[0].mxu0
      %v3359 = vadd.f32 0.0, %v3358
      %3360 = vmatprep.mubr.bf16.mxu0 0
      %3361 = vmatmul.mubr.bf16.gmra.mrb[0].mxu0 %v3220
      %v3362 = vpop.f32.mrb[0].mxu0
      %v3363 = vadd.f32 0.0, %v3362
      %v3364 = vpop.f32.mrb[0].mxu0
      %v3365 = vadd.f32 0.0, %v3364
      %v3366 = vpop.f32.mrb[0].mxu0
      %v3367 = vadd.f32 0.0, %v3366
      %v3368 = vpop.f32.mrb[0].mxu0
      %v3369 = vadd.f32 0.0, %v3368
      %3370 = vmatprep.mubr.bf16.mxu0 0
      %3371 = vmatmul.mubr.bf16.gmra.mrb[0].mxu0 %v3223
      %v3372 = vpop.f32.mrb[0].mxu0
      %v3373 = vadd.f32 0.0, %v3372
      %v3374 = vpop.f32.mrb[0].mxu0
      %v3375 = vadd.f32 0.0, %v3374
      %v3376 = vpop.f32.mrb[0].mxu0
      %v3377 = vadd.f32 0.0, %v3376
      %v3378 = vpop.f32.mrb[0].mxu0
      %v3379 = vadd.f32 0.0, %v3378
      %3380 = vmatprep.mubr.bf16.mxu0 0
      %3381 = vmatmul.mubr.bf16.gmra.mrb[0].mxu0 %v3226
      %v3382 = vpop.f32.mrb[0].mxu0
      %v3383 = vadd.f32 0.0, %v3382
      %v3384 = vpop.f32.mrb[0].mxu0
      %v3385 = vadd.f32 0.0, %v3384
      %v3386 = vpop.f32.mrb[0].mxu0
      %v3387 = vadd.f32 0.0, %v3386
      %v3388 = vpop.f32.mrb[0].mxu0
      %v3389 = vadd.f32 0.0, %v3388
      %3390 = vmatprep.mubr.bf16.mxu0 0
      %3391 = vmatmul.mubr.bf16.gmra.mrb[0].mxu0 %v3229
      %v3392 = vpop.f32.mrb[0].mxu0
      %v3393 = vadd.f32 0.0, %v3392
      %v3394 = vpop.f32.mrb[0].mxu0
      %v3395 = vadd.f32 0.0, %v3394
      %v3396 = vpop.f32.mrb[0].mxu0
      %v3397 = vadd.f32 0.0, %v3396
      %v3398 = vpop.f32.mrb[0].mxu0
      %v3399 = vadd.f32 0.0, %v3398
      %3400 = vmatprep.mubr.bf16.mxu0 0
      %3401 = vmatmul.mubr.bf16.gmra.mrb[0].mxu0 %v3232
      %v3402 = vpop.f32.mrb[0].mxu0
      %v3403 = vadd.f32 0.0, %v3402
      %v3404 = vpop.f32.mrb[0].mxu0
      %v3405 = vadd.f32 0.0, %v3404
      %v3406 = vpop.f32.mrb[0].mxu0
      %v3407 = vadd.f32 0.0, %v3406
      %v3408 = vpop.f32.mrb[0].mxu0
      %v3409 = vadd.f32 0.0, %v3408
      %3410 = vmatprep.mubr.bf16.mxu0 0
      %3411 = vmatmul.mubr.bf16.gmra.mrb[0].mxu0 %v3235
      %v3412 = vpop.f32.mrb[0].mxu0
      %v3413 = vadd.f32 0.0, %v3412
      %v3414 = vpop.f32.mrb[0].mxu0
      %v3415 = vadd.f32 0.0, %v3414
      %v3416 = vpop.f32.mrb[0].mxu0
      %v3417 = vadd.f32 0.0, %v3416
      %v3418 = vpop.f32.mrb[0].mxu0
      %v3419 = vadd.f32 0.0, %v3418
      %3420 = vmatprep.mubr.bf16.mxu0 0
      %3421 = vmatmul.mubr.bf16.gmra.mrb[0].mxu0 %v3238
      %v3422 = vpop.f32.mrb[0].mxu0
      %v3423 = vadd.f32 0.0, %v3422
      %v3424 = vpop.f32.mrb[0].mxu0
      %v3425 = vadd.f32 0.0, %v3424
      %v3426 = vpop.f32.mrb[0].mxu0
      %v3427 = vadd.f32 0.0, %v3426
      %v3428 = vpop.f32.mrb[0].mxu0
      %v3429 = vadd.f32 0.0, %v3428
      %3430 = vmatprep.mubr.bf16.mxu0 0
      %3431 = vmatmul.mubr.bf16.gmra.mrb[0].mxu0 %v3241
      %v3432 = vpop.f32.mrb[0].mxu0
      %v3433 = vadd.f32 0.0, %v3432
      %v3434 = vpop.f32.mrb[0].mxu0
      %v3435 = vadd.f32 0.0, %v3434
      %v3436 = vpop.f32.mrb[0].mxu0
      %v3437 = vadd.f32 0.0, %v3436
      %v3438 = vpop.f32.mrb[0].mxu0
      %v3439 = vadd.f32 0.0, %v3438
      %3440 = vmatprep.mubr.bf16.mxu0 0
      %3441 = vmatmul.mubr.bf16.gmra.mrb[0].mxu0 %v3244
      %v3442 = vpop.f32.mrb[0].mxu0
      %v3443 = vadd.f32 0.0, %v3442
      %v3444 = vpop.f32.mrb[0].mxu0
      %v3445 = vadd.f32 0.0, %v3444
      %v3446 = vpop.f32.mrb[0].mxu0
      %v3447 = vadd.f32 0.0, %v3446
      %v3448 = vpop.f32.mrb[0].mxu0
      %v3449 = vadd.f32 0.0, %v3448
      %3450 = vmatprep.mubr.bf16.mxu0 0
      %3451 = vmatmul.mubr.bf16.gmra.mrb[0].mxu0 %v3247
      %v3452 = vpop.f32.mrb[0].mxu0
      %v3453 = vadd.f32 0.0, %v3452
      %v3454 = vpop.f32.mrb[0].mxu0
      %v3455 = vadd.f32 0.0, %v3454
      %v3456 = vpop.f32.mrb[0].mxu0
      %v3457 = vadd.f32 0.0, %v3456
      %v3458 = vpop.f32.mrb[0].mxu0
      %v3459 = vadd.f32 0.0, %v3458
      %3460 = vmatprep.mubr.bf16.mxu0 0
      %3461 = vmatmul.mubr.bf16.gmra.mrb[0].mxu0 %v3250
      %v3462 = vpop.f32.mrb[0].mxu0
      %v3463 = vadd.f32 0.0, %v3462
      %v3464 = vpop.f32.mrb[0].mxu0
      %v3465 = vadd.f32 0.0, %v3464
      %v3466 = vpop.f32.mrb[0].mxu0
      %v3467 = vadd.f32 0.0, %v3466
      %v3468 = vpop.f32.mrb[0].mxu0
      %v3469 = vadd.f32 0.0, %v3468
      %3470 = vdwg.mxu0
      %v3471 = vadd.f32 %v3055, %v3293
      %v3472 = vadd.f32 %v3056, %v3295
      %v3473 = vadd.f32 %v3057, %v3297
      %v3474 = vadd.f32 %v3058, %v3299
      %v3475 = vadd.f32 %v3059, %v3303
      %v3476 = vadd.f32 %v3060, %v3305
      %v3477 = vadd.f32 %v3061, %v3307
      %v3478 = vadd.f32 %v3062, %v3309
      %v3479 = vadd.f32 %v3063, %v3313
      %v3480 = vadd.f32 %v3064, %v3315
      %v3481 = vadd.f32 %v3065, %v3317
      %v3482 = vadd.f32 %v3066, %v3319
      %v3483 = vadd.f32 %v3067, %v3323
      %v3484 = vadd.f32 %v3068, %v3325
      %v3485 = vadd.f32 %v3069, %v3327
      %v3486 = vadd.f32 %v3070, %v3329
      %v3487 = vadd.f32 %v3071, %v3333
      %v3488 = vadd.f32 %v3072, %v3335
      %v3489 = vadd.f32 %v3073, %v3337
      %v3490 = vadd.f32 %v3074, %v3339
      %v3491 = vadd.f32 %v3075, %v3343
      %v3492 = vadd.f32 %v3076, %v3345
      %v3493 = vadd.f32 %v3077, %v3347
      %v3494 = vadd.f32 %v3078, %v3349
      %v3495 = vadd.f32 %v3079, %v3353
      %v3496 = vadd.f32 %v3080, %v3355
      %v3497 = vadd.f32 %v3081, %v3357
      %v3498 = vadd.f32 %v3082, %v3359
      %v3499 = vadd.f32 %v3083, %v3363
      %v3500 = vadd.f32 %v3084, %v3365
      %v3501 = vadd.f32 %v3085, %v3367
      %v3502 = vadd.f32 %v3086, %v3369
      %v3503 = vadd.f32 %v3087, %v3373
      %v3504 = vadd.f32 %v3088, %v3375
      %v3505 = vadd.f32 %v3089, %v3377
      %v3506 = vadd.f32 %v3090, %v3379
      %v3507 = vadd.f32 %v3091, %v3383
      %v3508 = vadd.f32 %v3092, %v3385
      %v3509 = vadd.f32 %v3093, %v3387
      %v3510 = vadd.f32 %v3094, %v3389
      %v3511 = vadd.f32 %v3095, %v3393
      %v3512 = vadd.f32 %v3096, %v3395
      %v3513 = vadd.f32 %v3097, %v3397
      %v3514 = vadd.f32 %v3098, %v3399
      %v3515 = vadd.f32 %v3099, %v3403
      %v3516 = vadd.f32 %v3100, %v3405
      %v3517 = vadd.f32 %v3101, %v3407
      %v3518 = vadd.f32 %v3102, %v3409
      %v3519 = vadd.f32 %v3103, %v3413
      %v3520 = vadd.f32 %v3104, %v3415
      %v3521 = vadd.f32 %v3105, %v3417
      %v3522 = vadd.f32 %v3106, %v3419
      %v3523 = vadd.f32 %v3107, %v3423
      %v3524 = vadd.f32 %v3108, %v3425
      %v3525 = vadd.f32 %v3109, %v3427
      %v3526 = vadd.f32 %v3110, %v3429
      %v3527 = vadd.f32 %v3111, %v3433
      %v3528 = vadd.f32 %v3112, %v3435
      %v3529 = vadd.f32 %v3113, %v3437
      %v3530 = vadd.f32 %v3114, %v3439
      %v3531 = vadd.f32 %v3115, %v3443
      %v3532 = vadd.f32 %v3116, %v3445
      %v3533 = vadd.f32 %v3117, %v3447
      %v3534 = vadd.f32 %v3118, %v3449
      %v3535 = vadd.f32 %v3119, %v3453
      %v3536 = vadd.f32 %v3120, %v3455
      %v3537 = vadd.f32 %v3121, %v3457
      %v3538 = vadd.f32 %v3122, %v3459
      %v3539 = vadd.f32 %v3123, %v3463
      %v3540 = vadd.f32 %v3124, %v3465
      %v3541 = vadd.f32 %v3125, %v3467
      %v3542 = vadd.f32 %v3126, %v3469
      %3543 = vst [vmem:[#allocation2] sm:$0xff] %v3471
      %3544 = vst [vmem:[#allocation2 + $0x8] sm:$0xff] %v3472
      %3545 = vst [vmem:[#allocation2 + $0x10] sm:$0xff] %v3473
      %3546 = vst [vmem:[#allocation2 + $0x18] sm:$0xff] %v3474
      %3547 = vst [vmem:[#allocation2 + $0x20] sm:$0xff] %v3475
      %3548 = vst [vmem:[#allocation2 + $0x28] sm:$0xff] %v3476
      %3549 = vst [vmem:[#allocation2 + $0x30] sm:$0xff] %v3477
      %3550 = vst [vmem:[#allocation2 + $0x38] sm:$0xff] %v3478
      %3551 = vst [vmem:[#allocation2 + $0x40] sm:$0xff] %v3479
      %3552 = vst [vmem:[#allocation2 + $0x48] sm:$0xff] %v3480
      %3553 = vst [vmem:[#allocation2 + $0x50] sm:$0xff] %v3481
      %3554 = vst [vmem:[#allocation2 + $0x58] sm:$0xff] %v3482
      %3555 = vst [vmem:[#allocation2 + $0x60] sm:$0xff] %v3483
      %3556 = vst [vmem:[#allocation2 + $0x68] sm:$0xff] %v3484
      %3557 = vst [vmem:[#allocation2 + $0x70] sm:$0xff] %v3485
      %3558 = vst [vmem:[#allocation2 + $0x78] sm:$0xff] %v3486
      %3559 = vst [vmem:[#allocation2 + $0x80] sm:$0xff] %v3487
      %3560 = vst [vmem:[#allocation2 + $0x88] sm:$0xff] %v3488
      %3561 = vst [vmem:[#allocation2 + $0x90] sm:$0xff] %v3489
      %3562 = vst [vmem:[#allocation2 + $0x98] sm:$0xff] %v3490
      %3563 = vst [vmem:[#allocation2 + $0xa0] sm:$0xff] %v3491
      %3564 = vst [vmem:[#allocation2 + $0xa8] sm:$0xff] %v3492
      %3565 = vst [vmem:[#allocation2 + $0xb0] sm:$0xff] %v3493
      %3566 = vst [vmem:[#allocation2 + $0xb8] sm:$0xff] %v3494
      %3567 = vst [vmem:[#allocation2 + $0xc0] sm:$0xff] %v3495
      %3568 = vst [vmem:[#allocation2 + $0xc8] sm:$0xff] %v3496
      %3569 = vst [vmem:[#allocation2 + $0xd0] sm:$0xff] %v3497
      %3570 = vst [vmem:[#allocation2 + $0xd8] sm:$0xff] %v3498
      %3571 = vst [vmem:[#allocation2 + $0xe0] sm:$0xff] %v3499
      %3572 = vst [vmem:[#allocation2 + $0xe8] sm:$0xff] %v3500
      %3573 = vst [vmem:[#allocation2 + $0xf0] sm:$0xff] %v3501
      %3574 = vst [vmem:[#allocation2 + $0xf8] sm:$0xff] %v3502
      %3575 = vst [vmem:[#allocation2 + $0x100] sm:$0xff] %v3503
      %3576 = vst [vmem:[#allocation2 + $0x108] sm:$0xff] %v3504
      %3577 = vst [vmem:[#allocation2 + $0x110] sm:$0xff] %v3505
      %3578 = vst [vmem:[#allocation2 + $0x118] sm:$0xff] %v3506
      %3579 = vst [vmem:[#allocation2 + $0x120] sm:$0xff] %v3507
      %3580 = vst [vmem:[#allocation2 + $0x128] sm:$0xff] %v3508
      %3581 = vst [vmem:[#allocation2 + $0x130] sm:$0xff] %v3509
      %3582 = vst [vmem:[#allocation2 + $0x138] sm:$0xff] %v3510
      %3583 = vst [vmem:[#allocation2 + $0x140] sm:$0xff] %v3511
      %3584 = vst [vmem:[#allocation2 + $0x148] sm:$0xff] %v3512
      %3585 = vst [vmem:[#allocation2 + $0x150] sm:$0xff] %v3513
      %3586 = vst [vmem:[#allocation2 + $0x158] sm:$0xff] %v3514
      %3587 = vst [vmem:[#allocation2 + $0x160] sm:$0xff] %v3515
      %3588 = vst [vmem:[#allocation2 + $0x168] sm:$0xff] %v3516
      %3589 = vst [vmem:[#allocation2 + $0x170] sm:$0xff] %v3517
      %3590 = vst [vmem:[#allocation2 + $0x178] sm:$0xff] %v3518
      %3591 = vst [vmem:[#allocation2 + $0x180] sm:$0xff] %v3519
      %3592 = vst [vmem:[#allocation2 + $0x188] sm:$0xff] %v3520
      %3593 = vst [vmem:[#allocation2 + $0x190] sm:$0xff] %v3521
      %3594 = vst [vmem:[#allocation2 + $0x198] sm:$0xff] %v3522
      %3595 = vst [vmem:[#allocation2 + $0x1a0] sm:$0xff] %v3523
      %3596 = vst [vmem:[#allocation2 + $0x1a8] sm:$0xff] %v3524
      %3597 = vst [vmem:[#allocation2 + $0x1b0] sm:$0xff] %v3525
      %3598 = vst [vmem:[#allocation2 + $0x1b8] sm:$0xff] %v3526
      %3599 = vst [vmem:[#allocation2 + $0x1c0] sm:$0xff] %v3527
      %3600 = vst [vmem:[#allocation2 + $0x1c8] sm:$0xff] %v3528
      %3601 = vst [vmem:[#allocation2 + $0x1d0] sm:$0xff] %v3529
      %3602 = vst [vmem:[#allocation2 + $0x1d8] sm:$0xff] %v3530
      %3603 = vst [vmem:[#allocation2 + $0x1e0] sm:$0xff] %v3531
      %3604 = vst [vmem:[#allocation2 + $0x1e8] sm:$0xff] %v3532
      %3605 = vst [vmem:[#allocation2 + $0x1f0] sm:$0xff] %v3533
      %3606 = vst [vmem:[#allocation2 + $0x1f8] sm:$0xff] %v3534
      %3607 = vst [vmem:[#allocation2 + $0x200] sm:$0xff] %v3535
      %3608 = vst [vmem:[#allocation2 + $0x208] sm:$0xff] %v3536
      %3609 = vst [vmem:[#allocation2 + $0x210] sm:$0xff] %v3537
      %3610 = vst [vmem:[#allocation2 + $0x218] sm:$0xff] %v3538
      %3611 = vst [vmem:[#allocation2 + $0x220] sm:$0xff] %v3539
      %3612 = vst [vmem:[#allocation2 + $0x228] sm:$0xff] %v3540
      %3613 = vst [vmem:[#allocation2 + $0x230] sm:$0xff] %v3541
      %3614 = vst [vmem:[#allocation2 + $0x238] sm:$0xff] %v3542
      %v3615 = vld [vmem:[#allocation2] sm:$0xff]
      %v3616 = vld [vmem:[#allocation2 + $0x8] sm:$0xff]
      %v3617 = vld [vmem:[#allocation2 + $0x10] sm:$0xff]
      %v3618 = vld [vmem:[#allocation2 + $0x18] sm:$0xff]
      %v3619 = vld [vmem:[#allocation2 + $0x20] sm:$0xff]
      %v3620 = vld [vmem:[#allocation2 + $0x28] sm:$0xff]
      %v3621 = vld [vmem:[#allocation2 + $0x30] sm:$0xff]
      %v3622 = vld [vmem:[#allocation2 + $0x38] sm:$0xff]
      %v3623 = vld [vmem:[#allocation2 + $0x40] sm:$0xff]
      %v3624 = vld [vmem:[#allocation2 + $0x48] sm:$0xff]
      %v3625 = vld [vmem:[#allocation2 + $0x50] sm:$0xff]
      %v3626 = vld [vmem:[#allocation2 + $0x58] sm:$0xff]
      %v3627 = vld [vmem:[#allocation2 + $0x60] sm:$0xff]
      %v3628 = vld [vmem:[#allocation2 + $0x68] sm:$0xff]
      %v3629 = vld [vmem:[#allocation2 + $0x70] sm:$0xff]
      %v3630 = vld [vmem:[#allocation2 + $0x78] sm:$0xff]
      %v3631 = vld [vmem:[#allocation2 + $0x80] sm:$0xff]
      %v3632 = vld [vmem:[#allocation2 + $0x88] sm:$0xff]
      %v3633 = vld [vmem:[#allocation2 + $0x90] sm:$0xff]
      %v3634 = vld [vmem:[#allocation2 + $0x98] sm:$0xff]
      %v3635 = vld [vmem:[#allocation2 + $0xa0] sm:$0xff]
      %v3636 = vld [vmem:[#allocation2 + $0xa8] sm:$0xff]
      %v3637 = vld [vmem:[#allocation2 + $0xb0] sm:$0xff]
      %v3638 = vld [vmem:[#allocation2 + $0xb8] sm:$0xff]
      %v3639 = vld [vmem:[#allocation2 + $0xc0] sm:$0xff]
      %v3640 = vld [vmem:[#allocation2 + $0xc8] sm:$0xff]
      %v3641 = vld [vmem:[#allocation2 + $0xd0] sm:$0xff]
      %v3642 = vld [vmem:[#allocation2 + $0xd8] sm:$0xff]
      %v3643 = vld [vmem:[#allocation2 + $0xe0] sm:$0xff]
      %v3644 = vld [vmem:[#allocation2 + $0xe8] sm:$0xff]
      %v3645 = vld [vmem:[#allocation2 + $0xf0] sm:$0xff]
      %v3646 = vld [vmem:[#allocation2 + $0xf8] sm:$0xff]
      %v3647 = vld [vmem:[#allocation2 + $0x100] sm:$0xff]
      %v3648 = vld [vmem:[#allocation2 + $0x108] sm:$0xff]
      %v3649 = vld [vmem:[#allocation2 + $0x110] sm:$0xff]
      %v3650 = vld [vmem:[#allocation2 + $0x118] sm:$0xff]
      %v3651 = vld [vmem:[#allocation2 + $0x120] sm:$0xff]
      %v3652 = vld [vmem:[#allocation2 + $0x128] sm:$0xff]
      %v3653 = vld [vmem:[#allocation2 + $0x130] sm:$0xff]
      %v3654 = vld [vmem:[#allocation2 + $0x138] sm:$0xff]
      %v3655 = vld [vmem:[#allocation2 + $0x140] sm:$0xff]
      %v3656 = vld [vmem:[#allocation2 + $0x148] sm:$0xff]
      %v3657 = vld [vmem:[#allocation2 + $0x150] sm:$0xff]
      %v3658 = vld [vmem:[#allocation2 + $0x158] sm:$0xff]
      %v3659 = vld [vmem:[#allocation2 + $0x160] sm:$0xff]
      %v3660 = vld [vmem:[#allocation2 + $0x168] sm:$0xff]
      %v3661 = vld [vmem:[#allocation2 + $0x170] sm:$0xff]
      %v3662 = vld [vmem:[#allocation2 + $0x178] sm:$0xff]
      %v3663 = vld [vmem:[#allocation2 + $0x180] sm:$0xff]
      %v3664 = vld [vmem:[#allocation2 + $0x188] sm:$0xff]
      %v3665 = vld [vmem:[#allocation2 + $0x190] sm:$0xff]
      %v3666 = vld [vmem:[#allocation2 + $0x198] sm:$0xff]
      %v3667 = vld [vmem:[#allocation2 + $0x1a0] sm:$0xff]
      %v3668 = vld [vmem:[#allocation2 + $0x1a8] sm:$0xff]
      %v3669 = vld [vmem:[#allocation2 + $0x1b0] sm:$0xff]
      %v3670 = vld [vmem:[#allocation2 + $0x1b8] sm:$0xff]
      %v3671 = vld [vmem:[#allocation2 + $0x1c0] sm:$0xff]
      %v3672 = vld [vmem:[#allocation2 + $0x1c8] sm:$0xff]
      %v3673 = vld [vmem:[#allocation2 + $0x1d0] sm:$0xff]
      %v3674 = vld [vmem:[#allocation2 + $0x1d8] sm:$0xff]
      %v3675 = vld [vmem:[#allocation2 + $0x1e0] sm:$0xff]
      %v3676 = vld [vmem:[#allocation2 + $0x1e8] sm:$0xff]
      %v3677 = vld [vmem:[#allocation2 + $0x1f0] sm:$0xff]
      %v3678 = vld [vmem:[#allocation2 + $0x1f8] sm:$0xff]
      %v3679 = vld [vmem:[#allocation2 + $0x200] sm:$0xff]
      %v3680 = vld [vmem:[#allocation2 + $0x208] sm:$0xff]
      %v3681 = vld [vmem:[#allocation2 + $0x210] sm:$0xff]
      %v3682 = vld [vmem:[#allocation2 + $0x218] sm:$0xff]
      %v3683 = vld [vmem:[#allocation2 + $0x220] sm:$0xff]
      %v3684 = vld [vmem:[#allocation2 + $0x228] sm:$0xff]
      %v3685 = vld [vmem:[#allocation2 + $0x230] sm:$0xff]
      %v3686 = vld [vmem:[#allocation2 + $0x238] sm:$0xff]
      %s3687 = scalar_lea.vmem %s1, 24
      %v3688 = vld [vmem:[%s3687] sm:$0xf]
      %3689 = vrot.lane.b32.xlu0 %v324, 92
      %v3690 = vpop.permute.xlu0 %3689
      %3691 = vrot.lane.b32.xlu0 %v332, 92
      %v3692 = vpop.permute.xlu0 %3691
      %3693 = vrot.lane.b32.xlu0 %v331, 92
      %v3694 = vpop.permute.xlu0 %3693
      %vm3695 = vcmask 752640
      %v3696 = vsel %vm3695, %v3690, %v3692
      %v3697 = vsel %vm3695, %v3692, %v3694
      %3701 = vxpose.xlu0.c.b16.start [1/8] %v3696, 128
      %3702 = vxpose.xlu0.c.b16.cont [2/8] 0, 128
      %3703 = vxpose.xlu0.c.b16.cont [3/8] 0, 128
      %3704 = vxpose.xlu0.c.b16.cont [4/8] 0, 128
      %3705 = vxpose.xlu0.c.b16.cont [5/8] 0, 128
      %3706 = vxpose.xlu0.c.b16.cont [6/8] 0, 128
      %3707 = vxpose.xlu0.c.b16.cont [7/8] 0, 128
      %3708 = vxpose.xlu0.c.b16.end [8/8] 0, 128
      %v3709 = vpop.trf.xlu0
      %v3710 = vpop.trf.xlu0
      %v3711 = vpop.trf.xlu0
      %v3712 = vpop.trf.xlu0
      %v3713 = vpop.trf.xlu0
      %v3714 = vpop.trf.xlu0
      %v3715 = vpop.trf.xlu0
      %v3716 = vpop.trf.xlu0
      %3717 = vxpose.xlu0.c.b16.start [1/8] %v3697, 128
      %3718 = vxpose.xlu0.c.b16.cont [2/8] 0, 128
      %3719 = vxpose.xlu0.c.b16.cont [3/8] 0, 128
      %3720 = vxpose.xlu0.c.b16.cont [4/8] 0, 128
      %3721 = vxpose.xlu0.c.b16.cont [5/8] 0, 128
      %3722 = vxpose.xlu0.c.b16.cont [6/8] 0, 128
      %3723 = vxpose.xlu0.c.b16.cont [7/8] 0, 128
      %3724 = vxpose.xlu0.c.b16.end [8/8] 0, 128
      %v3725 = vpop.trf.xlu0
      %v3726 = vpop.trf.xlu0
      %v3727 = vpop.trf.xlu0
      %v3728 = vpop.trf.xlu0
      %v3729 = vpop.trf.xlu0
      %v3730 = vpop.trf.xlu0
      %v3731 = vpop.trf.xlu0
      %v3732 = vpop.trf.xlu0
      %3733 = vxpose.xlu0.c.b16.start [1/8] %v3694, 128
      %3734 = vxpose.xlu0.c.b16.cont [2/8] 0, 128
      %3735 = vxpose.xlu0.c.b16.cont [3/8] 0, 128
      %3736 = vxpose.xlu0.c.b16.cont [4/8] 0, 128
      %3737 = vxpose.xlu0.c.b16.cont [5/8] 0, 128
      %3738 = vxpose.xlu0.c.b16.cont [6/8] 0, 128
      %3739 = vxpose.xlu0.c.b16.cont [7/8] 0, 128
      %3740 = vxpose.xlu0.c.b16.end [8/8] 0, 128
      %v3741 = vpop.trf.xlu0
      %v3742 = vpop.trf.xlu0
      %v3743 = vpop.trf.xlu0
      %v3744 = vpop.trf.xlu0
      %v3745 = vpop.trf.xlu0
      %v3746 = vpop.trf.xlu0
      %v3747 = vpop.trf.xlu0
      %v3748 = vpop.trf.xlu0
      %v3751 = vunpack.c.l.s4 1983009808
      %v3752 = vunpack.c.0.s8 %v3751
      %v3753 = vlaneseq
      %v3754 = vshrl.u32 %v3753, 7
      %v3755 = vsub.s32 %v3752, %v3754
      %v3756 = vrot.slane %v3688, %v3755
      %v3757 = vcombine.high %v3756, %v3756
      %v3759 = vsel %vm393, %v3709, 0
      %v3762 = vsel %vm393, %v3710, 0
      %v3765 = vsel %vm393, %v3711, 0
      %v3768 = vsel %vm393, %v3712, 0
      %v3771 = vsel %vm393, %v3713, 0
      %v3774 = vsel %vm393, %v3714, 0
      %v3777 = vsel %vm393, %v3715, 0
      %v3780 = vsel %vm393, %v3716, 0
      %v3783 = vsel %vm393, %v3725, 0
      %v3786 = vsel %vm393, %v3726, 0
      %v3789 = vsel %vm393, %v3727, 0
      %v3792 = vsel %vm393, %v3728, 0
      %v3795 = vsel %vm393, %v3729, 0
      %v3798 = vsel %vm393, %v3730, 0
      %v3801 = vsel %vm393, %v3731, 0
      %v3804 = vsel %vm393, %v3732, 0
      %v3807 = vsel %vm393, %v3741, 0
      %v3810 = vsel %vm393, %v3742, 0
      %v3813 = vand.u32 %v3756, %v451
      %v3816 = vand.u32 %v3757, %v451
      %3818 = vmatprep.subr.bf16.mxu0 %v3816
      %3819 = vmatpush1.bf16.msra.mxu0 %v3813
      %3820 = vmatprep.subr.bf16.mxu0 0
      %3821 = vmatpush1.bf16.msra.mxu0 0
      %3822 = vmatprep.subr.bf16.mxu0 0
      %3823 = vmatpush1.bf16.msra.mxu0 0
      %3824 = vmatprep.subr.bf16.mxu0 0
      %3825 = vmatpush1.bf16.msra.mxu0 0
      %3826 = vmatprep.subr.bf16.mxu0 0
      %3827 = vmatpush1.bf16.msra.mxu0 0
      %3828 = vmatprep.subr.bf16.mxu0 0
      %3829 = vmatpush1.bf16.msra.mxu0 0
      %3830 = vmatprep.subr.bf16.mxu0 0
      %3831 = vmatpush1.bf16.msra.mxu0 0
      %3832 = vmatprep.subr.bf16.mxu0 0
      %3833 = vmatpush1.bf16.msra.mxu0 0
      %3834 = vmatprep.subr.bf16.mxu0 0
      %3835 = vmatpush1.bf16.msra.mxu0 0
      %3836 = vmatprep.subr.bf16.mxu0 0
      %3837 = vmatpush1.bf16.msra.mxu0 0
      %3838 = vmatprep.subr.bf16.mxu0 0
      %3839 = vmatpush1.bf16.msra.mxu0 0
      %3840 = vmatprep.subr.bf16.mxu0 0
      %3841 = vmatpush1.bf16.msra.mxu0 0
      %3842 = vmatprep.subr.bf16.mxu0 0
      %3843 = vmatpush1.bf16.msra.mxu0 0
      %3844 = vmatprep.subr.bf16.mxu0 0
      %3845 = vmatpush1.bf16.msra.mxu0 0
      %3846 = vmatprep.subr.bf16.mxu0 0
      %3847 = vmatpush1.bf16.msra.mxu0 0
      %3848 = vmatprep.subr.bf16.mxu0 0
      %3849 = vmatpush1.bf16.msra.mxu0 0
      %3850 = vmatprep.mubr.bf16.mxu0 0
      %3851 = vmatmul.mubr.bf16.gmra.mrb[0].mxu0 %v3759
      %v3852 = vpop.f32.mrb[0].mxu0
      %v3853 = vadd.f32 0.0, %v3852
      %v3854 = vpop.f32.mrb[0].mxu0
      %v3855 = vadd.f32 0.0, %v3854
      %v3856 = vpop.f32.mrb[0].mxu0
      %v3857 = vadd.f32 0.0, %v3856
      %v3858 = vpop.f32.mrb[0].mxu0
      %v3859 = vadd.f32 0.0, %v3858
      %3860 = vmatprep.mubr.bf16.mxu0 0
      %3861 = vmatmul.mubr.bf16.gmra.mrb[0].mxu0 %v3762
      %v3862 = vpop.f32.mrb[0].mxu0
      %v3863 = vadd.f32 0.0, %v3862
      %v3864 = vpop.f32.mrb[0].mxu0
      %v3865 = vadd.f32 0.0, %v3864
      %v3866 = vpop.f32.mrb[0].mxu0
      %v3867 = vadd.f32 0.0, %v3866
      %v3868 = vpop.f32.mrb[0].mxu0
      %v3869 = vadd.f32 0.0, %v3868
      %3870 = vmatprep.mubr.bf16.mxu0 0
      %3871 = vmatmul.mubr.bf16.gmra.mrb[0].mxu0 %v3765
      %v3872 = vpop.f32.mrb[0].mxu0
      %v3873 = vadd.f32 0.0, %v3872
      %v3874 = vpop.f32.mrb[0].mxu0
      %v3875 = vadd.f32 0.0, %v3874
      %v3876 = vpop.f32.mrb[0].mxu0
      %v3877 = vadd.f32 0.0, %v3876
      %v3878 = vpop.f32.mrb[0].mxu0
      %v3879 = vadd.f32 0.0, %v3878
      %3880 = vmatprep.mubr.bf16.mxu0 0
      %3881 = vmatmul.mubr.bf16.gmra.mrb[0].mxu0 %v3768
      %v3882 = vpop.f32.mrb[0].mxu0
      %v3883 = vadd.f32 0.0, %v3882
      %v3884 = vpop.f32.mrb[0].mxu0
      %v3885 = vadd.f32 0.0, %v3884
      %v3886 = vpop.f32.mrb[0].mxu0
      %v3887 = vadd.f32 0.0, %v3886
      %v3888 = vpop.f32.mrb[0].mxu0
      %v3889 = vadd.f32 0.0, %v3888
      %3890 = vmatprep.mubr.bf16.mxu0 0
      %3891 = vmatmul.mubr.bf16.gmra.mrb[0].mxu0 %v3771
      %v3892 = vpop.f32.mrb[0].mxu0
      %v3893 = vadd.f32 0.0, %v3892
      %v3894 = vpop.f32.mrb[0].mxu0
      %v3895 = vadd.f32 0.0, %v3894
      %v3896 = vpop.f32.mrb[0].mxu0
      %v3897 = vadd.f32 0.0, %v3896
      %v3898 = vpop.f32.mrb[0].mxu0
      %v3899 = vadd.f32 0.0, %v3898
      %3900 = vmatprep.mubr.bf16.mxu0 0
      %3901 = vmatmul.mubr.bf16.gmra.mrb[0].mxu0 %v3774
      %v3902 = vpop.f32.mrb[0].mxu0
      %v3903 = vadd.f32 0.0, %v3902
      %v3904 = vpop.f32.mrb[0].mxu0
      %v3905 = vadd.f32 0.0, %v3904
      %v3906 = vpop.f32.mrb[0].mxu0
      %v3907 = vadd.f32 0.0, %v3906
      %v3908 = vpop.f32.mrb[0].mxu0
      %v3909 = vadd.f32 0.0, %v3908
      %3910 = vmatprep.mubr.bf16.mxu0 0
      %3911 = vmatmul.mubr.bf16.gmra.mrb[0].mxu0 %v3777
      %v3912 = vpop.f32.mrb[0].mxu0
      %v3913 = vadd.f32 0.0, %v3912
      %v3914 = vpop.f32.mrb[0].mxu0
      %v3915 = vadd.f32 0.0, %v3914
      %v3916 = vpop.f32.mrb[0].mxu0
      %v3917 = vadd.f32 0.0, %v3916
      %v3918 = vpop.f32.mrb[0].mxu0
      %v3919 = vadd.f32 0.0, %v3918
      %3920 = vmatprep.mubr.bf16.mxu0 0
      %3921 = vmatmul.mubr.bf16.gmra.mrb[0].mxu0 %v3780
      %v3922 = vpop.f32.mrb[0].mxu0
      %v3923 = vadd.f32 0.0, %v3922
      %v3924 = vpop.f32.mrb[0].mxu0
      %v3925 = vadd.f32 0.0, %v3924
      %v3926 = vpop.f32.mrb[0].mxu0
      %v3927 = vadd.f32 0.0, %v3926
      %v3928 = vpop.f32.mrb[0].mxu0
      %v3929 = vadd.f32 0.0, %v3928
      %3930 = vmatprep.mubr.bf16.mxu0 0
      %3931 = vmatmul.mubr.bf16.gmra.mrb[0].mxu0 %v3783
      %v3932 = vpop.f32.mrb[0].mxu0
      %v3933 = vadd.f32 0.0, %v3932
      %v3934 = vpop.f32.mrb[0].mxu0
      %v3935 = vadd.f32 0.0, %v3934
      %v3936 = vpop.f32.mrb[0].mxu0
      %v3937 = vadd.f32 0.0, %v3936
      %v3938 = vpop.f32.mrb[0].mxu0
      %v3939 = vadd.f32 0.0, %v3938
      %3940 = vmatprep.mubr.bf16.mxu0 0
      %3941 = vmatmul.mubr.bf16.gmra.mrb[0].mxu0 %v3786
      %v3942 = vpop.f32.mrb[0].mxu0
      %v3943 = vadd.f32 0.0, %v3942
      %v3944 = vpop.f32.mrb[0].mxu0
      %v3945 = vadd.f32 0.0, %v3944
      %v3946 = vpop.f32.mrb[0].mxu0
      %v3947 = vadd.f32 0.0, %v3946
      %v3948 = vpop.f32.mrb[0].mxu0
      %v3949 = vadd.f32 0.0, %v3948
      %3950 = vmatprep.mubr.bf16.mxu0 0
      %3951 = vmatmul.mubr.bf16.gmra.mrb[0].mxu0 %v3789
      %v3952 = vpop.f32.mrb[0].mxu0
      %v3953 = vadd.f32 0.0, %v3952
      %v3954 = vpop.f32.mrb[0].mxu0
      %v3955 = vadd.f32 0.0, %v3954
      %v3956 = vpop.f32.mrb[0].mxu0
      %v3957 = vadd.f32 0.0, %v3956
      %v3958 = vpop.f32.mrb[0].mxu0
      %v3959 = vadd.f32 0.0, %v3958
      %3960 = vmatprep.mubr.bf16.mxu0 0
      %3961 = vmatmul.mubr.bf16.gmra.mrb[0].mxu0 %v3792
      %v3962 = vpop.f32.mrb[0].mxu0
      %v3963 = vadd.f32 0.0, %v3962
      %v3964 = vpop.f32.mrb[0].mxu0
      %v3965 = vadd.f32 0.0, %v3964
      %v3966 = vpop.f32.mrb[0].mxu0
      %v3967 = vadd.f32 0.0, %v3966
      %v3968 = vpop.f32.mrb[0].mxu0
      %v3969 = vadd.f32 0.0, %v3968
      %3970 = vmatprep.mubr.bf16.mxu0 0
      %3971 = vmatmul.mubr.bf16.gmra.mrb[0].mxu0 %v3795
      %v3972 = vpop.f32.mrb[0].mxu0
      %v3973 = vadd.f32 0.0, %v3972
      %v3974 = vpop.f32.mrb[0].mxu0
      %v3975 = vadd.f32 0.0, %v3974
      %v3976 = vpop.f32.mrb[0].mxu0
      %v3977 = vadd.f32 0.0, %v3976
      %v3978 = vpop.f32.mrb[0].mxu0
      %v3979 = vadd.f32 0.0, %v3978
      %3980 = vmatprep.mubr.bf16.mxu0 0
      %3981 = vmatmul.mubr.bf16.gmra.mrb[0].mxu0 %v3798
      %v3982 = vpop.f32.mrb[0].mxu0
      %v3983 = vadd.f32 0.0, %v3982
      %v3984 = vpop.f32.mrb[0].mxu0
      %v3985 = vadd.f32 0.0, %v3984
      %v3986 = vpop.f32.mrb[0].mxu0
      %v3987 = vadd.f32 0.0, %v3986
      %v3988 = vpop.f32.mrb[0].mxu0
      %v3989 = vadd.f32 0.0, %v3988
      %3990 = vmatprep.mubr.bf16.mxu0 0
      %3991 = vmatmul.mubr.bf16.gmra.mrb[0].mxu0 %v3801
      %v3992 = vpop.f32.mrb[0].mxu0
      %v3993 = vadd.f32 0.0, %v3992
      %v3994 = vpop.f32.mrb[0].mxu0
      %v3995 = vadd.f32 0.0, %v3994
      %v3996 = vpop.f32.mrb[0].mxu0
      %v3997 = vadd.f32 0.0, %v3996
      %v3998 = vpop.f32.mrb[0].mxu0
      %v3999 = vadd.f32 0.0, %v3998
      %4000 = vmatprep.mubr.bf16.mxu0 0
      %4001 = vmatmul.mubr.bf16.gmra.mrb[0].mxu0 %v3804
      %v4002 = vpop.f32.mrb[0].mxu0
      %v4003 = vadd.f32 0.0, %v4002
      %v4004 = vpop.f32.mrb[0].mxu0
      %v4005 = vadd.f32 0.0, %v4004
      %v4006 = vpop.f32.mrb[0].mxu0
      %v4007 = vadd.f32 0.0, %v4006
      %v4008 = vpop.f32.mrb[0].mxu0
      %v4009 = vadd.f32 0.0, %v4008
      %4010 = vmatprep.mubr.bf16.mxu0 0
      %4011 = vmatmul.mubr.bf16.gmra.mrb[0].mxu0 %v3807
      %v4012 = vpop.f32.mrb[0].mxu0
      %v4013 = vadd.f32 0.0, %v4012
      %v4014 = vpop.f32.mrb[0].mxu0
      %v4015 = vadd.f32 0.0, %v4014
      %v4016 = vpop.f32.mrb[0].mxu0
      %v4017 = vadd.f32 0.0, %v4016
      %v4018 = vpop.f32.mrb[0].mxu0
      %v4019 = vadd.f32 0.0, %v4018
      %4020 = vmatprep.mubr.bf16.mxu0 0
      %4021 = vmatmul.mubr.bf16.gmra.mrb[0].mxu0 %v3810
      %v4022 = vpop.f32.mrb[0].mxu0
      %v4023 = vadd.f32 0.0, %v4022
      %v4024 = vpop.f32.mrb[0].mxu0
      %v4025 = vadd.f32 0.0, %v4024
      %v4026 = vpop.f32.mrb[0].mxu0
      %v4027 = vadd.f32 0.0, %v4026
      %v4028 = vpop.f32.mrb[0].mxu0
      %v4029 = vadd.f32 0.0, %v4028
      %4030 = vdwg.mxu0
      %v4031 = vadd.f32 %v3615, %v3853
      %v4032 = vadd.f32 %v3616, %v3855
      %v4033 = vadd.f32 %v3617, %v3857
      %v4034 = vadd.f32 %v3618, %v3859
      %v4035 = vadd.f32 %v3619, %v3863
      %v4036 = vadd.f32 %v3620, %v3865
      %v4037 = vadd.f32 %v3621, %v3867
      %v4038 = vadd.f32 %v3622, %v3869
      %v4039 = vadd.f32 %v3623, %v3873
      %v4040 = vadd.f32 %v3624, %v3875
      %v4041 = vadd.f32 %v3625, %v3877
      %v4042 = vadd.f32 %v3626, %v3879
      %v4043 = vadd.f32 %v3627, %v3883
      %v4044 = vadd.f32 %v3628, %v3885
      %v4045 = vadd.f32 %v3629, %v3887
      %v4046 = vadd.f32 %v3630, %v3889
      %v4047 = vadd.f32 %v3631, %v3893
      %v4048 = vadd.f32 %v3632, %v3895
      %v4049 = vadd.f32 %v3633, %v3897
      %v4050 = vadd.f32 %v3634, %v3899
      %v4051 = vadd.f32 %v3635, %v3903
      %v4052 = vadd.f32 %v3636, %v3905
      %v4053 = vadd.f32 %v3637, %v3907
      %v4054 = vadd.f32 %v3638, %v3909
      %v4055 = vadd.f32 %v3639, %v3913
      %v4056 = vadd.f32 %v3640, %v3915
      %v4057 = vadd.f32 %v3641, %v3917
      %v4058 = vadd.f32 %v3642, %v3919
      %v4059 = vadd.f32 %v3643, %v3923
      %v4060 = vadd.f32 %v3644, %v3925
      %v4061 = vadd.f32 %v3645, %v3927
      %v4062 = vadd.f32 %v3646, %v3929
      %v4063 = vadd.f32 %v3647, %v3933
      %v4064 = vadd.f32 %v3648, %v3935
      %v4065 = vadd.f32 %v3649, %v3937
      %v4066 = vadd.f32 %v3650, %v3939
      %v4067 = vadd.f32 %v3651, %v3943
      %v4068 = vadd.f32 %v3652, %v3945
      %v4069 = vadd.f32 %v3653, %v3947
      %v4070 = vadd.f32 %v3654, %v3949
      %v4071 = vadd.f32 %v3655, %v3953
      %v4072 = vadd.f32 %v3656, %v3955
      %v4073 = vadd.f32 %v3657, %v3957
      %v4074 = vadd.f32 %v3658, %v3959
      %v4075 = vadd.f32 %v3659, %v3963
      %v4076 = vadd.f32 %v3660, %v3965
      %v4077 = vadd.f32 %v3661, %v3967
      %v4078 = vadd.f32 %v3662, %v3969
      %v4079 = vadd.f32 %v3663, %v3973
      %v4080 = vadd.f32 %v3664, %v3975
      %v4081 = vadd.f32 %v3665, %v3977
      %v4082 = vadd.f32 %v3666, %v3979
      %v4083 = vadd.f32 %v3667, %v3983
      %v4084 = vadd.f32 %v3668, %v3985
      %v4085 = vadd.f32 %v3669, %v3987
      %v4086 = vadd.f32 %v3670, %v3989
      %v4087 = vadd.f32 %v3671, %v3993
      %v4088 = vadd.f32 %v3672, %v3995
      %v4089 = vadd.f32 %v3673, %v3997
      %v4090 = vadd.f32 %v3674, %v3999
      %v4091 = vadd.f32 %v3675, %v4003
      %v4092 = vadd.f32 %v3676, %v4005
      %v4093 = vadd.f32 %v3677, %v4007
      %v4094 = vadd.f32 %v3678, %v4009
      %v4095 = vadd.f32 %v3679, %v4013
      %v4096 = vadd.f32 %v3680, %v4015
      %v4097 = vadd.f32 %v3681, %v4017
      %v4098 = vadd.f32 %v3682, %v4019
      %v4099 = vadd.f32 %v3683, %v4023
      %v4100 = vadd.f32 %v3684, %v4025
      %v4101 = vadd.f32 %v3685, %v4027
      %v4102 = vadd.f32 %v3686, %v4029
      %4103 = vst [vmem:[#allocation2] sm:$0xff] %v4031
      %4104 = vst [vmem:[#allocation2 + $0x8] sm:$0xff] %v4032
      %4105 = vst [vmem:[#allocation2 + $0x10] sm:$0xff] %v4033
      %4106 = vst [vmem:[#allocation2 + $0x18] sm:$0xff] %v4034
      %4107 = vst [vmem:[#allocation2 + $0x20] sm:$0xff] %v4035
      %4108 = vst [vmem:[#allocation2 + $0x28] sm:$0xff] %v4036
      %4109 = vst [vmem:[#allocation2 + $0x30] sm:$0xff] %v4037
      %4110 = vst [vmem:[#allocation2 + $0x38] sm:$0xff] %v4038
      %4111 = vst [vmem:[#allocation2 + $0x40] sm:$0xff] %v4039
      %4112 = vst [vmem:[#allocation2 + $0x48] sm:$0xff] %v4040
      %4113 = vst [vmem:[#allocation2 + $0x50] sm:$0xff] %v4041
      %4114 = vst [vmem:[#allocation2 + $0x58] sm:$0xff] %v4042
      %4115 = vst [vmem:[#allocation2 + $0x60] sm:$0xff] %v4043
      %4116 = vst [vmem:[#allocation2 + $0x68] sm:$0xff] %v4044
      %4117 = vst [vmem:[#allocation2 + $0x70] sm:$0xff] %v4045
      %4118 = vst [vmem:[#allocation2 + $0x78] sm:$0xff] %v4046
      %4119 = vst [vmem:[#allocation2 + $0x80] sm:$0xff] %v4047
      %4120 = vst [vmem:[#allocation2 + $0x88] sm:$0xff] %v4048
      %4121 = vst [vmem:[#allocation2 + $0x90] sm:$0xff] %v4049
      %4122 = vst [vmem:[#allocation2 + $0x98] sm:$0xff] %v4050
      %4123 = vst [vmem:[#allocation2 + $0xa0] sm:$0xff] %v4051
      %4124 = vst [vmem:[#allocation2 + $0xa8] sm:$0xff] %v4052
      %4125 = vst [vmem:[#allocation2 + $0xb0] sm:$0xff] %v4053
      %4126 = vst [vmem:[#allocation2 + $0xb8] sm:$0xff] %v4054
      %4127 = vst [vmem:[#allocation2 + $0xc0] sm:$0xff] %v4055
      %4128 = vst [vmem:[#allocation2 + $0xc8] sm:$0xff] %v4056
      %4129 = vst [vmem:[#allocation2 + $0xd0] sm:$0xff] %v4057
      %4130 = vst [vmem:[#allocation2 + $0xd8] sm:$0xff] %v4058
      %4131 = vst [vmem:[#allocation2 + $0xe0] sm:$0xff] %v4059
      %4132 = vst [vmem:[#allocation2 + $0xe8] sm:$0xff] %v4060
      %4133 = vst [vmem:[#allocation2 + $0xf0] sm:$0xff] %v4061
      %4134 = vst [vmem:[#allocation2 + $0xf8] sm:$0xff] %v4062
      %4135 = vst [vmem:[#allocation2 + $0x100] sm:$0xff] %v4063
      %4136 = vst [vmem:[#allocation2 + $0x108] sm:$0xff] %v4064
      %4137 = vst [vmem:[#allocation2 + $0x110] sm:$0xff] %v4065
      %4138 = vst [vmem:[#allocation2 + $0x118] sm:$0xff] %v4066
      %4139 = vst [vmem:[#allocation2 + $0x120] sm:$0xff] %v4067
      %4140 = vst [vmem:[#allocation2 + $0x128] sm:$0xff] %v4068
      %4141 = vst [vmem:[#allocation2 + $0x130] sm:$0xff] %v4069
      %4142 = vst [vmem:[#allocation2 + $0x138] sm:$0xff] %v4070
      %4143 = vst [vmem:[#allocation2 + $0x140] sm:$0xff] %v4071
      %4144 = vst [vmem:[#allocation2 + $0x148] sm:$0xff] %v4072
      %4145 = vst [vmem:[#allocation2 + $0x150] sm:$0xff] %v4073
      %4146 = vst [vmem:[#allocation2 + $0x158] sm:$0xff] %v4074
      %4147 = vst [vmem:[#allocation2 + $0x160] sm:$0xff] %v4075
      %4148 = vst [vmem:[#allocation2 + $0x168] sm:$0xff] %v4076
      %4149 = vst [vmem:[#allocation2 + $0x170] sm:$0xff] %v4077
      %4150 = vst [vmem:[#allocation2 + $0x178] sm:$0xff] %v4078
      %4151 = vst [vmem:[#allocation2 + $0x180] sm:$0xff] %v4079
      %4152 = vst [vmem:[#allocation2 + $0x188] sm:$0xff] %v4080
      %4153 = vst [vmem:[#allocation2 + $0x190] sm:$0xff] %v4081
      %4154 = vst [vmem:[#allocation2 + $0x198] sm:$0xff] %v4082
      %4155 = vst [vmem:[#allocation2 + $0x1a0] sm:$0xff] %v4083
      %4156 = vst [vmem:[#allocation2 + $0x1a8] sm:$0xff] %v4084
      %4157 = vst [vmem:[#allocation2 + $0x1b0] sm:$0xff] %v4085
      %4158 = vst [vmem:[#allocation2 + $0x1b8] sm:$0xff] %v4086
      %4159 = vst [vmem:[#allocation2 + $0x1c0] sm:$0xff] %v4087
      %4160 = vst [vmem:[#allocation2 + $0x1c8] sm:$0xff] %v4088
      %4161 = vst [vmem:[#allocation2 + $0x1d0] sm:$0xff] %v4089
      %4162 = vst [vmem:[#allocation2 + $0x1d8] sm:$0xff] %v4090
      %4163 = vst [vmem:[#allocation2 + $0x1e0] sm:$0xff] %v4091
      %4164 = vst [vmem:[#allocation2 + $0x1e8] sm:$0xff] %v4092
      %4165 = vst [vmem:[#allocation2 + $0x1f0] sm:$0xff] %v4093
      %4166 = vst [vmem:[#allocation2 + $0x1f8] sm:$0xff] %v4094
      %4167 = vst [vmem:[#allocation2 + $0x200] sm:$0xff] %v4095
      %4168 = vst [vmem:[#allocation2 + $0x208] sm:$0xff] %v4096
      %4169 = vst [vmem:[#allocation2 + $0x210] sm:$0xff] %v4097
      %4170 = vst [vmem:[#allocation2 + $0x218] sm:$0xff] %v4098
      %4171 = vst [vmem:[#allocation2 + $0x220] sm:$0xff] %v4099
      %4172 = vst [vmem:[#allocation2 + $0x228] sm:$0xff] %v4100
      %4173 = vst [vmem:[#allocation2 + $0x230] sm:$0xff] %v4101
      %4174 = vst [vmem:[#allocation2 + $0x238] sm:$0xff] %v4102
      %v4175 = vld [vmem:[#allocation2] sm:$0xff]
      %v4176 = vld [vmem:[#allocation2 + $0x8] sm:$0xff]
      %v4177 = vld [vmem:[#allocation2 + $0x10] sm:$0xff]
      %v4178 = vld [vmem:[#allocation2 + $0x18] sm:$0xff]
      %v4179 = vld [vmem:[#allocation2 + $0x20] sm:$0xff]
      %v4180 = vld [vmem:[#allocation2 + $0x28] sm:$0xff]
      %v4181 = vld [vmem:[#allocation2 + $0x30] sm:$0xff]
      %v4182 = vld [vmem:[#allocation2 + $0x38] sm:$0xff]
      %v4183 = vld [vmem:[#allocation2 + $0x40] sm:$0xff]
      %v4184 = vld [vmem:[#allocation2 + $0x48] sm:$0xff]
      %v4185 = vld [vmem:[#allocation2 + $0x50] sm:$0xff]
      %v4186 = vld [vmem:[#allocation2 + $0x58] sm:$0xff]
      %v4187 = vld [vmem:[#allocation2 + $0x60] sm:$0xff]
      %v4188 = vld [vmem:[#allocation2 + $0x68] sm:$0xff]
      %v4189 = vld [vmem:[#allocation2 + $0x70] sm:$0xff]
      %v4190 = vld [vmem:[#allocation2 + $0x78] sm:$0xff]
      %v4191 = vld [vmem:[#allocation2 + $0x80] sm:$0xff]
      %v4192 = vld [vmem:[#allocation2 + $0x88] sm:$0xff]
      %v4193 = vld [vmem:[#allocation2 + $0x90] sm:$0xff]
      %v4194 = vld [vmem:[#allocation2 + $0x98] sm:$0xff]
      %v4195 = vld [vmem:[#allocation2 + $0xa0] sm:$0xff]
      %v4196 = vld [vmem:[#allocation2 + $0xa8] sm:$0xff]
      %v4197 = vld [vmem:[#allocation2 + $0xb0] sm:$0xff]
      %v4198 = vld [vmem:[#allocation2 + $0xb8] sm:$0xff]
      %v4199 = vld [vmem:[#allocation2 + $0xc0] sm:$0xff]
      %v4200 = vld [vmem:[#allocation2 + $0xc8] sm:$0xff]
      %v4201 = vld [vmem:[#allocation2 + $0xd0] sm:$0xff]
      %v4202 = vld [vmem:[#allocation2 + $0xd8] sm:$0xff]
      %v4203 = vld [vmem:[#allocation2 + $0xe0] sm:$0xff]
      %v4204 = vld [vmem:[#allocation2 + $0xe8] sm:$0xff]
      %v4205 = vld [vmem:[#allocation2 + $0xf0] sm:$0xff]
      %v4206 = vld [vmem:[#allocation2 + $0xf8] sm:$0xff]
      %v4207 = vld [vmem:[#allocation2 + $0x100] sm:$0xff]
      %v4208 = vld [vmem:[#allocation2 + $0x108] sm:$0xff]
      %v4209 = vld [vmem:[#allocation2 + $0x110] sm:$0xff]
      %v4210 = vld [vmem:[#allocation2 + $0x118] sm:$0xff]
      %v4211 = vld [vmem:[#allocation2 + $0x120] sm:$0xff]
      %v4212 = vld [vmem:[#allocation2 + $0x128] sm:$0xff]
      %v4213 = vld [vmem:[#allocation2 + $0x130] sm:$0xff]
      %v4214 = vld [vmem:[#allocation2 + $0x138] sm:$0xff]
      %v4215 = vld [vmem:[#allocation2 + $0x140] sm:$0xff]
      %v4216 = vld [vmem:[#allocation2 + $0x148] sm:$0xff]
      %v4217 = vld [vmem:[#allocation2 + $0x150] sm:$0xff]
      %v4218 = vld [vmem:[#allocation2 + $0x158] sm:$0xff]
      %v4219 = vld [vmem:[#allocation2 + $0x160] sm:$0xff]
      %v4220 = vld [vmem:[#allocation2 + $0x168] sm:$0xff]
      %v4221 = vld [vmem:[#allocation2 + $0x170] sm:$0xff]
      %v4222 = vld [vmem:[#allocation2 + $0x178] sm:$0xff]
      %v4223 = vld [vmem:[#allocation2 + $0x180] sm:$0xff]
      %v4224 = vld [vmem:[#allocation2 + $0x188] sm:$0xff]
      %v4225 = vld [vmem:[#allocation2 + $0x190] sm:$0xff]
      %v4226 = vld [vmem:[#allocation2 + $0x198] sm:$0xff]
      %v4227 = vld [vmem:[#allocation2 + $0x1a0] sm:$0xff]
      %v4228 = vld [vmem:[#allocation2 + $0x1a8] sm:$0xff]
      %v4229 = vld [vmem:[#allocation2 + $0x1b0] sm:$0xff]
      %v4230 = vld [vmem:[#allocation2 + $0x1b8] sm:$0xff]
      %v4231 = vld [vmem:[#allocation2 + $0x1c0] sm:$0xff]
      %v4232 = vld [vmem:[#allocation2 + $0x1c8] sm:$0xff]
      %v4233 = vld [vmem:[#allocation2 + $0x1d0] sm:$0xff]
      %v4234 = vld [vmem:[#allocation2 + $0x1d8] sm:$0xff]
      %v4235 = vld [vmem:[#allocation2 + $0x1e0] sm:$0xff]
      %v4236 = vld [vmem:[#allocation2 + $0x1e8] sm:$0xff]
      %v4237 = vld [vmem:[#allocation2 + $0x1f0] sm:$0xff]
      %v4238 = vld [vmem:[#allocation2 + $0x1f8] sm:$0xff]
      %v4239 = vld [vmem:[#allocation2 + $0x200] sm:$0xff]
      %v4240 = vld [vmem:[#allocation2 + $0x208] sm:$0xff]
      %v4241 = vld [vmem:[#allocation2 + $0x210] sm:$0xff]
      %v4242 = vld [vmem:[#allocation2 + $0x218] sm:$0xff]
      %v4243 = vld [vmem:[#allocation2 + $0x220] sm:$0xff]
      %v4244 = vld [vmem:[#allocation2 + $0x228] sm:$0xff]
      %v4245 = vld [vmem:[#allocation2 + $0x230] sm:$0xff]
      %v4246 = vld [vmem:[#allocation2 + $0x238] sm:$0xff]
      %s4247 = scalar_lea.vmem %s1, 28
      %v4248 = vld [vmem:[%s4247] sm:$0xf]
      %4249 = vrot.lane.b32.xlu0 %v324, 91
      %v4250 = vpop.permute.xlu0 %4249
      %4251 = vrot.lane.b32.xlu0 %v332, 91
      %v4252 = vpop.permute.xlu0 %4251
      %4253 = vrot.lane.b32.xlu0 %v331, 91
      %v4254 = vpop.permute.xlu0 %4253
      %vm4255 = vcmask 744448
      %v4256 = vsel %vm4255, %v4250, %v4252
      %v4257 = vsel %vm4255, %v4252, %v4254
      %4261 = vxpose.xlu0.c.b16.start [1/8] %v4256, 128
      %4262 = vxpose.xlu0.c.b16.cont [2/8] 0, 128
      %4263 = vxpose.xlu0.c.b16.cont [3/8] 0, 128
      %4264 = vxpose.xlu0.c.b16.cont [4/8] 0, 128
      %4265 = vxpose.xlu0.c.b16.cont [5/8] 0, 128
      %4266 = vxpose.xlu0.c.b16.cont [6/8] 0, 128
      %4267 = vxpose.xlu0.c.b16.cont [7/8] 0, 128
      %4268 = vxpose.xlu0.c.b16.end [8/8] 0, 128
      %v4269 = vpop.trf.xlu0
      %v4270 = vpop.trf.xlu0
      %v4271 = vpop.trf.xlu0
      %v4272 = vpop.trf.xlu0
      %v4273 = vpop.trf.xlu0
      %v4274 = vpop.trf.xlu0
      %v4275 = vpop.trf.xlu0
      %v4276 = vpop.trf.xlu0
      %4277 = vxpose.xlu0.c.b16.start [1/8] %v4257, 128
      %4278 = vxpose.xlu0.c.b16.cont [2/8] 0, 128
      %4279 = vxpose.xlu0.c.b16.cont [3/8] 0, 128
      %4280 = vxpose.xlu0.c.b16.cont [4/8] 0, 128
      %4281 = vxpose.xlu0.c.b16.cont [5/8] 0, 128
      %4282 = vxpose.xlu0.c.b16.cont [6/8] 0, 128
      %4283 = vxpose.xlu0.c.b16.cont [7/8] 0, 128
      %4284 = vxpose.xlu0.c.b16.end [8/8] 0, 128
      %v4285 = vpop.trf.xlu0
      %v4286 = vpop.trf.xlu0
      %v4287 = vpop.trf.xlu0
      %v4288 = vpop.trf.xlu0
      %v4289 = vpop.trf.xlu0
      %v4290 = vpop.trf.xlu0
      %v4291 = vpop.trf.xlu0
      %v4292 = vpop.trf.xlu0
      %4293 = vxpose.xlu0.c.b16.start [1/8] %v4254, 128
      %4294 = vxpose.xlu0.c.b16.cont [2/8] 0, 128
      %4295 = vxpose.xlu0.c.b16.cont [3/8] 0, 128
      %4296 = vxpose.xlu0.c.b16.cont [4/8] 0, 128
      %4297 = vxpose.xlu0.c.b16.cont [5/8] 0, 128
      %4298 = vxpose.xlu0.c.b16.cont [6/8] 0, 128
      %4299 = vxpose.xlu0.c.b16.cont [7/8] 0, 128
      %4300 = vxpose.xlu0.c.b16.end [8/8] 0, 128
      %v4301 = vpop.trf.xlu0
      %v4302 = vpop.trf.xlu0
      %v4303 = vpop.trf.xlu0
      %v4304 = vpop.trf.xlu0
      %v4305 = vpop.trf.xlu0
      %v4306 = vpop.trf.xlu0
      %v4307 = vpop.trf.xlu0
      %v4308 = vpop.trf.xlu0
      %v4311 = vunpack.c.l.s4 1983009808
      %v4312 = vunpack.c.0.s8 %v4311
      %v4313 = vlaneseq
      %v4314 = vshrl.u32 %v4313, 7
      %v4315 = vsub.s32 %v4312, %v4314
      %v4316 = vrot.slane %v4248, %v4315
      %v4317 = vcombine.high %v4316, %v4316
      %v4319 = vsel %vm393, %v4269, 0
      %v4322 = vsel %vm393, %v4270, 0
      %v4325 = vsel %vm393, %v4271, 0
      %v4328 = vsel %vm393, %v4272, 0
      %v4331 = vsel %vm393, %v4273, 0
      %v4334 = vsel %vm393, %v4274, 0
      %v4337 = vsel %vm393, %v4275, 0
      %v4340 = vsel %vm393, %v4276, 0
      %v4343 = vsel %vm393, %v4285, 0
      %v4346 = vsel %vm393, %v4286, 0
      %v4349 = vsel %vm393, %v4287, 0
      %v4352 = vsel %vm393, %v4288, 0
      %v4355 = vsel %vm393, %v4289, 0
      %v4358 = vsel %vm393, %v4290, 0
      %v4361 = vsel %vm393, %v4291, 0
      %v4364 = vsel %vm393, %v4292, 0
      %v4367 = vsel %vm393, %v4301, 0
      %v4370 = vsel %vm393, %v4302, 0
      %v4373 = vand.u32 %v4316, %v451
      %v4376 = vand.u32 %v4317, %v451
      %4378 = vmatprep.subr.bf16.mxu0 %v4376
      %4379 = vmatpush1.bf16.msra.mxu0 %v4373
      %4380 = vmatprep.subr.bf16.mxu0 0
      %4381 = vmatpush1.bf16.msra.mxu0 0
      %4382 = vmatprep.subr.bf16.mxu0 0
      %4383 = vmatpush1.bf16.msra.mxu0 0
      %4384 = vmatprep.subr.bf16.mxu0 0
      %4385 = vmatpush1.bf16.msra.mxu0 0
      %4386 = vmatprep.subr.bf16.mxu0 0
      %4387 = vmatpush1.bf16.msra.mxu0 0
      %4388 = vmatprep.subr.bf16.mxu0 0
      %4389 = vmatpush1.bf16.msra.mxu0 0
      %4390 = vmatprep.subr.bf16.mxu0 0
      %4391 = vmatpush1.bf16.msra.mxu0 0
      %4392 = vmatprep.subr.bf16.mxu0 0
      %4393 = vmatpush1.bf16.msra.mxu0 0
      %4394 = vmatprep.subr.bf16.mxu0 0
      %4395 = vmatpush1.bf16.msra.mxu0 0
      %4396 = vmatprep.subr.bf16.mxu0 0
      %4397 = vmatpush1.bf16.msra.mxu0 0
      %4398 = vmatprep.subr.bf16.mxu0 0
      %4399 = vmatpush1.bf16.msra.mxu0 0
      %4400 = vmatprep.subr.bf16.mxu0 0
      %4401 = vmatpush1.bf16.msra.mxu0 0
      %4402 = vmatprep.subr.bf16.mxu0 0
      %4403 = vmatpush1.bf16.msra.mxu0 0
      %4404 = vmatprep.subr.bf16.mxu0 0
      %4405 = vmatpush1.bf16.msra.mxu0 0
      %4406 = vmatprep.subr.bf16.mxu0 0
      %4407 = vmatpush1.bf16.msra.mxu0 0
      %4408 = vmatprep.subr.bf16.mxu0 0
      %4409 = vmatpush1.bf16.msra.mxu0 0
      %4410 = vmatprep.mubr.bf16.mxu0 0
      %4411 = vmatmul.mubr.bf16.gmra.mrb[0].mxu0 %v4319
      %v4412 = vpop.f32.mrb[0].mxu0
      %v4413 = vadd.f32 0.0, %v4412
      %v4414 = vpop.f32.mrb[0].mxu0
      %v4415 = vadd.f32 0.0, %v4414
      %v4416 = vpop.f32.mrb[0].mxu0
      %v4417 = vadd.f32 0.0, %v4416
      %v4418 = vpop.f32.mrb[0].mxu0
      %v4419 = vadd.f32 0.0, %v4418
      %4420 = vmatprep.mubr.bf16.mxu0 0
      %4421 = vmatmul.mubr.bf16.gmra.mrb[0].mxu0 %v4322
      %v4422 = vpop.f32.mrb[0].mxu0
      %v4423 = vadd.f32 0.0, %v4422
      %v4424 = vpop.f32.mrb[0].mxu0
      %v4425 = vadd.f32 0.0, %v4424
      %v4426 = vpop.f32.mrb[0].mxu0
      %v4427 = vadd.f32 0.0, %v4426
      %v4428 = vpop.f32.mrb[0].mxu0
      %v4429 = vadd.f32 0.0, %v4428
      %4430 = vmatprep.mubr.bf16.mxu0 0
      %4431 = vmatmul.mubr.bf16.gmra.mrb[0].mxu0 %v4325
      %v4432 = vpop.f32.mrb[0].mxu0
      %v4433 = vadd.f32 0.0, %v4432
      %v4434 = vpop.f32.mrb[0].mxu0
      %v4435 = vadd.f32 0.0, %v4434
      %v4436 = vpop.f32.mrb[0].mxu0
      %v4437 = vadd.f32 0.0, %v4436
      %v4438 = vpop.f32.mrb[0].mxu0
      %v4439 = vadd.f32 0.0, %v4438
      %4440 = vmatprep.mubr.bf16.mxu0 0
      %4441 = vmatmul.mubr.bf16.gmra.mrb[0].mxu0 %v4328
      %v4442 = vpop.f32.mrb[0].mxu0
      %v4443 = vadd.f32 0.0, %v4442
      %v4444 = vpop.f32.mrb[0].mxu0
      %v4445 = vadd.f32 0.0, %v4444
      %v4446 = vpop.f32.mrb[0].mxu0
      %v4447 = vadd.f32 0.0, %v4446
      %v4448 = vpop.f32.mrb[0].mxu0
      %v4449 = vadd.f32 0.0, %v4448
      %4450 = vmatprep.mubr.bf16.mxu0 0
      %4451 = vmatmul.mubr.bf16.gmra.mrb[0].mxu0 %v4331
      %v4452 = vpop.f32.mrb[0].mxu0
      %v4453 = vadd.f32 0.0, %v4452
      %v4454 = vpop.f32.mrb[0].mxu0
      %v4455 = vadd.f32 0.0, %v4454
      %v4456 = vpop.f32.mrb[0].mxu0
      %v4457 = vadd.f32 0.0, %v4456
      %v4458 = vpop.f32.mrb[0].mxu0
      %v4459 = vadd.f32 0.0, %v4458
      %4460 = vmatprep.mubr.bf16.mxu0 0
      %4461 = vmatmul.mubr.bf16.gmra.mrb[0].mxu0 %v4334
      %v4462 = vpop.f32.mrb[0].mxu0
      %v4463 = vadd.f32 0.0, %v4462
      %v4464 = vpop.f32.mrb[0].mxu0
      %v4465 = vadd.f32 0.0, %v4464
      %v4466 = vpop.f32.mrb[0].mxu0
      %v4467 = vadd.f32 0.0, %v4466
      %v4468 = vpop.f32.mrb[0].mxu0
      %v4469 = vadd.f32 0.0, %v4468
      %4470 = vmatprep.mubr.bf16.mxu0 0
      %4471 = vmatmul.mubr.bf16.gmra.mrb[0].mxu0 %v4337
      %v4472 = vpop.f32.mrb[0].mxu0
      %v4473 = vadd.f32 0.0, %v4472
      %v4474 = vpop.f32.mrb[0].mxu0
      %v4475 = vadd.f32 0.0, %v4474
      %v4476 = vpop.f32.mrb[0].mxu0
      %v4477 = vadd.f32 0.0, %v4476
      %v4478 = vpop.f32.mrb[0].mxu0
      %v4479 = vadd.f32 0.0, %v4478
      %4480 = vmatprep.mubr.bf16.mxu0 0
      %4481 = vmatmul.mubr.bf16.gmra.mrb[0].mxu0 %v4340
      %v4482 = vpop.f32.mrb[0].mxu0
      %v4483 = vadd.f32 0.0, %v4482
      %v4484 = vpop.f32.mrb[0].mxu0
      %v4485 = vadd.f32 0.0, %v4484
      %v4486 = vpop.f32.mrb[0].mxu0
      %v4487 = vadd.f32 0.0, %v4486
      %v4488 = vpop.f32.mrb[0].mxu0
      %v4489 = vadd.f32 0.0, %v4488
      %4490 = vmatprep.mubr.bf16.mxu0 0
      %4491 = vmatmul.mubr.bf16.gmra.mrb[0].mxu0 %v4343
      %v4492 = vpop.f32.mrb[0].mxu0
      %v4493 = vadd.f32 0.0, %v4492
      %v4494 = vpop.f32.mrb[0].mxu0
      %v4495 = vadd.f32 0.0, %v4494
      %v4496 = vpop.f32.mrb[0].mxu0
      %v4497 = vadd.f32 0.0, %v4496
      %v4498 = vpop.f32.mrb[0].mxu0
      %v4499 = vadd.f32 0.0, %v4498
      %4500 = vmatprep.mubr.bf16.mxu0 0
      %4501 = vmatmul.mubr.bf16.gmra.mrb[0].mxu0 %v4346
      %v4502 = vpop.f32.mrb[0].mxu0
      %v4503 = vadd.f32 0.0, %v4502
      %v4504 = vpop.f32.mrb[0].mxu0
      %v4505 = vadd.f32 0.0, %v4504
      %v4506 = vpop.f32.mrb[0].mxu0
      %v4507 = vadd.f32 0.0, %v4506
      %v4508 = vpop.f32.mrb[0].mxu0
      %v4509 = vadd.f32 0.0, %v4508
      %4510 = vmatprep.mubr.bf16.mxu0 0
      %4511 = vmatmul.mubr.bf16.gmra.mrb[0].mxu0 %v4349
      %v4512 = vpop.f32.mrb[0].mxu0
      %v4513 = vadd.f32 0.0, %v4512
      %v4514 = vpop.f32.mrb[0].mxu0
      %v4515 = vadd.f32 0.0, %v4514
      %v4516 = vpop.f32.mrb[0].mxu0
      %v4517 = vadd.f32 0.0, %v4516
      %v4518 = vpop.f32.mrb[0].mxu0
      %v4519 = vadd.f32 0.0, %v4518
      %4520 = vmatprep.mubr.bf16.mxu0 0
      %4521 = vmatmul.mubr.bf16.gmra.mrb[0].mxu0 %v4352
      %v4522 = vpop.f32.mrb[0].mxu0
      %v4523 = vadd.f32 0.0, %v4522
      %v4524 = vpop.f32.mrb[0].mxu0
      %v4525 = vadd.f32 0.0, %v4524
      %v4526 = vpop.f32.mrb[0].mxu0
      %v4527 = vadd.f32 0.0, %v4526
      %v4528 = vpop.f32.mrb[0].mxu0
      %v4529 = vadd.f32 0.0, %v4528
      %4530 = vmatprep.mubr.bf16.mxu0 0
      %4531 = vmatmul.mubr.bf16.gmra.mrb[0].mxu0 %v4355
      %v4532 = vpop.f32.mrb[0].mxu0
      %v4533 = vadd.f32 0.0, %v4532
      %v4534 = vpop.f32.mrb[0].mxu0
      %v4535 = vadd.f32 0.0, %v4534
      %v4536 = vpop.f32.mrb[0].mxu0
      %v4537 = vadd.f32 0.0, %v4536
      %v4538 = vpop.f32.mrb[0].mxu0
      %v4539 = vadd.f32 0.0, %v4538
      %4540 = vmatprep.mubr.bf16.mxu0 0
      %4541 = vmatmul.mubr.bf16.gmra.mrb[0].mxu0 %v4358
      %v4542 = vpop.f32.mrb[0].mxu0
      %v4543 = vadd.f32 0.0, %v4542
      %v4544 = vpop.f32.mrb[0].mxu0
      %v4545 = vadd.f32 0.0, %v4544
      %v4546 = vpop.f32.mrb[0].mxu0
      %v4547 = vadd.f32 0.0, %v4546
      %v4548 = vpop.f32.mrb[0].mxu0
      %v4549 = vadd.f32 0.0, %v4548
      %4550 = vmatprep.mubr.bf16.mxu0 0
      %4551 = vmatmul.mubr.bf16.gmra.mrb[0].mxu0 %v4361
      %v4552 = vpop.f32.mrb[0].mxu0
      %v4553 = vadd.f32 0.0, %v4552
      %v4554 = vpop.f32.mrb[0].mxu0
      %v4555 = vadd.f32 0.0, %v4554
      %v4556 = vpop.f32.mrb[0].mxu0
      %v4557 = vadd.f32 0.0, %v4556
      %v4558 = vpop.f32.mrb[0].mxu0
      %v4559 = vadd.f32 0.0, %v4558
      %4560 = vmatprep.mubr.bf16.mxu0 0
      %4561 = vmatmul.mubr.bf16.gmra.mrb[0].mxu0 %v4364
      %v4562 = vpop.f32.mrb[0].mxu0
      %v4563 = vadd.f32 0.0, %v4562
      %v4564 = vpop.f32.mrb[0].mxu0
      %v4565 = vadd.f32 0.0, %v4564
      %v4566 = vpop.f32.mrb[0].mxu0
      %v4567 = vadd.f32 0.0, %v4566
      %v4568 = vpop.f32.mrb[0].mxu0
      %v4569 = vadd.f32 0.0, %v4568
      %4570 = vmatprep.mubr.bf16.mxu0 0
      %4571 = vmatmul.mubr.bf16.gmra.mrb[0].mxu0 %v4367
      %v4572 = vpop.f32.mrb[0].mxu0
      %v4573 = vadd.f32 0.0, %v4572
      %v4574 = vpop.f32.mrb[0].mxu0
      %v4575 = vadd.f32 0.0, %v4574
      %v4576 = vpop.f32.mrb[0].mxu0
      %v4577 = vadd.f32 0.0, %v4576
      %v4578 = vpop.f32.mrb[0].mxu0
      %v4579 = vadd.f32 0.0, %v4578
      %4580 = vmatprep.mubr.bf16.mxu0 0
      %4581 = vmatmul.mubr.bf16.gmra.mrb[0].mxu0 %v4370
      %v4582 = vpop.f32.mrb[0].mxu0
      %v4583 = vadd.f32 0.0, %v4582
      %v4584 = vpop.f32.mrb[0].mxu0
      %v4585 = vadd.f32 0.0, %v4584
      %v4586 = vpop.f32.mrb[0].mxu0
      %v4587 = vadd.f32 0.0, %v4586
      %v4588 = vpop.f32.mrb[0].mxu0
      %v4589 = vadd.f32 0.0, %v4588
      %4590 = vdwg.mxu0
      %v4591 = vadd.f32 %v4175, %v4413
      %v4592 = vadd.f32 %v4176, %v4415
      %v4593 = vadd.f32 %v4177, %v4417
      %v4594 = vadd.f32 %v4178, %v4419
      %v4595 = vadd.f32 %v4179, %v4423
      %v4596 = vadd.f32 %v4180, %v4425
      %v4597 = vadd.f32 %v4181, %v4427
      %v4598 = vadd.f32 %v4182, %v4429
      %v4599 = vadd.f32 %v4183, %v4433
      %v4600 = vadd.f32 %v4184, %v4435
      %v4601 = vadd.f32 %v4185, %v4437
      %v4602 = vadd.f32 %v4186, %v4439
      %v4603 = vadd.f32 %v4187, %v4443
      %v4604 = vadd.f32 %v4188, %v4445
      %v4605 = vadd.f32 %v4189, %v4447
      %v4606 = vadd.f32 %v4190, %v4449
      %v4607 = vadd.f32 %v4191, %v4453
      %v4608 = vadd.f32 %v4192, %v4455
      %v4609 = vadd.f32 %v4193, %v4457
      %v4610 = vadd.f32 %v4194, %v4459
      %v4611 = vadd.f32 %v4195, %v4463
      %v4612 = vadd.f32 %v4196, %v4465
      %v4613 = vadd.f32 %v4197, %v4467
      %v4614 = vadd.f32 %v4198, %v4469
      %v4615 = vadd.f32 %v4199, %v4473
      %v4616 = vadd.f32 %v4200, %v4475
      %v4617 = vadd.f32 %v4201, %v4477
      %v4618 = vadd.f32 %v4202, %v4479
      %v4619 = vadd.f32 %v4203, %v4483
      %v4620 = vadd.f32 %v4204, %v4485
      %v4621 = vadd.f32 %v4205, %v4487
      %v4622 = vadd.f32 %v4206, %v4489
      %v4623 = vadd.f32 %v4207, %v4493
      %v4624 = vadd.f32 %v4208, %v4495
      %v4625 = vadd.f32 %v4209, %v4497
      %v4626 = vadd.f32 %v4210, %v4499
      %v4627 = vadd.f32 %v4211, %v4503
      %v4628 = vadd.f32 %v4212, %v4505
      %v4629 = vadd.f32 %v4213, %v4507
      %v4630 = vadd.f32 %v4214, %v4509
      %v4631 = vadd.f32 %v4215, %v4513
      %v4632 = vadd.f32 %v4216, %v4515
      %v4633 = vadd.f32 %v4217, %v4517
      %v4634 = vadd.f32 %v4218, %v4519
      %v4635 = vadd.f32 %v4219, %v4523
      %v4636 = vadd.f32 %v4220, %v4525
      %v4637 = vadd.f32 %v4221, %v4527
      %v4638 = vadd.f32 %v4222, %v4529
      %v4639 = vadd.f32 %v4223, %v4533
      %v4640 = vadd.f32 %v4224, %v4535
      %v4641 = vadd.f32 %v4225, %v4537
      %v4642 = vadd.f32 %v4226, %v4539
      %v4643 = vadd.f32 %v4227, %v4543
      %v4644 = vadd.f32 %v4228, %v4545
      %v4645 = vadd.f32 %v4229, %v4547
      %v4646 = vadd.f32 %v4230, %v4549
      %v4647 = vadd.f32 %v4231, %v4553
      %v4648 = vadd.f32 %v4232, %v4555
      %v4649 = vadd.f32 %v4233, %v4557
      %v4650 = vadd.f32 %v4234, %v4559
      %v4651 = vadd.f32 %v4235, %v4563
      %v4652 = vadd.f32 %v4236, %v4565
      %v4653 = vadd.f32 %v4237, %v4567
      %v4654 = vadd.f32 %v4238, %v4569
      %v4655 = vadd.f32 %v4239, %v4573
      %v4656 = vadd.f32 %v4240, %v4575
      %v4657 = vadd.f32 %v4241, %v4577
      %v4658 = vadd.f32 %v4242, %v4579
      %v4659 = vadd.f32 %v4243, %v4583
      %v4660 = vadd.f32 %v4244, %v4585
      %v4661 = vadd.f32 %v4245, %v4587
      %v4662 = vadd.f32 %v4246, %v4589
      %4663 = vst [vmem:[#allocation2] sm:$0xff] %v4591
      %4664 = vst [vmem:[#allocation2 + $0x8] sm:$0xff] %v4592
      %4665 = vst [vmem:[#allocation2 + $0x10] sm:$0xff] %v4593
      %4666 = vst [vmem:[#allocation2 + $0x18] sm:$0xff] %v4594
      %4667 = vst [vmem:[#allocation2 + $0x20] sm:$0xff] %v4595
      %4668 = vst [vmem:[#allocation2 + $0x28] sm:$0xff] %v4596
      %4669 = vst [vmem:[#allocation2 + $0x30] sm:$0xff] %v4597
      %4670 = vst [vmem:[#allocation2 + $0x38] sm:$0xff] %v4598
      %4671 = vst [vmem:[#allocation2 + $0x40] sm:$0xff] %v4599
      %4672 = vst [vmem:[#allocation2 + $0x48] sm:$0xff] %v4600
      %4673 = vst [vmem:[#allocation2 + $0x50] sm:$0xff] %v4601
      %4674 = vst [vmem:[#allocation2 + $0x58] sm:$0xff] %v4602
      %4675 = vst [vmem:[#allocation2 + $0x60] sm:$0xff] %v4603
      %4676 = vst [vmem:[#allocation2 + $0x68] sm:$0xff] %v4604
      %4677 = vst [vmem:[#allocation2 + $0x70] sm:$0xff] %v4605
      %4678 = vst [vmem:[#allocation2 + $0x78] sm:$0xff] %v4606
      %4679 = vst [vmem:[#allocation2 + $0x80] sm:$0xff] %v4607
      %4680 = vst [vmem:[#allocation2 + $0x88] sm:$0xff] %v4608
      %4681 = vst [vmem:[#allocation2 + $0x90] sm:$0xff] %v4609
      %4682 = vst [vmem:[#allocation2 + $0x98] sm:$0xff] %v4610
      %4683 = vst [vmem:[#allocation2 + $0xa0] sm:$0xff] %v4611
      %4684 = vst [vmem:[#allocation2 + $0xa8] sm:$0xff] %v4612
      %4685 = vst [vmem:[#allocation2 + $0xb0] sm:$0xff] %v4613
      %4686 = vst [vmem:[#allocation2 + $0xb8] sm:$0xff] %v4614
      %4687 = vst [vmem:[#allocation2 + $0xc0] sm:$0xff] %v4615
      %4688 = vst [vmem:[#allocation2 + $0xc8] sm:$0xff] %v4616
      %4689 = vst [vmem:[#allocation2 + $0xd0] sm:$0xff] %v4617
      %4690 = vst [vmem:[#allocation2 + $0xd8] sm:$0xff] %v4618
      %4691 = vst [vmem:[#allocation2 + $0xe0] sm:$0xff] %v4619
      %4692 = vst [vmem:[#allocation2 + $0xe8] sm:$0xff] %v4620
      %4693 = vst [vmem:[#allocation2 + $0xf0] sm:$0xff] %v4621
      %4694 = vst [vmem:[#allocation2 + $0xf8] sm:$0xff] %v4622
      %4695 = vst [vmem:[#allocation2 + $0x100] sm:$0xff] %v4623
      %4696 = vst [vmem:[#allocation2 + $0x108] sm:$0xff] %v4624
      %4697 = vst [vmem:[#allocation2 + $0x110] sm:$0xff] %v4625
      %4698 = vst [vmem:[#allocation2 + $0x118] sm:$0xff] %v4626
      %4699 = vst [vmem:[#allocation2 + $0x120] sm:$0xff] %v4627
      %4700 = vst [vmem:[#allocation2 + $0x128] sm:$0xff] %v4628
      %4701 = vst [vmem:[#allocation2 + $0x130] sm:$0xff] %v4629
      %4702 = vst [vmem:[#allocation2 + $0x138] sm:$0xff] %v4630
      %4703 = vst [vmem:[#allocation2 + $0x140] sm:$0xff] %v4631
      %4704 = vst [vmem:[#allocation2 + $0x148] sm:$0xff] %v4632
      %4705 = vst [vmem:[#allocation2 + $0x150] sm:$0xff] %v4633
      %4706 = vst [vmem:[#allocation2 + $0x158] sm:$0xff] %v4634
      %4707 = vst [vmem:[#allocation2 + $0x160] sm:$0xff] %v4635
      %4708 = vst [vmem:[#allocation2 + $0x168] sm:$0xff] %v4636
      %4709 = vst [vmem:[#allocation2 + $0x170] sm:$0xff] %v4637
      %4710 = vst [vmem:[#allocation2 + $0x178] sm:$0xff] %v4638
      %4711 = vst [vmem:[#allocation2 + $0x180] sm:$0xff] %v4639
      %4712 = vst [vmem:[#allocation2 + $0x188] sm:$0xff] %v4640
      %4713 = vst [vmem:[#allocation2 + $0x190] sm:$0xff] %v4641
      %4714 = vst [vmem:[#allocation2 + $0x198] sm:$0xff] %v4642
      %4715 = vst [vmem:[#allocation2 + $0x1a0] sm:$0xff] %v4643
      %4716 = vst [vmem:[#allocation2 + $0x1a8] sm:$0xff] %v4644
      %4717 = vst [vmem:[#allocation2 + $0x1b0] sm:$0xff] %v4645
      %4718 = vst [vmem:[#allocation2 + $0x1b8] sm:$0xff] %v4646
      %4719 = vst [vmem:[#allocation2 + $0x1c0] sm:$0xff] %v4647
      %4720 = vst [vmem:[#allocation2 + $0x1c8] sm:$0xff] %v4648
      %4721 = vst [vmem:[#allocation2 + $0x1d0] sm:$0xff] %v4649
      %4722 = vst [vmem:[#allocation2 + $0x1d8] sm:$0xff] %v4650
      %4723 = vst [vmem:[#allocation2 + $0x1e0] sm:$0xff] %v4651
      %4724 = vst [vmem:[#allocation2 + $0x1e8] sm:$0xff] %v4652
      %4725 = vst [vmem:[#allocation2 + $0x1f0] sm:$0xff] %v4653
      %4726 = vst [vmem:[#allocation2 + $0x1f8] sm:$0xff] %v4654
      %4727 = vst [vmem:[#allocation2 + $0x200] sm:$0xff] %v4655
      %4728 = vst [vmem:[#allocation2 + $0x208] sm:$0xff] %v4656
      %4729 = vst [vmem:[#allocation2 + $0x210] sm:$0xff] %v4657
      %4730 = vst [vmem:[#allocation2 + $0x218] sm:$0xff] %v4658
      %4731 = vst [vmem:[#allocation2 + $0x220] sm:$0xff] %v4659
      %4732 = vst [vmem:[#allocation2 + $0x228] sm:$0xff] %v4660
      %4733 = vst [vmem:[#allocation2 + $0x230] sm:$0xff] %v4661
      %4734 = vst [vmem:[#allocation2 + $0x238] sm:$0xff] %v4662
      %v4735 = vld [vmem:[#allocation2] sm:$0xff]
      %v4736 = vld [vmem:[#allocation2 + $0x8] sm:$0xff]
      %v4737 = vld [vmem:[#allocation2 + $0x10] sm:$0xff]
      %v4738 = vld [vmem:[#allocation2 + $0x18] sm:$0xff]
      %v4739 = vld [vmem:[#allocation2 + $0x20] sm:$0xff]
      %v4740 = vld [vmem:[#allocation2 + $0x28] sm:$0xff]
      %v4741 = vld [vmem:[#allocation2 + $0x30] sm:$0xff]
      %v4742 = vld [vmem:[#allocation2 + $0x38] sm:$0xff]
      %v4743 = vld [vmem:[#allocation2 + $0x40] sm:$0xff]
      %v4744 = vld [vmem:[#allocation2 + $0x48] sm:$0xff]
      %v4745 = vld [vmem:[#allocation2 + $0x50] sm:$0xff]
      %v4746 = vld [vmem:[#allocation2 + $0x58] sm:$0xff]
      %v4747 = vld [vmem:[#allocation2 + $0x60] sm:$0xff]
      %v4748 = vld [vmem:[#allocation2 + $0x68] sm:$0xff]
      %v4749 = vld [vmem:[#allocation2 + $0x70] sm:$0xff]
      %v4750 = vld [vmem:[#allocation2 + $0x78] sm:$0xff]
      %v4751 = vld [vmem:[#allocation2 + $0x80] sm:$0xff]
      %v4752 = vld [vmem:[#allocation2 + $0x88] sm:$0xff]
      %v4753 = vld [vmem:[#allocation2 + $0x90] sm:$0xff]
      %v4754 = vld [vmem:[#allocation2 + $0x98] sm:$0xff]
      %v4755 = vld [vmem:[#allocation2 + $0xa0] sm:$0xff]
      %v4756 = vld [vmem:[#allocation2 + $0xa8] sm:$0xff]
      %v4757 = vld [vmem:[#allocation2 + $0xb0] sm:$0xff]
      %v4758 = vld [vmem:[#allocation2 + $0xb8] sm:$0xff]
      %v4759 = vld [vmem:[#allocation2 + $0xc0] sm:$0xff]
      %v4760 = vld [vmem:[#allocation2 + $0xc8] sm:$0xff]
      %v4761 = vld [vmem:[#allocation2 + $0xd0] sm:$0xff]
      %v4762 = vld [vmem:[#allocation2 + $0xd8] sm:$0xff]
      %v4763 = vld [vmem:[#allocation2 + $0xe0] sm:$0xff]
      %v4764 = vld [vmem:[#allocation2 + $0xe8] sm:$0xff]
      %v4765 = vld [vmem:[#allocation2 + $0xf0] sm:$0xff]
      %v4766 = vld [vmem:[#allocation2 + $0xf8] sm:$0xff]
      %v4767 = vld [vmem:[#allocation2 + $0x100] sm:$0xff]
      %v4768 = vld [vmem:[#allocation2 + $0x108] sm:$0xff]
      %v4769 = vld [vmem:[#allocation2 + $0x110] sm:$0xff]
      %v4770 = vld [vmem:[#allocation2 + $0x118] sm:$0xff]
      %v4771 = vld [vmem:[#allocation2 + $0x120] sm:$0xff]
      %v4772 = vld [vmem:[#allocation2 + $0x128] sm:$0xff]
      %v4773 = vld [vmem:[#allocation2 + $0x130] sm:$0xff]
      %v4774 = vld [vmem:[#allocation2 + $0x138] sm:$0xff]
      %v4775 = vld [vmem:[#allocation2 + $0x140] sm:$0xff]
      %v4776 = vld [vmem:[#allocation2 + $0x148] sm:$0xff]
      %v4777 = vld [vmem:[#allocation2 + $0x150] sm:$0xff]
      %v4778 = vld [vmem:[#allocation2 + $0x158] sm:$0xff]
      %v4779 = vld [vmem:[#allocation2 + $0x160] sm:$0xff]
      %v4780 = vld [vmem:[#allocation2 + $0x168] sm:$0xff]
      %v4781 = vld [vmem:[#allocation2 + $0x170] sm:$0xff]
      %v4782 = vld [vmem:[#allocation2 + $0x178] sm:$0xff]
      %v4783 = vld [vmem:[#allocation2 + $0x180] sm:$0xff]
      %v4784 = vld [vmem:[#allocation2 + $0x188] sm:$0xff]
      %v4785 = vld [vmem:[#allocation2 + $0x190] sm:$0xff]
      %v4786 = vld [vmem:[#allocation2 + $0x198] sm:$0xff]
      %v4787 = vld [vmem:[#allocation2 + $0x1a0] sm:$0xff]
      %v4788 = vld [vmem:[#allocation2 + $0x1a8] sm:$0xff]
      %v4789 = vld [vmem:[#allocation2 + $0x1b0] sm:$0xff]
      %v4790 = vld [vmem:[#allocation2 + $0x1b8] sm:$0xff]
      %v4791 = vld [vmem:[#allocation2 + $0x1c0] sm:$0xff]
      %v4792 = vld [vmem:[#allocation2 + $0x1c8] sm:$0xff]
      %v4793 = vld [vmem:[#allocation2 + $0x1d0] sm:$0xff]
      %v4794 = vld [vmem:[#allocation2 + $0x1d8] sm:$0xff]
      %v4795 = vld [vmem:[#allocation2 + $0x1e0] sm:$0xff]
      %v4796 = vld [vmem:[#allocation2 + $0x1e8] sm:$0xff]
      %v4797 = vld [vmem:[#allocation2 + $0x1f0] sm:$0xff]
      %v4798 = vld [vmem:[#allocation2 + $0x1f8] sm:$0xff]
      %v4799 = vld [vmem:[#allocation2 + $0x200] sm:$0xff]
      %v4800 = vld [vmem:[#allocation2 + $0x208] sm:$0xff]
      %v4801 = vld [vmem:[#allocation2 + $0x210] sm:$0xff]
      %v4802 = vld [vmem:[#allocation2 + $0x218] sm:$0xff]
      %v4803 = vld [vmem:[#allocation2 + $0x220] sm:$0xff]
      %v4804 = vld [vmem:[#allocation2 + $0x228] sm:$0xff]
      %v4805 = vld [vmem:[#allocation2 + $0x230] sm:$0xff]
      %v4806 = vld [vmem:[#allocation2 + $0x238] sm:$0xff]
      %s4807 = scalar_lea.vmem %s1, 32
      %v4808 = vld [vmem:[%s4807] sm:$0xf]
      %4809 = vrot.lane.b32.xlu0 %v324, 90
      %v4810 = vpop.permute.xlu0 %4809
      %4811 = vrot.lane.b32.xlu0 %v332, 90
      %v4812 = vpop.permute.xlu0 %4811
      %4813 = vrot.lane.b32.xlu0 %v331, 90
      %v4814 = vpop.permute.xlu0 %4813
      %vm4815 = vcmask 736256
      %v4816 = vsel %vm4815, %v4810, %v4812
      %v4817 = vsel %vm4815, %v4812, %v4814
      %4821 = vxpose.xlu0.c.b16.start [1/8] %v4816, 128
      %4822 = vxpose.xlu0.c.b16.cont [2/8] 0, 128
      %4823 = vxpose.xlu0.c.b16.cont [3/8] 0, 128
      %4824 = vxpose.xlu0.c.b16.cont [4/8] 0, 128
      %4825 = vxpose.xlu0.c.b16.cont [5/8] 0, 128
      %4826 = vxpose.xlu0.c.b16.cont [6/8] 0, 128
      %4827 = vxpose.xlu0.c.b16.cont [7/8] 0, 128
      %4828 = vxpose.xlu0.c.b16.end [8/8] 0, 128
      %v4829 = vpop.trf.xlu0
      %v4830 = vpop.trf.xlu0
      %v4831 = vpop.trf.xlu0
      %v4832 = vpop.trf.xlu0
      %v4833 = vpop.trf.xlu0
      %v4834 = vpop.trf.xlu0
      %v4835 = vpop.trf.xlu0
      %v4836 = vpop.trf.xlu0
      %4837 = vxpose.xlu0.c.b16.start [1/8] %v4817, 128
      %4838 = vxpose.xlu0.c.b16.cont [2/8] 0, 128
      %4839 = vxpose.xlu0.c.b16.cont [3/8] 0, 128
      %4840 = vxpose.xlu0.c.b16.cont [4/8] 0, 128
      %4841 = vxpose.xlu0.c.b16.cont [5/8] 0, 128
      %4842 = vxpose.xlu0.c.b16.cont [6/8] 0, 128
      %4843 = vxpose.xlu0.c.b16.cont [7/8] 0, 128
      %4844 = vxpose.xlu0.c.b16.end [8/8] 0, 128
      %v4845 = vpop.trf.xlu0
      %v4846 = vpop.trf.xlu0
      %v4847 = vpop.trf.xlu0
      %v4848 = vpop.trf.xlu0
      %v4849 = vpop.trf.xlu0
      %v4850 = vpop.trf.xlu0
      %v4851 = vpop.trf.xlu0
      %v4852 = vpop.trf.xlu0
      %4853 = vxpose.xlu0.c.b16.start [1/8] %v4814, 128
      %4854 = vxpose.xlu0.c.b16.cont [2/8] 0, 128
      %4855 = vxpose.xlu0.c.b16.cont [3/8] 0, 128
      %4856 = vxpose.xlu0.c.b16.cont [4/8] 0, 128
      %4857 = vxpose.xlu0.c.b16.cont [5/8] 0, 128
      %4858 = vxpose.xlu0.c.b16.cont [6/8] 0, 128
      %4859 = vxpose.xlu0.c.b16.cont [7/8] 0, 128
      %4860 = vxpose.xlu0.c.b16.end [8/8] 0, 128
      %v4861 = vpop.trf.xlu0
      %v4862 = vpop.trf.xlu0
      %v4863 = vpop.trf.xlu0
      %v4864 = vpop.trf.xlu0
      %v4865 = vpop.trf.xlu0
      %v4866 = vpop.trf.xlu0
      %v4867 = vpop.trf.xlu0
      %v4868 = vpop.trf.xlu0
      %v4871 = vunpack.c.l.s4 1983009808
      %v4872 = vunpack.c.0.s8 %v4871
      %v4873 = vlaneseq
      %v4874 = vshrl.u32 %v4873, 7
      %v4875 = vsub.s32 %v4872, %v4874
      %v4876 = vrot.slane %v4808, %v4875
      %v4877 = vcombine.high %v4876, %v4876
      %v4879 = vsel %vm393, %v4829, 0
      %v4882 = vsel %vm393, %v4830, 0
      %v4885 = vsel %vm393, %v4831, 0
      %v4888 = vsel %vm393, %v4832, 0
      %v4891 = vsel %vm393, %v4833, 0
      %v4894 = vsel %vm393, %v4834, 0
      %v4897 = vsel %vm393, %v4835, 0
      %v4900 = vsel %vm393, %v4836, 0
      %v4903 = vsel %vm393, %v4845, 0
      %v4906 = vsel %vm393, %v4846, 0
      %v4909 = vsel %vm393, %v4847, 0
      %v4912 = vsel %vm393, %v4848, 0
      %v4915 = vsel %vm393, %v4849, 0
      %v4918 = vsel %vm393, %v4850, 0
      %v4921 = vsel %vm393, %v4851, 0
      %v4924 = vsel %vm393, %v4852, 0
      %v4927 = vsel %vm393, %v4861, 0
      %v4930 = vsel %vm393, %v4862, 0
      %v4933 = vand.u32 %v4876, %v451
      %v4936 = vand.u32 %v4877, %v451
      %4938 = vmatprep.subr.bf16.mxu0 %v4936
      %4939 = vmatpush1.bf16.msra.mxu0 %v4933
      %4940 = vmatprep.subr.bf16.mxu0 0
      %4941 = vmatpush1.bf16.msra.mxu0 0
      %4942 = vmatprep.subr.bf16.mxu0 0
      %4943 = vmatpush1.bf16.msra.mxu0 0
      %4944 = vmatprep.subr.bf16.mxu0 0
      %4945 = vmatpush1.bf16.msra.mxu0 0
      %4946 = vmatprep.subr.bf16.mxu0 0
      %4947 = vmatpush1.bf16.msra.mxu0 0
      %4948 = vmatprep.subr.bf16.mxu0 0
      %4949 = vmatpush1.bf16.msra.mxu0 0
      %4950 = vmatprep.subr.bf16.mxu0 0
      %4951 = vmatpush1.bf16.msra.mxu0 0
      %4952 = vmatprep.subr.bf16.mxu0 0
      %4953 = vmatpush1.bf16.msra.mxu0 0
      %4954 = vmatprep.subr.bf16.mxu0 0
      %4955 = vmatpush1.bf16.msra.mxu0 0
      %4956 = vmatprep.subr.bf16.mxu0 0
      %4957 = vmatpush1.bf16.msra.mxu0 0
      %4958 = vmatprep.subr.bf16.mxu0 0
      %4959 = vmatpush1.bf16.msra.mxu0 0
      %4960 = vmatprep.subr.bf16.mxu0 0
      %4961 = vmatpush1.bf16.msra.mxu0 0
      %4962 = vmatprep.subr.bf16.mxu0 0
      %4963 = vmatpush1.bf16.msra.mxu0 0
      %4964 = vmatprep.subr.bf16.mxu0 0
      %4965 = vmatpush1.bf16.msra.mxu0 0
      %4966 = vmatprep.subr.bf16.mxu0 0
      %4967 = vmatpush1.bf16.msra.mxu0 0
      %4968 = vmatprep.subr.bf16.mxu0 0
      %4969 = vmatpush1.bf16.msra.mxu0 0
      %4970 = vmatprep.mubr.bf16.mxu0 0
      %4971 = vmatmul.mubr.bf16.gmra.mrb[0].mxu0 %v4879
      %v4972 = vpop.f32.mrb[0].mxu0
      %v4973 = vadd.f32 0.0, %v4972
      %v4974 = vpop.f32.mrb[0].mxu0
      %v4975 = vadd.f32 0.0, %v4974
      %v4976 = vpop.f32.mrb[0].mxu0
      %v4977 = vadd.f32 0.0, %v4976
      %v4978 = vpop.f32.mrb[0].mxu0
      %v4979 = vadd.f32 0.0, %v4978
      %4980 = vmatprep.mubr.bf16.mxu0 0
      %4981 = vmatmul.mubr.bf16.gmra.mrb[0].mxu0 %v4882
      %v4982 = vpop.f32.mrb[0].mxu0
      %v4983 = vadd.f32 0.0, %v4982
      %v4984 = vpop.f32.mrb[0].mxu0
      %v4985 = vadd.f32 0.0, %v4984
      %v4986 = vpop.f32.mrb[0].mxu0
      %v4987 = vadd.f32 0.0, %v4986
      %v4988 = vpop.f32.mrb[0].mxu0
      %v4989 = vadd.f32 0.0, %v4988
      %4990 = vmatprep.mubr.bf16.mxu0 0
      %4991 = vmatmul.mubr.bf16.gmra.mrb[0].mxu0 %v4885
      %v4992 = vpop.f32.mrb[0].mxu0
      %v4993 = vadd.f32 0.0, %v4992
      %v4994 = vpop.f32.mrb[0].mxu0
      %v4995 = vadd.f32 0.0, %v4994
      %v4996 = vpop.f32.mrb[0].mxu0
      %v4997 = vadd.f32 0.0, %v4996
      %v4998 = vpop.f32.mrb[0].mxu0
      %v4999 = vadd.f32 0.0, %v4998
      %5000 = vmatprep.mubr.bf16.mxu0 0
      %5001 = vmatmul.mubr.bf16.gmra.mrb[0].mxu0 %v4888
      %v5002 = vpop.f32.mrb[0].mxu0
      %v5003 = vadd.f32 0.0, %v5002
      %v5004 = vpop.f32.mrb[0].mxu0
      %v5005 = vadd.f32 0.0, %v5004
      %v5006 = vpop.f32.mrb[0].mxu0
      %v5007 = vadd.f32 0.0, %v5006
      %v5008 = vpop.f32.mrb[0].mxu0
      %v5009 = vadd.f32 0.0, %v5008
      %5010 = vmatprep.mubr.bf16.mxu0 0
      %5011 = vmatmul.mubr.bf16.gmra.mrb[0].mxu0 %v4891
      %v5012 = vpop.f32.mrb[0].mxu0
      %v5013 = vadd.f32 0.0, %v5012
      %v5014 = vpop.f32.mrb[0].mxu0
      %v5015 = vadd.f32 0.0, %v5014
      %v5016 = vpop.f32.mrb[0].mxu0
      %v5017 = vadd.f32 0.0, %v5016
      %v5018 = vpop.f32.mrb[0].mxu0
      %v5019 = vadd.f32 0.0, %v5018
      %5020 = vmatprep.mubr.bf16.mxu0 0
      %5021 = vmatmul.mubr.bf16.gmra.mrb[0].mxu0 %v4894
      %v5022 = vpop.f32.mrb[0].mxu0
      %v5023 = vadd.f32 0.0, %v5022
      %v5024 = vpop.f32.mrb[0].mxu0
      %v5025 = vadd.f32 0.0, %v5024
      %v5026 = vpop.f32.mrb[0].mxu0
      %v5027 = vadd.f32 0.0, %v5026
      %v5028 = vpop.f32.mrb[0].mxu0
      %v5029 = vadd.f32 0.0, %v5028
      %5030 = vmatprep.mubr.bf16.mxu0 0
      %5031 = vmatmul.mubr.bf16.gmra.mrb[0].mxu0 %v4897
      %v5032 = vpop.f32.mrb[0].mxu0
      %v5033 = vadd.f32 0.0, %v5032
      %v5034 = vpop.f32.mrb[0].mxu0
      %v5035 = vadd.f32 0.0, %v5034
      %v5036 = vpop.f32.mrb[0].mxu0
      %v5037 = vadd.f32 0.0, %v5036
      %v5038 = vpop.f32.mrb[0].mxu0
      %v5039 = vadd.f32 0.0, %v5038
      %5040 = vmatprep.mubr.bf16.mxu0 0
      %5041 = vmatmul.mubr.bf16.gmra.mrb[0].mxu0 %v4900
      %v5042 = vpop.f32.mrb[0].mxu0
      %v5043 = vadd.f32 0.0, %v5042
      %v5044 = vpop.f32.mrb[0].mxu0
      %v5045 = vadd.f32 0.0, %v5044
      %v5046 = vpop.f32.mrb[0].mxu0
      %v5047 = vadd.f32 0.0, %v5046
      %v5048 = vpop.f32.mrb[0].mxu0
      %v5049 = vadd.f32 0.0, %v5048
      %5050 = vmatprep.mubr.bf16.mxu0 0
      %5051 = vmatmul.mubr.bf16.gmra.mrb[0].mxu0 %v4903
      %v5052 = vpop.f32.mrb[0].mxu0
      %v5053 = vadd.f32 0.0, %v5052
      %v5054 = vpop.f32.mrb[0].mxu0
      %v5055 = vadd.f32 0.0, %v5054
      %v5056 = vpop.f32.mrb[0].mxu0
      %v5057 = vadd.f32 0.0, %v5056
      %v5058 = vpop.f32.mrb[0].mxu0
      %v5059 = vadd.f32 0.0, %v5058
      %5060 = vmatprep.mubr.bf16.mxu0 0
      %5061 = vmatmul.mubr.bf16.gmra.mrb[0].mxu0 %v4906
      %v5062 = vpop.f32.mrb[0].mxu0
      %v5063 = vadd.f32 0.0, %v5062
      %v5064 = vpop.f32.mrb[0].mxu0
      %v5065 = vadd.f32 0.0, %v5064
      %v5066 = vpop.f32.mrb[0].mxu0
      %v5067 = vadd.f32 0.0, %v5066
      %v5068 = vpop.f32.mrb[0].mxu0
      %v5069 = vadd.f32 0.0, %v5068
      %5070 = vmatprep.mubr.bf16.mxu0 0
      %5071 = vmatmul.mubr.bf16.gmra.mrb[0].mxu0 %v4909
      %v5072 = vpop.f32.mrb[0].mxu0
      %v5073 = vadd.f32 0.0, %v5072
      %v5074 = vpop.f32.mrb[0].mxu0
      %v5075 = vadd.f32 0.0, %v5074
      %v5076 = vpop.f32.mrb[0].mxu0
      %v5077 = vadd.f32 0.0, %v5076
      %v5078 = vpop.f32.mrb[0].mxu0
      %v5079 = vadd.f32 0.0, %v5078
      %5080 = vmatprep.mubr.bf16.mxu0 0
      %5081 = vmatmul.mubr.bf16.gmra.mrb[0].mxu0 %v4912
      %v5082 = vpop.f32.mrb[0].mxu0
      %v5083 = vadd.f32 0.0, %v5082
      %v5084 = vpop.f32.mrb[0].mxu0
      %v5085 = vadd.f32 0.0, %v5084
      %v5086 = vpop.f32.mrb[0].mxu0
      %v5087 = vadd.f32 0.0, %v5086
      %v5088 = vpop.f32.mrb[0].mxu0
      %v5089 = vadd.f32 0.0, %v5088
      %5090 = vmatprep.mubr.bf16.mxu0 0
      %5091 = vmatmul.mubr.bf16.gmra.mrb[0].mxu0 %v4915
      %v5092 = vpop.f32.mrb[0].mxu0
      %v5093 = vadd.f32 0.0, %v5092
      %v5094 = vpop.f32.mrb[0].mxu0
      %v5095 = vadd.f32 0.0, %v5094
      %v5096 = vpop.f32.mrb[0].mxu0
      %v5097 = vadd.f32 0.0, %v5096
      %v5098 = vpop.f32.mrb[0].mxu0
      %v5099 = vadd.f32 0.0, %v5098
      %5100 = vmatprep.mubr.bf16.mxu0 0
      %5101 = vmatmul.mubr.bf16.gmra.mrb[0].mxu0 %v4918
      %v5102 = vpop.f32.mrb[0].mxu0
      %v5103 = vadd.f32 0.0, %v5102
      %v5104 = vpop.f32.mrb[0].mxu0
      %v5105 = vadd.f32 0.0, %v5104
      %v5106 = vpop.f32.mrb[0].mxu0
      %v5107 = vadd.f32 0.0, %v5106
      %v5108 = vpop.f32.mrb[0].mxu0
      %v5109 = vadd.f32 0.0, %v5108
      %5110 = vmatprep.mubr.bf16.mxu0 0
      %5111 = vmatmul.mubr.bf16.gmra.mrb[0].mxu0 %v4921
      %v5112 = vpop.f32.mrb[0].mxu0
      %v5113 = vadd.f32 0.0, %v5112
      %v5114 = vpop.f32.mrb[0].mxu0
      %v5115 = vadd.f32 0.0, %v5114
      %v5116 = vpop.f32.mrb[0].mxu0
      %v5117 = vadd.f32 0.0, %v5116
      %v5118 = vpop.f32.mrb[0].mxu0
      %v5119 = vadd.f32 0.0, %v5118
      %5120 = vmatprep.mubr.bf16.mxu0 0
      %5121 = vmatmul.mubr.bf16.gmra.mrb[0].mxu0 %v4924
      %v5122 = vpop.f32.mrb[0].mxu0
      %v5123 = vadd.f32 0.0, %v5122
      %v5124 = vpop.f32.mrb[0].mxu0
      %v5125 = vadd.f32 0.0, %v5124
      %v5126 = vpop.f32.mrb[0].mxu0
      %v5127 = vadd.f32 0.0, %v5126
      %v5128 = vpop.f32.mrb[0].mxu0
      %v5129 = vadd.f32 0.0, %v5128
      %5130 = vmatprep.mubr.bf16.mxu0 0
      %5131 = vmatmul.mubr.bf16.gmra.mrb[0].mxu0 %v4927
      %v5132 = vpop.f32.mrb[0].mxu0
      %v5133 = vadd.f32 0.0, %v5132
      %v5134 = vpop.f32.mrb[0].mxu0
      %v5135 = vadd.f32 0.0, %v5134
      %v5136 = vpop.f32.mrb[0].mxu0
      %v5137 = vadd.f32 0.0, %v5136
      %v5138 = vpop.f32.mrb[0].mxu0
      %v5139 = vadd.f32 0.0, %v5138
      %5140 = vmatprep.mubr.bf16.mxu0 0
      %5141 = vmatmul.mubr.bf16.gmra.mrb[0].mxu0 %v4930
      %v5142 = vpop.f32.mrb[0].mxu0
      %v5143 = vadd.f32 0.0, %v5142
      %v5144 = vpop.f32.mrb[0].mxu0
      %v5145 = vadd.f32 0.0, %v5144
      %v5146 = vpop.f32.mrb[0].mxu0
      %v5147 = vadd.f32 0.0, %v5146
      %v5148 = vpop.f32.mrb[0].mxu0
      %v5149 = vadd.f32 0.0, %v5148
      %5150 = vdwg.mxu0
      %v5151 = vadd.f32 %v4735, %v4973
      %v5152 = vadd.f32 %v4736, %v4975
      %v5153 = vadd.f32 %v4737, %v4977
      %v5154 = vadd.f32 %v4738, %v4979
      %v5155 = vadd.f32 %v4739, %v4983
      %v5156 = vadd.f32 %v4740, %v4985
      %v5157 = vadd.f32 %v4741, %v4987
      %v5158 = vadd.f32 %v4742, %v4989
      %v5159 = vadd.f32 %v4743, %v4993
      %v5160 = vadd.f32 %v4744, %v4995
      %v5161 = vadd.f32 %v4745, %v4997
      %v5162 = vadd.f32 %v4746, %v4999
      %v5163 = vadd.f32 %v4747, %v5003
      %v5164 = vadd.f32 %v4748, %v5005
      %v5165 = vadd.f32 %v4749, %v5007
      %v5166 = vadd.f32 %v4750, %v5009
      %v5167 = vadd.f32 %v4751, %v5013
      %v5168 = vadd.f32 %v4752, %v5015
      %v5169 = vadd.f32 %v4753, %v5017
      %v5170 = vadd.f32 %v4754, %v5019
      %v5171 = vadd.f32 %v4755, %v5023
      %v5172 = vadd.f32 %v4756, %v5025
      %v5173 = vadd.f32 %v4757, %v5027
      %v5174 = vadd.f32 %v4758, %v5029
      %v5175 = vadd.f32 %v4759, %v5033
      %v5176 = vadd.f32 %v4760, %v5035
      %v5177 = vadd.f32 %v4761, %v5037
      %v5178 = vadd.f32 %v4762, %v5039
      %v5179 = vadd.f32 %v4763, %v5043
      %v5180 = vadd.f32 %v4764, %v5045
      %v5181 = vadd.f32 %v4765, %v5047
      %v5182 = vadd.f32 %v4766, %v5049
      %v5183 = vadd.f32 %v4767, %v5053
      %v5184 = vadd.f32 %v4768, %v5055
      %v5185 = vadd.f32 %v4769, %v5057
      %v5186 = vadd.f32 %v4770, %v5059
      %v5187 = vadd.f32 %v4771, %v5063
      %v5188 = vadd.f32 %v4772, %v5065
      %v5189 = vadd.f32 %v4773, %v5067
      %v5190 = vadd.f32 %v4774, %v5069
      %v5191 = vadd.f32 %v4775, %v5073
      %v5192 = vadd.f32 %v4776, %v5075
      %v5193 = vadd.f32 %v4777, %v5077
      %v5194 = vadd.f32 %v4778, %v5079
      %v5195 = vadd.f32 %v4779, %v5083
      %v5196 = vadd.f32 %v4780, %v5085
      %v5197 = vadd.f32 %v4781, %v5087
      %v5198 = vadd.f32 %v4782, %v5089
      %v5199 = vadd.f32 %v4783, %v5093
      %v5200 = vadd.f32 %v4784, %v5095
      %v5201 = vadd.f32 %v4785, %v5097
      %v5202 = vadd.f32 %v4786, %v5099
      %v5203 = vadd.f32 %v4787, %v5103
      %v5204 = vadd.f32 %v4788, %v5105
      %v5205 = vadd.f32 %v4789, %v5107
      %v5206 = vadd.f32 %v4790, %v5109
      %v5207 = vadd.f32 %v4791, %v5113
      %v5208 = vadd.f32 %v4792, %v5115
      %v5209 = vadd.f32 %v4793, %v5117
      %v5210 = vadd.f32 %v4794, %v5119
      %v5211 = vadd.f32 %v4795, %v5123
      %v5212 = vadd.f32 %v4796, %v5125
      %v5213 = vadd.f32 %v4797, %v5127
      %v5214 = vadd.f32 %v4798, %v5129
      %v5215 = vadd.f32 %v4799, %v5133
      %v5216 = vadd.f32 %v4800, %v5135
      %v5217 = vadd.f32 %v4801, %v5137
      %v5218 = vadd.f32 %v4802, %v5139
      %v5219 = vadd.f32 %v4803, %v5143
      %v5220 = vadd.f32 %v4804, %v5145
      %v5221 = vadd.f32 %v4805, %v5147
      %v5222 = vadd.f32 %v4806, %v5149
      %5223 = vst [vmem:[#allocation2] sm:$0xff] %v5151
      %5224 = vst [vmem:[#allocation2 + $0x8] sm:$0xff] %v5152
      %5225 = vst [vmem:[#allocation2 + $0x10] sm:$0xff] %v5153
      %5226 = vst [vmem:[#allocation2 + $0x18] sm:$0xff] %v5154
      %5227 = vst [vmem:[#allocation2 + $0x20] sm:$0xff] %v5155
      %5228 = vst [vmem:[#allocation2 + $0x28] sm:$0xff] %v5156
      %5229 = vst [vmem:[#allocation2 + $0x30] sm:$0xff] %v5157
      %5230 = vst [vmem:[#allocation2 + $0x38] sm:$0xff] %v5158
      %5231 = vst [vmem:[#allocation2 + $0x40] sm:$0xff] %v5159
      %5232 = vst [vmem:[#allocation2 + $0x48] sm:$0xff] %v5160
      %5233 = vst [vmem:[#allocation2 + $0x50] sm:$0xff] %v5161
      %5234 = vst [vmem:[#allocation2 + $0x58] sm:$0xff] %v5162
      %5235 = vst [vmem:[#allocation2 + $0x60] sm:$0xff] %v5163
      %5236 = vst [vmem:[#allocation2 + $0x68] sm:$0xff] %v5164
      %5237 = vst [vmem:[#allocation2 + $0x70] sm:$0xff] %v5165
      %5238 = vst [vmem:[#allocation2 + $0x78] sm:$0xff] %v5166
      %5239 = vst [vmem:[#allocation2 + $0x80] sm:$0xff] %v5167
      %5240 = vst [vmem:[#allocation2 + $0x88] sm:$0xff] %v5168
      %5241 = vst [vmem:[#allocation2 + $0x90] sm:$0xff] %v5169
      %5242 = vst [vmem:[#allocation2 + $0x98] sm:$0xff] %v5170
      %5243 = vst [vmem:[#allocation2 + $0xa0] sm:$0xff] %v5171
      %5244 = vst [vmem:[#allocation2 + $0xa8] sm:$0xff] %v5172
      %5245 = vst [vmem:[#allocation2 + $0xb0] sm:$0xff] %v5173
      %5246 = vst [vmem:[#allocation2 + $0xb8] sm:$0xff] %v5174
      %5247 = vst [vmem:[#allocation2 + $0xc0] sm:$0xff] %v5175
      %5248 = vst [vmem:[#allocation2 + $0xc8] sm:$0xff] %v5176
      %5249 = vst [vmem:[#allocation2 + $0xd0] sm:$0xff] %v5177
      %5250 = vst [vmem:[#allocation2 + $0xd8] sm:$0xff] %v5178
      %5251 = vst [vmem:[#allocation2 + $0xe0] sm:$0xff] %v5179
      %5252 = vst [vmem:[#allocation2 + $0xe8] sm:$0xff] %v5180
      %5253 = vst [vmem:[#allocation2 + $0xf0] sm:$0xff] %v5181
      %5254 = vst [vmem:[#allocation2 + $0xf8] sm:$0xff] %v5182
      %5255 = vst [vmem:[#allocation2 + $0x100] sm:$0xff] %v5183
      %5256 = vst [vmem:[#allocation2 + $0x108] sm:$0xff] %v5184
      %5257 = vst [vmem:[#allocation2 + $0x110] sm:$0xff] %v5185
      %5258 = vst [vmem:[#allocation2 + $0x118] sm:$0xff] %v5186
      %5259 = vst [vmem:[#allocation2 + $0x120] sm:$0xff] %v5187
      %5260 = vst [vmem:[#allocation2 + $0x128] sm:$0xff] %v5188
      %5261 = vst [vmem:[#allocation2 + $0x130] sm:$0xff] %v5189
      %5262 = vst [vmem:[#allocation2 + $0x138] sm:$0xff] %v5190
      %5263 = vst [vmem:[#allocation2 + $0x140] sm:$0xff] %v5191
      %5264 = vst [vmem:[#allocation2 + $0x148] sm:$0xff] %v5192
      %5265 = vst [vmem:[#allocation2 + $0x150] sm:$0xff] %v5193
      %5266 = vst [vmem:[#allocation2 + $0x158] sm:$0xff] %v5194
      %5267 = vst [vmem:[#allocation2 + $0x160] sm:$0xff] %v5195
      %5268 = vst [vmem:[#allocation2 + $0x168] sm:$0xff] %v5196
      %5269 = vst [vmem:[#allocation2 + $0x170] sm:$0xff] %v5197
      %5270 = vst [vmem:[#allocation2 + $0x178] sm:$0xff] %v5198
      %5271 = vst [vmem:[#allocation2 + $0x180] sm:$0xff] %v5199
      %5272 = vst [vmem:[#allocation2 + $0x188] sm:$0xff] %v5200
      %5273 = vst [vmem:[#allocation2 + $0x190] sm:$0xff] %v5201
      %5274 = vst [vmem:[#allocation2 + $0x198] sm:$0xff] %v5202
      %5275 = vst [vmem:[#allocation2 + $0x1a0] sm:$0xff] %v5203
      %5276 = vst [vmem:[#allocation2 + $0x1a8] sm:$0xff] %v5204
      %5277 = vst [vmem:[#allocation2 + $0x1b0] sm:$0xff] %v5205
      %5278 = vst [vmem:[#allocation2 + $0x1b8] sm:$0xff] %v5206
      %5279 = vst [vmem:[#allocation2 + $0x1c0] sm:$0xff] %v5207
      %5280 = vst [vmem:[#allocation2 + $0x1c8] sm:$0xff] %v5208
      %5281 = vst [vmem:[#allocation2 + $0x1d0] sm:$0xff] %v5209
      %5282 = vst [vmem:[#allocation2 + $0x1d8] sm:$0xff] %v5210
      %5283 = vst [vmem:[#allocation2 + $0x1e0] sm:$0xff] %v5211
      %5284 = vst [vmem:[#allocation2 + $0x1e8] sm:$0xff] %v5212
      %5285 = vst [vmem:[#allocation2 + $0x1f0] sm:$0xff] %v5213
      %5286 = vst [vmem:[#allocation2 + $0x1f8] sm:$0xff] %v5214
      %5287 = vst [vmem:[#allocation2 + $0x200] sm:$0xff] %v5215
      %5288 = vst [vmem:[#allocation2 + $0x208] sm:$0xff] %v5216
      %5289 = vst [vmem:[#allocation2 + $0x210] sm:$0xff] %v5217
      %5290 = vst [vmem:[#allocation2 + $0x218] sm:$0xff] %v5218
      %5291 = vst [vmem:[#allocation2 + $0x220] sm:$0xff] %v5219
      %5292 = vst [vmem:[#allocation2 + $0x228] sm:$0xff] %v5220
      %5293 = vst [vmem:[#allocation2 + $0x230] sm:$0xff] %v5221
      %5294 = vst [vmem:[#allocation2 + $0x238] sm:$0xff] %v5222
      %v5295 = vld [vmem:[#allocation2] sm:$0xff]
      %v5296 = vld [vmem:[#allocation2 + $0x8] sm:$0xff]
      %v5297 = vld [vmem:[#allocation2 + $0x10] sm:$0xff]
      %v5298 = vld [vmem:[#allocation2 + $0x18] sm:$0xff]
      %v5299 = vld [vmem:[#allocation2 + $0x20] sm:$0xff]
      %v5300 = vld [vmem:[#allocation2 + $0x28] sm:$0xff]
      %v5301 = vld [vmem:[#allocation2 + $0x30] sm:$0xff]
      %v5302 = vld [vmem:[#allocation2 + $0x38] sm:$0xff]
      %v5303 = vld [vmem:[#allocation2 + $0x40] sm:$0xff]
      %v5304 = vld [vmem:[#allocation2 + $0x48] sm:$0xff]
      %v5305 = vld [vmem:[#allocation2 + $0x50] sm:$0xff]
      %v5306 = vld [vmem:[#allocation2 + $0x58] sm:$0xff]
      %v5307 = vld [vmem:[#allocation2 + $0x60] sm:$0xff]
      %v5308 = vld [vmem:[#allocation2 + $0x68] sm:$0xff]
      %v5309 = vld [vmem:[#allocation2 + $0x70] sm:$0xff]
      %v5310 = vld [vmem:[#allocation2 + $0x78] sm:$0xff]
      %v5311 = vld [vmem:[#allocation2 + $0x80] sm:$0xff]
      %v5312 = vld [vmem:[#allocation2 + $0x88] sm:$0xff]
      %v5313 = vld [vmem:[#allocation2 + $0x90] sm:$0xff]
      %v5314 = vld [vmem:[#allocation2 + $0x98] sm:$0xff]
      %v5315 = vld [vmem:[#allocation2 + $0xa0] sm:$0xff]
      %v5316 = vld [vmem:[#allocation2 + $0xa8] sm:$0xff]
      %v5317 = vld [vmem:[#allocation2 + $0xb0] sm:$0xff]
      %v5318 = vld [vmem:[#allocation2 + $0xb8] sm:$0xff]
      %v5319 = vld [vmem:[#allocation2 + $0xc0] sm:$0xff]
      %v5320 = vld [vmem:[#allocation2 + $0xc8] sm:$0xff]
      %v5321 = vld [vmem:[#allocation2 + $0xd0] sm:$0xff]
      %v5322 = vld [vmem:[#allocation2 + $0xd8] sm:$0xff]
      %v5323 = vld [vmem:[#allocation2 + $0xe0] sm:$0xff]
      %v5324 = vld [vmem:[#allocation2 + $0xe8] sm:$0xff]
      %v5325 = vld [vmem:[#allocation2 + $0xf0] sm:$0xff]
      %v5326 = vld [vmem:[#allocation2 + $0xf8] sm:$0xff]
      %v5327 = vld [vmem:[#allocation2 + $0x100] sm:$0xff]
      %v5328 = vld [vmem:[#allocation2 + $0x108] sm:$0xff]
      %v5329 = vld [vmem:[#allocation2 + $0x110] sm:$0xff]
      %v5330 = vld [vmem:[#allocation2 + $0x118] sm:$0xff]
      %v5331 = vld [vmem:[#allocation2 + $0x120] sm:$0xff]
      %v5332 = vld [vmem:[#allocation2 + $0x128] sm:$0xff]
      %v5333 = vld [vmem:[#allocation2 + $0x130] sm:$0xff]
      %v5334 = vld [vmem:[#allocation2 + $0x138] sm:$0xff]
      %v5335 = vld [vmem:[#allocation2 + $0x140] sm:$0xff]
      %v5336 = vld [vmem:[#allocation2 + $0x148] sm:$0xff]
      %v5337 = vld [vmem:[#allocation2 + $0x150] sm:$0xff]
      %v5338 = vld [vmem:[#allocation2 + $0x158] sm:$0xff]
      %v5339 = vld [vmem:[#allocation2 + $0x160] sm:$0xff]
      %v5340 = vld [vmem:[#allocation2 + $0x168] sm:$0xff]
      %v5341 = vld [vmem:[#allocation2 + $0x170] sm:$0xff]
      %v5342 = vld [vmem:[#allocation2 + $0x178] sm:$0xff]
      %v5343 = vld [vmem:[#allocation2 + $0x180] sm:$0xff]
      %v5344 = vld [vmem:[#allocation2 + $0x188] sm:$0xff]
      %v5345 = vld [vmem:[#allocation2 + $0x190] sm:$0xff]
      %v5346 = vld [vmem:[#allocation2 + $0x198] sm:$0xff]
      %v5347 = vld [vmem:[#allocation2 + $0x1a0] sm:$0xff]
      %v5348 = vld [vmem:[#allocation2 + $0x1a8] sm:$0xff]
      %v5349 = vld [vmem:[#allocation2 + $0x1b0] sm:$0xff]
      %v5350 = vld [vmem:[#allocation2 + $0x1b8] sm:$0xff]
      %v5351 = vld [vmem:[#allocation2 + $0x1c0] sm:$0xff]
      %v5352 = vld [vmem:[#allocation2 + $0x1c8] sm:$0xff]
      %v5353 = vld [vmem:[#allocation2 + $0x1d0] sm:$0xff]
      %v5354 = vld [vmem:[#allocation2 + $0x1d8] sm:$0xff]
      %v5355 = vld [vmem:[#allocation2 + $0x1e0] sm:$0xff]
      %v5356 = vld [vmem:[#allocation2 + $0x1e8] sm:$0xff]
      %v5357 = vld [vmem:[#allocation2 + $0x1f0] sm:$0xff]
      %v5358 = vld [vmem:[#allocation2 + $0x1f8] sm:$0xff]
      %v5359 = vld [vmem:[#allocation2 + $0x200] sm:$0xff]
      %v5360 = vld [vmem:[#allocation2 + $0x208] sm:$0xff]
      %v5361 = vld [vmem:[#allocation2 + $0x210] sm:$0xff]
      %v5362 = vld [vmem:[#allocation2 + $0x218] sm:$0xff]
      %v5363 = vld [vmem:[#allocation2 + $0x220] sm:$0xff]
      %v5364 = vld [vmem:[#allocation2 + $0x228] sm:$0xff]
      %v5365 = vld [vmem:[#allocation2 + $0x230] sm:$0xff]
      %v5366 = vld [vmem:[#allocation2 + $0x238] sm:$0xff]
      %v5367 = vld [vmem:[%s2] sm:$0x3]
      %v5369 = vlaneseq
      %v5370 = vshrl.u32 %v5369, 7
      %v5371 = vsub.s32 0, %v5370
      %v5372 = vrot.slane %v5367, %v5371
      %v5373 = vlaneseq
      %v5374 = vshrl.u32 %v5373, 7
      %v5375 = vsub.s32 1, %v5374
      %v5376 = vrot.slane %v5367, %v5375
      %v5379 = vadd.f32 %v5295, %v5372
      %v5380 = vadd.f32 %v5296, %v5376
      %v5381 = vadd.f32 %v5297, %v5372
      %v5382 = vadd.f32 %v5298, %v5376
      %v5383 = vadd.f32 %v5299, %v5372
      %v5384 = vadd.f32 %v5300, %v5376
      %v5385 = vadd.f32 %v5301, %v5372
      %v5386 = vadd.f32 %v5302, %v5376
      %v5387 = vadd.f32 %v5303, %v5372
      %v5388 = vadd.f32 %v5304, %v5376
      %v5389 = vadd.f32 %v5305, %v5372
      %v5390 = vadd.f32 %v5306, %v5376
      %v5391 = vadd.f32 %v5307, %v5372
      %v5392 = vadd.f32 %v5308, %v5376
      %v5393 = vadd.f32 %v5309, %v5372
      %v5394 = vadd.f32 %v5310, %v5376
      %v5395 = vadd.f32 %v5311, %v5372
      %v5396 = vadd.f32 %v5312, %v5376
      %v5397 = vadd.f32 %v5313, %v5372
      %v5398 = vadd.f32 %v5314, %v5376
      %v5399 = vadd.f32 %v5315, %v5372
      %v5400 = vadd.f32 %v5316, %v5376
      %v5401 = vadd.f32 %v5317, %v5372
      %v5402 = vadd.f32 %v5318, %v5376
      %v5403 = vadd.f32 %v5319, %v5372
      %v5404 = vadd.f32 %v5320, %v5376
      %v5405 = vadd.f32 %v5321, %v5372
      %v5406 = vadd.f32 %v5322, %v5376
      %v5407 = vadd.f32 %v5323, %v5372
      %v5408 = vadd.f32 %v5324, %v5376
      %v5409 = vadd.f32 %v5325, %v5372
      %v5410 = vadd.f32 %v5326, %v5376
      %v5411 = vadd.f32 %v5327, %v5372
      %v5412 = vadd.f32 %v5328, %v5376
      %v5413 = vadd.f32 %v5329, %v5372
      %v5414 = vadd.f32 %v5330, %v5376
      %v5415 = vadd.f32 %v5331, %v5372
      %v5416 = vadd.f32 %v5332, %v5376
      %v5417 = vadd.f32 %v5333, %v5372
      %v5418 = vadd.f32 %v5334, %v5376
      %v5419 = vadd.f32 %v5335, %v5372
      %v5420 = vadd.f32 %v5336, %v5376
      %v5421 = vadd.f32 %v5337, %v5372
      %v5422 = vadd.f32 %v5338, %v5376
      %v5423 = vadd.f32 %v5339, %v5372
      %v5424 = vadd.f32 %v5340, %v5376
      %v5425 = vadd.f32 %v5341, %v5372
      %v5426 = vadd.f32 %v5342, %v5376
      %v5427 = vadd.f32 %v5343, %v5372
      %v5428 = vadd.f32 %v5344, %v5376
      %v5429 = vadd.f32 %v5345, %v5372
      %v5430 = vadd.f32 %v5346, %v5376
      %v5431 = vadd.f32 %v5347, %v5372
      %v5432 = vadd.f32 %v5348, %v5376
      %v5433 = vadd.f32 %v5349, %v5372
      %v5434 = vadd.f32 %v5350, %v5376
      %v5435 = vadd.f32 %v5351, %v5372
      %v5436 = vadd.f32 %v5352, %v5376
      %v5437 = vadd.f32 %v5353, %v5372
      %v5438 = vadd.f32 %v5354, %v5376
      %v5439 = vadd.f32 %v5355, %v5372
      %v5440 = vadd.f32 %v5356, %v5376
      %v5441 = vadd.f32 %v5357, %v5372
      %v5442 = vadd.f32 %v5358, %v5376
      %v5443 = vadd.f32 %v5359, %v5372
      %v5444 = vadd.f32 %v5360, %v5376
      %v5445 = vadd.f32 %v5361, %v5372
      %v5446 = vadd.f32 %v5362, %v5376
      %v5447 = vadd.f32 %v5363, %v5372
      %v5448 = vadd.f32 %v5364, %v5376
      %v5449 = vadd.f32 %v5365, %v5372
      %v5450 = vadd.f32 %v5366, %v5376
      %v5451 = vmax.f32 %v5379, 0.0
      %v5452 = vmax.f32 %v5380, 0.0
      %v5453 = vmax.f32 %v5381, 0.0
      %v5454 = vmax.f32 %v5382, 0.0
      %v5455 = vmax.f32 %v5383, 0.0
      %v5456 = vmax.f32 %v5384, 0.0
      %v5457 = vmax.f32 %v5385, 0.0
      %v5458 = vmax.f32 %v5386, 0.0
      %v5459 = vmax.f32 %v5387, 0.0
      %v5460 = vmax.f32 %v5388, 0.0
      %v5461 = vmax.f32 %v5389, 0.0
      %v5462 = vmax.f32 %v5390, 0.0
      %v5463 = vmax.f32 %v5391, 0.0
      %v5464 = vmax.f32 %v5392, 0.0
      %v5465 = vmax.f32 %v5393, 0.0
      %v5466 = vmax.f32 %v5394, 0.0
      %v5467 = vmax.f32 %v5395, 0.0
      %v5468 = vmax.f32 %v5396, 0.0
      %v5469 = vmax.f32 %v5397, 0.0
      %v5470 = vmax.f32 %v5398, 0.0
      %v5471 = vmax.f32 %v5399, 0.0
      %v5472 = vmax.f32 %v5400, 0.0
      %v5473 = vmax.f32 %v5401, 0.0
      %v5474 = vmax.f32 %v5402, 0.0
      %v5475 = vmax.f32 %v5403, 0.0
      %v5476 = vmax.f32 %v5404, 0.0
      %v5477 = vmax.f32 %v5405, 0.0
      %v5478 = vmax.f32 %v5406, 0.0
      %v5479 = vmax.f32 %v5407, 0.0
      %v5480 = vmax.f32 %v5408, 0.0
      %v5481 = vmax.f32 %v5409, 0.0
      %v5482 = vmax.f32 %v5410, 0.0
      %v5483 = vmax.f32 %v5411, 0.0
      %v5484 = vmax.f32 %v5412, 0.0
      %v5485 = vmax.f32 %v5413, 0.0
      %v5486 = vmax.f32 %v5414, 0.0
      %v5487 = vmax.f32 %v5415, 0.0
      %v5488 = vmax.f32 %v5416, 0.0
      %v5489 = vmax.f32 %v5417, 0.0
      %v5490 = vmax.f32 %v5418, 0.0
      %v5491 = vmax.f32 %v5419, 0.0
      %v5492 = vmax.f32 %v5420, 0.0
      %v5493 = vmax.f32 %v5421, 0.0
      %v5494 = vmax.f32 %v5422, 0.0
      %v5495 = vmax.f32 %v5423, 0.0
      %v5496 = vmax.f32 %v5424, 0.0
      %v5497 = vmax.f32 %v5425, 0.0
      %v5498 = vmax.f32 %v5426, 0.0
      %v5499 = vmax.f32 %v5427, 0.0
      %v5500 = vmax.f32 %v5428, 0.0
      %v5501 = vmax.f32 %v5429, 0.0
      %v5502 = vmax.f32 %v5430, 0.0
      %v5503 = vmax.f32 %v5431, 0.0
      %v5504 = vmax.f32 %v5432, 0.0
      %v5505 = vmax.f32 %v5433, 0.0
      %v5506 = vmax.f32 %v5434, 0.0
      %v5507 = vmax.f32 %v5435, 0.0
      %v5508 = vmax.f32 %v5436, 0.0
      %v5509 = vmax.f32 %v5437, 0.0
      %v5510 = vmax.f32 %v5438, 0.0
      %v5511 = vmax.f32 %v5439, 0.0
      %v5512 = vmax.f32 %v5440, 0.0
      %v5513 = vmax.f32 %v5441, 0.0
      %v5514 = vmax.f32 %v5442, 0.0
      %v5515 = vmax.f32 %v5443, 0.0
      %v5516 = vmax.f32 %v5444, 0.0
      %v5517 = vmax.f32 %v5445, 0.0
      %v5518 = vmax.f32 %v5446, 0.0
      %v5519 = vmax.f32 %v5447, 0.0
      %v5520 = vmax.f32 %v5448, 0.0
      %v5521 = vmax.f32 %v5449, 0.0
      %v5522 = vmax.f32 %v5450, 0.0
      %v5523 = vlaneseq
      %v5524 = vshrl.u32 %v5523, 7
      %v5525 = vadd.s32 %v5524, 8
      %v5526 = vadd.s32 %v5524, 16
      %v5527 = vadd.s32 %v5524, 24
      %v5528 = vadd.s32 %v5524, 32
      %v5529 = vadd.s32 %v5524, 40
      %v5530 = vadd.s32 %v5524, 48
      %v5531 = vadd.s32 %v5524, 56
      %v5532 = vadd.s32 %v5524, 64
      %v5533 = vadd.s32 %v5524, 72
      %v5534 = vadd.s32 %v5524, 80
      %v5535 = vadd.s32 %v5524, 88
      %v5536 = vadd.s32 %v5524, 96
      %v5537 = vadd.s32 %v5524, 104
      %v5538 = vadd.s32 %v5524, 112
      %v5539 = vadd.s32 %v5524, 120
      %v5540 = vadd.s32 %v5524, 128
      %v5541 = vadd.s32 %v5524, 136
      %v5542 = vadd.s32 %v5524, 144
      %v5543 = vadd.s32 %v5524, 152
      %v5544 = vadd.s32 %v5524, 160
      %v5545 = vadd.s32 %v5524, 168
      %v5546 = vadd.s32 %v5524, 176
      %v5547 = vadd.s32 %v5524, 184
      %v5548 = vadd.s32 %v5524, 192
      %v5549 = vadd.s32 %v5524, 200
      %v5550 = vadd.s32 %v5524, 208
      %v5551 = vadd.s32 %v5524, 216
      %v5552 = vadd.s32 %v5524, 224
      %v5553 = vadd.s32 %v5524, 232
      %v5554 = vadd.s32 %v5524, 240
      %v5555 = vadd.s32 %v5524, 248
      %v5556 = vadd.s32 %v5524, 256
      %v5557 = vadd.s32 %v5524, 264
      %v5558 = vadd.s32 %v5524, 272
      %v5559 = vadd.s32 %v5524, 280
      %vm5560 = vcmp.lt.s32.totalorder %v5524, 0
      %v5561 = vsub.s32 0, %v5524
      %v5562 = vsel %vm5560, %v5561, %v5524
      %v5563 = vmul.u32.u64.compose %v5562, 3817748708
      %v5564 = vextract.low.u32 %v5563
      %v5565 = vextract.high.u32 %v5563
      %v5566 = vshrl.u32 %v5565, 4
      %v5567 = vmul.u32 %v5566, 18
      %v5568 = vsub.s32 %v5562, %v5567
      %v5569 = vsub.s32 0, %v5568
      %v5570 = vsel %vm5560, %v5569, %v5568
      %vm5571 = vcmp.lt.s32.totalorder %v5525, 0
      %v5572 = vsub.s32 0, %v5525
      %v5573 = vsel %vm5571, %v5572, %v5525
      %v5574 = vmul.u32.u64.compose %v5573, 3817748708
      %v5575 = vextract.low.u32 %v5574
      %v5576 = vextract.high.u32 %v5574
      %v5577 = vshrl.u32 %v5576, 4
      %v5578 = vmul.u32 %v5577, 18
      %v5579 = vsub.s32 %v5573, %v5578
      %v5580 = vsub.s32 0, %v5579
      %v5581 = vsel %vm5571, %v5580, %v5579
      %vm5582 = vcmp.lt.s32.totalorder %v5526, 0
      %v5583 = vsub.s32 0, %v5526
      %v5584 = vsel %vm5582, %v5583, %v5526
      %v5585 = vmul.u32.u64.compose %v5584, 3817748708
      %v5586 = vextract.low.u32 %v5585
      %v5587 = vextract.high.u32 %v5585
      %v5588 = vshrl.u32 %v5587, 4
      %v5589 = vmul.u32 %v5588, 18
      %v5590 = vsub.s32 %v5584, %v5589
      %v5591 = vsub.s32 0, %v5590
      %v5592 = vsel %vm5582, %v5591, %v5590
      %vm5593 = vcmp.lt.s32.totalorder %v5527, 0
      %v5594 = vsub.s32 0, %v5527
      %v5595 = vsel %vm5593, %v5594, %v5527
      %v5596 = vmul.u32.u64.compose %v5595, 3817748708
      %v5597 = vextract.low.u32 %v5596
      %v5598 = vextract.high.u32 %v5596
      %v5599 = vshrl.u32 %v5598, 4
      %v5600 = vmul.u32 %v5599, 18
      %v5601 = vsub.s32 %v5595, %v5600
      %v5602 = vsub.s32 0, %v5601
      %v5603 = vsel %vm5593, %v5602, %v5601
      %vm5604 = vcmp.lt.s32.totalorder %v5528, 0
      %v5605 = vsub.s32 0, %v5528
      %v5606 = vsel %vm5604, %v5605, %v5528
      %v5607 = vmul.u32.u64.compose %v5606, 3817748708
      %v5608 = vextract.low.u32 %v5607
      %v5609 = vextract.high.u32 %v5607
      %v5610 = vshrl.u32 %v5609, 4
      %v5611 = vmul.u32 %v5610, 18
      %v5612 = vsub.s32 %v5606, %v5611
      %v5613 = vsub.s32 0, %v5612
      %v5614 = vsel %vm5604, %v5613, %v5612
      %vm5615 = vcmp.lt.s32.totalorder %v5529, 0
      %v5616 = vsub.s32 0, %v5529
      %v5617 = vsel %vm5615, %v5616, %v5529
      %v5618 = vmul.u32.u64.compose %v5617, 3817748708
      %v5619 = vextract.low.u32 %v5618
      %v5620 = vextract.high.u32 %v5618
      %v5621 = vshrl.u32 %v5620, 4
      %v5622 = vmul.u32 %v5621, 18
      %v5623 = vsub.s32 %v5617, %v5622
      %v5624 = vsub.s32 0, %v5623
      %v5625 = vsel %vm5615, %v5624, %v5623
      %vm5626 = vcmp.lt.s32.totalorder %v5530, 0
      %v5627 = vsub.s32 0, %v5530
      %v5628 = vsel %vm5626, %v5627, %v5530
      %v5629 = vmul.u32.u64.compose %v5628, 3817748708
      %v5630 = vextract.low.u32 %v5629
      %v5631 = vextract.high.u32 %v5629
      %v5632 = vshrl.u32 %v5631, 4
      %v5633 = vmul.u32 %v5632, 18
      %v5634 = vsub.s32 %v5628, %v5633
      %v5635 = vsub.s32 0, %v5634
      %v5636 = vsel %vm5626, %v5635, %v5634
      %vm5637 = vcmp.lt.s32.totalorder %v5531, 0
      %v5638 = vsub.s32 0, %v5531
      %v5639 = vsel %vm5637, %v5638, %v5531
      %v5640 = vmul.u32.u64.compose %v5639, 3817748708
      %v5641 = vextract.low.u32 %v5640
      %v5642 = vextract.high.u32 %v5640
      %v5643 = vshrl.u32 %v5642, 4
      %v5644 = vmul.u32 %v5643, 18
      %v5645 = vsub.s32 %v5639, %v5644
      %v5646 = vsub.s32 0, %v5645
      %v5647 = vsel %vm5637, %v5646, %v5645
      %vm5648 = vcmp.lt.s32.totalorder %v5532, 0
      %v5649 = vsub.s32 0, %v5532
      %v5650 = vsel %vm5648, %v5649, %v5532
      %v5651 = vmul.u32.u64.compose %v5650, 3817748708
      %v5652 = vextract.low.u32 %v5651
      %v5653 = vextract.high.u32 %v5651
      %v5654 = vshrl.u32 %v5653, 4
      %v5655 = vmul.u32 %v5654, 18
      %v5656 = vsub.s32 %v5650, %v5655
      %v5657 = vsub.s32 0, %v5656
      %v5658 = vsel %vm5648, %v5657, %v5656
      %vm5659 = vcmp.lt.s32.totalorder %v5533, 0
      %v5660 = vsub.s32 0, %v5533
      %v5661 = vsel %vm5659, %v5660, %v5533
      %v5662 = vmul.u32.u64.compose %v5661, 3817748708
      %v5663 = vextract.low.u32 %v5662
      %v5664 = vextract.high.u32 %v5662
      %v5665 = vshrl.u32 %v5664, 4
      %v5666 = vmul.u32 %v5665, 18
      %v5667 = vsub.s32 %v5661, %v5666
      %v5668 = vsub.s32 0, %v5667
      %v5669 = vsel %vm5659, %v5668, %v5667
      %vm5670 = vcmp.lt.s32.totalorder %v5534, 0
      %v5671 = vsub.s32 0, %v5534
      %v5672 = vsel %vm5670, %v5671, %v5534
      %v5673 = vmul.u32.u64.compose %v5672, 3817748708
      %v5674 = vextract.low.u32 %v5673
      %v5675 = vextract.high.u32 %v5673
      %v5676 = vshrl.u32 %v5675, 4
      %v5677 = vmul.u32 %v5676, 18
      %v5678 = vsub.s32 %v5672, %v5677
      %v5679 = vsub.s32 0, %v5678
      %v5680 = vsel %vm5670, %v5679, %v5678
      %vm5681 = vcmp.lt.s32.totalorder %v5535, 0
      %v5682 = vsub.s32 0, %v5535
      %v5683 = vsel %vm5681, %v5682, %v5535
      %v5684 = vmul.u32.u64.compose %v5683, 3817748708
      %v5685 = vextract.low.u32 %v5684
      %v5686 = vextract.high.u32 %v5684
      %v5687 = vshrl.u32 %v5686, 4
      %v5688 = vmul.u32 %v5687, 18
      %v5689 = vsub.s32 %v5683, %v5688
      %v5690 = vsub.s32 0, %v5689
      %v5691 = vsel %vm5681, %v5690, %v5689
      %vm5692 = vcmp.lt.s32.totalorder %v5536, 0
      %v5693 = vsub.s32 0, %v5536
      %v5694 = vsel %vm5692, %v5693, %v5536
      %v5695 = vmul.u32.u64.compose %v5694, 3817748708
      %v5696 = vextract.low.u32 %v5695
      %v5697 = vextract.high.u32 %v5695
      %v5698 = vshrl.u32 %v5697, 4
      %v5699 = vmul.u32 %v5698, 18
      %v5700 = vsub.s32 %v5694, %v5699
      %v5701 = vsub.s32 0, %v5700
      %v5702 = vsel %vm5692, %v5701, %v5700
      %vm5703 = vcmp.lt.s32.totalorder %v5537, 0
      %v5704 = vsub.s32 0, %v5537
      %v5705 = vsel %vm5703, %v5704, %v5537
      %v5706 = vmul.u32.u64.compose %v5705, 3817748708
      %v5707 = vextract.low.u32 %v5706
      %v5708 = vextract.high.u32 %v5706
      %v5709 = vshrl.u32 %v5708, 4
      %v5710 = vmul.u32 %v5709, 18
      %v5711 = vsub.s32 %v5705, %v5710
      %v5712 = vsub.s32 0, %v5711
      %v5713 = vsel %vm5703, %v5712, %v5711
      %vm5714 = vcmp.lt.s32.totalorder %v5538, 0
      %v5715 = vsub.s32 0, %v5538
      %v5716 = vsel %vm5714, %v5715, %v5538
      %v5717 = vmul.u32.u64.compose %v5716, 3817748708
      %v5718 = vextract.low.u32 %v5717
      %v5719 = vextract.high.u32 %v5717
      %v5720 = vshrl.u32 %v5719, 4
      %v5721 = vmul.u32 %v5720, 18
      %v5722 = vsub.s32 %v5716, %v5721
      %v5723 = vsub.s32 0, %v5722
      %v5724 = vsel %vm5714, %v5723, %v5722
      %vm5725 = vcmp.lt.s32.totalorder %v5539, 0
      %v5726 = vsub.s32 0, %v5539
      %v5727 = vsel %vm5725, %v5726, %v5539
      %v5728 = vmul.u32.u64.compose %v5727, 3817748708
      %v5729 = vextract.low.u32 %v5728
      %v5730 = vextract.high.u32 %v5728
      %v5731 = vshrl.u32 %v5730, 4
      %v5732 = vmul.u32 %v5731, 18
      %v5733 = vsub.s32 %v5727, %v5732
      %v5734 = vsub.s32 0, %v5733
      %v5735 = vsel %vm5725, %v5734, %v5733
      %vm5736 = vcmp.lt.s32.totalorder %v5540, 0
      %v5737 = vsub.s32 0, %v5540
      %v5738 = vsel %vm5736, %v5737, %v5540
      %v5739 = vmul.u32.u64.compose %v5738, 3817748708
      %v5740 = vextract.low.u32 %v5739
      %v5741 = vextract.high.u32 %v5739
      %v5742 = vshrl.u32 %v5741, 4
      %v5743 = vmul.u32 %v5742, 18
      %v5744 = vsub.s32 %v5738, %v5743
      %v5745 = vsub.s32 0, %v5744
      %v5746 = vsel %vm5736, %v5745, %v5744
      %vm5747 = vcmp.lt.s32.totalorder %v5541, 0
      %v5748 = vsub.s32 0, %v5541
      %v5749 = vsel %vm5747, %v5748, %v5541
      %v5750 = vmul.u32.u64.compose %v5749, 3817748708
      %v5751 = vextract.low.u32 %v5750
      %v5752 = vextract.high.u32 %v5750
      %v5753 = vshrl.u32 %v5752, 4
      %v5754 = vmul.u32 %v5753, 18
      %v5755 = vsub.s32 %v5749, %v5754
      %v5756 = vsub.s32 0, %v5755
      %v5757 = vsel %vm5747, %v5756, %v5755
      %vm5758 = vcmp.lt.s32.totalorder %v5542, 0
      %v5759 = vsub.s32 0, %v5542
      %v5760 = vsel %vm5758, %v5759, %v5542
      %v5761 = vmul.u32.u64.compose %v5760, 3817748708
      %v5762 = vextract.low.u32 %v5761
      %v5763 = vextract.high.u32 %v5761
      %v5764 = vshrl.u32 %v5763, 4
      %v5765 = vmul.u32 %v5764, 18
      %v5766 = vsub.s32 %v5760, %v5765
      %v5767 = vsub.s32 0, %v5766
      %v5768 = vsel %vm5758, %v5767, %v5766
      %vm5769 = vcmp.lt.s32.totalorder %v5543, 0
      %v5770 = vsub.s32 0, %v5543
      %v5771 = vsel %vm5769, %v5770, %v5543
      %v5772 = vmul.u32.u64.compose %v5771, 3817748708
      %v5773 = vextract.low.u32 %v5772
      %v5774 = vextract.high.u32 %v5772
      %v5775 = vshrl.u32 %v5774, 4
      %v5776 = vmul.u32 %v5775, 18
      %v5777 = vsub.s32 %v5771, %v5776
      %v5778 = vsub.s32 0, %v5777
      %v5779 = vsel %vm5769, %v5778, %v5777
      %vm5780 = vcmp.lt.s32.totalorder %v5544, 0
      %v5781 = vsub.s32 0, %v5544
      %v5782 = vsel %vm5780, %v5781, %v5544
      %v5783 = vmul.u32.u64.compose %v5782, 3817748708
      %v5784 = vextract.low.u32 %v5783
      %v5785 = vextract.high.u32 %v5783
      %v5786 = vshrl.u32 %v5785, 4
      %v5787 = vmul.u32 %v5786, 18
      %v5788 = vsub.s32 %v5782, %v5787
      %v5789 = vsub.s32 0, %v5788
      %v5790 = vsel %vm5780, %v5789, %v5788
      %vm5791 = vcmp.lt.s32.totalorder %v5545, 0
      %v5792 = vsub.s32 0, %v5545
      %v5793 = vsel %vm5791, %v5792, %v5545
      %v5794 = vmul.u32.u64.compose %v5793, 3817748708
      %v5795 = vextract.low.u32 %v5794
      %v5796 = vextract.high.u32 %v5794
      %v5797 = vshrl.u32 %v5796, 4
      %v5798 = vmul.u32 %v5797, 18
      %v5799 = vsub.s32 %v5793, %v5798
      %v5800 = vsub.s32 0, %v5799
      %v5801 = vsel %vm5791, %v5800, %v5799
      %vm5802 = vcmp.lt.s32.totalorder %v5546, 0
      %v5803 = vsub.s32 0, %v5546
      %v5804 = vsel %vm5802, %v5803, %v5546
      %v5805 = vmul.u32.u64.compose %v5804, 3817748708
      %v5806 = vextract.low.u32 %v5805
      %v5807 = vextract.high.u32 %v5805
      %v5808 = vshrl.u32 %v5807, 4
      %v5809 = vmul.u32 %v5808, 18
      %v5810 = vsub.s32 %v5804, %v5809
      %v5811 = vsub.s32 0, %v5810
      %v5812 = vsel %vm5802, %v5811, %v5810
      %vm5813 = vcmp.lt.s32.totalorder %v5547, 0
      %v5814 = vsub.s32 0, %v5547
      %v5815 = vsel %vm5813, %v5814, %v5547
      %v5816 = vmul.u32.u64.compose %v5815, 3817748708
      %v5817 = vextract.low.u32 %v5816
      %v5818 = vextract.high.u32 %v5816
      %v5819 = vshrl.u32 %v5818, 4
      %v5820 = vmul.u32 %v5819, 18
      %v5821 = vsub.s32 %v5815, %v5820
      %v5822 = vsub.s32 0, %v5821
      %v5823 = vsel %vm5813, %v5822, %v5821
      %vm5824 = vcmp.lt.s32.totalorder %v5548, 0
      %v5825 = vsub.s32 0, %v5548
      %v5826 = vsel %vm5824, %v5825, %v5548
      %v5827 = vmul.u32.u64.compose %v5826, 3817748708
      %v5828 = vextract.low.u32 %v5827
      %v5829 = vextract.high.u32 %v5827
      %v5830 = vshrl.u32 %v5829, 4
      %v5831 = vmul.u32 %v5830, 18
      %v5832 = vsub.s32 %v5826, %v5831
      %v5833 = vsub.s32 0, %v5832
      %v5834 = vsel %vm5824, %v5833, %v5832
      %vm5835 = vcmp.lt.s32.totalorder %v5549, 0
      %v5836 = vsub.s32 0, %v5549
      %v5837 = vsel %vm5835, %v5836, %v5549
      %v5838 = vmul.u32.u64.compose %v5837, 3817748708
      %v5839 = vextract.low.u32 %v5838
      %v5840 = vextract.high.u32 %v5838
      %v5841 = vshrl.u32 %v5840, 4
      %v5842 = vmul.u32 %v5841, 18
      %v5843 = vsub.s32 %v5837, %v5842
      %v5844 = vsub.s32 0, %v5843
      %v5845 = vsel %vm5835, %v5844, %v5843
      %vm5846 = vcmp.lt.s32.totalorder %v5550, 0
      %v5847 = vsub.s32 0, %v5550
      %v5848 = vsel %vm5846, %v5847, %v5550
      %v5849 = vmul.u32.u64.compose %v5848, 3817748708
      %v5850 = vextract.low.u32 %v5849
      %v5851 = vextract.high.u32 %v5849
      %v5852 = vshrl.u32 %v5851, 4
      %v5853 = vmul.u32 %v5852, 18
      %v5854 = vsub.s32 %v5848, %v5853
      %v5855 = vsub.s32 0, %v5854
      %v5856 = vsel %vm5846, %v5855, %v5854
      %vm5857 = vcmp.lt.s32.totalorder %v5551, 0
      %v5858 = vsub.s32 0, %v5551
      %v5859 = vsel %vm5857, %v5858, %v5551
      %v5860 = vmul.u32.u64.compose %v5859, 3817748708
      %v5861 = vextract.low.u32 %v5860
      %v5862 = vextract.high.u32 %v5860
      %v5863 = vshrl.u32 %v5862, 4
      %v5864 = vmul.u32 %v5863, 18
      %v5865 = vsub.s32 %v5859, %v5864
      %v5866 = vsub.s32 0, %v5865
      %v5867 = vsel %vm5857, %v5866, %v5865
      %vm5868 = vcmp.lt.s32.totalorder %v5552, 0
      %v5869 = vsub.s32 0, %v5552
      %v5870 = vsel %vm5868, %v5869, %v5552
      %v5871 = vmul.u32.u64.compose %v5870, 3817748708
      %v5872 = vextract.low.u32 %v5871
      %v5873 = vextract.high.u32 %v5871
      %v5874 = vshrl.u32 %v5873, 4
      %v5875 = vmul.u32 %v5874, 18
      %v5876 = vsub.s32 %v5870, %v5875
      %v5877 = vsub.s32 0, %v5876
      %v5878 = vsel %vm5868, %v5877, %v5876
      %vm5879 = vcmp.lt.s32.totalorder %v5553, 0
      %v5880 = vsub.s32 0, %v5553
      %v5881 = vsel %vm5879, %v5880, %v5553
      %v5882 = vmul.u32.u64.compose %v5881, 3817748708
      %v5883 = vextract.low.u32 %v5882
      %v5884 = vextract.high.u32 %v5882
      %v5885 = vshrl.u32 %v5884, 4
      %v5886 = vmul.u32 %v5885, 18
      %v5887 = vsub.s32 %v5881, %v5886
      %v5888 = vsub.s32 0, %v5887
      %v5889 = vsel %vm5879, %v5888, %v5887
      %vm5890 = vcmp.lt.s32.totalorder %v5554, 0
      %v5891 = vsub.s32 0, %v5554
      %v5892 = vsel %vm5890, %v5891, %v5554
      %v5893 = vmul.u32.u64.compose %v5892, 3817748708
      %v5894 = vextract.low.u32 %v5893
      %v5895 = vextract.high.u32 %v5893
      %v5896 = vshrl.u32 %v5895, 4
      %v5897 = vmul.u32 %v5896, 18
      %v5898 = vsub.s32 %v5892, %v5897
      %v5899 = vsub.s32 0, %v5898
      %v5900 = vsel %vm5890, %v5899, %v5898
      %vm5901 = vcmp.lt.s32.totalorder %v5555, 0
      %v5902 = vsub.s32 0, %v5555
      %v5903 = vsel %vm5901, %v5902, %v5555
      %v5904 = vmul.u32.u64.compose %v5903, 3817748708
      %v5905 = vextract.low.u32 %v5904
      %v5906 = vextract.high.u32 %v5904
      %v5907 = vshrl.u32 %v5906, 4
      %v5908 = vmul.u32 %v5907, 18
      %v5909 = vsub.s32 %v5903, %v5908
      %v5910 = vsub.s32 0, %v5909
      %v5911 = vsel %vm5901, %v5910, %v5909
      %vm5912 = vcmp.lt.s32.totalorder %v5556, 0
      %v5913 = vsub.s32 0, %v5556
      %v5914 = vsel %vm5912, %v5913, %v5556
      %v5915 = vmul.u32.u64.compose %v5914, 3817748708
      %v5916 = vextract.low.u32 %v5915
      %v5917 = vextract.high.u32 %v5915
      %v5918 = vshrl.u32 %v5917, 4
      %v5919 = vmul.u32 %v5918, 18
      %v5920 = vsub.s32 %v5914, %v5919
      %v5921 = vsub.s32 0, %v5920
      %v5922 = vsel %vm5912, %v5921, %v5920
      %vm5923 = vcmp.lt.s32.totalorder %v5557, 0
      %v5924 = vsub.s32 0, %v5557
      %v5925 = vsel %vm5923, %v5924, %v5557
      %v5926 = vmul.u32.u64.compose %v5925, 3817748708
      %v5927 = vextract.low.u32 %v5926
      %v5928 = vextract.high.u32 %v5926
      %v5929 = vshrl.u32 %v5928, 4
      %v5930 = vmul.u32 %v5929, 18
      %v5931 = vsub.s32 %v5925, %v5930
      %v5932 = vsub.s32 0, %v5931
      %v5933 = vsel %vm5923, %v5932, %v5931
      %vm5934 = vcmp.lt.s32.totalorder %v5558, 0
      %v5935 = vsub.s32 0, %v5558
      %v5936 = vsel %vm5934, %v5935, %v5558
      %v5937 = vmul.u32.u64.compose %v5936, 3817748708
      %v5938 = vextract.low.u32 %v5937
      %v5939 = vextract.high.u32 %v5937
      %v5940 = vshrl.u32 %v5939, 4
      %v5941 = vmul.u32 %v5940, 18
      %v5942 = vsub.s32 %v5936, %v5941
      %v5943 = vsub.s32 0, %v5942
      %v5944 = vsel %vm5934, %v5943, %v5942
      %vm5945 = vcmp.lt.s32.totalorder %v5559, 0
      %v5946 = vsub.s32 0, %v5559
      %v5947 = vsel %vm5945, %v5946, %v5559
      %v5948 = vmul.u32.u64.compose %v5947, 3817748708
      %v5949 = vextract.low.u32 %v5948
      %v5950 = vextract.high.u32 %v5948
      %v5951 = vshrl.u32 %v5950, 4
      %v5952 = vmul.u32 %v5951, 18
      %v5953 = vsub.s32 %v5947, %v5952
      %v5954 = vsub.s32 0, %v5953
      %v5955 = vsel %vm5945, %v5954, %v5953
      %vm5956 = vcmp.ne.s32.totalorder %v5570, 0
      %vm5957 = vcmp.ne.s32.totalorder %v5581, 0
      %vm5958 = vcmp.ne.s32.totalorder %v5592, 0
      %vm5959 = vcmp.ne.s32.totalorder %v5603, 0
      %vm5960 = vcmp.ne.s32.totalorder %v5614, 0
      %vm5961 = vcmp.ne.s32.totalorder %v5625, 0
      %vm5962 = vcmp.ne.s32.totalorder %v5636, 0
      %vm5963 = vcmp.ne.s32.totalorder %v5647, 0
      %vm5964 = vcmp.ne.s32.totalorder %v5658, 0
      %vm5965 = vcmp.ne.s32.totalorder %v5669, 0
      %vm5966 = vcmp.ne.s32.totalorder %v5680, 0
      %vm5967 = vcmp.ne.s32.totalorder %v5691, 0
      %vm5968 = vcmp.ne.s32.totalorder %v5702, 0
      %vm5969 = vcmp.ne.s32.totalorder %v5713, 0
      %vm5970 = vcmp.ne.s32.totalorder %v5724, 0
      %vm5971 = vcmp.ne.s32.totalorder %v5735, 0
      %vm5972 = vcmp.ne.s32.totalorder %v5746, 0
      %vm5973 = vcmp.ne.s32.totalorder %v5757, 0
      %vm5974 = vcmp.ne.s32.totalorder %v5768, 0
      %vm5975 = vcmp.ne.s32.totalorder %v5779, 0
      %vm5976 = vcmp.ne.s32.totalorder %v5790, 0
      %vm5977 = vcmp.ne.s32.totalorder %v5801, 0
      %vm5978 = vcmp.ne.s32.totalorder %v5812, 0
      %vm5979 = vcmp.ne.s32.totalorder %v5823, 0
      %vm5980 = vcmp.ne.s32.totalorder %v5834, 0
      %vm5981 = vcmp.ne.s32.totalorder %v5845, 0
      %vm5982 = vcmp.ne.s32.totalorder %v5856, 0
      %vm5983 = vcmp.ne.s32.totalorder %v5867, 0
      %vm5984 = vcmp.ne.s32.totalorder %v5878, 0
      %vm5985 = vcmp.ne.s32.totalorder %v5889, 0
      %vm5986 = vcmp.ne.s32.totalorder %v5900, 0
      %vm5987 = vcmp.ne.s32.totalorder %v5911, 0
      %vm5988 = vcmp.ne.s32.totalorder %v5922, 0
      %vm5989 = vcmp.ne.s32.totalorder %v5933, 0
      %vm5990 = vcmp.ne.s32.totalorder %v5944, 0
      %vm5991 = vcmp.ne.s32.totalorder %v5955, 0
      %vm5992 = vcmp.lt.s32.totalorder %v5570, 0
      %vm5993 = vcmp.lt.s32.totalorder %v5581, 0
      %vm5994 = vcmp.lt.s32.totalorder %v5592, 0
      %vm5995 = vcmp.lt.s32.totalorder %v5603, 0
      %vm5996 = vcmp.lt.s32.totalorder %v5614, 0
      %vm5997 = vcmp.lt.s32.totalorder %v5625, 0
      %vm5998 = vcmp.lt.s32.totalorder %v5636, 0
      %vm5999 = vcmp.lt.s32.totalorder %v5647, 0
      %vm6000 = vcmp.lt.s32.totalorder %v5658, 0
      %vm6001 = vcmp.lt.s32.totalorder %v5669, 0
      %vm6002 = vcmp.lt.s32.totalorder %v5680, 0
      %vm6003 = vcmp.lt.s32.totalorder %v5691, 0
      %vm6004 = vcmp.lt.s32.totalorder %v5702, 0
      %vm6005 = vcmp.lt.s32.totalorder %v5713, 0
      %vm6006 = vcmp.lt.s32.totalorder %v5724, 0
      %vm6007 = vcmp.lt.s32.totalorder %v5735, 0
      %vm6008 = vcmp.lt.s32.totalorder %v5746, 0
      %vm6009 = vcmp.lt.s32.totalorder %v5757, 0
      %vm6010 = vcmp.lt.s32.totalorder %v5768, 0
      %vm6011 = vcmp.lt.s32.totalorder %v5779, 0
      %vm6012 = vcmp.lt.s32.totalorder %v5790, 0
      %vm6013 = vcmp.lt.s32.totalorder %v5801, 0
      %vm6014 = vcmp.lt.s32.totalorder %v5812, 0
      %vm6015 = vcmp.lt.s32.totalorder %v5823, 0
      %vm6016 = vcmp.lt.s32.totalorder %v5834, 0
      %vm6017 = vcmp.lt.s32.totalorder %v5845, 0
      %vm6018 = vcmp.lt.s32.totalorder %v5856, 0
      %vm6019 = vcmp.lt.s32.totalorder %v5867, 0
      %vm6020 = vcmp.lt.s32.totalorder %v5878, 0
      %vm6021 = vcmp.lt.s32.totalorder %v5889, 0
      %vm6022 = vcmp.lt.s32.totalorder %v5900, 0
      %vm6023 = vcmp.lt.s32.totalorder %v5911, 0
      %vm6024 = vcmp.lt.s32.totalorder %v5922, 0
      %vm6025 = vcmp.lt.s32.totalorder %v5933, 0
      %vm6026 = vcmp.lt.s32.totalorder %v5944, 0
      %vm6027 = vcmp.lt.s32.totalorder %v5955, 0
      %vm6028 = vmand %vm5992, %vm5956
      %vm6029 = vmand %vm5993, %vm5957
      %vm6030 = vmand %vm5994, %vm5958
      %vm6031 = vmand %vm5995, %vm5959
      %vm6032 = vmand %vm5996, %vm5960
      %vm6033 = vmand %vm5997, %vm5961
      %vm6034 = vmand %vm5998, %vm5962
      %vm6035 = vmand %vm5999, %vm5963
      %vm6036 = vmand %vm6000, %vm5964
      %vm6037 = vmand %vm6001, %vm5965
      %vm6038 = vmand %vm6002, %vm5966
      %vm6039 = vmand %vm6003, %vm5967
      %vm6040 = vmand %vm6004, %vm5968
      %vm6041 = vmand %vm6005, %vm5969
      %vm6042 = vmand %vm6006, %vm5970
      %vm6043 = vmand %vm6007, %vm5971
      %vm6044 = vmand %vm6008, %vm5972
      %vm6045 = vmand %vm6009, %vm5973
      %vm6046 = vmand %vm6010, %vm5974
      %vm6047 = vmand %vm6011, %vm5975
      %vm6048 = vmand %vm6012, %vm5976
      %vm6049 = vmand %vm6013, %vm5977
      %vm6050 = vmand %vm6014, %vm5978
      %vm6051 = vmand %vm6015, %vm5979
      %vm6052 = vmand %vm6016, %vm5980
      %vm6053 = vmand %vm6017, %vm5981
      %vm6054 = vmand %vm6018, %vm5982
      %vm6055 = vmand %vm6019, %vm5983
      %vm6056 = vmand %vm6020, %vm5984
      %vm6057 = vmand %vm6021, %vm5985
      %vm6058 = vmand %vm6022, %vm5986
      %vm6059 = vmand %vm6023, %vm5987
      %vm6060 = vmand %vm6024, %vm5988
      %vm6061 = vmand %vm6025, %vm5989
      %vm6062 = vmand %vm6026, %vm5990
      %vm6063 = vmand %vm6027, %vm5991
      %v6064 = vadd.s32 %v5570, 18
      %v6065 = vadd.s32 %v5581, 18
      %v6066 = vadd.s32 %v5592, 18
      %v6067 = vadd.s32 %v5603, 18
      %v6068 = vadd.s32 %v5614, 18
      %v6069 = vadd.s32 %v5625, 18
      %v6070 = vadd.s32 %v5636, 18
      %v6071 = vadd.s32 %v5647, 18
      %v6072 = vadd.s32 %v5658, 18
      %v6073 = vadd.s32 %v5669, 18
      %v6074 = vadd.s32 %v5680, 18
      %v6075 = vadd.s32 %v5691, 18
      %v6076 = vadd.s32 %v5702, 18
      %v6077 = vadd.s32 %v5713, 18
      %v6078 = vadd.s32 %v5724, 18
      %v6079 = vadd.s32 %v5735, 18
      %v6080 = vadd.s32 %v5746, 18
      %v6081 = vadd.s32 %v5757, 18
      %v6082 = vadd.s32 %v5768, 18
      %v6083 = vadd.s32 %v5779, 18
      %v6084 = vadd.s32 %v5790, 18
      %v6085 = vadd.s32 %v5801, 18
      %v6086 = vadd.s32 %v5812, 18
      %v6087 = vadd.s32 %v5823, 18
      %v6088 = vadd.s32 %v5834, 18
      %v6089 = vadd.s32 %v5845, 18
      %v6090 = vadd.s32 %v5856, 18
      %v6091 = vadd.s32 %v5867, 18
      %v6092 = vadd.s32 %v5878, 18
      %v6093 = vadd.s32 %v5889, 18
      %v6094 = vadd.s32 %v5900, 18
      %v6095 = vadd.s32 %v5911, 18
      %v6096 = vadd.s32 %v5922, 18
      %v6097 = vadd.s32 %v5933, 18
      %v6098 = vadd.s32 %v5944, 18
      %v6099 = vadd.s32 %v5955, 18
      %v6100 = vsel %vm6028, %v6064, %v5570
      %v6101 = vsel %vm6029, %v6065, %v5581
      %v6102 = vsel %vm6030, %v6066, %v5592
      %v6103 = vsel %vm6031, %v6067, %v5603
      %v6104 = vsel %vm6032, %v6068, %v5614
      %v6105 = vsel %vm6033, %v6069, %v5625
      %v6106 = vsel %vm6034, %v6070, %v5636
      %v6107 = vsel %vm6035, %v6071, %v5647
      %v6108 = vsel %vm6036, %v6072, %v5658
      %v6109 = vsel %vm6037, %v6073, %v5669
      %v6110 = vsel %vm6038, %v6074, %v5680
      %v6111 = vsel %vm6039, %v6075, %v5691
      %v6112 = vsel %vm6040, %v6076, %v5702
      %v6113 = vsel %vm6041, %v6077, %v5713
      %v6114 = vsel %vm6042, %v6078, %v5724
      %v6115 = vsel %vm6043, %v6079, %v5735
      %v6116 = vsel %vm6044, %v6080, %v5746
      %v6117 = vsel %vm6045, %v6081, %v5757
      %v6118 = vsel %vm6046, %v6082, %v5768
      %v6119 = vsel %vm6047, %v6083, %v5779
      %v6120 = vsel %vm6048, %v6084, %v5790
      %v6121 = vsel %vm6049, %v6085, %v5801
      %v6122 = vsel %vm6050, %v6086, %v5812
      %v6123 = vsel %vm6051, %v6087, %v5823
      %v6124 = vsel %vm6052, %v6088, %v5834
      %v6125 = vsel %vm6053, %v6089, %v5845
      %v6126 = vsel %vm6054, %v6090, %v5856
      %v6127 = vsel %vm6055, %v6091, %v5867
      %v6128 = vsel %vm6056, %v6092, %v5878
      %v6129 = vsel %vm6057, %v6093, %v5889
      %v6130 = vsel %vm6058, %v6094, %v5900
      %v6131 = vsel %vm6059, %v6095, %v5911
      %v6132 = vsel %vm6060, %v6096, %v5922
      %v6133 = vsel %vm6061, %v6097, %v5933
      %v6134 = vsel %vm6062, %v6098, %v5944
      %v6135 = vsel %vm6063, %v6099, %v5955
      %vm6136 = vcmp.lt.s32.totalorder %v6100, 16
      %vm6137 = vcmp.lt.s32.totalorder %v6101, 16
      %vm6138 = vcmp.lt.s32.totalorder %v6102, 16
      %vm6139 = vcmp.lt.s32.totalorder %v6103, 16
      %vm6140 = vcmp.lt.s32.totalorder %v6104, 16
      %vm6141 = vcmp.lt.s32.totalorder %v6105, 16
      %vm6142 = vcmp.lt.s32.totalorder %v6106, 16
      %vm6143 = vcmp.lt.s32.totalorder %v6107, 16
      %vm6144 = vcmp.lt.s32.totalorder %v6108, 16
      %vm6145 = vcmp.lt.s32.totalorder %v6109, 16
      %vm6146 = vcmp.lt.s32.totalorder %v6110, 16
      %vm6147 = vcmp.lt.s32.totalorder %v6111, 16
      %vm6148 = vcmp.lt.s32.totalorder %v6112, 16
      %vm6149 = vcmp.lt.s32.totalorder %v6113, 16
      %vm6150 = vcmp.lt.s32.totalorder %v6114, 16
      %vm6151 = vcmp.lt.s32.totalorder %v6115, 16
      %vm6152 = vcmp.lt.s32.totalorder %v6116, 16
      %vm6153 = vcmp.lt.s32.totalorder %v6117, 16
      %vm6154 = vcmp.lt.s32.totalorder %v6118, 16
      %vm6155 = vcmp.lt.s32.totalorder %v6119, 16
      %vm6156 = vcmp.lt.s32.totalorder %v6120, 16
      %vm6157 = vcmp.lt.s32.totalorder %v6121, 16
      %vm6158 = vcmp.lt.s32.totalorder %v6122, 16
      %vm6159 = vcmp.lt.s32.totalorder %v6123, 16
      %vm6160 = vcmp.lt.s32.totalorder %v6124, 16
      %vm6161 = vcmp.lt.s32.totalorder %v6125, 16
      %vm6162 = vcmp.lt.s32.totalorder %v6126, 16
      %vm6163 = vcmp.lt.s32.totalorder %v6127, 16
      %vm6164 = vcmp.lt.s32.totalorder %v6128, 16
      %vm6165 = vcmp.lt.s32.totalorder %v6129, 16
      %vm6166 = vcmp.lt.s32.totalorder %v6130, 16
      %vm6167 = vcmp.lt.s32.totalorder %v6131, 16
      %vm6168 = vcmp.lt.s32.totalorder %v6132, 16
      %vm6169 = vcmp.lt.s32.totalorder %v6133, 16
      %vm6170 = vcmp.lt.s32.totalorder %v6134, 16
      %vm6171 = vcmp.lt.s32.totalorder %v6135, 16
      %v6172 = vsel %vm6136, 1, 0
      %v6173 = vsel %vm6137, 1, 0
      %v6174 = vsel %vm6138, 1, 0
      %v6175 = vsel %vm6139, 1, 0
      %v6176 = vsel %vm6140, 1, 0
      %v6177 = vsel %vm6141, 1, 0
      %v6178 = vsel %vm6142, 1, 0
      %v6179 = vsel %vm6143, 1, 0
      %v6180 = vsel %vm6144, 1, 0
      %v6181 = vsel %vm6145, 1, 0
      %v6182 = vsel %vm6146, 1, 0
      %v6183 = vsel %vm6147, 1, 0
      %v6184 = vsel %vm6148, 1, 0
      %v6185 = vsel %vm6149, 1, 0
      %v6186 = vsel %vm6150, 1, 0
      %v6187 = vsel %vm6151, 1, 0
      %v6188 = vsel %vm6152, 1, 0
      %v6189 = vsel %vm6153, 1, 0
      %v6190 = vsel %vm6154, 1, 0
      %v6191 = vsel %vm6155, 1, 0
      %v6192 = vsel %vm6156, 1, 0
      %v6193 = vsel %vm6157, 1, 0
      %v6194 = vsel %vm6158, 1, 0
      %v6195 = vsel %vm6159, 1, 0
      %v6196 = vsel %vm6160, 1, 0
      %v6197 = vsel %vm6161, 1, 0
      %v6198 = vsel %vm6162, 1, 0
      %v6199 = vsel %vm6163, 1, 0
      %v6200 = vsel %vm6164, 1, 0
      %v6201 = vsel %vm6165, 1, 0
      %v6202 = vsel %vm6166, 1, 0
      %v6203 = vsel %vm6167, 1, 0
      %v6204 = vsel %vm6168, 1, 0
      %v6205 = vsel %vm6169, 1, 0
      %v6206 = vsel %vm6170, 1, 0
      %v6207 = vsel %vm6171, 1, 0
      %vm6208 = vcmp.eq.s32.totalorder %v6172, 1
      %vm6209 = vcmp.eq.s32.totalorder %v6173, 1
      %vm6210 = vcmp.eq.s32.totalorder %v6174, 1
      %vm6211 = vcmp.eq.s32.totalorder %v6175, 1
      %vm6212 = vcmp.eq.s32.totalorder %v6176, 1
      %vm6213 = vcmp.eq.s32.totalorder %v6177, 1
      %vm6214 = vcmp.eq.s32.totalorder %v6178, 1
      %vm6215 = vcmp.eq.s32.totalorder %v6179, 1
      %vm6216 = vcmp.eq.s32.totalorder %v6180, 1
      %vm6217 = vcmp.eq.s32.totalorder %v6181, 1
      %vm6218 = vcmp.eq.s32.totalorder %v6182, 1
      %vm6219 = vcmp.eq.s32.totalorder %v6183, 1
      %vm6220 = vcmp.eq.s32.totalorder %v6184, 1
      %vm6221 = vcmp.eq.s32.totalorder %v6185, 1
      %vm6222 = vcmp.eq.s32.totalorder %v6186, 1
      %vm6223 = vcmp.eq.s32.totalorder %v6187, 1
      %vm6224 = vcmp.eq.s32.totalorder %v6188, 1
      %vm6225 = vcmp.eq.s32.totalorder %v6189, 1
      %vm6226 = vcmp.eq.s32.totalorder %v6190, 1
      %vm6227 = vcmp.eq.s32.totalorder %v6191, 1
      %vm6228 = vcmp.eq.s32.totalorder %v6192, 1
      %vm6229 = vcmp.eq.s32.totalorder %v6193, 1
      %vm6230 = vcmp.eq.s32.totalorder %v6194, 1
      %vm6231 = vcmp.eq.s32.totalorder %v6195, 1
      %vm6232 = vcmp.eq.s32.totalorder %v6196, 1
      %vm6233 = vcmp.eq.s32.totalorder %v6197, 1
      %vm6234 = vcmp.eq.s32.totalorder %v6198, 1
      %vm6235 = vcmp.eq.s32.totalorder %v6199, 1
      %vm6236 = vcmp.eq.s32.totalorder %v6200, 1
      %vm6237 = vcmp.eq.s32.totalorder %v6201, 1
      %vm6238 = vcmp.eq.s32.totalorder %v6202, 1
      %vm6239 = vcmp.eq.s32.totalorder %v6203, 1
      %vm6240 = vcmp.eq.s32.totalorder %v6204, 1
      %vm6241 = vcmp.eq.s32.totalorder %v6205, 1
      %vm6242 = vcmp.eq.s32.totalorder %v6206, 1
      %vm6243 = vcmp.eq.s32.totalorder %v6207, 1
      %v6244 = vsel %vm6208, %v5451, 0.0
      %v6245 = vsel %vm6208, %v5452, 0.0
      %v6246 = vsel %vm6209, %v5453, 0.0
      %v6247 = vsel %vm6209, %v5454, 0.0
      %v6248 = vsel %vm6210, %v5455, 0.0
      %v6249 = vsel %vm6210, %v5456, 0.0
      %v6250 = vsel %vm6211, %v5457, 0.0
      %v6251 = vsel %vm6211, %v5458, 0.0
      %v6252 = vsel %vm6212, %v5459, 0.0
      %v6253 = vsel %vm6212, %v5460, 0.0
      %v6254 = vsel %vm6213, %v5461, 0.0
      %v6255 = vsel %vm6213, %v5462, 0.0
      %v6256 = vsel %vm6214, %v5463, 0.0
      %v6257 = vsel %vm6214, %v5464, 0.0
      %v6258 = vsel %vm6215, %v5465, 0.0
      %v6259 = vsel %vm6215, %v5466, 0.0
      %v6260 = vsel %vm6216, %v5467, 0.0
      %v6261 = vsel %vm6216, %v5468, 0.0
      %v6262 = vsel %vm6217, %v5469, 0.0
      %v6263 = vsel %vm6217, %v5470, 0.0
      %v6264 = vsel %vm6218, %v5471, 0.0
      %v6265 = vsel %vm6218, %v5472, 0.0
      %v6266 = vsel %vm6219, %v5473, 0.0
      %v6267 = vsel %vm6219, %v5474, 0.0
      %v6268 = vsel %vm6220, %v5475, 0.0
      %v6269 = vsel %vm6220, %v5476, 0.0
      %v6270 = vsel %vm6221, %v5477, 0.0
      %v6271 = vsel %vm6221, %v5478, 0.0
      %v6272 = vsel %vm6222, %v5479, 0.0
      %v6273 = vsel %vm6222, %v5480, 0.0
      %v6274 = vsel %vm6223, %v5481, 0.0
      %v6275 = vsel %vm6223, %v5482, 0.0
      %v6276 = vsel %vm6224, %v5483, 0.0
      %v6277 = vsel %vm6224, %v5484, 0.0
      %v6278 = vsel %vm6225, %v5485, 0.0
      %v6279 = vsel %vm6225, %v5486, 0.0
      %v6280 = vsel %vm6226, %v5487, 0.0
      %v6281 = vsel %vm6226, %v5488, 0.0
      %v6282 = vsel %vm6227, %v5489, 0.0
      %v6283 = vsel %vm6227, %v5490, 0.0
      %v6284 = vsel %vm6228, %v5491, 0.0
      %v6285 = vsel %vm6228, %v5492, 0.0
      %v6286 = vsel %vm6229, %v5493, 0.0
      %v6287 = vsel %vm6229, %v5494, 0.0
      %v6288 = vsel %vm6230, %v5495, 0.0
      %v6289 = vsel %vm6230, %v5496, 0.0
      %v6290 = vsel %vm6231, %v5497, 0.0
      %v6291 = vsel %vm6231, %v5498, 0.0
      %v6292 = vsel %vm6232, %v5499, 0.0
      %v6293 = vsel %vm6232, %v5500, 0.0
      %v6294 = vsel %vm6233, %v5501, 0.0
      %v6295 = vsel %vm6233, %v5502, 0.0
      %v6296 = vsel %vm6234, %v5503, 0.0
      %v6297 = vsel %vm6234, %v5504, 0.0
      %v6298 = vsel %vm6235, %v5505, 0.0
      %v6299 = vsel %vm6235, %v5506, 0.0
      %v6300 = vsel %vm6236, %v5507, 0.0
      %v6301 = vsel %vm6236, %v5508, 0.0
      %v6302 = vsel %vm6237, %v5509, 0.0
      %v6303 = vsel %vm6237, %v5510, 0.0
      %v6304 = vsel %vm6238, %v5511, 0.0
      %v6305 = vsel %vm6238, %v5512, 0.0
      %v6306 = vsel %vm6239, %v5513, 0.0
      %v6307 = vsel %vm6239, %v5514, 0.0
      %v6308 = vsel %vm6240, %v5515, 0.0
      %v6309 = vsel %vm6240, %v5516, 0.0
      %v6310 = vsel %vm6241, %v5517, 0.0
      %v6311 = vsel %vm6241, %v5518, 0.0
      %v6312 = vsel %vm6242, %v5519, 0.0
      %v6313 = vsel %vm6242, %v5520, 0.0
      %v6314 = vsel %vm6243, %v5521, 0.0
      %v6315 = vsel %vm6243, %v5522, 0.0
      %v6316 = vadd.f32 %v6244, %v6246
      %v6317 = vadd.f32 %v6316, %v6248
      %v6318 = vadd.f32 %v6317, %v6250
      %v6319 = vadd.f32 %v6318, %v6252
      %v6320 = vadd.f32 %v6319, %v6254
      %v6321 = vadd.f32 %v6320, %v6256
      %v6322 = vadd.f32 %v6321, %v6258
      %v6323 = vadd.f32 %v6322, %v6260
      %v6324 = vadd.f32 %v6323, %v6262
      %v6325 = vadd.f32 %v6324, %v6264
      %v6326 = vadd.f32 %v6325, %v6266
      %v6327 = vadd.f32 %v6326, %v6268
      %v6328 = vadd.f32 %v6327, %v6270
      %v6329 = vadd.f32 %v6328, %v6272
      %v6330 = vadd.f32 %v6329, %v6274
      %v6331 = vadd.f32 %v6330, %v6276
      %v6332 = vadd.f32 %v6331, %v6278
      %v6333 = vadd.f32 %v6332, %v6280
      %v6334 = vadd.f32 %v6333, %v6282
      %v6335 = vadd.f32 %v6334, %v6284
      %v6336 = vadd.f32 %v6335, %v6286
      %v6337 = vadd.f32 %v6336, %v6288
      %v6338 = vadd.f32 %v6337, %v6290
      %v6339 = vadd.f32 %v6338, %v6292
      %v6340 = vadd.f32 %v6339, %v6294
      %v6341 = vadd.f32 %v6340, %v6296
      %v6342 = vadd.f32 %v6341, %v6298
      %v6343 = vadd.f32 %v6342, %v6300
      %v6344 = vadd.f32 %v6343, %v6302
      %v6345 = vadd.f32 %v6344, %v6304
      %v6346 = vadd.f32 %v6345, %v6306
      %v6347 = vadd.f32 %v6346, %v6308
      %v6348 = vadd.f32 %v6347, %v6310
      %v6349 = vadd.f32 %v6348, %v6312
      %v6350 = vadd.f32 %v6349, %v6314
      %v6351 = vrot.slane %v6350, 4
      %v6352 = vadd.f32 %v6350, %v6351
      %v6353 = vrot.slane %v6352, 2
      %v6354 = vadd.f32 %v6352, %v6353
      %v6355 = vrot.slane %v6354, 1
      %v6356 = vadd.f32 %v6354, %v6355
      %v6357 = vadd.f32 %v6245, %v6247
      %v6358 = vadd.f32 %v6357, %v6249
      %v6359 = vadd.f32 %v6358, %v6251
      %v6360 = vadd.f32 %v6359, %v6253
      %v6361 = vadd.f32 %v6360, %v6255
      %v6362 = vadd.f32 %v6361, %v6257
      %v6363 = vadd.f32 %v6362, %v6259
      %v6364 = vadd.f32 %v6363, %v6261
      %v6365 = vadd.f32 %v6364, %v6263
      %v6366 = vadd.f32 %v6365, %v6265
      %v6367 = vadd.f32 %v6366, %v6267
      %v6368 = vadd.f32 %v6367, %v6269
      %v6369 = vadd.f32 %v6368, %v6271
      %v6370 = vadd.f32 %v6369, %v6273
      %v6371 = vadd.f32 %v6370, %v6275
      %v6372 = vadd.f32 %v6371, %v6277
      %v6373 = vadd.f32 %v6372, %v6279
      %v6374 = vadd.f32 %v6373, %v6281
      %v6375 = vadd.f32 %v6374, %v6283
      %v6376 = vadd.f32 %v6375, %v6285
      %v6377 = vadd.f32 %v6376, %v6287
      %v6378 = vadd.f32 %v6377, %v6289
      %v6379 = vadd.f32 %v6378, %v6291
      %v6380 = vadd.f32 %v6379, %v6293
      %v6381 = vadd.f32 %v6380, %v6295
      %v6382 = vadd.f32 %v6381, %v6297
      %v6383 = vadd.f32 %v6382, %v6299
      %v6384 = vadd.f32 %v6383, %v6301
      %v6385 = vadd.f32 %v6384, %v6303
      %v6386 = vadd.f32 %v6385, %v6305
      %v6387 = vadd.f32 %v6386, %v6307
      %v6388 = vadd.f32 %v6387, %v6309
      %v6389 = vadd.f32 %v6388, %v6311
      %v6390 = vadd.f32 %v6389, %v6313
      %v6391 = vadd.f32 %v6390, %v6315
      %v6392 = vrot.slane %v6391, 4
      %v6393 = vadd.f32 %v6391, %v6392
      %v6394 = vrot.slane %v6393, 2
      %v6395 = vadd.f32 %v6393, %v6394
      %v6396 = vrot.slane %v6395, 1
      %v6397 = vadd.f32 %v6395, %v6396
      %v6398 = vmul.f32 %v6356, 0.00390625
      %v6399 = vmul.f32 %v6397, 0.00390625
      %v6402 = vcombine.low %v6398, %v6399
      %v6404 = vunpack.c.l.s4 1966171168
      %v6405 = vunpack.c.0.s8 %v6404
      %v6406 = vlaneseq
      %v6407 = vshrl.u32 %v6406, 7
      %v6408 = vsub.s32 %v6405, %v6407
      %v6409 = vrot.slane %v6402, %v6408
      %v6411 = vunpack.c.l.s4 1966171168
      %v6412 = vunpack.c.0.s8 %v6411
      %v6413 = vlaneseq
      %v6414 = vshrl.u32 %v6413, 7
      %v6415 = vsub.s32 %v6412, %v6414
      %v6416 = vrot.slane %v6409, %v6415
      %v6418 = vlaneseq
      %vm6419 = vcmp.ge.s32.totalorder %v6418, 0
      %vm6420 = vcmp.lt.s32.totalorder %v6418, 256
      %vm6421 = vmand %vm6419, %vm6420
      %6422 = vst.msk [vmem:[%s168] sm:$0x3] %vm6421, %v6416
      %p6423 = scmp.lt.s32.totalorder %s14, 7
      %s6424 = scalar_select %p6423, %s14, 7
      %s6425 = smul.addr %s6424, 2
      %s6426 = scalar_lea.vmem %s3, %s6425
      // Predicated region
      $region33: #{moco_forward.11} parent=31 // pred_check
        %p6427 = pneg %p100
      $region34: #{moco_forward.11} parent=31 // pred_check_branch
        %6429 = sbr.rel (%p6427) target = $region36
      $region35: #{moco_forward.11} parent=31 // pred_region
        _
      $region36: #{moco_forward.11} parent=31 // pred_fallthru
        _
    $region32: #{moco_forward.11} parent=5 // pred_fallthru
      _
    %p6430 = scmp.le.s32.totalorder 2, %s9
    // Predicated region
    $region37: #{moco_forward.11} parent=5 // pred_check
      %p6431 = pneg %p6430
    $region38: #{moco_forward.11} parent=5 // pred_check_branch
      %6433 = sbr.rel (%p6431) target = $region40
    $region39: #{moco_forward.11} parent=5 // pred_region
      %s6434 = ssub.s32 %s9, 2
      // Predicated region
      $region41: #{moco_forward.11} parent=39 // pred_check
        %p6435 = pneg %p106
      $region42: #{moco_forward.11} parent=39 // pred_check_branch
        %6437 = sbr.rel (%p6435) target = $region44
      $region43: #{moco_forward.11} parent=39 // pred_region
        %p6438 = scmp.lt.s32.totalorder %s15, 7
        %s6439 = scalar_select %p6438, %s15, 7
        %s6440 = smul.addr %s6439, 2
        %s6441 = scalar_lea.vmem %s3, %s6440
      $region44: #{moco_forward.11} parent=39 // pred_fallthru
        _
    $region40: #{moco_forward.11} parent=5 // pred_fallthru
      _
  $region6: #{moco_forward.11} parent=0 // loop_footer
    %s13 = sadd.s32 1, %s9
  $region7: #{moco_forward.11} parent=0 // loop_footer_branch
    %8 = sbr.rel target = $region3
  $region8: #{moco_forward.11} parent=0 // loop_exit
    _

</llo_original>
